<compile_context>
chip_gen: v6e
topology: v6e:2x2x1
jax: 0.10.0
libtpu: 0.0.40
codegen_flags: <defaults>
</compile_context>

<pallas_src>
import math

import jax
import jax.numpy as jnp
from jax.experimental import pallas as pl
from jax.experimental.pallas import tpu as pltpu

# ----------------------------- configuration -------------------------------
B         = 2
SEQ_LEN   = 16
LABEL_LEN = 8
PRED_LEN  = 8
DEC_LEN   = LABEL_LEN + PRED_LEN
FEAT_DIM  = 4      # enc_in = dec_in = c_out
MARK_DIM  = 4      # timeF embedding, freq='h'
D_MODEL   = 32
N_HEADS   = 4
D_HEAD    = D_MODEL // N_HEADS
D_FF      = 64
E_LAYERS  = 2
D_LAYERS  = 1
HID_DIM   = 256    # final nn.Linear(feat_dim, hid_dim)
FEAT_DIM1 = 32     # linear_emb (unused in forward, kept for parity)


# ----------------------- small in-kernel helpers ----------------------------
def _dot(a, b):
    return jnp.dot(a, b, preferred_element_type=jnp.float32)


def _gelu(x):
    # tanh-approximate GELU (see TODO at top of file).
    c = math.sqrt(2.0 / math.pi)
    return 0.5 * x * (1.0 + jnp.tanh(c * (x + 0.044715 * x * x * x)))


# ----------------------------- the fused kernel -----------------------------
def _make_kernel(index):
    scale = 1.0 / math.sqrt(D_HEAD)

    def kernel(x_ref, xm_ref, xd_ref, xdm_ref, blob_ref, out_ref, attn_sc):

        def W(name):
            r0, nr, nc = index[name]
            return blob_ref[r0:r0 + nr, 0:nc]

        def layer_norm(x, pfx):
            mu = jnp.mean(x, axis=-1, keepdims=True)
            d = x - mu
            var = jnp.mean(d * d, axis=-1, keepdims=True)
            return d * jax.lax.rsqrt(var + 1e-5) * W(pfx + "_g") + W(pfx + "_b")

        def softmax_rows(s):
            m = jnp.max(s, axis=-1, keepdims=True)
            p = jnp.exp(s - m)
            return p * pl.reciprocal(jnp.sum(p, axis=-1, keepdims=True), approx=True)

        def mha(q, k, v, bias):
            # All batches processed together per head; off-batch (and causal)
            # blocks are masked by the precomputed additive `bias`.
            for h in range(N_HEADS):
                sl = slice(h * D_HEAD, (h + 1) * D_HEAD)
                s = jax.lax.dot_general(q[:, sl], k[:, sl],
                                        (((1,), (1,)), ((), ())),
                                        preferred_element_type=jnp.float32) * scale + bias
                attn_sc[:, sl] = _dot(softmax_rows(s), v[:, sl])
            return attn_sc[...]

        def self_attention(x, pfx, bias):
            qkv = _dot(x, W(pfx + "_qkv_W")) + W(pfx + "_qkv_b")
            o = mha(qkv[:, 0:D_MODEL],
                    qkv[:, D_MODEL:2 * D_MODEL],
                    qkv[:, 2 * D_MODEL:3 * D_MODEL], bias)
            return _dot(o, W(pfx + "_o_W")) + W(pfx + "_o_b")

        def cross_attention(xq, xkv, pfx, bias):
            nq = xq.shape[0]
            stacked = jnp.concatenate([xq, xkv], axis=0)            # [64, D_MODEL]
            qkv = _dot(stacked, W(pfx + "_qkv_W")) + W(pfx + "_qkv_b")
            o = mha(qkv[0:nq, 0:D_MODEL],
                    qkv[nq:, D_MODEL:2 * D_MODEL],
                    qkv[nq:, 2 * D_MODEL:3 * D_MODEL], bias)
            return _dot(o, W(pfx + "_o_W")) + W(pfx + "_o_b")

        def ffn(x, pfx):
            y = _gelu(_dot(x, W(pfx + "_c1_W")) + W(pfx + "_c1_b"))
            return _dot(y, W(pfx + "_c2_W")) + W(pfx + "_c2_b")

        def embed(x, xm, wname, pename, L):
            # Conv1d(c_in, d_model, k=3, circular, no bias) + TimeFeature linear
            # + positional embedding, all folded into ONE matmul.
            N = B * L
            prev_g = pltpu.roll(x, 1, 0)
            prev_a = pltpu.roll(x, (1 - L) % N, 0)
            next_g = pltpu.roll(x, N - 1, 0)
            next_a = pltpu.roll(x, L - 1, 0)
            row = jax.lax.broadcasted_iota(jnp.int32, (N, 1), 0)
            pos = row % L
            prev = jnp.where(pos == 0, prev_a, prev_g)       # fix per-batch circular wrap
            nxt = jnp.where(pos == L - 1, next_a, next_g)
            feat = jnp.concatenate([prev, x, nxt, xm], axis=-1)      # [N, 3*C + M]
            return _dot(feat, W(wname)) + W(pename)

        mask_enc = W("mask_enc")
        mask_dec = W("mask_dec")
        mask_cross = W("mask_cross")

        # ---------------- encoder ----------------
        enc = embed(x_ref[...], xm_ref[...], "emb_enc_W", "pe_enc", SEQ_LEN)
        for i in range(E_LAYERS):
            pfx = f"enc{i}"
            enc = enc + self_attention(enc, pfx, mask_enc)
            enc = layer_norm(enc, pfx + "_n1")
            enc = layer_norm(enc + ffn(enc, pfx), pfx + "_n2")
        enc = layer_norm(enc, "enc_norm")

        # ---------------- decoder ----------------
        dec = embed(xd_ref[...], xdm_ref[...], "emb_dec_W", "pe_dec", DEC_LEN)
        for i in range(D_LAYERS):
            pfx = f"dec{i}"
            dec = dec + self_attention(dec, pfx + "_s", mask_dec)
            dec = layer_norm(dec, pfx + "_n1")
            dec = dec + cross_attention(dec, enc, pfx + "_x", mask_cross)
            dec = layer_norm(dec, pfx + "_n2")
            dec = layer_norm(dec + ffn(dec, pfx), pfx + "_n3")
        dec = layer_norm(dec, "dec_norm")

        # fused projection(d_model->feat_dim) . linear(feat_dim->hid_dim):
        # slice the last PRED_LEN rows of each batch, then ONE [16,32]x[32,256].
        pred = jnp.concatenate(
            [dec[b * DEC_LEN + LABEL_LEN:(b + 1) * DEC_LEN, :] for b in range(B)],
            axis=0)                                                 # [B*PRED_LEN, D_MODEL]
        out_ref[...] = (_dot(pred, W("out_W")) + W("out_b")).astype(out_ref.dtype)

    return kernel


# ------------------------ host-side parameter packing ------------------------
def _positional_embedding(L, d_model):
    position = jnp.arange(L, dtype=jnp.float32)[:, None]
    div_term = jnp.exp(jnp.arange(0, d_model, 2, dtype=jnp.float32)
                       * -(math.log(10000.0) / d_model))
    pe = jnp.zeros((L, d_model), jnp.float32)
    pe = pe.at[:, 0::2].set(jnp.sin(position * div_term))
    pe = pe.at[:, 1::2].set(jnp.cos(position * div_term))
    return pe


def _block_mask(Lq, Lk, causal=False):
    """Additive attention bias: 0 inside a batch's block, -1e30 outside."""
    qi = jnp.arange(B * Lq)
    ki = jnp.arange(B * Lk)
    valid = (qi[:, None] // Lq) == (ki[None, :] // Lk)
    if causal:
        valid = valid & ((ki[None, :] % Lk) <= (qi[:, None] % Lq))
    return jnp.where(valid, 0.0, -1e30).astype(jnp.float32)


def _pack_params(params):
    """Pack every weight/bias/constant into one lane-padded [N, 256] f32 blob."""
    mp = params["model"]
    segs = {}   # name -> 2D f32 array (insertion-ordered)

    def add(name, arr):
        arr = jnp.asarray(arr, jnp.float32)
        if arr.ndim == 1:
            arr = arr.reshape(1, -1)
        segs[name] = arr

    def emb_weight(p):
        w = p["token_W"]        # [D_MODEL, FEAT_DIM, 3]  (Conv1d weight)
        return jnp.concatenate([w[:, :, 0].T, w[:, :, 1].T, w[:, :, 2].T,
                                p["timeF_W"]], axis=0)    # [3*C + M, D_MODEL]

    add("emb_enc_W", emb_weight(mp["enc_emb"]))
    add("emb_dec_W", emb_weight(mp["dec_emb"]))
    add("pe_enc", jnp.tile(_positional_embedding(SEQ_LEN, D_MODEL), (B, 1)))
    add("pe_dec", jnp.tile(_positional_embedding(DEC_LEN, D_MODEL), (B, 1)))
    add("mask_enc", _block_mask(SEQ_LEN, SEQ_LEN))
    add("mask_dec", _block_mask(DEC_LEN, DEC_LEN, causal=True))
    add("mask_cross", _block_mask(DEC_LEN, SEQ_LEN))

    def add_attn(pfx, p):
        add(pfx + "_qkv_W", jnp.concatenate([p["q"]["W"], p["k"]["W"], p["v"]["W"]], axis=1))
        add(pfx + "_qkv_b", jnp.concatenate([p["q"]["b"], p["k"]["b"], p["v"]["b"]]))
        add(pfx + "_o_W", p["o"]["W"])
        add(pfx + "_o_b", p["o"]["b"])

    def add_ffn_norms(pfx, lp, n_norms):
        add(pfx + "_c1_W", lp["conv1"]["W"][:, :, 0].T)
        add(pfx + "_c1_b", lp["conv1"]["b"])
        add(pfx + "_c2_W", lp["conv2"]["W"][:, :, 0].T)
        add(pfx + "_c2_b", lp["conv2"]["b"])
        for i in range(1, n_norms + 1):
            add(pfx + f"_n{i}_g", lp[f"norm{i}"]["g"])
            add(pfx + f"_n{i}_b", lp[f"norm{i}"]["b"])

    for i, lp in enumerate(mp["enc_layers"]):
        add_attn(f"enc{i}", lp["attn"])
        add_ffn_norms(f"enc{i}", lp, 2)
    add("enc_norm_g", mp["enc_norm"]["g"])
    add("enc_norm_b", mp["enc_norm"]["b"])

    for i, lp in enumerate(mp["dec_layers"]):
        add_attn(f"dec{i}_s", lp["self_attn"])
        add_attn(f"dec{i}_x", lp["cross_attn"])
        add_ffn_norms(f"dec{i}", lp, 3)
    add("dec_norm_g", mp["dec_norm"]["g"])
    add("dec_norm_b", mp["dec_norm"]["b"])

    # Fuse proj (d_model -> feat_dim) with the final linear (feat_dim -> hid_dim).
    w_fused = mp["proj"]["W"] @ params["linear"]["W"]                                 # [32, 256]
    b_fused = mp["proj"]["b"][None, :] @ params["linear"]["W"] + params["linear"]["b"][None, :]
    add("out_W", w_fused)
    add("out_b", b_fused)

    # Flatten into one [rows, lanes] blob; every segment 8-row / lane padded.
    lanes = max(a.shape[1] for a in segs.values())
    lanes = ((lanes + 127) // 128) * 128
    chunks, index, r = [], {}, 0
    for name, a in segs.items():
        nr, nc = a.shape
        pad_r = (-nr) % 8
        index[name] = (r, nr, nc)
        chunks.append(jnp.pad(a, ((0, pad_r), (0, lanes - nc))))
        r += nr + pad_r
    blob = jnp.concatenate(chunks, axis=0)
    return blob, index


def build_forward(params):
    blob, index = _pack_params(params)

    cost = pl.CostEstimate(
        flops=3_000_000,
        transcendentals=30_000,
        bytes_accessed=int(blob.size * 4 + 4 * (B * SEQ_LEN * 8) * 4
                           + B * PRED_LEN * HID_DIM * 4))

    # Single pallas_call: no grid, whole-array blocks -> everything lives in VMEM.
    call = pl.pallas_call(
        _make_kernel(index),
        out_shape=jax.ShapeDtypeStruct((B * PRED_LEN, HID_DIM), jnp.float32),
        scratch_shapes=[pltpu.VMEM((B * SEQ_LEN, D_MODEL), jnp.float32)],
        cost_estimate=cost,
    )

    @jax.jit
    def forward(x, x_mark, targ, targ_mark):
        out2d = call(
            x.reshape(B * SEQ_LEN, FEAT_DIM).astype(jnp.float32),
            x_mark.reshape(B * SEQ_LEN, MARK_DIM).astype(jnp.float32),
            targ.reshape(B * DEC_LEN, FEAT_DIM).astype(jnp.float32),
            targ_mark.reshape(B * DEC_LEN, MARK_DIM).astype(jnp.float32),
            blob)
        return out2d.reshape(B, PRED_LEN, HID_DIM)

    return forward


# ----------------------------- parameter init -------------------------------
def _uniform(key, shape, bound):
    return jax.random.uniform(key, shape, jnp.float32, -bound, bound)


def init_linear(key, in_f, out_f, bias=True):
    kw, kb = jax.random.split(key)
    bound = 1.0 / math.sqrt(in_f)
    return {"W": _uniform(kw, (in_f, out_f), bound),
            "b": _uniform(kb, (out_f,), bound) if bias else None}


def init_conv1d(key, in_c, out_c, k, bias=True):
    kw, kb = jax.random.split(key)
    bound = 1.0 / math.sqrt(in_c * k)
    return {"W": _uniform(kw, (out_c, in_c, k), bound),
            "b": _uniform(kb, (out_c,), bound) if bias else None}


def init_norm(d):
    return {"g": jnp.ones((d,), jnp.float32), "b": jnp.zeros((d,), jnp.float32)}


def init_attn(key):
    k1, k2, k3, k4 = jax.random.split(key, 4)
    return {"q": init_linear(k1, D_MODEL, D_MODEL),
            "k": init_linear(k2, D_MODEL, D_MODEL),
            "v": init_linear(k3, D_MODEL, D_MODEL),
            "o": init_linear(k4, D_MODEL, D_MODEL)}


def init_embedding(key):
    k1, k2 = jax.random.split(key)
    bound = 1.0 / math.sqrt(FEAT_DIM * 3)
    return {"token_W": _uniform(k1, (D_MODEL, FEAT_DIM, 3), bound),   # Conv1d, no bias
            "timeF_W": init_linear(k2, MARK_DIM, D_MODEL, bias=False)["W"]}


def init_params(key):
    keys = iter(jax.random.split(key, 128))
    nk = lambda: next(keys)

    enc_layers = []
    for _ in range(E_LAYERS):
        enc_layers.append({"attn": init_attn(nk()),
                           "conv1": init_conv1d(nk(), D_MODEL, D_FF, 1),
                           "conv2": init_conv1d(nk(), D_FF, D_MODEL, 1),
                           "norm1": init_norm(D_MODEL),
                           "norm2": init_norm(D_MODEL)})
    dec_layers = []
    for _ in range(D_LAYERS):
        dec_layers.append({"self_attn": init_attn(nk()),
                           "cross_attn": init_attn(nk()),
                           "conv1": init_conv1d(nk(), D_MODEL, D_FF, 1),
                           "conv2": init_conv1d(nk(), D_FF, D_MODEL, 1),
                           "norm1": init_norm(D_MODEL),
                           "norm2": init_norm(D_MODEL),
                           "norm3": init_norm(D_MODEL)})
    model = {"enc_emb": init_embedding(nk()),
             "dec_emb": init_embedding(nk()),
             "enc_layers": enc_layers,
             "enc_norm": init_norm(D_MODEL),
             "dec_layers": dec_layers,
             "dec_norm": init_norm(D_MODEL),
             "proj": init_linear(nk(), D_MODEL, FEAT_DIM)}
    return {"model": model,
            "linear": init_linear(nk(), FEAT_DIM, HID_DIM),
            "linear_emb": init_linear(nk(), FEAT_DIM, FEAT_DIM1)}  # unused in forward


# ----------------------------- main ------------------------------------------
if __name__ == "__main__":
    key = jax.random.PRNGKey(0)
    kx, kxm, kt, ktm = jax.random.split(key, 4)
    x         = jax.random.normal(kx,  (B, SEQ_LEN, FEAT_DIM), jnp.float32)
    x_mark    = jax.random.normal(kxm, (B, SEQ_LEN, MARK_DIM), jnp.float32)
    targ      = jax.random.normal(kt,  (B, DEC_LEN, FEAT_DIM), jnp.float32)
    targ_mark = jax.random.normal(ktm, (B, DEC_LEN, MARK_DIM), jnp.float32)

    params = init_params(jax.random.PRNGKey(42))
    fwd = build_forward(params)
    out = fwd(x, x_mark, targ, targ_mark)
    jax.block_until_ready(out)
    assert out.shape == (B, PRED_LEN, HID_DIM), out.shape
    print("KERNEL_OK")
</pallas_src>

<mosaic_0001>
module attributes {stable_mosaic.version = 11 : i64} {
  func.func @kernel(%arg0: memref<32x4xf32, #tpu.memory_space<vmem>>, %arg1: memref<32x4xf32, #tpu.memory_space<vmem>>, %arg2: memref<32x4xf32, #tpu.memory_space<vmem>>, %arg3: memref<32x4xf32, #tpu.memory_space<vmem>>, %arg4: memref<1032x256xf32, #tpu.memory_space<vmem>>, %arg5: memref<16x256xf32, #tpu.memory_space<vmem>>, %arg6: memref<32x32xf32, #tpu.memory_space<vmem>>) attributes {dimension_semantics = [], scalar_prefetch = 0 : i64, scratch_operands = 1 : i64, tpu.core_type = #tpu.core_type<tc>} {
    %c96 = arith.constant 96 : index
    %c0 = arith.constant 0 : index
    %0 = vector.load %arg4[%c96, %c0] : memref<1032x256xf32, #tpu.memory_space<vmem>>, vector<32x32xf32>
    %c128 = arith.constant 128 : index
    %c0_0 = arith.constant 0 : index
    %1 = vector.load %arg4[%c128, %c0_0] : memref<1032x256xf32, #tpu.memory_space<vmem>>, vector<32x32xf32>
    %c160 = arith.constant 160 : index
    %c0_1 = arith.constant 0 : index
    %2 = vector.load %arg4[%c160, %c0_1] : memref<1032x256xf32, #tpu.memory_space<vmem>>, vector<32x32xf32>
    %c0_2 = arith.constant 0 : index
    %c0_3 = arith.constant 0 : index
    %3 = vector.load %arg0[%c0_2, %c0_3] : memref<32x4xf32, #tpu.memory_space<vmem>>, vector<32x4xf32>
    %c0_4 = arith.constant 0 : index
    %c0_5 = arith.constant 0 : index
    %4 = vector.load %arg1[%c0_4, %c0_5] : memref<32x4xf32, #tpu.memory_space<vmem>>, vector<32x4xf32>
    %c1_i32 = arith.constant 1 : i32
    %5 = tpu.dynamic_rotate %3 by %c1_i32 dim 0 : vector<32x4xf32>, i32 -> vector<32x4xf32>
    %c17_i32 = arith.constant 17 : i32
    %6 = tpu.dynamic_rotate %3 by %c17_i32 dim 0 : vector<32x4xf32>, i32 -> vector<32x4xf32>
    %c31_i32 = arith.constant 31 : i32
    %7 = tpu.dynamic_rotate %3 by %c31_i32 dim 0 : vector<32x4xf32>, i32 -> vector<32x4xf32>
    %c15_i32 = arith.constant 15 : i32
    %8 = tpu.dynamic_rotate %3 by %c15_i32 dim 0 : vector<32x4xf32>, i32 -> vector<32x4xf32>
    %9 = tpu.iota {dimensions = array<i32: 0>} : vector<32x1xi32>
    %c16_i32 = arith.constant 16 : i32
    %c0_i32 = arith.constant 0 : i32
    %10 = arith.cmpi eq, %c16_i32, %c0_i32 : i32
    %c1_i32_6 = arith.constant 1 : i32
    %11 = arith.select %10, %c1_i32_6, %c16_i32 : i32
    %12 = vector.broadcast %11 : i32 to vector<32x1xi32>
    %13 = arith.remsi %9, %12 : vector<32x1xi32>
    %c0_i32_7 = arith.constant 0 : i32
    %14 = vector.broadcast %c0_i32_7 : i32 to vector<32x1xi32>
    %15 = arith.cmpi ne, %13, %14 : vector<32x1xi32>
    %c0_i32_8 = arith.constant 0 : i32
    %16 = vector.broadcast %c0_i32_8 : i32 to vector<32x1xi32>
    %17 = arith.cmpi slt, %13, %16 : vector<32x1xi32>
    %c0_i32_9 = arith.constant 0 : i32
    %18 = arith.cmpi slt, %11, %c0_i32_9 : i32
    %19 = vector.broadcast %18 : i1 to vector<32x1xi1>
    %20 = vector.broadcast %19 : vector<32x1xi1> to vector<32x1xi1>
    %21 = arith.xori %17, %20 : vector<32x1xi1>
    %22 = arith.andi %21, %15 : vector<32x1xi1>
    %23 = vector.broadcast %11 : i32 to vector<32x1xi32>
    %24 = arith.addi %13, %23 : vector<32x1xi32>
    %25 = arith.select %22, %24, %13 : vector<32x1xi1>, vector<32x1xi32>
    %c0_i32_10 = arith.constant 0 : i32
    %26 = vector.broadcast %c0_i32_10 : i32 to vector<32x1xi32>
    %27 = arith.cmpi eq, %25, %26 : vector<32x1xi32>
    %28 = vector.shape_cast %27 : vector<32x1xi1> to vector<32x1xi1>
    %29 = vector.broadcast %28 : vector<32x1xi1> to vector<32x4xi1>
    %30 = arith.select %29, %6, %5 : vector<32x4xi1>, vector<32x4xf32>
    %c15_i32_11 = arith.constant 15 : i32
    %31 = vector.broadcast %c15_i32_11 : i32 to vector<32x1xi32>
    %32 = arith.cmpi eq, %25, %31 : vector<32x1xi32>
    %33 = vector.shape_cast %32 : vector<32x1xi1> to vector<32x1xi1>
    %34 = vector.broadcast %33 : vector<32x1xi1> to vector<32x4xi1>
    %35 = arith.select %34, %8, %7 : vector<32x4xi1>, vector<32x4xf32>
    %36 = tpu.concatenate %30, %3, %35, %4 in 1 : vector<32x4xf32>, vector<32x4xf32>, vector<32x4xf32>, vector<32x4xf32> -> vector<32x16xf32>
    %c0_12 = arith.constant 0 : index
    %c0_13 = arith.constant 0 : index
    %37 = vector.load %arg4[%c0_12, %c0_13] : memref<1032x256xf32, #tpu.memory_space<vmem>>, vector<16x32xf32>
    %cst = arith.constant dense<0.000000e+00> : vector<32x32xf32>
    %38 = tpu.matmul %36, %37, %cst {dimension_numbers = #tpu.dot_dimension_numbers<[1], [0], [0], [1], [0, 0, 1, 1], [], []>} : vector<32x16xf32>, vector<16x32xf32>, vector<32x32xf32> -> vector<32x32xf32>
    %c32 = arith.constant 32 : index
    %c0_14 = arith.constant 0 : index
    %39 = vector.load %arg4[%c32, %c0_14] : memref<1032x256xf32, #tpu.memory_space<vmem>>, vector<32x32xf32>
    %40 = arith.addf %38, %39 : vector<32x32xf32>
    %c192 = arith.constant 192 : index
    %c0_15 = arith.constant 0 : index
    %41 = vector.load %arg4[%c192, %c0_15] : memref<1032x256xf32, #tpu.memory_space<vmem>>, vector<32x96xf32>
    %cst_16 = arith.constant dense<0.000000e+00> : vector<32x96xf32>
    %42 = tpu.matmul %40, %41, %cst_16 {dimension_numbers = #tpu.dot_dimension_numbers<[1], [0], [0], [1], [0, 0, 1, 1], [], []>} : vector<32x32xf32>, vector<32x96xf32>, vector<32x96xf32> -> vector<32x96xf32>
    %c224 = arith.constant 224 : index
    %c0_17 = arith.constant 0 : index
    %43 = vector.load %arg4[%c224, %c0_17] : memref<1032x256xf32, #tpu.memory_space<vmem>>, vector<1x96xf32>
    %44 = vector.broadcast %43 : vector<1x96xf32> to vector<32x96xf32>
    %45 = arith.addf %42, %44 : vector<32x96xf32>
    %46 = vector.extract_strided_slice %45 {offsets = [0, 0], sizes = [32, 32], strides = [1, 1]} : vector<32x96xf32> to vector<32x32xf32>
    %47 = vector.extract_strided_slice %45 {offsets = [0, 32], sizes = [32, 32], strides = [1, 1]} : vector<32x96xf32> to vector<32x32xf32>
    %48 = vector.extract_strided_slice %45 {offsets = [0, 64], sizes = [32, 32], strides = [1, 1]} : vector<32x96xf32> to vector<32x32xf32>
    %49 = vector.extract_strided_slice %46 {offsets = [0, 0], sizes = [32, 8], strides = [1, 1]} : vector<32x32xf32> to vector<32x8xf32>
    %50 = vector.extract_strided_slice %47 {offsets = [0, 0], sizes = [32, 8], strides = [1, 1]} : vector<32x32xf32> to vector<32x8xf32>
    %cst_18 = arith.constant dense<0.000000e+00> : vector<32x32xf32>
    %51 = tpu.matmul %49, %50, %cst_18 {dimension_numbers = #tpu.dot_dimension_numbers<[1], [1], [0], [0], [0, 0, 1, 0], [], []>} : vector<32x8xf32>, vector<32x8xf32>, vector<32x32xf32> -> vector<32x32xf32>
    %cst_19 = arith.constant 0.353553385 : f32
    %52 = vector.broadcast %cst_19 : f32 to vector<32x32xf32>
    %53 = arith.mulf %51, %52 : vector<32x32xf32>
    %54 = arith.addf %53, %0 : vector<32x32xf32>
    %cst_20 = arith.constant dense<0xFF800000> : vector<32xf32>
    %55 = vector.multi_reduction <maximumf>, %54, %cst_20 [1] : vector<32x32xf32> to vector<32xf32>
    %56 = vector.shape_cast %55 : vector<32xf32> to vector<32x1xf32>
    %57 = vector.broadcast %56 : vector<32x1xf32> to vector<32x32xf32>
    %58 = arith.subf %54, %57 : vector<32x32xf32>
    %59 = math.exp %58 : vector<32x32xf32>
    %cst_21 = arith.constant dense<0.000000e+00> : vector<32xf32>
    %60 = vector.multi_reduction <add>, %59, %cst_21 [1] : vector<32x32xf32> to vector<32xf32>
    %61 = vector.shape_cast %60 : vector<32xf32> to vector<32x1xf32>
    %62 = tpu.reciprocal %61 {approx = true} : vector<32x1xf32> -> vector<32x1xf32>
    %63 = vector.broadcast %62 : vector<32x1xf32> to vector<32x32xf32>
    %64 = arith.mulf %59, %63 : vector<32x32xf32>
    %65 = vector.extract_strided_slice %48 {offsets = [0, 0], sizes = [32, 8], strides = [1, 1]} : vector<32x32xf32> to vector<32x8xf32>
    %cst_22 = arith.constant dense<0.000000e+00> : vector<32x8xf32>
    %66 = tpu.matmul %64, %65, %cst_22 {dimension_numbers = #tpu.dot_dimension_numbers<[1], [0], [0], [1], [0, 0, 1, 1], [], []>} : vector<32x32xf32>, vector<32x8xf32>, vector<32x8xf32> -> vector<32x8xf32>
    %c0_23 = arith.constant 0 : index
    %c0_24 = arith.constant 0 : index
    %67 = vector.load %arg6[%c0_23, %c0_24] : memref<32x32xf32, #tpu.memory_space<vmem>>, vector<32x8xf32>
    tpu.vector_store %arg6[%c0_23, %c0_24], %66 {strides = array<i32>} : memref<32x32xf32, #tpu.memory_space<vmem>>, vector<32x8xf32>,
    %68 = vector.extract_strided_slice %46 {offsets = [0, 8], sizes = [32, 8], strides = [1, 1]} : vector<32x32xf32> to vector<32x8xf32>
    %69 = vector.extract_strided_slice %47 {offsets = [0, 8], sizes = [32, 8], strides = [1, 1]} : vector<32x32xf32> to vector<32x8xf32>
    %cst_25 = arith.constant dense<0.000000e+00> : vector<32x32xf32>
    %70 = tpu.matmul %68, %69, %cst_25 {dimension_numbers = #tpu.dot_dimension_numbers<[1], [1], [0], [0], [0, 0, 1, 0], [], []>} : vector<32x8xf32>, vector<32x8xf32>, vector<32x32xf32> -> vector<32x32xf32>
    %cst_26 = arith.constant 0.353553385 : f32
    %71 = vector.broadcast %cst_26 : f32 to vector<32x32xf32>
    %72 = arith.mulf %70, %71 : vector<32x32xf32>
    %73 = arith.addf %72, %0 : vector<32x32xf32>
    %cst_27 = arith.constant dense<0xFF800000> : vector<32xf32>
    %74 = vector.multi_reduction <maximumf>, %73, %cst_27 [1] : vector<32x32xf32> to vector<32xf32>
    %75 = vector.shape_cast %74 : vector<32xf32> to vector<32x1xf32>
    %76 = vector.broadcast %75 : vector<32x1xf32> to vector<32x32xf32>
    %77 = arith.subf %73, %76 : vector<32x32xf32>
    %78 = math.exp %77 : vector<32x32xf32>
    %cst_28 = arith.constant dense<0.000000e+00> : vector<32xf32>
    %79 = vector.multi_reduction <add>, %78, %cst_28 [1] : vector<32x32xf32> to vector<32xf32>
    %80 = vector.shape_cast %79 : vector<32xf32> to vector<32x1xf32>
    %81 = tpu.reciprocal %80 {approx = true} : vector<32x1xf32> -> vector<32x1xf32>
    %82 = vector.broadcast %81 : vector<32x1xf32> to vector<32x32xf32>
    %83 = arith.mulf %78, %82 : vector<32x32xf32>
    %84 = vector.extract_strided_slice %48 {offsets = [0, 8], sizes = [32, 8], strides = [1, 1]} : vector<32x32xf32> to vector<32x8xf32>
    %cst_29 = arith.constant dense<0.000000e+00> : vector<32x8xf32>
    %85 = tpu.matmul %83, %84, %cst_29 {dimension_numbers = #tpu.dot_dimension_numbers<[1], [0], [0], [1], [0, 0, 1, 1], [], []>} : vector<32x32xf32>, vector<32x8xf32>, vector<32x8xf32> -> vector<32x8xf32>
    %c0_30 = arith.constant 0 : index
    %c8 = arith.constant 8 : index
    %86 = vector.load %arg6[%c0_30, %c8] : memref<32x32xf32, #tpu.memory_space<vmem>>, vector<32x8xf32>
    tpu.vector_store %arg6[%c0_30, %c8], %85 {strides = array<i32>} : memref<32x32xf32, #tpu.memory_space<vmem>>, vector<32x8xf32>,
    %87 = vector.extract_strided_slice %46 {offsets = [0, 16], sizes = [32, 8], strides = [1, 1]} : vector<32x32xf32> to vector<32x8xf32>
    %88 = vector.extract_strided_slice %47 {offsets = [0, 16], sizes = [32, 8], strides = [1, 1]} : vector<32x32xf32> to vector<32x8xf32>
    %cst_31 = arith.constant dense<0.000000e+00> : vector<32x32xf32>
    %89 = tpu.matmul %87, %88, %cst_31 {dimension_numbers = #tpu.dot_dimension_numbers<[1], [1], [0], [0], [0, 0, 1, 0], [], []>} : vector<32x8xf32>, vector<32x8xf32>, vector<32x32xf32> -> vector<32x32xf32>
    %cst_32 = arith.constant 0.353553385 : f32
    %90 = vector.broadcast %cst_32 : f32 to vector<32x32xf32>
    %91 = arith.mulf %89, %90 : vector<32x32xf32>
    %92 = arith.addf %91, %0 : vector<32x32xf32>
    %cst_33 = arith.constant dense<0xFF800000> : vector<32xf32>
    %93 = vector.multi_reduction <maximumf>, %92, %cst_33 [1] : vector<32x32xf32> to vector<32xf32>
    %94 = vector.shape_cast %93 : vector<32xf32> to vector<32x1xf32>
    %95 = vector.broadcast %94 : vector<32x1xf32> to vector<32x32xf32>
    %96 = arith.subf %92, %95 : vector<32x32xf32>
    %97 = math.exp %96 : vector<32x32xf32>
    %cst_34 = arith.constant dense<0.000000e+00> : vector<32xf32>
    %98 = vector.multi_reduction <add>, %97, %cst_34 [1] : vector<32x32xf32> to vector<32xf32>
    %99 = vector.shape_cast %98 : vector<32xf32> to vector<32x1xf32>
    %100 = tpu.reciprocal %99 {approx = true} : vector<32x1xf32> -> vector<32x1xf32>
    %101 = vector.broadcast %100 : vector<32x1xf32> to vector<32x32xf32>
    %102 = arith.mulf %97, %101 : vector<32x32xf32>
    %103 = vector.extract_strided_slice %48 {offsets = [0, 16], sizes = [32, 8], strides = [1, 1]} : vector<32x32xf32> to vector<32x8xf32>
    %cst_35 = arith.constant dense<0.000000e+00> : vector<32x8xf32>
    %104 = tpu.matmul %102, %103, %cst_35 {dimension_numbers = #tpu.dot_dimension_numbers<[1], [0], [0], [1], [0, 0, 1, 1], [], []>} : vector<32x32xf32>, vector<32x8xf32>, vector<32x8xf32> -> vector<32x8xf32>
    %c0_36 = arith.constant 0 : index
    %c16 = arith.constant 16 : index
    %105 = vector.load %arg6[%c0_36, %c16] : memref<32x32xf32, #tpu.memory_space<vmem>>, vector<32x8xf32>
    tpu.vector_store %arg6[%c0_36, %c16], %104 {strides = array<i32>} : memref<32x32xf32, #tpu.memory_space<vmem>>, vector<32x8xf32>,
    %106 = vector.extract_strided_slice %46 {offsets = [0, 24], sizes = [32, 8], strides = [1, 1]} : vector<32x32xf32> to vector<32x8xf32>
    %107 = vector.extract_strided_slice %47 {offsets = [0, 24], sizes = [32, 8], strides = [1, 1]} : vector<32x32xf32> to vector<32x8xf32>
    %cst_37 = arith.constant dense<0.000000e+00> : vector<32x32xf32>
    %108 = tpu.matmul %106, %107, %cst_37 {dimension_numbers = #tpu.dot_dimension_numbers<[1], [1], [0], [0], [0, 0, 1, 0], [], []>} : vector<32x8xf32>, vector<32x8xf32>, vector<32x32xf32> -> vector<32x32xf32>
    %cst_38 = arith.constant 0.353553385 : f32
    %109 = vector.broadcast %cst_38 : f32 to vector<32x32xf32>
    %110 = arith.mulf %108, %109 : vector<32x32xf32>
    %111 = arith.addf %110, %0 : vector<32x32xf32>
    %cst_39 = arith.constant dense<0xFF800000> : vector<32xf32>
    %112 = vector.multi_reduction <maximumf>, %111, %cst_39 [1] : vector<32x32xf32> to vector<32xf32>
    %113 = vector.shape_cast %112 : vector<32xf32> to vector<32x1xf32>
    %114 = vector.broadcast %113 : vector<32x1xf32> to vector<32x32xf32>
    %115 = arith.subf %111, %114 : vector<32x32xf32>
    %116 = math.exp %115 : vector<32x32xf32>
    %cst_40 = arith.constant dense<0.000000e+00> : vector<32xf32>
    %117 = vector.multi_reduction <add>, %116, %cst_40 [1] : vector<32x32xf32> to vector<32xf32>
    %118 = vector.shape_cast %117 : vector<32xf32> to vector<32x1xf32>
    %119 = tpu.reciprocal %118 {approx = true} : vector<32x1xf32> -> vector<32x1xf32>
    %120 = vector.broadcast %119 : vector<32x1xf32> to vector<32x32xf32>
    %121 = arith.mulf %116, %120 : vector<32x32xf32>
    %122 = vector.extract_strided_slice %48 {offsets = [0, 24], sizes = [32, 8], strides = [1, 1]} : vector<32x32xf32> to vector<32x8xf32>
    %cst_41 = arith.constant dense<0.000000e+00> : vector<32x8xf32>
    %123 = tpu.matmul %121, %122, %cst_41 {dimension_numbers = #tpu.dot_dimension_numbers<[1], [0], [0], [1], [0, 0, 1, 1], [], []>} : vector<32x32xf32>, vector<32x8xf32>, vector<32x8xf32> -> vector<32x8xf32>
    %c0_42 = arith.constant 0 : index
    %c24 = arith.constant 24 : index
    %124 = vector.load %arg6[%c0_42, %c24] : memref<32x32xf32, #tpu.memory_space<vmem>>, vector<32x8xf32>
    tpu.vector_store %arg6[%c0_42, %c24], %123 {strides = array<i32>} : memref<32x32xf32, #tpu.memory_space<vmem>>, vector<32x8xf32>,
    %c0_43 = arith.constant 0 : index
    %c0_44 = arith.constant 0 : index
    %125 = vector.load %arg6[%c0_43, %c0_44] : memref<32x32xf32, #tpu.memory_space<vmem>>, vector<32x32xf32>
    %c232 = arith.constant 232 : index
    %c0_45 = arith.constant 0 : index
    %126 = vector.load %arg4[%c232, %c0_45] : memref<1032x256xf32, #tpu.memory_space<vmem>>, vector<32x32xf32>
    %cst_46 = arith.constant dense<0.000000e+00> : vector<32x32xf32>
    %127 = tpu.matmul %125, %126, %cst_46 {dimension_numbers = #tpu.dot_dimension_numbers<[1], [0], [0], [1], [0, 0, 1, 1], [], []>} : vector<32x32xf32>, vector<32x32xf32>, vector<32x32xf32> -> vector<32x32xf32>
    %c264 = arith.constant 264 : index
    %c0_47 = arith.constant 0 : index
    %128 = vector.load %arg4[%c264, %c0_47] : memref<1032x256xf32, #tpu.memory_space<vmem>>, vector<1x32xf32>
    %129 = vector.broadcast %128 : vector<1x32xf32> to vector<32x32xf32>
    %130 = arith.addf %127, %129 : vector<32x32xf32>
    %131 = arith.addf %40, %130 : vector<32x32xf32>
    %cst_48 = arith.constant dense<0.000000e+00> : vector<32xf32>
    %132 = vector.multi_reduction <add>, %131, %cst_48 [1] : vector<32x32xf32> to vector<32xf32>
    %133 = vector.shape_cast %132 : vector<32xf32> to vector<32x1xf32>
    %cst_49 = arith.constant 3.200000e+01 : f32
    %134 = vector.broadcast %cst_49 : f32 to vector<32x1xf32>
    %135 = arith.divf %133, %134 : vector<32x1xf32>
    %136 = vector.broadcast %135 : vector<32x1xf32> to vector<32x32xf32>
    %137 = arith.subf %131, %136 : vector<32x32xf32>
    %138 = arith.mulf %137, %137 : vector<32x32xf32>
    %cst_50 = arith.constant dense<0.000000e+00> : vector<32xf32>
    %139 = vector.multi_reduction <add>, %138, %cst_50 [1] : vector<32x32xf32> to vector<32xf32>
    %140 = vector.shape_cast %139 : vector<32xf32> to vector<32x1xf32>
    %cst_51 = arith.constant 3.200000e+01 : f32
    %141 = vector.broadcast %cst_51 : f32 to vector<32x1xf32>
    %142 = arith.divf %140, %141 : vector<32x1xf32>
    %cst_52 = arith.constant 9.99999974E-6 : f32
    %143 = vector.broadcast %cst_52 : f32 to vector<32x1xf32>
    %144 = arith.addf %142, %143 : vector<32x1xf32>
    %145 = math.rsqrt %144 : vector<32x1xf32>
    %146 = vector.broadcast %145 : vector<32x1xf32> to vector<32x32xf32>
    %147 = arith.mulf %137, %146 : vector<32x32xf32>
    %c384 = arith.constant 384 : index
    %c0_53 = arith.constant 0 : index
    %148 = vector.load %arg4[%c384, %c0_53] : memref<1032x256xf32, #tpu.memory_space<vmem>>, vector<1x32xf32>
    %149 = vector.broadcast %148 : vector<1x32xf32> to vector<32x32xf32>
    %150 = arith.mulf %147, %149 : vector<32x32xf32>
    %c392 = arith.constant 392 : index
    %c0_54 = arith.constant 0 : index
    %151 = vector.load %arg4[%c392, %c0_54] : memref<1032x256xf32, #tpu.memory_space<vmem>>, vector<1x32xf32>
    %152 = vector.broadcast %151 : vector<1x32xf32> to vector<32x32xf32>
    %153 = arith.addf %150, %152 : vector<32x32xf32>
    %c272 = arith.constant 272 : index
    %c0_55 = arith.constant 0 : index
    %154 = vector.load %arg4[%c272, %c0_55] : memref<1032x256xf32, #tpu.memory_space<vmem>>, vector<32x64xf32>
    %cst_56 = arith.constant dense<0.000000e+00> : vector<32x64xf32>
    %155 = tpu.matmul %153, %154, %cst_56 {dimension_numbers = #tpu.dot_dimension_numbers<[1], [0], [0], [1], [0, 0, 1, 1], [], []>} : vector<32x32xf32>, vector<32x64xf32>, vector<32x64xf32> -> vector<32x64xf32>
    %c304 = arith.constant 304 : index
    %c0_57 = arith.constant 0 : index
    %156 = vector.load %arg4[%c304, %c0_57] : memref<1032x256xf32, #tpu.memory_space<vmem>>, vector<1x64xf32>
    %157 = vector.broadcast %156 : vector<1x64xf32> to vector<32x64xf32>
    %158 = arith.addf %155, %157 : vector<32x64xf32>
    %cst_58 = arith.constant 5.000000e-01 : f32
    %159 = vector.broadcast %cst_58 : f32 to vector<32x64xf32>
    %160 = arith.mulf %159, %158 : vector<32x64xf32>
    %cst_59 = arith.constant 4.471500e-02 : f32
    %161 = vector.broadcast %cst_59 : f32 to vector<32x64xf32>
    %162 = arith.mulf %161, %158 : vector<32x64xf32>
    %163 = arith.mulf %162, %158 : vector<32x64xf32>
    %164 = arith.mulf %163, %158 : vector<32x64xf32>
    %165 = arith.addf %158, %164 : vector<32x64xf32>
    %cst_60 = arith.constant 0.797884583 : f32
    %166 = vector.broadcast %cst_60 : f32 to vector<32x64xf32>
    %167 = arith.mulf %166, %165 : vector<32x64xf32>
    %168 = math.tanh %167 : vector<32x64xf32>
    %cst_61 = arith.constant 1.000000e+00 : f32
    %169 = vector.broadcast %cst_61 : f32 to vector<32x64xf32>
    %170 = arith.addf %169, %168 : vector<32x64xf32>
    %171 = arith.mulf %160, %170 : vector<32x64xf32>
    %c312 = arith.constant 312 : index
    %c0_62 = arith.constant 0 : index
    %172 = vector.load %arg4[%c312, %c0_62] : memref<1032x256xf32, #tpu.memory_space<vmem>>, vector<64x32xf32>
    %cst_63 = arith.constant dense<0.000000e+00> : vector<32x32xf32>
    %173 = tpu.matmul %171, %172, %cst_63 {dimension_numbers = #tpu.dot_dimension_numbers<[1], [0], [0], [1], [0, 0, 1, 1], [], []>} : vector<32x64xf32>, vector<64x32xf32>, vector<32x32xf32> -> vector<32x32xf32>
    %c376 = arith.constant 376 : index
    %c0_64 = arith.constant 0 : index
    %174 = vector.load %arg4[%c376, %c0_64] : memref<1032x256xf32, #tpu.memory_space<vmem>>, vector<1x32xf32>
    %175 = vector.broadcast %174 : vector<1x32xf32> to vector<32x32xf32>
    %176 = arith.addf %173, %175 : vector<32x32xf32>
    %177 = arith.addf %153, %176 : vector<32x32xf32>
    %cst_65 = arith.constant dense<0.000000e+00> : vector<32xf32>
    %178 = vector.multi_reduction <add>, %177, %cst_65 [1] : vector<32x32xf32> to vector<32xf32>
    %179 = vector.shape_cast %178 : vector<32xf32> to vector<32x1xf32>
    %cst_66 = arith.constant 3.200000e+01 : f32
    %180 = vector.broadcast %cst_66 : f32 to vector<32x1xf32>
    %181 = arith.divf %179, %180 : vector<32x1xf32>
    %182 = vector.broadcast %181 : vector<32x1xf32> to vector<32x32xf32>
    %183 = arith.subf %177, %182 : vector<32x32xf32>
    %184 = arith.mulf %183, %183 : vector<32x32xf32>
    %cst_67 = arith.constant dense<0.000000e+00> : vector<32xf32>
    %185 = vector.multi_reduction <add>, %184, %cst_67 [1] : vector<32x32xf32> to vector<32xf32>
    %186 = vector.shape_cast %185 : vector<32xf32> to vector<32x1xf32>
    %cst_68 = arith.constant 3.200000e+01 : f32
    %187 = vector.broadcast %cst_68 : f32 to vector<32x1xf32>
    %188 = arith.divf %186, %187 : vector<32x1xf32>
    %cst_69 = arith.constant 9.99999974E-6 : f32
    %189 = vector.broadcast %cst_69 : f32 to vector<32x1xf32>
    %190 = arith.addf %188, %189 : vector<32x1xf32>
    %191 = math.rsqrt %190 : vector<32x1xf32>
    %192 = vector.broadcast %191 : vector<32x1xf32> to vector<32x32xf32>
    %193 = arith.mulf %183, %192 : vector<32x32xf32>
    %c400 = arith.constant 400 : index
    %c0_70 = arith.constant 0 : index
    %194 = vector.load %arg4[%c400, %c0_70] : memref<1032x256xf32, #tpu.memory_space<vmem>>, vector<1x32xf32>
    %195 = vector.broadcast %194 : vector<1x32xf32> to vector<32x32xf32>
    %196 = arith.mulf %193, %195 : vector<32x32xf32>
    %c408 = arith.constant 408 : index
    %c0_71 = arith.constant 0 : index
    %197 = vector.load %arg4[%c408, %c0_71] : memref<1032x256xf32, #tpu.memory_space<vmem>>, vector<1x32xf32>
    %198 = vector.broadcast %197 : vector<1x32xf32> to vector<32x32xf32>
    %199 = arith.addf %196, %198 : vector<32x32xf32>
    %c416 = arith.constant 416 : index
    %c0_72 = arith.constant 0 : index
    %200 = vector.load %arg4[%c416, %c0_72] : memref<1032x256xf32, #tpu.memory_space<vmem>>, vector<32x96xf32>
    %cst_73 = arith.constant dense<0.000000e+00> : vector<32x96xf32>
    %201 = tpu.matmul %199, %200, %cst_73 {dimension_numbers = #tpu.dot_dimension_numbers<[1], [0], [0], [1], [0, 0, 1, 1], [], []>} : vector<32x32xf32>, vector<32x96xf32>, vector<32x96xf32> -> vector<32x96xf32>
    %c448 = arith.constant 448 : index
    %c0_74 = arith.constant 0 : index
    %202 = vector.load %arg4[%c448, %c0_74] : memref<1032x256xf32, #tpu.memory_space<vmem>>, vector<1x96xf32>
    %203 = vector.broadcast %202 : vector<1x96xf32> to vector<32x96xf32>
    %204 = arith.addf %201, %203 : vector<32x96xf32>
    %205 = vector.extract_strided_slice %204 {offsets = [0, 0], sizes = [32, 32], strides = [1, 1]} : vector<32x96xf32> to vector<32x32xf32>
    %206 = vector.extract_strided_slice %204 {offsets = [0, 32], sizes = [32, 32], strides = [1, 1]} : vector<32x96xf32> to vector<32x32xf32>
    %207 = vector.extract_strided_slice %204 {offsets = [0, 64], sizes = [32, 32], strides = [1, 1]} : vector<32x96xf32> to vector<32x32xf32>
    %208 = vector.extract_strided_slice %205 {offsets = [0, 0], sizes = [32, 8], strides = [1, 1]} : vector<32x32xf32> to vector<32x8xf32>
    %209 = vector.extract_strided_slice %206 {offsets = [0, 0], sizes = [32, 8], strides = [1, 1]} : vector<32x32xf32> to vector<32x8xf32>
    %cst_75 = arith.constant dense<0.000000e+00> : vector<32x32xf32>
    %210 = tpu.matmul %208, %209, %cst_75 {dimension_numbers = #tpu.dot_dimension_numbers<[1], [1], [0], [0], [0, 0, 1, 0], [], []>} : vector<32x8xf32>, vector<32x8xf32>, vector<32x32xf32> -> vector<32x32xf32>
    %cst_76 = arith.constant 0.353553385 : f32
    %211 = vector.broadcast %cst_76 : f32 to vector<32x32xf32>
    %212 = arith.mulf %210, %211 : vector<32x32xf32>
    %213 = arith.addf %212, %0 : vector<32x32xf32>
    %cst_77 = arith.constant dense<0xFF800000> : vector<32xf32>
    %214 = vector.multi_reduction <maximumf>, %213, %cst_77 [1] : vector<32x32xf32> to vector<32xf32>
    %215 = vector.shape_cast %214 : vector<32xf32> to vector<32x1xf32>
    %216 = vector.broadcast %215 : vector<32x1xf32> to vector<32x32xf32>
    %217 = arith.subf %213, %216 : vector<32x32xf32>
    %218 = math.exp %217 : vector<32x32xf32>
    %cst_78 = arith.constant dense<0.000000e+00> : vector<32xf32>
    %219 = vector.multi_reduction <add>, %218, %cst_78 [1] : vector<32x32xf32> to vector<32xf32>
    %220 = vector.shape_cast %219 : vector<32xf32> to vector<32x1xf32>
    %221 = tpu.reciprocal %220 {approx = true} : vector<32x1xf32> -> vector<32x1xf32>
    %222 = vector.broadcast %221 : vector<32x1xf32> to vector<32x32xf32>
    %223 = arith.mulf %218, %222 : vector<32x32xf32>
    %224 = vector.extract_strided_slice %207 {offsets = [0, 0], sizes = [32, 8], strides = [1, 1]} : vector<32x32xf32> to vector<32x8xf32>
    %cst_79 = arith.constant dense<0.000000e+00> : vector<32x8xf32>
    %225 = tpu.matmul %223, %224, %cst_79 {dimension_numbers = #tpu.dot_dimension_numbers<[1], [0], [0], [1], [0, 0, 1, 1], [], []>} : vector<32x32xf32>, vector<32x8xf32>, vector<32x8xf32> -> vector<32x8xf32>
    %c0_80 = arith.constant 0 : index
    %c0_81 = arith.constant 0 : index
    %226 = vector.load %arg6[%c0_80, %c0_81] : memref<32x32xf32, #tpu.memory_space<vmem>>, vector<32x8xf32>
    tpu.vector_store %arg6[%c0_80, %c0_81], %225 {strides = array<i32>} : memref<32x32xf32, #tpu.memory_space<vmem>>, vector<32x8xf32>,
    %227 = vector.extract_strided_slice %205 {offsets = [0, 8], sizes = [32, 8], strides = [1, 1]} : vector<32x32xf32> to vector<32x8xf32>
    %228 = vector.extract_strided_slice %206 {offsets = [0, 8], sizes = [32, 8], strides = [1, 1]} : vector<32x32xf32> to vector<32x8xf32>
    %cst_82 = arith.constant dense<0.000000e+00> : vector<32x32xf32>
    %229 = tpu.matmul %227, %228, %cst_82 {dimension_numbers = #tpu.dot_dimension_numbers<[1], [1], [0], [0], [0, 0, 1, 0], [], []>} : vector<32x8xf32>, vector<32x8xf32>, vector<32x32xf32> -> vector<32x32xf32>
    %cst_83 = arith.constant 0.353553385 : f32
    %230 = vector.broadcast %cst_83 : f32 to vector<32x32xf32>
    %231 = arith.mulf %229, %230 : vector<32x32xf32>
    %232 = arith.addf %231, %0 : vector<32x32xf32>
    %cst_84 = arith.constant dense<0xFF800000> : vector<32xf32>
    %233 = vector.multi_reduction <maximumf>, %232, %cst_84 [1] : vector<32x32xf32> to vector<32xf32>
    %234 = vector.shape_cast %233 : vector<32xf32> to vector<32x1xf32>
    %235 = vector.broadcast %234 : vector<32x1xf32> to vector<32x32xf32>
    %236 = arith.subf %232, %235 : vector<32x32xf32>
    %237 = math.exp %236 : vector<32x32xf32>
    %cst_85 = arith.constant dense<0.000000e+00> : vector<32xf32>
    %238 = vector.multi_reduction <add>, %237, %cst_85 [1] : vector<32x32xf32> to vector<32xf32>
    %239 = vector.shape_cast %238 : vector<32xf32> to vector<32x1xf32>
    %240 = tpu.reciprocal %239 {approx = true} : vector<32x1xf32> -> vector<32x1xf32>
    %241 = vector.broadcast %240 : vector<32x1xf32> to vector<32x32xf32>
    %242 = arith.mulf %237, %241 : vector<32x32xf32>
    %243 = vector.extract_strided_slice %207 {offsets = [0, 8], sizes = [32, 8], strides = [1, 1]} : vector<32x32xf32> to vector<32x8xf32>
    %cst_86 = arith.constant dense<0.000000e+00> : vector<32x8xf32>
    %244 = tpu.matmul %242, %243, %cst_86 {dimension_numbers = #tpu.dot_dimension_numbers<[1], [0], [0], [1], [0, 0, 1, 1], [], []>} : vector<32x32xf32>, vector<32x8xf32>, vector<32x8xf32> -> vector<32x8xf32>
    %c0_87 = arith.constant 0 : index
    %c8_88 = arith.constant 8 : index
    %245 = vector.load %arg6[%c0_87, %c8_88] : memref<32x32xf32, #tpu.memory_space<vmem>>, vector<32x8xf32>
    tpu.vector_store %arg6[%c0_87, %c8_88], %244 {strides = array<i32>} : memref<32x32xf32, #tpu.memory_space<vmem>>, vector<32x8xf32>,
    %246 = vector.extract_strided_slice %205 {offsets = [0, 16], sizes = [32, 8], strides = [1, 1]} : vector<32x32xf32> to vector<32x8xf32>
    %247 = vector.extract_strided_slice %206 {offsets = [0, 16], sizes = [32, 8], strides = [1, 1]} : vector<32x32xf32> to vector<32x8xf32>
    %cst_89 = arith.constant dense<0.000000e+00> : vector<32x32xf32>
    %248 = tpu.matmul %246, %247, %cst_89 {dimension_numbers = #tpu.dot_dimension_numbers<[1], [1], [0], [0], [0, 0, 1, 0], [], []>} : vector<32x8xf32>, vector<32x8xf32>, vector<32x32xf32> -> vector<32x32xf32>
    %cst_90 = arith.constant 0.353553385 : f32
    %249 = vector.broadcast %cst_90 : f32 to vector<32x32xf32>
    %250 = arith.mulf %248, %249 : vector<32x32xf32>
    %251 = arith.addf %250, %0 : vector<32x32xf32>
    %cst_91 = arith.constant dense<0xFF800000> : vector<32xf32>
    %252 = vector.multi_reduction <maximumf>, %251, %cst_91 [1] : vector<32x32xf32> to vector<32xf32>
    %253 = vector.shape_cast %252 : vector<32xf32> to vector<32x1xf32>
    %254 = vector.broadcast %253 : vector<32x1xf32> to vector<32x32xf32>
    %255 = arith.subf %251, %254 : vector<32x32xf32>
    %256 = math.exp %255 : vector<32x32xf32>
    %cst_92 = arith.constant dense<0.000000e+00> : vector<32xf32>
    %257 = vector.multi_reduction <add>, %256, %cst_92 [1] : vector<32x32xf32> to vector<32xf32>
    %258 = vector.shape_cast %257 : vector<32xf32> to vector<32x1xf32>
    %259 = tpu.reciprocal %258 {approx = true} : vector<32x1xf32> -> vector<32x1xf32>
    %260 = vector.broadcast %259 : vector<32x1xf32> to vector<32x32xf32>
    %261 = arith.mulf %256, %260 : vector<32x32xf32>
    %262 = vector.extract_strided_slice %207 {offsets = [0, 16], sizes = [32, 8], strides = [1, 1]} : vector<32x32xf32> to vector<32x8xf32>
    %cst_93 = arith.constant dense<0.000000e+00> : vector<32x8xf32>
    %263 = tpu.matmul %261, %262, %cst_93 {dimension_numbers = #tpu.dot_dimension_numbers<[1], [0], [0], [1], [0, 0, 1, 1], [], []>} : vector<32x32xf32>, vector<32x8xf32>, vector<32x8xf32> -> vector<32x8xf32>
    %c0_94 = arith.constant 0 : index
    %c16_95 = arith.constant 16 : index
    %264 = vector.load %arg6[%c0_94, %c16_95] : memref<32x32xf32, #tpu.memory_space<vmem>>, vector<32x8xf32>
    tpu.vector_store %arg6[%c0_94, %c16_95], %263 {strides = array<i32>} : memref<32x32xf32, #tpu.memory_space<vmem>>, vector<32x8xf32>,
    %265 = vector.extract_strided_slice %205 {offsets = [0, 24], sizes = [32, 8], strides = [1, 1]} : vector<32x32xf32> to vector<32x8xf32>
    %266 = vector.extract_strided_slice %206 {offsets = [0, 24], sizes = [32, 8], strides = [1, 1]} : vector<32x32xf32> to vector<32x8xf32>
    %cst_96 = arith.constant dense<0.000000e+00> : vector<32x32xf32>
    %267 = tpu.matmul %265, %266, %cst_96 {dimension_numbers = #tpu.dot_dimension_numbers<[1], [1], [0], [0], [0, 0, 1, 0], [], []>} : vector<32x8xf32>, vector<32x8xf32>, vector<32x32xf32> -> vector<32x32xf32>
    %cst_97 = arith.constant 0.353553385 : f32
    %268 = vector.broadcast %cst_97 : f32 to vector<32x32xf32>
    %269 = arith.mulf %267, %268 : vector<32x32xf32>
    %270 = arith.addf %269, %0 : vector<32x32xf32>
    %cst_98 = arith.constant dense<0xFF800000> : vector<32xf32>
    %271 = vector.multi_reduction <maximumf>, %270, %cst_98 [1] : vector<32x32xf32> to vector<32xf32>
    %272 = vector.shape_cast %271 : vector<32xf32> to vector<32x1xf32>
    %273 = vector.broadcast %272 : vector<32x1xf32> to vector<32x32xf32>
    %274 = arith.subf %270, %273 : vector<32x32xf32>
    %275 = math.exp %274 : vector<32x32xf32>
    %cst_99 = arith.constant dense<0.000000e+00> : vector<32xf32>
    %276 = vector.multi_reduction <add>, %275, %cst_99 [1] : vector<32x32xf32> to vector<32xf32>
    %277 = vector.shape_cast %276 : vector<32xf32> to vector<32x1xf32>
    %278 = tpu.reciprocal %277 {approx = true} : vector<32x1xf32> -> vector<32x1xf32>
    %279 = vector.broadcast %278 : vector<32x1xf32> to vector<32x32xf32>
    %280 = arith.mulf %275, %279 : vector<32x32xf32>
    %281 = vector.extract_strided_slice %207 {offsets = [0, 24], sizes = [32, 8], strides = [1, 1]} : vector<32x32xf32> to vector<32x8xf32>
    %cst_100 = arith.constant dense<0.000000e+00> : vector<32x8xf32>
    %282 = tpu.matmul %280, %281, %cst_100 {dimension_numbers = #tpu.dot_dimension_numbers<[1], [0], [0], [1], [0, 0, 1, 1], [], []>} : vector<32x32xf32>, vector<32x8xf32>, vector<32x8xf32> -> vector<32x8xf32>
    %c0_101 = arith.constant 0 : index
    %c24_102 = arith.constant 24 : index
    %283 = vector.load %arg6[%c0_101, %c24_102] : memref<32x32xf32, #tpu.memory_space<vmem>>, vector<32x8xf32>
    tpu.vector_store %arg6[%c0_101, %c24_102], %282 {strides = array<i32>} : memref<32x32xf32, #tpu.memory_space<vmem>>, vector<32x8xf32>,
    %c0_103 = arith.constant 0 : index
    %c0_104 = arith.constant 0 : index
    %284 = vector.load %arg6[%c0_103, %c0_104] : memref<32x32xf32, #tpu.memory_space<vmem>>, vector<32x32xf32>
    %c456 = arith.constant 456 : index
    %c0_105 = arith.constant 0 : index
    %285 = vector.load %arg4[%c456, %c0_105] : memref<1032x256xf32, #tpu.memory_space<vmem>>, vector<32x32xf32>
    %cst_106 = arith.constant dense<0.000000e+00> : vector<32x32xf32>
    %286 = tpu.matmul %284, %285, %cst_106 {dimension_numbers = #tpu.dot_dimension_numbers<[1], [0], [0], [1], [0, 0, 1, 1], [], []>} : vector<32x32xf32>, vector<32x32xf32>, vector<32x32xf32> -> vector<32x32xf32>
    %c488 = arith.constant 488 : index
    %c0_107 = arith.constant 0 : index
    %287 = vector.load %arg4[%c488, %c0_107] : memref<1032x256xf32, #tpu.memory_space<vmem>>, vector<1x32xf32>
    %288 = vector.broadcast %287 : vector<1x32xf32> to vector<32x32xf32>
    %289 = arith.addf %286, %288 : vector<32x32xf32>
    %290 = arith.addf %199, %289 : vector<32x32xf32>
    %cst_108 = arith.constant dense<0.000000e+00> : vector<32xf32>
    %291 = vector.multi_reduction <add>, %290, %cst_108 [1] : vector<32x32xf32> to vector<32xf32>
    %292 = vector.shape_cast %291 : vector<32xf32> to vector<32x1xf32>
    %cst_109 = arith.constant 3.200000e+01 : f32
    %293 = vector.broadcast %cst_109 : f32 to vector<32x1xf32>
    %294 = arith.divf %292, %293 : vector<32x1xf32>
    %295 = vector.broadcast %294 : vector<32x1xf32> to vector<32x32xf32>
    %296 = arith.subf %290, %295 : vector<32x32xf32>
    %297 = arith.mulf %296, %296 : vector<32x32xf32>
    %cst_110 = arith.constant dense<0.000000e+00> : vector<32xf32>
    %298 = vector.multi_reduction <add>, %297, %cst_110 [1] : vector<32x32xf32> to vector<32xf32>
    %299 = vector.shape_cast %298 : vector<32xf32> to vector<32x1xf32>
    %cst_111 = arith.constant 3.200000e+01 : f32
    %300 = vector.broadcast %cst_111 : f32 to vector<32x1xf32>
    %301 = arith.divf %299, %300 : vector<32x1xf32>
    %cst_112 = arith.constant 9.99999974E-6 : f32
    %302 = vector.broadcast %cst_112 : f32 to vector<32x1xf32>
    %303 = arith.addf %301, %302 : vector<32x1xf32>
    %304 = math.rsqrt %303 : vector<32x1xf32>
    %305 = vector.broadcast %304 : vector<32x1xf32> to vector<32x32xf32>
    %306 = arith.mulf %296, %305 : vector<32x32xf32>
    %c608 = arith.constant 608 : index
    %c0_113 = arith.constant 0 : index
    %307 = vector.load %arg4[%c608, %c0_113] : memref<1032x256xf32, #tpu.memory_space<vmem>>, vector<1x32xf32>
    %308 = vector.broadcast %307 : vector<1x32xf32> to vector<32x32xf32>
    %309 = arith.mulf %306, %308 : vector<32x32xf32>
    %c616 = arith.constant 616 : index
    %c0_114 = arith.constant 0 : index
    %310 = vector.load %arg4[%c616, %c0_114] : memref<1032x256xf32, #tpu.memory_space<vmem>>, vector<1x32xf32>
    %311 = vector.broadcast %310 : vector<1x32xf32> to vector<32x32xf32>
    %312 = arith.addf %309, %311 : vector<32x32xf32>
    %c496 = arith.constant 496 : index
    %c0_115 = arith.constant 0 : index
    %313 = vector.load %arg4[%c496, %c0_115] : memref<1032x256xf32, #tpu.memory_space<vmem>>, vector<32x64xf32>
    %cst_116 = arith.constant dense<0.000000e+00> : vector<32x64xf32>
    %314 = tpu.matmul %312, %313, %cst_116 {dimension_numbers = #tpu.dot_dimension_numbers<[1], [0], [0], [1], [0, 0, 1, 1], [], []>} : vector<32x32xf32>, vector<32x64xf32>, vector<32x64xf32> -> vector<32x64xf32>
    %c528 = arith.constant 528 : index
    %c0_117 = arith.constant 0 : index
    %315 = vector.load %arg4[%c528, %c0_117] : memref<1032x256xf32, #tpu.memory_space<vmem>>, vector<1x64xf32>
    %316 = vector.broadcast %315 : vector<1x64xf32> to vector<32x64xf32>
    %317 = arith.addf %314, %316 : vector<32x64xf32>
    %cst_118 = arith.constant 5.000000e-01 : f32
    %318 = vector.broadcast %cst_118 : f32 to vector<32x64xf32>
    %319 = arith.mulf %318, %317 : vector<32x64xf32>
    %cst_119 = arith.constant 4.471500e-02 : f32
    %320 = vector.broadcast %cst_119 : f32 to vector<32x64xf32>
    %321 = arith.mulf %320, %317 : vector<32x64xf32>
    %322 = arith.mulf %321, %317 : vector<32x64xf32>
    %323 = arith.mulf %322, %317 : vector<32x64xf32>
    %324 = arith.addf %317, %323 : vector<32x64xf32>
    %cst_120 = arith.constant 0.797884583 : f32
    %325 = vector.broadcast %cst_120 : f32 to vector<32x64xf32>
    %326 = arith.mulf %325, %324 : vector<32x64xf32>
    %327 = math.tanh %326 : vector<32x64xf32>
    %cst_121 = arith.constant 1.000000e+00 : f32
    %328 = vector.broadcast %cst_121 : f32 to vector<32x64xf32>
    %329 = arith.addf %328, %327 : vector<32x64xf32>
    %330 = arith.mulf %319, %329 : vector<32x64xf32>
    %c536 = arith.constant 536 : index
    %c0_122 = arith.constant 0 : index
    %331 = vector.load %arg4[%c536, %c0_122] : memref<1032x256xf32, #tpu.memory_space<vmem>>, vector<64x32xf32>
    %cst_123 = arith.constant dense<0.000000e+00> : vector<32x32xf32>
    %332 = tpu.matmul %330, %331, %cst_123 {dimension_numbers = #tpu.dot_dimension_numbers<[1], [0], [0], [1], [0, 0, 1, 1], [], []>} : vector<32x64xf32>, vector<64x32xf32>, vector<32x32xf32> -> vector<32x32xf32>
    %c600 = arith.constant 600 : index
    %c0_124 = arith.constant 0 : index
    %333 = vector.load %arg4[%c600, %c0_124] : memref<1032x256xf32, #tpu.memory_space<vmem>>, vector<1x32xf32>
    %334 = vector.broadcast %333 : vector<1x32xf32> to vector<32x32xf32>
    %335 = arith.addf %332, %334 : vector<32x32xf32>
    %336 = arith.addf %312, %335 : vector<32x32xf32>
    %cst_125 = arith.constant dense<0.000000e+00> : vector<32xf32>
    %337 = vector.multi_reduction <add>, %336, %cst_125 [1] : vector<32x32xf32> to vector<32xf32>
    %338 = vector.shape_cast %337 : vector<32xf32> to vector<32x1xf32>
    %cst_126 = arith.constant 3.200000e+01 : f32
    %339 = vector.broadcast %cst_126 : f32 to vector<32x1xf32>
    %340 = arith.divf %338, %339 : vector<32x1xf32>
    %341 = vector.broadcast %340 : vector<32x1xf32> to vector<32x32xf32>
    %342 = arith.subf %336, %341 : vector<32x32xf32>
    %343 = arith.mulf %342, %342 : vector<32x32xf32>
    %cst_127 = arith.constant dense<0.000000e+00> : vector<32xf32>
    %344 = vector.multi_reduction <add>, %343, %cst_127 [1] : vector<32x32xf32> to vector<32xf32>
    %345 = vector.shape_cast %344 : vector<32xf32> to vector<32x1xf32>
    %cst_128 = arith.constant 3.200000e+01 : f32
    %346 = vector.broadcast %cst_128 : f32 to vector<32x1xf32>
    %347 = arith.divf %345, %346 : vector<32x1xf32>
    %cst_129 = arith.constant 9.99999974E-6 : f32
    %348 = vector.broadcast %cst_129 : f32 to vector<32x1xf32>
    %349 = arith.addf %347, %348 : vector<32x1xf32>
    %350 = math.rsqrt %349 : vector<32x1xf32>
    %351 = vector.broadcast %350 : vector<32x1xf32> to vector<32x32xf32>
    %352 = arith.mulf %342, %351 : vector<32x32xf32>
    %c624 = arith.constant 624 : index
    %c0_130 = arith.constant 0 : index
    %353 = vector.load %arg4[%c624, %c0_130] : memref<1032x256xf32, #tpu.memory_space<vmem>>, vector<1x32xf32>
    %354 = vector.broadcast %353 : vector<1x32xf32> to vector<32x32xf32>
    %355 = arith.mulf %352, %354 : vector<32x32xf32>
    %c632 = arith.constant 632 : index
    %c0_131 = arith.constant 0 : index
    %356 = vector.load %arg4[%c632, %c0_131] : memref<1032x256xf32, #tpu.memory_space<vmem>>, vector<1x32xf32>
    %357 = vector.broadcast %356 : vector<1x32xf32> to vector<32x32xf32>
    %358 = arith.addf %355, %357 : vector<32x32xf32>
    %cst_132 = arith.constant dense<0.000000e+00> : vector<32xf32>
    %359 = vector.multi_reduction <add>, %358, %cst_132 [1] : vector<32x32xf32> to vector<32xf32>
    %360 = vector.shape_cast %359 : vector<32xf32> to vector<32x1xf32>
    %cst_133 = arith.constant 3.200000e+01 : f32
    %361 = vector.broadcast %cst_133 : f32 to vector<32x1xf32>
    %362 = arith.divf %360, %361 : vector<32x1xf32>
    %363 = vector.broadcast %362 : vector<32x1xf32> to vector<32x32xf32>
    %364 = arith.subf %358, %363 : vector<32x32xf32>
    %365 = arith.mulf %364, %364 : vector<32x32xf32>
    %cst_134 = arith.constant dense<0.000000e+00> : vector<32xf32>
    %366 = vector.multi_reduction <add>, %365, %cst_134 [1] : vector<32x32xf32> to vector<32xf32>
    %367 = vector.shape_cast %366 : vector<32xf32> to vector<32x1xf32>
    %cst_135 = arith.constant 3.200000e+01 : f32
    %368 = vector.broadcast %cst_135 : f32 to vector<32x1xf32>
    %369 = arith.divf %367, %368 : vector<32x1xf32>
    %cst_136 = arith.constant 9.99999974E-6 : f32
    %370 = vector.broadcast %cst_136 : f32 to vector<32x1xf32>
    %371 = arith.addf %369, %370 : vector<32x1xf32>
    %372 = math.rsqrt %371 : vector<32x1xf32>
    %373 = vector.broadcast %372 : vector<32x1xf32> to vector<32x32xf32>
    %374 = arith.mulf %364, %373 : vector<32x32xf32>
    %c640 = arith.constant 640 : index
    %c0_137 = arith.constant 0 : index
    %375 = vector.load %arg4[%c640, %c0_137] : memref<1032x256xf32, #tpu.memory_space<vmem>>, vector<1x32xf32>
    %376 = vector.broadcast %375 : vector<1x32xf32> to vector<32x32xf32>
    %377 = arith.mulf %374, %376 : vector<32x32xf32>
    %c648 = arith.constant 648 : index
    %c0_138 = arith.constant 0 : index
    %378 = vector.load %arg4[%c648, %c0_138] : memref<1032x256xf32, #tpu.memory_space<vmem>>, vector<1x32xf32>
    %379 = vector.broadcast %378 : vector<1x32xf32> to vector<32x32xf32>
    %380 = arith.addf %377, %379 : vector<32x32xf32>
    %c0_139 = arith.constant 0 : index
    %c0_140 = arith.constant 0 : index
    %381 = vector.load %arg2[%c0_139, %c0_140] : memref<32x4xf32, #tpu.memory_space<vmem>>, vector<32x4xf32>
    %c0_141 = arith.constant 0 : index
    %c0_142 = arith.constant 0 : index
    %382 = vector.load %arg3[%c0_141, %c0_142] : memref<32x4xf32, #tpu.memory_space<vmem>>, vector<32x4xf32>
    %c1_i32_143 = arith.constant 1 : i32
    %383 = tpu.dynamic_rotate %381 by %c1_i32_143 dim 0 : vector<32x4xf32>, i32 -> vector<32x4xf32>
    %c17_i32_144 = arith.constant 17 : i32
    %384 = tpu.dynamic_rotate %381 by %c17_i32_144 dim 0 : vector<32x4xf32>, i32 -> vector<32x4xf32>
    %c31_i32_145 = arith.constant 31 : i32
    %385 = tpu.dynamic_rotate %381 by %c31_i32_145 dim 0 : vector<32x4xf32>, i32 -> vector<32x4xf32>
    %c15_i32_146 = arith.constant 15 : i32
    %386 = tpu.dynamic_rotate %381 by %c15_i32_146 dim 0 : vector<32x4xf32>, i32 -> vector<32x4xf32>
    %387 = tpu.iota {dimensions = array<i32: 0>} : vector<32x1xi32>
    %c16_i32_147 = arith.constant 16 : i32
    %c0_i32_148 = arith.constant 0 : i32
    %388 = arith.cmpi eq, %c16_i32_147, %c0_i32_148 : i32
    %c1_i32_149 = arith.constant 1 : i32
    %389 = arith.select %388, %c1_i32_149, %c16_i32_147 : i32
    %390 = vector.broadcast %389 : i32 to vector<32x1xi32>
    %391 = arith.remsi %387, %390 : vector<32x1xi32>
    %c0_i32_150 = arith.constant 0 : i32
    %392 = vector.broadcast %c0_i32_150 : i32 to vector<32x1xi32>
    %393 = arith.cmpi ne, %391, %392 : vector<32x1xi32>
    %c0_i32_151 = arith.constant 0 : i32
    %394 = vector.broadcast %c0_i32_151 : i32 to vector<32x1xi32>
    %395 = arith.cmpi slt, %391, %394 : vector<32x1xi32>
    %c0_i32_152 = arith.constant 0 : i32
    %396 = arith.cmpi slt, %389, %c0_i32_152 : i32
    %397 = vector.broadcast %396 : i1 to vector<32x1xi1>
    %398 = vector.broadcast %397 : vector<32x1xi1> to vector<32x1xi1>
    %399 = arith.xori %395, %398 : vector<32x1xi1>
    %400 = arith.andi %399, %393 : vector<32x1xi1>
    %401 = vector.broadcast %389 : i32 to vector<32x1xi32>
    %402 = arith.addi %391, %401 : vector<32x1xi32>
    %403 = arith.select %400, %402, %391 : vector<32x1xi1>, vector<32x1xi32>
    %c0_i32_153 = arith.constant 0 : i32
    %404 = vector.broadcast %c0_i32_153 : i32 to vector<32x1xi32>
    %405 = arith.cmpi eq, %403, %404 : vector<32x1xi32>
    %406 = vector.shape_cast %405 : vector<32x1xi1> to vector<32x1xi1>
    %407 = vector.broadcast %406 : vector<32x1xi1> to vector<32x4xi1>
    %408 = arith.select %407, %384, %383 : vector<32x4xi1>, vector<32x4xf32>
    %c15_i32_154 = arith.constant 15 : i32
    %409 = vector.broadcast %c15_i32_154 : i32 to vector<32x1xi32>
    %410 = arith.cmpi eq, %403, %409 : vector<32x1xi32>
    %411 = vector.shape_cast %410 : vector<32x1xi1> to vector<32x1xi1>
    %412 = vector.broadcast %411 : vector<32x1xi1> to vector<32x4xi1>
    %413 = arith.select %412, %386, %385 : vector<32x4xi1>, vector<32x4xf32>
    %414 = tpu.concatenate %408, %381, %413, %382 in 1 : vector<32x4xf32>, vector<32x4xf32>, vector<32x4xf32>, vector<32x4xf32> -> vector<32x16xf32>
    %c16_155 = arith.constant 16 : index
    %c0_156 = arith.constant 0 : index
    %415 = vector.load %arg4[%c16_155, %c0_156] : memref<1032x256xf32, #tpu.memory_space<vmem>>, vector<16x32xf32>
    %cst_157 = arith.constant dense<0.000000e+00> : vector<32x32xf32>
    %416 = tpu.matmul %414, %415, %cst_157 {dimension_numbers = #tpu.dot_dimension_numbers<[1], [0], [0], [1], [0, 0, 1, 1], [], []>} : vector<32x16xf32>, vector<16x32xf32>, vector<32x32xf32> -> vector<32x32xf32>
    %c64 = arith.constant 64 : index
    %c0_158 = arith.constant 0 : index
    %417 = vector.load %arg4[%c64, %c0_158] : memref<1032x256xf32, #tpu.memory_space<vmem>>, vector<32x32xf32>
    %418 = arith.addf %416, %417 : vector<32x32xf32>
    %c656 = arith.constant 656 : index
    %c0_159 = arith.constant 0 : index
    %419 = vector.load %arg4[%c656, %c0_159] : memref<1032x256xf32, #tpu.memory_space<vmem>>, vector<32x96xf32>
    %cst_160 = arith.constant dense<0.000000e+00> : vector<32x96xf32>
    %420 = tpu.matmul %418, %419, %cst_160 {dimension_numbers = #tpu.dot_dimension_numbers<[1], [0], [0], [1], [0, 0, 1, 1], [], []>} : vector<32x32xf32>, vector<32x96xf32>, vector<32x96xf32> -> vector<32x96xf32>
    %c688 = arith.constant 688 : index
    %c0_161 = arith.constant 0 : index
    %421 = vector.load %arg4[%c688, %c0_161] : memref<1032x256xf32, #tpu.memory_space<vmem>>, vector<1x96xf32>
    %422 = vector.broadcast %421 : vector<1x96xf32> to vector<32x96xf32>
    %423 = arith.addf %420, %422 : vector<32x96xf32>
    %424 = vector.extract_strided_slice %423 {offsets = [0, 0], sizes = [32, 32], strides = [1, 1]} : vector<32x96xf32> to vector<32x32xf32>
    %425 = vector.extract_strided_slice %423 {offsets = [0, 32], sizes = [32, 32], strides = [1, 1]} : vector<32x96xf32> to vector<32x32xf32>
    %426 = vector.extract_strided_slice %423 {offsets = [0, 64], sizes = [32, 32], strides = [1, 1]} : vector<32x96xf32> to vector<32x32xf32>
    %427 = vector.extract_strided_slice %424 {offsets = [0, 0], sizes = [32, 8], strides = [1, 1]} : vector<32x32xf32> to vector<32x8xf32>
    %428 = vector.extract_strided_slice %425 {offsets = [0, 0], sizes = [32, 8], strides = [1, 1]} : vector<32x32xf32> to vector<32x8xf32>
    %cst_162 = arith.constant dense<0.000000e+00> : vector<32x32xf32>
    %429 = tpu.matmul %427, %428, %cst_162 {dimension_numbers = #tpu.dot_dimension_numbers<[1], [1], [0], [0], [0, 0, 1, 0], [], []>} : vector<32x8xf32>, vector<32x8xf32>, vector<32x32xf32> -> vector<32x32xf32>
    %cst_163 = arith.constant 0.353553385 : f32
    %430 = vector.broadcast %cst_163 : f32 to vector<32x32xf32>
    %431 = arith.mulf %429, %430 : vector<32x32xf32>
    %432 = arith.addf %431, %1 : vector<32x32xf32>
    %cst_164 = arith.constant dense<0xFF800000> : vector<32xf32>
    %433 = vector.multi_reduction <maximumf>, %432, %cst_164 [1] : vector<32x32xf32> to vector<32xf32>
    %434 = vector.shape_cast %433 : vector<32xf32> to vector<32x1xf32>
    %435 = vector.broadcast %434 : vector<32x1xf32> to vector<32x32xf32>
    %436 = arith.subf %432, %435 : vector<32x32xf32>
    %437 = math.exp %436 : vector<32x32xf32>
    %cst_165 = arith.constant dense<0.000000e+00> : vector<32xf32>
    %438 = vector.multi_reduction <add>, %437, %cst_165 [1] : vector<32x32xf32> to vector<32xf32>
    %439 = vector.shape_cast %438 : vector<32xf32> to vector<32x1xf32>
    %440 = tpu.reciprocal %439 {approx = true} : vector<32x1xf32> -> vector<32x1xf32>
    %441 = vector.broadcast %440 : vector<32x1xf32> to vector<32x32xf32>
    %442 = arith.mulf %437, %441 : vector<32x32xf32>
    %443 = vector.extract_strided_slice %426 {offsets = [0, 0], sizes = [32, 8], strides = [1, 1]} : vector<32x32xf32> to vector<32x8xf32>
    %cst_166 = arith.constant dense<0.000000e+00> : vector<32x8xf32>
    %444 = tpu.matmul %442, %443, %cst_166 {dimension_numbers = #tpu.dot_dimension_numbers<[1], [0], [0], [1], [0, 0, 1, 1], [], []>} : vector<32x32xf32>, vector<32x8xf32>, vector<32x8xf32> -> vector<32x8xf32>
    %c0_167 = arith.constant 0 : index
    %c0_168 = arith.constant 0 : index
    %445 = vector.load %arg6[%c0_167, %c0_168] : memref<32x32xf32, #tpu.memory_space<vmem>>, vector<32x8xf32>
    tpu.vector_store %arg6[%c0_167, %c0_168], %444 {strides = array<i32>} : memref<32x32xf32, #tpu.memory_space<vmem>>, vector<32x8xf32>,
    %446 = vector.extract_strided_slice %424 {offsets = [0, 8], sizes = [32, 8], strides = [1, 1]} : vector<32x32xf32> to vector<32x8xf32>
    %447 = vector.extract_strided_slice %425 {offsets = [0, 8], sizes = [32, 8], strides = [1, 1]} : vector<32x32xf32> to vector<32x8xf32>
    %cst_169 = arith.constant dense<0.000000e+00> : vector<32x32xf32>
    %448 = tpu.matmul %446, %447, %cst_169 {dimension_numbers = #tpu.dot_dimension_numbers<[1], [1], [0], [0], [0, 0, 1, 0], [], []>} : vector<32x8xf32>, vector<32x8xf32>, vector<32x32xf32> -> vector<32x32xf32>
    %cst_170 = arith.constant 0.353553385 : f32
    %449 = vector.broadcast %cst_170 : f32 to vector<32x32xf32>
    %450 = arith.mulf %448, %449 : vector<32x32xf32>
    %451 = arith.addf %450, %1 : vector<32x32xf32>
    %cst_171 = arith.constant dense<0xFF800000> : vector<32xf32>
    %452 = vector.multi_reduction <maximumf>, %451, %cst_171 [1] : vector<32x32xf32> to vector<32xf32>
    %453 = vector.shape_cast %452 : vector<32xf32> to vector<32x1xf32>
    %454 = vector.broadcast %453 : vector<32x1xf32> to vector<32x32xf32>
    %455 = arith.subf %451, %454 : vector<32x32xf32>
    %456 = math.exp %455 : vector<32x32xf32>
    %cst_172 = arith.constant dense<0.000000e+00> : vector<32xf32>
    %457 = vector.multi_reduction <add>, %456, %cst_172 [1] : vector<32x32xf32> to vector<32xf32>
    %458 = vector.shape_cast %457 : vector<32xf32> to vector<32x1xf32>
    %459 = tpu.reciprocal %458 {approx = true} : vector<32x1xf32> -> vector<32x1xf32>
    %460 = vector.broadcast %459 : vector<32x1xf32> to vector<32x32xf32>
    %461 = arith.mulf %456, %460 : vector<32x32xf32>
    %462 = vector.extract_strided_slice %426 {offsets = [0, 8], sizes = [32, 8], strides = [1, 1]} : vector<32x32xf32> to vector<32x8xf32>
    %cst_173 = arith.constant dense<0.000000e+00> : vector<32x8xf32>
    %463 = tpu.matmul %461, %462, %cst_173 {dimension_numbers = #tpu.dot_dimension_numbers<[1], [0], [0], [1], [0, 0, 1, 1], [], []>} : vector<32x32xf32>, vector<32x8xf32>, vector<32x8xf32> -> vector<32x8xf32>
    %c0_174 = arith.constant 0 : index
    %c8_175 = arith.constant 8 : index
    %464 = vector.load %arg6[%c0_174, %c8_175] : memref<32x32xf32, #tpu.memory_space<vmem>>, vector<32x8xf32>
    tpu.vector_store %arg6[%c0_174, %c8_175], %463 {strides = array<i32>} : memref<32x32xf32, #tpu.memory_space<vmem>>, vector<32x8xf32>,
    %465 = vector.extract_strided_slice %424 {offsets = [0, 16], sizes = [32, 8], strides = [1, 1]} : vector<32x32xf32> to vector<32x8xf32>
    %466 = vector.extract_strided_slice %425 {offsets = [0, 16], sizes = [32, 8], strides = [1, 1]} : vector<32x32xf32> to vector<32x8xf32>
    %cst_176 = arith.constant dense<0.000000e+00> : vector<32x32xf32>
    %467 = tpu.matmul %465, %466, %cst_176 {dimension_numbers = #tpu.dot_dimension_numbers<[1], [1], [0], [0], [0, 0, 1, 0], [], []>} : vector<32x8xf32>, vector<32x8xf32>, vector<32x32xf32> -> vector<32x32xf32>
    %cst_177 = arith.constant 0.353553385 : f32
    %468 = vector.broadcast %cst_177 : f32 to vector<32x32xf32>
    %469 = arith.mulf %467, %468 : vector<32x32xf32>
    %470 = arith.addf %469, %1 : vector<32x32xf32>
    %cst_178 = arith.constant dense<0xFF800000> : vector<32xf32>
    %471 = vector.multi_reduction <maximumf>, %470, %cst_178 [1] : vector<32x32xf32> to vector<32xf32>
    %472 = vector.shape_cast %471 : vector<32xf32> to vector<32x1xf32>
    %473 = vector.broadcast %472 : vector<32x1xf32> to vector<32x32xf32>
    %474 = arith.subf %470, %473 : vector<32x32xf32>
    %475 = math.exp %474 : vector<32x32xf32>
    %cst_179 = arith.constant dense<0.000000e+00> : vector<32xf32>
    %476 = vector.multi_reduction <add>, %475, %cst_179 [1] : vector<32x32xf32> to vector<32xf32>
    %477 = vector.shape_cast %476 : vector<32xf32> to vector<32x1xf32>
    %478 = tpu.reciprocal %477 {approx = true} : vector<32x1xf32> -> vector<32x1xf32>
    %479 = vector.broadcast %478 : vector<32x1xf32> to vector<32x32xf32>
    %480 = arith.mulf %475, %479 : vector<32x32xf32>
    %481 = vector.extract_strided_slice %426 {offsets = [0, 16], sizes = [32, 8], strides = [1, 1]} : vector<32x32xf32> to vector<32x8xf32>
    %cst_180 = arith.constant dense<0.000000e+00> : vector<32x8xf32>
    %482 = tpu.matmul %480, %481, %cst_180 {dimension_numbers = #tpu.dot_dimension_numbers<[1], [0], [0], [1], [0, 0, 1, 1], [], []>} : vector<32x32xf32>, vector<32x8xf32>, vector<32x8xf32> -> vector<32x8xf32>
    %c0_181 = arith.constant 0 : index
    %c16_182 = arith.constant 16 : index
    %483 = vector.load %arg6[%c0_181, %c16_182] : memref<32x32xf32, #tpu.memory_space<vmem>>, vector<32x8xf32>
    tpu.vector_store %arg6[%c0_181, %c16_182], %482 {strides = array<i32>} : memref<32x32xf32, #tpu.memory_space<vmem>>, vector<32x8xf32>,
    %484 = vector.extract_strided_slice %424 {offsets = [0, 24], sizes = [32, 8], strides = [1, 1]} : vector<32x32xf32> to vector<32x8xf32>
    %485 = vector.extract_strided_slice %425 {offsets = [0, 24], sizes = [32, 8], strides = [1, 1]} : vector<32x32xf32> to vector<32x8xf32>
    %cst_183 = arith.constant dense<0.000000e+00> : vector<32x32xf32>
    %486 = tpu.matmul %484, %485, %cst_183 {dimension_numbers = #tpu.dot_dimension_numbers<[1], [1], [0], [0], [0, 0, 1, 0], [], []>} : vector<32x8xf32>, vector<32x8xf32>, vector<32x32xf32> -> vector<32x32xf32>
    %cst_184 = arith.constant 0.353553385 : f32
    %487 = vector.broadcast %cst_184 : f32 to vector<32x32xf32>
    %488 = arith.mulf %486, %487 : vector<32x32xf32>
    %489 = arith.addf %488, %1 : vector<32x32xf32>
    %cst_185 = arith.constant dense<0xFF800000> : vector<32xf32>
    %490 = vector.multi_reduction <maximumf>, %489, %cst_185 [1] : vector<32x32xf32> to vector<32xf32>
    %491 = vector.shape_cast %490 : vector<32xf32> to vector<32x1xf32>
    %492 = vector.broadcast %491 : vector<32x1xf32> to vector<32x32xf32>
    %493 = arith.subf %489, %492 : vector<32x32xf32>
    %494 = math.exp %493 : vector<32x32xf32>
    %cst_186 = arith.constant dense<0.000000e+00> : vector<32xf32>
    %495 = vector.multi_reduction <add>, %494, %cst_186 [1] : vector<32x32xf32> to vector<32xf32>
    %496 = vector.shape_cast %495 : vector<32xf32> to vector<32x1xf32>
    %497 = tpu.reciprocal %496 {approx = true} : vector<32x1xf32> -> vector<32x1xf32>
    %498 = vector.broadcast %497 : vector<32x1xf32> to vector<32x32xf32>
    %499 = arith.mulf %494, %498 : vector<32x32xf32>
    %500 = vector.extract_strided_slice %426 {offsets = [0, 24], sizes = [32, 8], strides = [1, 1]} : vector<32x32xf32> to vector<32x8xf32>
    %cst_187 = arith.constant dense<0.000000e+00> : vector<32x8xf32>
    %501 = tpu.matmul %499, %500, %cst_187 {dimension_numbers = #tpu.dot_dimension_numbers<[1], [0], [0], [1], [0, 0, 1, 1], [], []>} : vector<32x32xf32>, vector<32x8xf32>, vector<32x8xf32> -> vector<32x8xf32>
    %c0_188 = arith.constant 0 : index
    %c24_189 = arith.constant 24 : index
    %502 = vector.load %arg6[%c0_188, %c24_189] : memref<32x32xf32, #tpu.memory_space<vmem>>, vector<32x8xf32>
    tpu.vector_store %arg6[%c0_188, %c24_189], %501 {strides = array<i32>} : memref<32x32xf32, #tpu.memory_space<vmem>>, vector<32x8xf32>,
    %c0_190 = arith.constant 0 : index
    %c0_191 = arith.constant 0 : index
    %503 = vector.load %arg6[%c0_190, %c0_191] : memref<32x32xf32, #tpu.memory_space<vmem>>, vector<32x32xf32>
    %c696 = arith.constant 696 : index
    %c0_192 = arith.constant 0 : index
    %504 = vector.load %arg4[%c696, %c0_192] : memref<1032x256xf32, #tpu.memory_space<vmem>>, vector<32x32xf32>
    %cst_193 = arith.constant dense<0.000000e+00> : vector<32x32xf32>
    %505 = tpu.matmul %503, %504, %cst_193 {dimension_numbers = #tpu.dot_dimension_numbers<[1], [0], [0], [1], [0, 0, 1, 1], [], []>} : vector<32x32xf32>, vector<32x32xf32>, vector<32x32xf32> -> vector<32x32xf32>
    %c728 = arith.constant 728 : index
    %c0_194 = arith.constant 0 : index
    %506 = vector.load %arg4[%c728, %c0_194] : memref<1032x256xf32, #tpu.memory_space<vmem>>, vector<1x32xf32>
    %507 = vector.broadcast %506 : vector<1x32xf32> to vector<32x32xf32>
    %508 = arith.addf %505, %507 : vector<32x32xf32>
    %509 = arith.addf %418, %508 : vector<32x32xf32>
    %cst_195 = arith.constant dense<0.000000e+00> : vector<32xf32>
    %510 = vector.multi_reduction <add>, %509, %cst_195 [1] : vector<32x32xf32> to vector<32xf32>
    %511 = vector.shape_cast %510 : vector<32xf32> to vector<32x1xf32>
    %cst_196 = arith.constant 3.200000e+01 : f32
    %512 = vector.broadcast %cst_196 : f32 to vector<32x1xf32>
    %513 = arith.divf %511, %512 : vector<32x1xf32>
    %514 = vector.broadcast %513 : vector<32x1xf32> to vector<32x32xf32>
    %515 = arith.subf %509, %514 : vector<32x32xf32>
    %516 = arith.mulf %515, %515 : vector<32x32xf32>
    %cst_197 = arith.constant dense<0.000000e+00> : vector<32xf32>
    %517 = vector.multi_reduction <add>, %516, %cst_197 [1] : vector<32x32xf32> to vector<32xf32>
    %518 = vector.shape_cast %517 : vector<32xf32> to vector<32x1xf32>
    %cst_198 = arith.constant 3.200000e+01 : f32
    %519 = vector.broadcast %cst_198 : f32 to vector<32x1xf32>
    %520 = arith.divf %518, %519 : vector<32x1xf32>
    %cst_199 = arith.constant 9.99999974E-6 : f32
    %521 = vector.broadcast %cst_199 : f32 to vector<32x1xf32>
    %522 = arith.addf %520, %521 : vector<32x1xf32>
    %523 = math.rsqrt %522 : vector<32x1xf32>
    %524 = vector.broadcast %523 : vector<32x1xf32> to vector<32x32xf32>
    %525 = arith.mulf %515, %524 : vector<32x32xf32>
    %c928 = arith.constant 928 : index
    %c0_200 = arith.constant 0 : index
    %526 = vector.load %arg4[%c928, %c0_200] : memref<1032x256xf32, #tpu.memory_space<vmem>>, vector<1x32xf32>
    %527 = vector.broadcast %526 : vector<1x32xf32> to vector<32x32xf32>
    %528 = arith.mulf %525, %527 : vector<32x32xf32>
    %c936 = arith.constant 936 : index
    %c0_201 = arith.constant 0 : index
    %529 = vector.load %arg4[%c936, %c0_201] : memref<1032x256xf32, #tpu.memory_space<vmem>>, vector<1x32xf32>
    %530 = vector.broadcast %529 : vector<1x32xf32> to vector<32x32xf32>
    %531 = arith.addf %528, %530 : vector<32x32xf32>
    %532 = tpu.concatenate %531, %380 in 0 : vector<32x32xf32>, vector<32x32xf32> -> vector<64x32xf32>
    %c736 = arith.constant 736 : index
    %c0_202 = arith.constant 0 : index
    %533 = vector.load %arg4[%c736, %c0_202] : memref<1032x256xf32, #tpu.memory_space<vmem>>, vector<32x96xf32>
    %cst_203 = arith.constant dense<0.000000e+00> : vector<64x96xf32>
    %534 = tpu.matmul %532, %533, %cst_203 {dimension_numbers = #tpu.dot_dimension_numbers<[1], [0], [0], [1], [0, 0, 1, 1], [], []>} : vector<64x32xf32>, vector<32x96xf32>, vector<64x96xf32> -> vector<64x96xf32>
    %c768 = arith.constant 768 : index
    %c0_204 = arith.constant 0 : index
    %535 = vector.load %arg4[%c768, %c0_204] : memref<1032x256xf32, #tpu.memory_space<vmem>>, vector<1x96xf32>
    %536 = vector.broadcast %535 : vector<1x96xf32> to vector<64x96xf32>
    %537 = arith.addf %534, %536 : vector<64x96xf32>
    %538 = vector.extract_strided_slice %537 {offsets = [0, 0], sizes = [32, 32], strides = [1, 1]} : vector<64x96xf32> to vector<32x32xf32>
    %539 = vector.extract_strided_slice %537 {offsets = [32, 32], sizes = [32, 32], strides = [1, 1]} : vector<64x96xf32> to vector<32x32xf32>
    %540 = vector.extract_strided_slice %537 {offsets = [32, 64], sizes = [32, 32], strides = [1, 1]} : vector<64x96xf32> to vector<32x32xf32>
    %541 = vector.extract_strided_slice %538 {offsets = [0, 0], sizes = [32, 8], strides = [1, 1]} : vector<32x32xf32> to vector<32x8xf32>
    %542 = vector.extract_strided_slice %539 {offsets = [0, 0], sizes = [32, 8], strides = [1, 1]} : vector<32x32xf32> to vector<32x8xf32>
    %cst_205 = arith.constant dense<0.000000e+00> : vector<32x32xf32>
    %543 = tpu.matmul %541, %542, %cst_205 {dimension_numbers = #tpu.dot_dimension_numbers<[1], [1], [0], [0], [0, 0, 1, 0], [], []>} : vector<32x8xf32>, vector<32x8xf32>, vector<32x32xf32> -> vector<32x32xf32>
    %cst_206 = arith.constant 0.353553385 : f32
    %544 = vector.broadcast %cst_206 : f32 to vector<32x32xf32>
    %545 = arith.mulf %543, %544 : vector<32x32xf32>
    %546 = arith.addf %545, %2 : vector<32x32xf32>
    %cst_207 = arith.constant dense<0xFF800000> : vector<32xf32>
    %547 = vector.multi_reduction <maximumf>, %546, %cst_207 [1] : vector<32x32xf32> to vector<32xf32>
    %548 = vector.shape_cast %547 : vector<32xf32> to vector<32x1xf32>
    %549 = vector.broadcast %548 : vector<32x1xf32> to vector<32x32xf32>
    %550 = arith.subf %546, %549 : vector<32x32xf32>
    %551 = math.exp %550 : vector<32x32xf32>
    %cst_208 = arith.constant dense<0.000000e+00> : vector<32xf32>
    %552 = vector.multi_reduction <add>, %551, %cst_208 [1] : vector<32x32xf32> to vector<32xf32>
    %553 = vector.shape_cast %552 : vector<32xf32> to vector<32x1xf32>
    %554 = tpu.reciprocal %553 {approx = true} : vector<32x1xf32> -> vector<32x1xf32>
    %555 = vector.broadcast %554 : vector<32x1xf32> to vector<32x32xf32>
    %556 = arith.mulf %551, %555 : vector<32x32xf32>
    %557 = vector.extract_strided_slice %540 {offsets = [0, 0], sizes = [32, 8], strides = [1, 1]} : vector<32x32xf32> to vector<32x8xf32>
    %cst_209 = arith.constant dense<0.000000e+00> : vector<32x8xf32>
    %558 = tpu.matmul %556, %557, %cst_209 {dimension_numbers = #tpu.dot_dimension_numbers<[1], [0], [0], [1], [0, 0, 1, 1], [], []>} : vector<32x32xf32>, vector<32x8xf32>, vector<32x8xf32> -> vector<32x8xf32>
    %c0_210 = arith.constant 0 : index
    %c0_211 = arith.constant 0 : index
    %559 = vector.load %arg6[%c0_210, %c0_211] : memref<32x32xf32, #tpu.memory_space<vmem>>, vector<32x8xf32>
    tpu.vector_store %arg6[%c0_210, %c0_211], %558 {strides = array<i32>} : memref<32x32xf32, #tpu.memory_space<vmem>>, vector<32x8xf32>,
    %560 = vector.extract_strided_slice %538 {offsets = [0, 8], sizes = [32, 8], strides = [1, 1]} : vector<32x32xf32> to vector<32x8xf32>
    %561 = vector.extract_strided_slice %539 {offsets = [0, 8], sizes = [32, 8], strides = [1, 1]} : vector<32x32xf32> to vector<32x8xf32>
    %cst_212 = arith.constant dense<0.000000e+00> : vector<32x32xf32>
    %562 = tpu.matmul %560, %561, %cst_212 {dimension_numbers = #tpu.dot_dimension_numbers<[1], [1], [0], [0], [0, 0, 1, 0], [], []>} : vector<32x8xf32>, vector<32x8xf32>, vector<32x32xf32> -> vector<32x32xf32>
    %cst_213 = arith.constant 0.353553385 : f32
    %563 = vector.broadcast %cst_213 : f32 to vector<32x32xf32>
    %564 = arith.mulf %562, %563 : vector<32x32xf32>
    %565 = arith.addf %564, %2 : vector<32x32xf32>
    %cst_214 = arith.constant dense<0xFF800000> : vector<32xf32>
    %566 = vector.multi_reduction <maximumf>, %565, %cst_214 [1] : vector<32x32xf32> to vector<32xf32>
    %567 = vector.shape_cast %566 : vector<32xf32> to vector<32x1xf32>
    %568 = vector.broadcast %567 : vector<32x1xf32> to vector<32x32xf32>
    %569 = arith.subf %565, %568 : vector<32x32xf32>
    %570 = math.exp %569 : vector<32x32xf32>
    %cst_215 = arith.constant dense<0.000000e+00> : vector<32xf32>
    %571 = vector.multi_reduction <add>, %570, %cst_215 [1] : vector<32x32xf32> to vector<32xf32>
    %572 = vector.shape_cast %571 : vector<32xf32> to vector<32x1xf32>
    %573 = tpu.reciprocal %572 {approx = true} : vector<32x1xf32> -> vector<32x1xf32>
    %574 = vector.broadcast %573 : vector<32x1xf32> to vector<32x32xf32>
    %575 = arith.mulf %570, %574 : vector<32x32xf32>
    %576 = vector.extract_strided_slice %540 {offsets = [0, 8], sizes = [32, 8], strides = [1, 1]} : vector<32x32xf32> to vector<32x8xf32>
    %cst_216 = arith.constant dense<0.000000e+00> : vector<32x8xf32>
    %577 = tpu.matmul %575, %576, %cst_216 {dimension_numbers = #tpu.dot_dimension_numbers<[1], [0], [0], [1], [0, 0, 1, 1], [], []>} : vector<32x32xf32>, vector<32x8xf32>, vector<32x8xf32> -> vector<32x8xf32>
    %c0_217 = arith.constant 0 : index
    %c8_218 = arith.constant 8 : index
    %578 = vector.load %arg6[%c0_217, %c8_218] : memref<32x32xf32, #tpu.memory_space<vmem>>, vector<32x8xf32>
    tpu.vector_store %arg6[%c0_217, %c8_218], %577 {strides = array<i32>} : memref<32x32xf32, #tpu.memory_space<vmem>>, vector<32x8xf32>,
    %579 = vector.extract_strided_slice %538 {offsets = [0, 16], sizes = [32, 8], strides = [1, 1]} : vector<32x32xf32> to vector<32x8xf32>
    %580 = vector.extract_strided_slice %539 {offsets = [0, 16], sizes = [32, 8], strides = [1, 1]} : vector<32x32xf32> to vector<32x8xf32>
    %cst_219 = arith.constant dense<0.000000e+00> : vector<32x32xf32>
    %581 = tpu.matmul %579, %580, %cst_219 {dimension_numbers = #tpu.dot_dimension_numbers<[1], [1], [0], [0], [0, 0, 1, 0], [], []>} : vector<32x8xf32>, vector<32x8xf32>, vector<32x32xf32> -> vector<32x32xf32>
    %cst_220 = arith.constant 0.353553385 : f32
    %582 = vector.broadcast %cst_220 : f32 to vector<32x32xf32>
    %583 = arith.mulf %581, %582 : vector<32x32xf32>
    %584 = arith.addf %583, %2 : vector<32x32xf32>
    %cst_221 = arith.constant dense<0xFF800000> : vector<32xf32>
    %585 = vector.multi_reduction <maximumf>, %584, %cst_221 [1] : vector<32x32xf32> to vector<32xf32>
    %586 = vector.shape_cast %585 : vector<32xf32> to vector<32x1xf32>
    %587 = vector.broadcast %586 : vector<32x1xf32> to vector<32x32xf32>
    %588 = arith.subf %584, %587 : vector<32x32xf32>
    %589 = math.exp %588 : vector<32x32xf32>
    %cst_222 = arith.constant dense<0.000000e+00> : vector<32xf32>
    %590 = vector.multi_reduction <add>, %589, %cst_222 [1] : vector<32x32xf32> to vector<32xf32>
    %591 = vector.shape_cast %590 : vector<32xf32> to vector<32x1xf32>
    %592 = tpu.reciprocal %591 {approx = true} : vector<32x1xf32> -> vector<32x1xf32>
    %593 = vector.broadcast %592 : vector<32x1xf32> to vector<32x32xf32>
    %594 = arith.mulf %589, %593 : vector<32x32xf32>
    %595 = vector.extract_strided_slice %540 {offsets = [0, 16], sizes = [32, 8], strides = [1, 1]} : vector<32x32xf32> to vector<32x8xf32>
    %cst_223 = arith.constant dense<0.000000e+00> : vector<32x8xf32>
    %596 = tpu.matmul %594, %595, %cst_223 {dimension_numbers = #tpu.dot_dimension_numbers<[1], [0], [0], [1], [0, 0, 1, 1], [], []>} : vector<32x32xf32>, vector<32x8xf32>, vector<32x8xf32> -> vector<32x8xf32>
    %c0_224 = arith.constant 0 : index
    %c16_225 = arith.constant 16 : index
    %597 = vector.load %arg6[%c0_224, %c16_225] : memref<32x32xf32, #tpu.memory_space<vmem>>, vector<32x8xf32>
    tpu.vector_store %arg6[%c0_224, %c16_225], %596 {strides = array<i32>} : memref<32x32xf32, #tpu.memory_space<vmem>>, vector<32x8xf32>,
    %598 = vector.extract_strided_slice %538 {offsets = [0, 24], sizes = [32, 8], strides = [1, 1]} : vector<32x32xf32> to vector<32x8xf32>
    %599 = vector.extract_strided_slice %539 {offsets = [0, 24], sizes = [32, 8], strides = [1, 1]} : vector<32x32xf32> to vector<32x8xf32>
    %cst_226 = arith.constant dense<0.000000e+00> : vector<32x32xf32>
    %600 = tpu.matmul %598, %599, %cst_226 {dimension_numbers = #tpu.dot_dimension_numbers<[1], [1], [0], [0], [0, 0, 1, 0], [], []>} : vector<32x8xf32>, vector<32x8xf32>, vector<32x32xf32> -> vector<32x32xf32>
    %cst_227 = arith.constant 0.353553385 : f32
    %601 = vector.broadcast %cst_227 : f32 to vector<32x32xf32>
    %602 = arith.mulf %600, %601 : vector<32x32xf32>
    %603 = arith.addf %602, %2 : vector<32x32xf32>
    %cst_228 = arith.constant dense<0xFF800000> : vector<32xf32>
    %604 = vector.multi_reduction <maximumf>, %603, %cst_228 [1] : vector<32x32xf32> to vector<32xf32>
    %605 = vector.shape_cast %604 : vector<32xf32> to vector<32x1xf32>
    %606 = vector.broadcast %605 : vector<32x1xf32> to vector<32x32xf32>
    %607 = arith.subf %603, %606 : vector<32x32xf32>
    %608 = math.exp %607 : vector<32x32xf32>
    %cst_229 = arith.constant dense<0.000000e+00> : vector<32xf32>
    %609 = vector.multi_reduction <add>, %608, %cst_229 [1] : vector<32x32xf32> to vector<32xf32>
    %610 = vector.shape_cast %609 : vector<32xf32> to vector<32x1xf32>
    %611 = tpu.reciprocal %610 {approx = true} : vector<32x1xf32> -> vector<32x1xf32>
    %612 = vector.broadcast %611 : vector<32x1xf32> to vector<32x32xf32>
    %613 = arith.mulf %608, %612 : vector<32x32xf32>
    %614 = vector.extract_strided_slice %540 {offsets = [0, 24], sizes = [32, 8], strides = [1, 1]} : vector<32x32xf32> to vector<32x8xf32>
    %cst_230 = arith.constant dense<0.000000e+00> : vector<32x8xf32>
    %615 = tpu.matmul %613, %614, %cst_230 {dimension_numbers = #tpu.dot_dimension_numbers<[1], [0], [0], [1], [0, 0, 1, 1], [], []>} : vector<32x32xf32>, vector<32x8xf32>, vector<32x8xf32> -> vector<32x8xf32>
    %c0_231 = arith.constant 0 : index
    %c24_232 = arith.constant 24 : index
    %616 = vector.load %arg6[%c0_231, %c24_232] : memref<32x32xf32, #tpu.memory_space<vmem>>, vector<32x8xf32>
    tpu.vector_store %arg6[%c0_231, %c24_232], %615 {strides = array<i32>} : memref<32x32xf32, #tpu.memory_space<vmem>>, vector<32x8xf32>,
    %c0_233 = arith.constant 0 : index
    %c0_234 = arith.constant 0 : index
    %617 = vector.load %arg6[%c0_233, %c0_234] : memref<32x32xf32, #tpu.memory_space<vmem>>, vector<32x32xf32>
    %c776 = arith.constant 776 : index
    %c0_235 = arith.constant 0 : index
    %618 = vector.load %arg4[%c776, %c0_235] : memref<1032x256xf32, #tpu.memory_space<vmem>>, vector<32x32xf32>
    %cst_236 = arith.constant dense<0.000000e+00> : vector<32x32xf32>
    %619 = tpu.matmul %617, %618, %cst_236 {dimension_numbers = #tpu.dot_dimension_numbers<[1], [0], [0], [1], [0, 0, 1, 1], [], []>} : vector<32x32xf32>, vector<32x32xf32>, vector<32x32xf32> -> vector<32x32xf32>
    %c808 = arith.constant 808 : index
    %c0_237 = arith.constant 0 : index
    %620 = vector.load %arg4[%c808, %c0_237] : memref<1032x256xf32, #tpu.memory_space<vmem>>, vector<1x32xf32>
    %621 = vector.broadcast %620 : vector<1x32xf32> to vector<32x32xf32>
    %622 = arith.addf %619, %621 : vector<32x32xf32>
    %623 = arith.addf %531, %622 : vector<32x32xf32>
    %cst_238 = arith.constant dense<0.000000e+00> : vector<32xf32>
    %624 = vector.multi_reduction <add>, %623, %cst_238 [1] : vector<32x32xf32> to vector<32xf32>
    %625 = vector.shape_cast %624 : vector<32xf32> to vector<32x1xf32>
    %cst_239 = arith.constant 3.200000e+01 : f32
    %626 = vector.broadcast %cst_239 : f32 to vector<32x1xf32>
    %627 = arith.divf %625, %626 : vector<32x1xf32>
    %628 = vector.broadcast %627 : vector<32x1xf32> to vector<32x32xf32>
    %629 = arith.subf %623, %628 : vector<32x32xf32>
    %630 = arith.mulf %629, %629 : vector<32x32xf32>
    %cst_240 = arith.constant dense<0.000000e+00> : vector<32xf32>
    %631 = vector.multi_reduction <add>, %630, %cst_240 [1] : vector<32x32xf32> to vector<32xf32>
    %632 = vector.shape_cast %631 : vector<32xf32> to vector<32x1xf32>
    %cst_241 = arith.constant 3.200000e+01 : f32
    %633 = vector.broadcast %cst_241 : f32 to vector<32x1xf32>
    %634 = arith.divf %632, %633 : vector<32x1xf32>
    %cst_242 = arith.constant 9.99999974E-6 : f32
    %635 = vector.broadcast %cst_242 : f32 to vector<32x1xf32>
    %636 = arith.addf %634, %635 : vector<32x1xf32>
    %637 = math.rsqrt %636 : vector<32x1xf32>
    %638 = vector.broadcast %637 : vector<32x1xf32> to vector<32x32xf32>
    %639 = arith.mulf %629, %638 : vector<32x32xf32>
    %c944 = arith.constant 944 : index
    %c0_243 = arith.constant 0 : index
    %640 = vector.load %arg4[%c944, %c0_243] : memref<1032x256xf32, #tpu.memory_space<vmem>>, vector<1x32xf32>
    %641 = vector.broadcast %640 : vector<1x32xf32> to vector<32x32xf32>
    %642 = arith.mulf %639, %641 : vector<32x32xf32>
    %c952 = arith.constant 952 : index
    %c0_244 = arith.constant 0 : index
    %643 = vector.load %arg4[%c952, %c0_244] : memref<1032x256xf32, #tpu.memory_space<vmem>>, vector<1x32xf32>
    %644 = vector.broadcast %643 : vector<1x32xf32> to vector<32x32xf32>
    %645 = arith.addf %642, %644 : vector<32x32xf32>
    %c816 = arith.constant 816 : index
    %c0_245 = arith.constant 0 : index
    %646 = vector.load %arg4[%c816, %c0_245] : memref<1032x256xf32, #tpu.memory_space<vmem>>, vector<32x64xf32>
    %cst_246 = arith.constant dense<0.000000e+00> : vector<32x64xf32>
    %647 = tpu.matmul %645, %646, %cst_246 {dimension_numbers = #tpu.dot_dimension_numbers<[1], [0], [0], [1], [0, 0, 1, 1], [], []>} : vector<32x32xf32>, vector<32x64xf32>, vector<32x64xf32> -> vector<32x64xf32>
    %c848 = arith.constant 848 : index
    %c0_247 = arith.constant 0 : index
    %648 = vector.load %arg4[%c848, %c0_247] : memref<1032x256xf32, #tpu.memory_space<vmem>>, vector<1x64xf32>
    %649 = vector.broadcast %648 : vector<1x64xf32> to vector<32x64xf32>
    %650 = arith.addf %647, %649 : vector<32x64xf32>
    %cst_248 = arith.constant 5.000000e-01 : f32
    %651 = vector.broadcast %cst_248 : f32 to vector<32x64xf32>
    %652 = arith.mulf %651, %650 : vector<32x64xf32>
    %cst_249 = arith.constant 4.471500e-02 : f32
    %653 = vector.broadcast %cst_249 : f32 to vector<32x64xf32>
    %654 = arith.mulf %653, %650 : vector<32x64xf32>
    %655 = arith.mulf %654, %650 : vector<32x64xf32>
    %656 = arith.mulf %655, %650 : vector<32x64xf32>
    %657 = arith.addf %650, %656 : vector<32x64xf32>
    %cst_250 = arith.constant 0.797884583 : f32
    %658 = vector.broadcast %cst_250 : f32 to vector<32x64xf32>
    %659 = arith.mulf %658, %657 : vector<32x64xf32>
    %660 = math.tanh %659 : vector<32x64xf32>
    %cst_251 = arith.constant 1.000000e+00 : f32
    %661 = vector.broadcast %cst_251 : f32 to vector<32x64xf32>
    %662 = arith.addf %661, %660 : vector<32x64xf32>
    %663 = arith.mulf %652, %662 : vector<32x64xf32>
    %c856 = arith.constant 856 : index
    %c0_252 = arith.constant 0 : index
    %664 = vector.load %arg4[%c856, %c0_252] : memref<1032x256xf32, #tpu.memory_space<vmem>>, vector<64x32xf32>
    %cst_253 = arith.constant dense<0.000000e+00> : vector<32x32xf32>
    %665 = tpu.matmul %663, %664, %cst_253 {dimension_numbers = #tpu.dot_dimension_numbers<[1], [0], [0], [1], [0, 0, 1, 1], [], []>} : vector<32x64xf32>, vector<64x32xf32>, vector<32x32xf32> -> vector<32x32xf32>
    %c920 = arith.constant 920 : index
    %c0_254 = arith.constant 0 : index
    %666 = vector.load %arg4[%c920, %c0_254] : memref<1032x256xf32, #tpu.memory_space<vmem>>, vector<1x32xf32>
    %667 = vector.broadcast %666 : vector<1x32xf32> to vector<32x32xf32>
    %668 = arith.addf %665, %667 : vector<32x32xf32>
    %669 = arith.addf %645, %668 : vector<32x32xf32>
    %cst_255 = arith.constant dense<0.000000e+00> : vector<32xf32>
    %670 = vector.multi_reduction <add>, %669, %cst_255 [1] : vector<32x32xf32> to vector<32xf32>
    %671 = vector.shape_cast %670 : vector<32xf32> to vector<32x1xf32>
    %cst_256 = arith.constant 3.200000e+01 : f32
    %672 = vector.broadcast %cst_256 : f32 to vector<32x1xf32>
    %673 = arith.divf %671, %672 : vector<32x1xf32>
    %674 = vector.broadcast %673 : vector<32x1xf32> to vector<32x32xf32>
    %675 = arith.subf %669, %674 : vector<32x32xf32>
    %676 = arith.mulf %675, %675 : vector<32x32xf32>
    %cst_257 = arith.constant dense<0.000000e+00> : vector<32xf32>
    %677 = vector.multi_reduction <add>, %676, %cst_257 [1] : vector<32x32xf32> to vector<32xf32>
    %678 = vector.shape_cast %677 : vector<32xf32> to vector<32x1xf32>
    %cst_258 = arith.constant 3.200000e+01 : f32
    %679 = vector.broadcast %cst_258 : f32 to vector<32x1xf32>
    %680 = arith.divf %678, %679 : vector<32x1xf32>
    %cst_259 = arith.constant 9.99999974E-6 : f32
    %681 = vector.broadcast %cst_259 : f32 to vector<32x1xf32>
    %682 = arith.addf %680, %681 : vector<32x1xf32>
    %683 = math.rsqrt %682 : vector<32x1xf32>
    %684 = vector.broadcast %683 : vector<32x1xf32> to vector<32x32xf32>
    %685 = arith.mulf %675, %684 : vector<32x32xf32>
    %c960 = arith.constant 960 : index
    %c0_260 = arith.constant 0 : index
    %686 = vector.load %arg4[%c960, %c0_260] : memref<1032x256xf32, #tpu.memory_space<vmem>>, vector<1x32xf32>
    %687 = vector.broadcast %686 : vector<1x32xf32> to vector<32x32xf32>
    %688 = arith.mulf %685, %687 : vector<32x32xf32>
    %c968 = arith.constant 968 : index
    %c0_261 = arith.constant 0 : index
    %689 = vector.load %arg4[%c968, %c0_261] : memref<1032x256xf32, #tpu.memory_space<vmem>>, vector<1x32xf32>
    %690 = vector.broadcast %689 : vector<1x32xf32> to vector<32x32xf32>
    %691 = arith.addf %688, %690 : vector<32x32xf32>
    %cst_262 = arith.constant dense<0.000000e+00> : vector<32xf32>
    %692 = vector.multi_reduction <add>, %691, %cst_262 [1] : vector<32x32xf32> to vector<32xf32>
    %693 = vector.shape_cast %692 : vector<32xf32> to vector<32x1xf32>
    %cst_263 = arith.constant 3.200000e+01 : f32
    %694 = vector.broadcast %cst_263 : f32 to vector<32x1xf32>
    %695 = arith.divf %693, %694 : vector<32x1xf32>
    %696 = vector.broadcast %695 : vector<32x1xf32> to vector<32x32xf32>
    %697 = arith.subf %691, %696 : vector<32x32xf32>
    %698 = arith.mulf %697, %697 : vector<32x32xf32>
    %cst_264 = arith.constant dense<0.000000e+00> : vector<32xf32>
    %699 = vector.multi_reduction <add>, %698, %cst_264 [1] : vector<32x32xf32> to vector<32xf32>
    %700 = vector.shape_cast %699 : vector<32xf32> to vector<32x1xf32>
    %cst_265 = arith.constant 3.200000e+01 : f32
    %701 = vector.broadcast %cst_265 : f32 to vector<32x1xf32>
    %702 = arith.divf %700, %701 : vector<32x1xf32>
    %cst_266 = arith.constant 9.99999974E-6 : f32
    %703 = vector.broadcast %cst_266 : f32 to vector<32x1xf32>
    %704 = arith.addf %702, %703 : vector<32x1xf32>
    %705 = math.rsqrt %704 : vector<32x1xf32>
    %706 = vector.broadcast %705 : vector<32x1xf32> to vector<32x32xf32>
    %707 = arith.mulf %697, %706 : vector<32x32xf32>
    %c976 = arith.constant 976 : index
    %c0_267 = arith.constant 0 : index
    %708 = vector.load %arg4[%c976, %c0_267] : memref<1032x256xf32, #tpu.memory_space<vmem>>, vector<1x32xf32>
    %709 = vector.broadcast %708 : vector<1x32xf32> to vector<32x32xf32>
    %710 = arith.mulf %707, %709 : vector<32x32xf32>
    %c984 = arith.constant 984 : index
    %c0_268 = arith.constant 0 : index
    %711 = vector.load %arg4[%c984, %c0_268] : memref<1032x256xf32, #tpu.memory_space<vmem>>, vector<1x32xf32>
    %712 = vector.broadcast %711 : vector<1x32xf32> to vector<32x32xf32>
    %713 = arith.addf %710, %712 : vector<32x32xf32>
    %714 = vector.extract_strided_slice %713 {offsets = [8, 0], sizes = [8, 32], strides = [1, 1]} : vector<32x32xf32> to vector<8x32xf32>
    %715 = vector.extract_strided_slice %713 {offsets = [24, 0], sizes = [8, 32], strides = [1, 1]} : vector<32x32xf32> to vector<8x32xf32>
    %716 = tpu.concatenate %714, %715 in 0 : vector<8x32xf32>, vector<8x32xf32> -> vector<16x32xf32>
    %c992 = arith.constant 992 : index
    %c0_269 = arith.constant 0 : index
    %717 = vector.load %arg4[%c992, %c0_269] : memref<1032x256xf32, #tpu.memory_space<vmem>>, vector<32x256xf32>
    %cst_270 = arith.constant dense<0.000000e+00> : vector<16x256xf32>
    %718 = tpu.matmul %716, %717, %cst_270 {dimension_numbers = #tpu.dot_dimension_numbers<[1], [0], [0], [1], [0, 0, 1, 1], [], []>} : vector<16x32xf32>, vector<32x256xf32>, vector<16x256xf32> -> vector<16x256xf32>
    %c1024 = arith.constant 1024 : index
    %c0_271 = arith.constant 0 : index
    %719 = vector.load %arg4[%c1024, %c0_271] : memref<1032x256xf32, #tpu.memory_space<vmem>>, vector<1x256xf32>
    %720 = vector.broadcast %719 : vector<1x256xf32> to vector<16x256xf32>
    %721 = arith.addf %718, %720 : vector<16x256xf32>
    %c0_272 = arith.constant 0 : index
    %c0_273 = arith.constant 0 : index
    %722 = vector.load %arg5[%c0_272, %c0_273] : memref<16x256xf32, #tpu.memory_space<vmem>>, vector<16x256xf32>
    tpu.vector_store %arg5[%c0_272, %c0_273], %721 {strides = array<i32>} : memref<16x256xf32, #tpu.memory_space<vmem>>, vector<16x256xf32>,
    return
  }
}

</mosaic_0001>

<llo_original>
// kernel: forward.1
$region0: #{forward.1}
  #allocation0 [shape = 'u32[]', space=smem, size = 0x4, offset = 0x4, fixed_abs, tag = 'smem constant byte address 0x4 - core index']
  #allocation1 [shape = 'u32[144,128]{1,0:T(1,128)}', space=vmem, size = 0x12000, scoped, tag = 'internal scratch']
  #allocation2 [shape = 'f32[32,32]{1,0:T(8,128)}', space=vmem, size = 0x4000, scoped, tag = 'scratch operand']
  %s0 = inlined_call_operand.vmem [shape: f32[32,4], index: 0, kind: input, shape index: {}]
  %s1 = inlined_call_operand.vmem [shape: f32[32,4], index: 1, kind: input, shape index: {}]
  %s2 = inlined_call_operand.vmem [shape: f32[32,4], index: 2, kind: input, shape index: {}]
  %s3 = inlined_call_operand.vmem [shape: f32[32,4], index: 3, kind: input, shape index: {}]
  %s4 = inlined_call_operand.hbm [shape: f32[1032,256], index: 4, kind: input, shape index: {}]
  %s5 = inlined_call_operand.hbm [shape: f32[16,256], index: 5, kind: output, shape index: {}]
  %s6 = sld [smem:[#allocation0]]
  $region34: #{forward.1} parent=0
    _
  %s8 = ssub.s32 1, %s6
  %s9 = scalar_select 0, %s8, %s6
  $region1: #{forward.1} parent=0
    #allocation3 [shape = 'u8[1056768]{0}', space=vmem, size = 0x102000, scoped, tag = 'input window, operand 4, single buffered']
    #allocation4 [shape = 's32[1]{0}', space=sflag, size = 0x4, scoped, tag = 'scoped memory for forward.1']
    #allocation5 [shape = 's32[1]{0}', space=sflag, size = 0x4, scoped, tag = 'scoped memory for forward.1']
    #allocation6 [shape = 'u8[16384]{0}', space=vmem, size = 0x4000, scoped, tag = 'output window, operand 0, single buffered']
    %10 = vsyncpa [#allocation4], 0
    %11 = vsyncpa [#allocation5], 0
    // Predicated region
    $region2: #{forward.1} parent=1 // pred_check
      _
    $region3: #{forward.1} parent=1 // pred_check_branch
      %13 = sbr.rel (0) target = $region5
    $region4: #{forward.1} parent=1 // pred_region
      _
    $region5: #{forward.1} parent=1 // pred_fallthru
      _
    // Predicated region
    $region6: #{forward.1} parent=1 // pred_check
      _
    $region7: #{forward.1} parent=1 // pred_check_branch
      %15 = sbr.rel (0) target = $region9
    $region8: #{forward.1} parent=1 // pred_region
      _
    $region9: #{forward.1} parent=1 // pred_fallthru
      _
    // Predicated region
    $region10: #{forward.1} parent=1 // pred_check
      _
    $region11: #{forward.1} parent=1 // pred_check_branch
      %17 = sbr.rel (0) target = $region13
    $region12: #{forward.1} parent=1 // pred_region
      _
    $region13: #{forward.1} parent=1 // pred_fallthru
      _
    // Predicated region
    $region14: #{forward.1} parent=1 // pred_check
      _
    $region15: #{forward.1} parent=1 // pred_check_branch
      %19 = sbr.rel (0) target = $region17
    $region16: #{forward.1} parent=1 // pred_region
      _
    $region17: #{forward.1} parent=1 // pred_fallthru
      _
    // Predicated region
    $region18: #{forward.1} parent=1 // pred_check
      _
    $region19: #{forward.1} parent=1 // pred_check_branch
      %21 = sbr.rel (0) target = $region21
    $region20: #{forward.1} parent=1 // pred_region
      %s23 = ssub.s32 33024, 33024
      %24 = vsyncadd [#allocation4], %s23
      %s25 = sshll.u32 [#allocation3], 4
      %s26 = int_to_ptr.vmem [resolvable:$true] %s25
      %31 = dma.hbm_to_vmem [thread:$0]  %s4, 33024, %s26, [#allocation4], 256, 256, 16
    $region21: #{forward.1} parent=1 // pred_fallthru
      _
    // Predicated region
    $region22: #{forward.1} parent=1 // pred_check
      _
    $region23: #{forward.1} parent=1 // pred_check_branch
      %33 = sbr.rel (0) target = $region25
    $region24: #{forward.1} parent=1 // pred_region
      %34 = dma.done [#allocation4], 33024
    $region25: #{forward.1} parent=1 // pred_fallthru
      _
    %v35 = vld [vmem:[#allocation3 + $0xc0] sm:$0xff]
    %v36 = vld [vmem:[#allocation3 + $0xd0] sm:$0xff]
    %v37 = vld [vmem:[#allocation3 + $0xe0] sm:$0xff]
    %v38 = vld [vmem:[#allocation3 + $0xf0] sm:$0xff]
    %v39 = vld [vmem:[#allocation3 + $0x100] sm:$0xff]
    %v40 = vld [vmem:[#allocation3 + $0x110] sm:$0xff]
    %v41 = vld [vmem:[#allocation3 + $0x120] sm:$0xff]
    %v42 = vld [vmem:[#allocation3 + $0x130] sm:$0xff]
    %v43 = vld [vmem:[#allocation3 + $0x140] sm:$0xff]
    %v44 = vld [vmem:[#allocation3 + $0x150] sm:$0xff]
    %v45 = vld [vmem:[#allocation3 + $0x160] sm:$0xff]
    %v46 = vld [vmem:[#allocation3 + $0x170] sm:$0xff]
    %v47 = vld [vmem:[%s0] sm:$0xff]
    %v48 = vld [vmem:[%s0 + $0x8] sm:$0xff]
    %v49 = vld [vmem:[%s0 + $0x10] sm:$0xff]
    %v50 = vld [vmem:[%s0 + $0x18] sm:$0xff]
    %v51 = vld [vmem:[%s1] sm:$0xff]
    %v52 = vld [vmem:[%s1 + $0x8] sm:$0xff]
    %v53 = vld [vmem:[%s1 + $0x10] sm:$0xff]
    %v54 = vld [vmem:[%s1 + $0x18] sm:$0xff]
    %v55 = vrot.slane %v47, 7
    %v56 = vrot.slane %v48, 7
    %v57 = vrot.slane %v49, 7
    %v58 = vrot.slane %v50, 7
    %v59 = vlaneseq
    %v60 = vshrl.u32 %v59, 7
    %vm61 = vcmp.lt.s32.totalorder %v60, 1
    %v62 = vsel %vm61, %v57, %v58
    %v63 = vsel %vm61, %v56, %v57
    %v64 = vsel %vm61, %v55, %v56
    %v65 = vsel %vm61, %v58, %v55
    %v66 = vrot.slane %v47, 1
    %v67 = vrot.slane %v48, 1
    %v68 = vrot.slane %v49, 1
    %v69 = vrot.slane %v50, 1
    %vm70 = vcmp.lt.s32.totalorder %v60, 7
    %v71 = vsel %vm70, %v68, %v69
    %v72 = vsel %vm70, %v67, %v68
    %v73 = vsel %vm70, %v66, %v67
    %v74 = vsel %vm70, %v69, %v66
    %v75 = vadd.s32 %v60, 8
    %v76 = vadd.s32 %v60, 16
    %v77 = vadd.s32 %v60, 24
    %vm78 = vcmp.lt.s32.totalorder %v60, 0
    %v79 = vsub.s32 0, %v60
    %v80 = vsel %vm78, %v79, %v60
    %v81 = vshrl.u32 %v80, 4
    %v82 = vand.u32 %v80, 15
    %v83 = vsub.s32 0, %v82
    %v84 = vsel %vm78, %v83, %v82
    %vm85 = vcmp.lt.s32.totalorder %v75, 0
    %v86 = vsub.s32 0, %v75
    %v87 = vsel %vm85, %v86, %v75
    %v88 = vshrl.u32 %v87, 4
    %v89 = vand.u32 %v87, 15
    %v90 = vsub.s32 0, %v89
    %v91 = vsel %vm85, %v90, %v89
    %vm92 = vcmp.lt.s32.totalorder %v76, 0
    %v93 = vsub.s32 0, %v76
    %v94 = vsel %vm92, %v93, %v76
    %v95 = vshrl.u32 %v94, 4
    %v96 = vand.u32 %v94, 15
    %v97 = vsub.s32 0, %v96
    %v98 = vsel %vm92, %v97, %v96
    %vm99 = vcmp.lt.s32.totalorder %v77, 0
    %v100 = vsub.s32 0, %v77
    %v101 = vsel %vm99, %v100, %v77
    %v102 = vshrl.u32 %v101, 4
    %v103 = vand.u32 %v101, 15
    %v104 = vsub.s32 0, %v103
    %v105 = vsel %vm99, %v104, %v103
    %vm106 = vcmp.ne.s32.totalorder %v84, 0
    %vm107 = vcmp.ne.s32.totalorder %v91, 0
    %vm108 = vcmp.ne.s32.totalorder %v98, 0
    %vm109 = vcmp.ne.s32.totalorder %v105, 0
    %vm110 = vcmp.lt.s32.totalorder %v84, 0
    %vm111 = vcmp.lt.s32.totalorder %v91, 0
    %vm112 = vcmp.lt.s32.totalorder %v98, 0
    %vm113 = vcmp.lt.s32.totalorder %v105, 0
    %vm114 = vmand %vm110, %vm106
    %vm115 = vmand %vm111, %vm107
    %vm116 = vmand %vm112, %vm108
    %vm117 = vmand %vm113, %vm109
    %v118 = vadd.s32 %v84, 16
    %v119 = vadd.s32 %v91, 16
    %v120 = vadd.s32 %v98, 16
    %v121 = vadd.s32 %v105, 16
    %v122 = vsel %vm114, %v118, %v84
    %v123 = vsel %vm115, %v119, %v91
    %v124 = vsel %vm116, %v120, %v98
    %v125 = vsel %vm117, %v121, %v105
    %vm126 = vcmp.eq.s32.totalorder %v122, 0
    %vm127 = vcmp.eq.s32.totalorder %v123, 0
    %vm128 = vcmp.eq.s32.totalorder %v124, 0
    %vm129 = vcmp.eq.s32.totalorder %v125, 0
    %v130 = vsel %vm126, 1, 0
    %v131 = vsel %vm127, 1, 0
    %v132 = vsel %vm128, 1, 0
    %v133 = vsel %vm129, 1, 0
    %vm134 = vcmp.eq.s32.totalorder %v130, 1
    %vm135 = vcmp.eq.s32.totalorder %v131, 1
    %vm136 = vcmp.eq.s32.totalorder %v132, 1
    %vm137 = vcmp.eq.s32.totalorder %v133, 1
    %v138 = vsel %vm134, %v63, %v65
    %v139 = vsel %vm135, %v62, %v64
    %v140 = vsel %vm136, %v65, %v63
    %v141 = vsel %vm137, %v64, %v62
    %vm142 = vcmp.eq.s32.totalorder %v122, 15
    %vm143 = vcmp.eq.s32.totalorder %v123, 15
    %vm144 = vcmp.eq.s32.totalorder %v124, 15
    %vm145 = vcmp.eq.s32.totalorder %v125, 15
    %v146 = vsel %vm142, 1, 0
    %v147 = vsel %vm143, 1, 0
    %v148 = vsel %vm144, 1, 0
    %v149 = vsel %vm145, 1, 0
    %vm150 = vcmp.eq.s32.totalorder %v146, 1
    %vm151 = vcmp.eq.s32.totalorder %v147, 1
    %vm152 = vcmp.eq.s32.totalorder %v148, 1
    %vm153 = vcmp.eq.s32.totalorder %v149, 1
    %v154 = vsel %vm150, %v71, %v73
    %v155 = vsel %vm151, %v74, %v72
    %v156 = vsel %vm152, %v73, %v71
    %v157 = vsel %vm153, %v72, %v74
    %162 = vrot.lane.b32.xlu0 %v47, 4
    %v163 = vpop.permute.xlu0 %162
    %164 = vrot.lane.b32.xlu0 %v48, 4
    %v165 = vpop.permute.xlu0 %164
    %166 = vrot.lane.b32.xlu0 %v49, 4
    %v167 = vpop.permute.xlu0 %166
    %168 = vrot.lane.b32.xlu0 %v50, 4
    %v169 = vpop.permute.xlu0 %168
    %178 = vrot.lane.b32.xlu0 %v154, 8
    %v179 = vpop.permute.xlu0 %178
    %180 = vrot.lane.b32.xlu0 %v155, 8
    %v181 = vpop.permute.xlu0 %180
    %182 = vrot.lane.b32.xlu0 %v156, 8
    %v183 = vpop.permute.xlu0 %182
    %184 = vrot.lane.b32.xlu0 %v157, 8
    %v185 = vpop.permute.xlu0 %184
    %194 = vrot.lane.b32.xlu0 %v51, 12
    %v195 = vpop.permute.xlu0 %194
    %196 = vrot.lane.b32.xlu0 %v52, 12
    %v197 = vpop.permute.xlu0 %196
    %198 = vrot.lane.b32.xlu0 %v53, 12
    %v199 = vpop.permute.xlu0 %198
    %200 = vrot.lane.b32.xlu0 %v54, 12
    %v201 = vpop.permute.xlu0 %200
    %vm206 = vcmask 31744
    %v207 = vsel %vm206, %v138, %v163
    %v208 = vsel %vm206, %v139, %v165
    %v209 = vsel %vm206, %v140, %v167
    %v210 = vsel %vm206, %v141, %v169
    %vm211 = vcmask 64512
    %v212 = vsel %vm211, %v207, %v179
    %v213 = vsel %vm211, %v208, %v181
    %v214 = vsel %vm211, %v209, %v183
    %v215 = vsel %vm211, %v210, %v185
    %vm216 = vcmask 97280
    %v217 = vsel %vm216, %v212, %v195
    %v218 = vsel %vm216, %v213, %v197
    %v219 = vsel %vm216, %v214, %v199
    %v220 = vsel %vm216, %v215, %v201
    %v221 = vld [vmem:[#allocation3] sm:$0xff]
    %v222 = vld [vmem:[#allocation3 + $0x10] sm:$0xff]
    %v223 = vld [vmem:[#allocation3 + $0x40] sm:$0xff]
    %v224 = vld [vmem:[#allocation3 + $0x50] sm:$0xff]
    %v225 = vld [vmem:[#allocation3 + $0x60] sm:$0xff]
    %v226 = vld [vmem:[#allocation3 + $0x70] sm:$0xff]
    %vm227 = vcmask 130048
    %v229 = vsel %vm227, %v217, 0
    %v232 = vsel %vm227, %v218, 0
    %v235 = vsel %vm227, %v219, 0
    %v238 = vsel %vm227, %v220, 0
    %240 = vmatprep.subr.mxu0 0.0
    %241 = vmatpush1.msra.mxu0 0.0
    %242 = vmatprep.subr.mxu0 0.0
    %243 = vmatpush1.msra.mxu0 0.0
    %244 = vmatprep.subr.mxu0 0.0
    %245 = vmatpush1.msra.mxu0 0.0
    %246 = vmatprep.subr.mxu0 0.0
    %247 = vmatpush1.msra.mxu0 0.0
    %248 = vmatprep.subr.mxu0 0.0
    %249 = vmatpush1.msra.mxu0 0.0
    %250 = vmatprep.subr.mxu0 0.0
    %251 = vmatpush1.msra.mxu0 0.0
    %252 = vmatprep.subr.mxu0 0.0
    %253 = vmatpush1.msra.mxu0 0.0
    %254 = vmatprep.subr.mxu0 0.0
    %255 = vmatpush1.msra.mxu0 0.0
    %256 = vmatprep.subr.mxu0 0.0
    %257 = vmatpush1.msra.mxu0 0.0
    %258 = vmatprep.subr.mxu0 0.0
    %259 = vmatpush1.msra.mxu0 0.0
    %260 = vmatprep.subr.mxu0 0.0
    %261 = vmatpush1.msra.mxu0 0.0
    %262 = vmatprep.subr.mxu0 0.0
    %263 = vmatpush1.msra.mxu0 0.0
    %264 = vmatprep.subr.mxu0 0.0
    %265 = vmatpush1.msra.mxu0 0.0
    %266 = vmatprep.subr.mxu0 0.0
    %267 = vmatpush1.msra.mxu0 0.0
    %268 = vmatprep.subr.mxu0 0.0
    %269 = vmatpush1.msra.mxu0 %v222
    %270 = vmatprep.subr.mxu0 0.0
    %271 = vmatpush1.msra.mxu0 %v221
    %272 = vmatprep.subr.mxu0 0.0
    %273 = vmatpush2.msra.mxu0 0.0
    %274 = vmatprep.subr.mxu0 0.0
    %275 = vmatpush2.msra.mxu0 0.0
    %276 = vmatprep.subr.mxu0 0.0
    %277 = vmatpush2.msra.mxu0 0.0
    %278 = vmatprep.subr.mxu0 0.0
    %279 = vmatpush2.msra.mxu0 0.0
    %280 = vmatprep.subr.mxu0 0.0
    %281 = vmatpush2.msra.mxu0 0.0
    %282 = vmatprep.subr.mxu0 0.0
    %283 = vmatpush2.msra.mxu0 0.0
    %284 = vmatprep.subr.mxu0 0.0
    %285 = vmatpush2.msra.mxu0 0.0
    %286 = vmatprep.subr.mxu0 0.0
    %287 = vmatpush2.msra.mxu0 0.0
    %288 = vmatprep.subr.mxu0 0.0
    %289 = vmatpush2.msra.mxu0 0.0
    %290 = vmatprep.subr.mxu0 0.0
    %291 = vmatpush2.msra.mxu0 0.0
    %292 = vmatprep.subr.mxu0 0.0
    %293 = vmatpush2.msra.mxu0 0.0
    %294 = vmatprep.subr.mxu0 0.0
    %295 = vmatpush2.msra.mxu0 0.0
    %296 = vmatprep.subr.mxu0 0.0
    %297 = vmatpush2.msra.mxu0 0.0
    %298 = vmatprep.subr.mxu0 0.0
    %299 = vmatpush2.msra.mxu0 0.0
    %300 = vmatprep.subr.mxu0 0.0
    %301 = vmatpush2.msra.mxu0 0.0
    %302 = vmatprep.subr.mxu0 0.0
    %303 = vmatpush2.msra.mxu0 0.0
    %304 = vmatprep.mubr.f32.mxu0 0.0
    %305 = vmatmul.mubr.f32.gmra.mxu0 %v229
    %v306 = vpop.f32.mrf.mxu0
    %v307 = vadd.f32 %v223, %v306
    %v308 = vpop.f32.mrf.mxu0
    %309 = vmatprep.mubr.f32.mxu0 0.0
    %310 = vmatmul.mubr.f32.gmra.mxu0 %v232
    %v311 = vpop.f32.mrf.mxu0
    %v312 = vadd.f32 %v224, %v311
    %v313 = vpop.f32.mrf.mxu0
    %314 = vmatprep.mubr.f32.mxu0 0.0
    %315 = vmatmul.mubr.f32.gmra.mxu0 %v235
    %v316 = vpop.f32.mrf.mxu0
    %v317 = vadd.f32 %v225, %v316
    %v318 = vpop.f32.mrf.mxu0
    %319 = vmatprep.mubr.f32.mxu0 0.0
    %320 = vmatmul.mubr.f32.gmra.mxu0 %v238
    %v321 = vpop.f32.mrf.mxu0
    %v322 = vadd.f32 %v226, %v321
    %v323 = vpop.f32.mrf.mxu0
    %324 = vdwg.mxu0
    %v325 = vld [vmem:[#allocation3 + $0x180] sm:$0xff]
    %v326 = vld [vmem:[#allocation3 + $0x190] sm:$0xff]
    %v327 = vld [vmem:[#allocation3 + $0x1a0] sm:$0xff]
    %v328 = vld [vmem:[#allocation3 + $0x1b0] sm:$0xff]
    %v329 = vld [vmem:[#allocation3 + $0x1c0] ss:$0 sm:$0xff]
    %vm330 = vcmask 261120
    %v332 = vsel %vm330, %v307, 0
    %v335 = vsel %vm330, %v312, 0
    %v338 = vsel %vm330, %v317, 0
    %v341 = vsel %vm330, %v322, 0
    %343 = vmatprep.subr.mxu0 0.0
    %344 = vmatpush1.msra.mxu0 0.0
    %345 = vmatprep.subr.mxu0 0.0
    %346 = vmatpush1.msra.mxu0 0.0
    %347 = vmatprep.subr.mxu0 0.0
    %348 = vmatpush1.msra.mxu0 0.0
    %349 = vmatprep.subr.mxu0 0.0
    %350 = vmatpush1.msra.mxu0 0.0
    %351 = vmatprep.subr.mxu0 0.0
    %352 = vmatpush1.msra.mxu0 0.0
    %353 = vmatprep.subr.mxu0 0.0
    %354 = vmatpush1.msra.mxu0 0.0
    %355 = vmatprep.subr.mxu0 0.0
    %356 = vmatpush1.msra.mxu0 0.0
    %357 = vmatprep.subr.mxu0 0.0
    %358 = vmatpush1.msra.mxu0 0.0
    %359 = vmatprep.subr.mxu0 0.0
    %360 = vmatpush1.msra.mxu0 0.0
    %361 = vmatprep.subr.mxu0 0.0
    %362 = vmatpush1.msra.mxu0 0.0
    %363 = vmatprep.subr.mxu0 0.0
    %364 = vmatpush1.msra.mxu0 0.0
    %365 = vmatprep.subr.mxu0 0.0
    %366 = vmatpush1.msra.mxu0 0.0
    %367 = vmatprep.subr.mxu0 0.0
    %368 = vmatpush1.msra.mxu0 %v328
    %369 = vmatprep.subr.mxu0 0.0
    %370 = vmatpush1.msra.mxu0 %v327
    %371 = vmatprep.subr.mxu0 0.0
    %372 = vmatpush1.msra.mxu0 %v326
    %373 = vmatprep.subr.mxu0 0.0
    %374 = vmatpush1.msra.mxu0 %v325
    %375 = vmatprep.subr.mxu0 0.0
    %376 = vmatpush2.msra.mxu0 0.0
    %377 = vmatprep.subr.mxu0 0.0
    %378 = vmatpush2.msra.mxu0 0.0
    %379 = vmatprep.subr.mxu0 0.0
    %380 = vmatpush2.msra.mxu0 0.0
    %381 = vmatprep.subr.mxu0 0.0
    %382 = vmatpush2.msra.mxu0 0.0
    %383 = vmatprep.subr.mxu0 0.0
    %384 = vmatpush2.msra.mxu0 0.0
    %385 = vmatprep.subr.mxu0 0.0
    %386 = vmatpush2.msra.mxu0 0.0
    %387 = vmatprep.subr.mxu0 0.0
    %388 = vmatpush2.msra.mxu0 0.0
    %389 = vmatprep.subr.mxu0 0.0
    %390 = vmatpush2.msra.mxu0 0.0
    %391 = vmatprep.subr.mxu0 0.0
    %392 = vmatpush2.msra.mxu0 0.0
    %393 = vmatprep.subr.mxu0 0.0
    %394 = vmatpush2.msra.mxu0 0.0
    %395 = vmatprep.subr.mxu0 0.0
    %396 = vmatpush2.msra.mxu0 0.0
    %397 = vmatprep.subr.mxu0 0.0
    %398 = vmatpush2.msra.mxu0 0.0
    %399 = vmatprep.subr.mxu0 0.0
    %400 = vmatpush2.msra.mxu0 0.0
    %401 = vmatprep.subr.mxu0 0.0
    %402 = vmatpush2.msra.mxu0 0.0
    %403 = vmatprep.subr.mxu0 0.0
    %404 = vmatpush2.msra.mxu0 0.0
    %405 = vmatprep.subr.mxu0 0.0
    %406 = vmatpush2.msra.mxu0 0.0
    %407 = vmatprep.mubr.f32.mxu0 0.0
    %408 = vmatmul.mubr.f32.gmra.mxu0 %v332
    %v409 = vpop.f32.mrf.mxu0
    %v410 = vadd.f32 %v329, %v409
    %v411 = vpop.f32.mrf.mxu0
    %412 = vmatprep.mubr.f32.mxu0 0.0
    %413 = vmatmul.mubr.f32.gmra.mxu0 %v335
    %v414 = vpop.f32.mrf.mxu0
    %v415 = vadd.f32 %v329, %v414
    %v416 = vpop.f32.mrf.mxu0
    %417 = vmatprep.mubr.f32.mxu0 0.0
    %418 = vmatmul.mubr.f32.gmra.mxu0 %v338
    %v419 = vpop.f32.mrf.mxu0
    %v420 = vadd.f32 %v329, %v419
    %v421 = vpop.f32.mrf.mxu0
    %422 = vmatprep.mubr.f32.mxu0 0.0
    %423 = vmatmul.mubr.f32.gmra.mxu0 %v341
    %v424 = vpop.f32.mrf.mxu0
    %v425 = vadd.f32 %v329, %v424
    %v426 = vpop.f32.mrf.mxu0
    %427 = vdwg.mxu0
    %432 = vrot.lane.b32.xlu0 %v410, 96
    %v433 = vpop.permute.xlu0 %432
    %434 = vrot.lane.b32.xlu0 %v415, 96
    %v435 = vpop.permute.xlu0 %434
    %436 = vrot.lane.b32.xlu0 %v420, 96
    %v437 = vpop.permute.xlu0 %436
    %438 = vrot.lane.b32.xlu0 %v425, 96
    %v439 = vpop.permute.xlu0 %438
    %v440 = vsel %vm211, %v410, 0
    %v442 = vsel %vm211, %v415, 0
    %v444 = vsel %vm211, %v420, 0
    %v446 = vsel %vm211, %v425, 0
    %v448 = vsel %vm211, %v433, 0
    %v450 = vsel %vm211, %v435, 0
    %v452 = vsel %vm211, %v437, 0
    %v454 = vsel %vm211, %v439, 0
    %456 = vmatprep.subr.mxu0 0.0
    %457 = vmatpush1.xpose.msra.mxu0 0.0
    %458 = vmatprep.subr.mxu0 0.0
    %459 = vmatpush1.xpose.msra.mxu0 0.0
    %460 = vmatprep.subr.mxu0 0.0
    %461 = vmatpush1.xpose.msra.mxu0 0.0
    %462 = vmatprep.subr.mxu0 0.0
    %463 = vmatpush1.xpose.msra.mxu0 0.0
    %464 = vmatprep.subr.mxu0 0.0
    %465 = vmatpush1.xpose.msra.mxu0 0.0
    %466 = vmatprep.subr.mxu0 0.0
    %467 = vmatpush1.xpose.msra.mxu0 0.0
    %468 = vmatprep.subr.mxu0 0.0
    %469 = vmatpush1.xpose.msra.mxu0 0.0
    %470 = vmatprep.subr.mxu0 0.0
    %471 = vmatpush1.xpose.msra.mxu0 0.0
    %472 = vmatprep.subr.mxu0 0.0
    %473 = vmatpush1.xpose.msra.mxu0 0.0
    %474 = vmatprep.subr.mxu0 0.0
    %475 = vmatpush1.xpose.msra.mxu0 0.0
    %476 = vmatprep.subr.mxu0 0.0
    %477 = vmatpush1.xpose.msra.mxu0 0.0
    %478 = vmatprep.subr.mxu0 0.0
    %479 = vmatpush1.xpose.msra.mxu0 0.0
    %480 = vmatprep.subr.mxu0 0.0
    %481 = vmatpush1.xpose.msra.mxu0 %v454
    %482 = vmatprep.subr.mxu0 0.0
    %483 = vmatpush1.xpose.msra.mxu0 %v452
    %484 = vmatprep.subr.mxu0 0.0
    %485 = vmatpush1.xpose.msra.mxu0 %v450
    %486 = vmatprep.subr.mxu0 0.0
    %487 = vmatpush1.xpose.msra.mxu0 %v448
    %488 = vmatprep.subr.mxu0 0.0
    %489 = vmatpush2.xpose.msra.mxu0 0.0
    %490 = vmatprep.subr.mxu0 0.0
    %491 = vmatpush2.xpose.msra.mxu0 0.0
    %492 = vmatprep.subr.mxu0 0.0
    %493 = vmatpush2.xpose.msra.mxu0 0.0
    %494 = vmatprep.subr.mxu0 0.0
    %495 = vmatpush2.xpose.msra.mxu0 0.0
    %496 = vmatprep.subr.mxu0 0.0
    %497 = vmatpush2.xpose.msra.mxu0 0.0
    %498 = vmatprep.subr.mxu0 0.0
    %499 = vmatpush2.xpose.msra.mxu0 0.0
    %500 = vmatprep.subr.mxu0 0.0
    %501 = vmatpush2.xpose.msra.mxu0 0.0
    %502 = vmatprep.subr.mxu0 0.0
    %503 = vmatpush2.xpose.msra.mxu0 0.0
    %504 = vmatprep.subr.mxu0 0.0
    %505 = vmatpush2.xpose.msra.mxu0 0.0
    %506 = vmatprep.subr.mxu0 0.0
    %507 = vmatpush2.xpose.msra.mxu0 0.0
    %508 = vmatprep.subr.mxu0 0.0
    %509 = vmatpush2.xpose.msra.mxu0 0.0
    %510 = vmatprep.subr.mxu0 0.0
    %511 = vmatpush2.xpose.msra.mxu0 0.0
    %512 = vmatprep.subr.mxu0 0.0
    %513 = vmatpush2.xpose.msra.mxu0 0.0
    %514 = vmatprep.subr.mxu0 0.0
    %515 = vmatpush2.xpose.msra.mxu0 0.0
    %516 = vmatprep.subr.mxu0 0.0
    %517 = vmatpush2.xpose.msra.mxu0 0.0
    %518 = vmatprep.subr.mxu0 0.0
    %519 = vmatpush2.xpose.msra.mxu0 0.0
    %520 = vmatprep.mubr.f32.mxu0 0.0
    %521 = vmatmul.mubr.f32.gmra.mxu0 %v440
    %v522 = vpop.f32.mrf.mxu0
    %v523 = vadd.f32 0.0, %v522
    %v524 = vpop.f32.mrf.mxu0
    %525 = vmatprep.mubr.f32.mxu0 0.0
    %526 = vmatmul.mubr.f32.gmra.mxu0 %v442
    %v527 = vpop.f32.mrf.mxu0
    %v528 = vadd.f32 0.0, %v527
    %v529 = vpop.f32.mrf.mxu0
    %530 = vmatprep.mubr.f32.mxu0 0.0
    %531 = vmatmul.mubr.f32.gmra.mxu0 %v444
    %v532 = vpop.f32.mrf.mxu0
    %v533 = vadd.f32 0.0, %v532
    %v534 = vpop.f32.mrf.mxu0
    %535 = vmatprep.mubr.f32.mxu0 0.0
    %536 = vmatmul.mubr.f32.gmra.mxu0 %v446
    %v537 = vpop.f32.mrf.mxu0
    %v538 = vadd.f32 0.0, %v537
    %v539 = vpop.f32.mrf.mxu0
    %540 = vdwg.mxu0
    %v541 = vmul.f32 %v523, 0.35355338
    %v542 = vmul.f32 %v528, 0.35355338
    %v543 = vmul.f32 %v533, 0.35355338
    %v544 = vmul.f32 %v538, 0.35355338
    %v545 = vadd.f32 %v541, %v35
    %v546 = vadd.f32 %v542, %v36
    %v547 = vadd.f32 %v543, %v37
    %v548 = vadd.f32 %v544, %v38
    %v549 = vsel %vm330, %v545, -inf
    %550 = vmax.xlane.f32.xlu0 %v549
    %v551 = vpop.xlane.xlu0 %550
    %v552 = vsel %vm330, %v546, -inf
    %553 = vmax.xlane.f32.xlu0 %v552
    %v554 = vpop.xlane.xlu0 %553
    %v555 = vsel %vm330, %v547, -inf
    %556 = vmax.xlane.f32.xlu0 %v555
    %v557 = vpop.xlane.xlu0 %556
    %v558 = vsel %vm330, %v548, -inf
    %559 = vmax.xlane.f32.xlu0 %v558
    %v560 = vpop.xlane.xlu0 %559
    %v561 = vsub.f32 %v545, %v551
    %v562 = vsub.f32 %v546, %v554
    %v563 = vsub.f32 %v547, %v557
    %v564 = vsub.f32 %v548, %v560
    %v565 = vmul.f32 %v561, 1.442695
    %v566 = vpow.pop %v565
    %v567 = vmul.f32 %v562, 1.442695
    %v568 = vpow.pop %v567
    %v569 = vmul.f32 %v563, 1.442695
    %v570 = vpow.pop %v569
    %v571 = vmul.f32 %v564, 1.442695
    %v572 = vpow.pop %v571
    %v573 = vsel %vm330, %v566, 0.0
    %574 = vadd.xlane.f32.xlu0 %v573
    %v575 = vpop.xlane.xlu0 %574
    %v576 = vsel %vm330, %v568, 0.0
    %577 = vadd.xlane.f32.xlu0 %v576
    %v578 = vpop.xlane.xlu0 %577
    %v579 = vsel %vm330, %v570, 0.0
    %580 = vadd.xlane.f32.xlu0 %v579
    %v581 = vpop.xlane.xlu0 %580
    %v582 = vsel %vm330, %v572, 0.0
    %583 = vadd.xlane.f32.xlu0 %v582
    %v584 = vpop.xlane.xlu0 %583
    %v585 = vrcp.pop %v575
    %v586 = vrcp.pop %v578
    %v587 = vrcp.pop %v581
    %v588 = vrcp.pop %v584
    %v589 = vmul.f32 %v566, %v585
    %v590 = vmul.f32 %v568, %v586
    %v591 = vmul.f32 %v570, %v587
    %v592 = vmul.f32 %v572, %v588
    %593 = vrot.lane.b32.xlu0 %v410, 64
    %v594 = vpop.permute.xlu0 %593
    %595 = vrot.lane.b32.xlu0 %v415, 64
    %v596 = vpop.permute.xlu0 %595
    %597 = vrot.lane.b32.xlu0 %v420, 64
    %v598 = vpop.permute.xlu0 %597
    %599 = vrot.lane.b32.xlu0 %v425, 64
    %v600 = vpop.permute.xlu0 %599
    %v606 = vsel %vm330, %v589, 0
    %v609 = vsel %vm330, %v590, 0
    %v612 = vsel %vm330, %v591, 0
    %v615 = vsel %vm330, %v592, 0
    %617 = vmatprep.subr.mxu0 0.0
    %618 = vmatpush1.msra.mxu0 0.0
    %619 = vmatprep.subr.mxu0 0.0
    %620 = vmatpush1.msra.mxu0 0.0
    %621 = vmatprep.subr.mxu0 0.0
    %622 = vmatpush1.msra.mxu0 0.0
    %623 = vmatprep.subr.mxu0 0.0
    %624 = vmatpush1.msra.mxu0 0.0
    %625 = vmatprep.subr.mxu0 0.0
    %626 = vmatpush1.msra.mxu0 0.0
    %627 = vmatprep.subr.mxu0 0.0
    %628 = vmatpush1.msra.mxu0 0.0
    %629 = vmatprep.subr.mxu0 0.0
    %630 = vmatpush1.msra.mxu0 0.0
    %631 = vmatprep.subr.mxu0 0.0
    %632 = vmatpush1.msra.mxu0 0.0
    %633 = vmatprep.subr.mxu0 0.0
    %634 = vmatpush1.msra.mxu0 0.0
    %635 = vmatprep.subr.mxu0 0.0
    %636 = vmatpush1.msra.mxu0 0.0
    %637 = vmatprep.subr.mxu0 0.0
    %638 = vmatpush1.msra.mxu0 0.0
    %639 = vmatprep.subr.mxu0 0.0
    %640 = vmatpush1.msra.mxu0 0.0
    %641 = vmatprep.subr.mxu0 0.0
    %642 = vmatpush1.msra.mxu0 %v600
    %643 = vmatprep.subr.mxu0 0.0
    %644 = vmatpush1.msra.mxu0 %v598
    %645 = vmatprep.subr.mxu0 0.0
    %646 = vmatpush1.msra.mxu0 %v596
    %647 = vmatprep.subr.mxu0 0.0
    %648 = vmatpush1.msra.mxu0 %v594
    %649 = vmatprep.subr.mxu0 0.0
    %650 = vmatpush2.msra.mxu0 0.0
    %651 = vmatprep.subr.mxu0 0.0
    %652 = vmatpush2.msra.mxu0 0.0
    %653 = vmatprep.subr.mxu0 0.0
    %654 = vmatpush2.msra.mxu0 0.0
    %655 = vmatprep.subr.mxu0 0.0
    %656 = vmatpush2.msra.mxu0 0.0
    %657 = vmatprep.subr.mxu0 0.0
    %658 = vmatpush2.msra.mxu0 0.0
    %659 = vmatprep.subr.mxu0 0.0
    %660 = vmatpush2.msra.mxu0 0.0
    %661 = vmatprep.subr.mxu0 0.0
    %662 = vmatpush2.msra.mxu0 0.0
    %663 = vmatprep.subr.mxu0 0.0
    %664 = vmatpush2.msra.mxu0 0.0
    %665 = vmatprep.subr.mxu0 0.0
    %666 = vmatpush2.msra.mxu0 0.0
    %667 = vmatprep.subr.mxu0 0.0
    %668 = vmatpush2.msra.mxu0 0.0
    %669 = vmatprep.subr.mxu0 0.0
    %670 = vmatpush2.msra.mxu0 0.0
    %671 = vmatprep.subr.mxu0 0.0
    %672 = vmatpush2.msra.mxu0 0.0
    %673 = vmatprep.subr.mxu0 0.0
    %674 = vmatpush2.msra.mxu0 0.0
    %675 = vmatprep.subr.mxu0 0.0
    %676 = vmatpush2.msra.mxu0 0.0
    %677 = vmatprep.subr.mxu0 0.0
    %678 = vmatpush2.msra.mxu0 0.0
    %679 = vmatprep.subr.mxu0 0.0
    %680 = vmatpush2.msra.mxu0 0.0
    %681 = vmatprep.mubr.f32.mxu0 0.0
    %682 = vmatmul.mubr.f32.gmra.mxu0 %v606
    %v683 = vpop.f32.mrf.mxu0
    %v684 = vadd.f32 0.0, %v683
    %v685 = vpop.f32.mrf.mxu0
    %686 = vmatprep.mubr.f32.mxu0 0.0
    %687 = vmatmul.mubr.f32.gmra.mxu0 %v609
    %v688 = vpop.f32.mrf.mxu0
    %v689 = vadd.f32 0.0, %v688
    %v690 = vpop.f32.mrf.mxu0
    %691 = vmatprep.mubr.f32.mxu0 0.0
    %692 = vmatmul.mubr.f32.gmra.mxu0 %v612
    %v693 = vpop.f32.mrf.mxu0
    %v694 = vadd.f32 0.0, %v693
    %v695 = vpop.f32.mrf.mxu0
    %696 = vmatprep.mubr.f32.mxu0 0.0
    %697 = vmatmul.mubr.f32.gmra.mxu0 %v615
    %v698 = vpop.f32.mrf.mxu0
    %v699 = vadd.f32 0.0, %v698
    %v700 = vpop.f32.mrf.mxu0
    %701 = vdwg.mxu0
    %702 = vst.msk [vmem:[#allocation2] sm:$0xff] %vm211, %v684
    %703 = vst.msk [vmem:[#allocation2 + $0x8] sm:$0xff] %vm211, %v689
    %704 = vst.msk [vmem:[#allocation2 + $0x10] sm:$0xff] %vm211, %v694
    %705 = vst.msk [vmem:[#allocation2 + $0x18] sm:$0xff] %vm211, %v699
    %706 = vrot.lane.b32.xlu0 %v410, 120
    %v707 = vpop.permute.xlu0 %706
    %708 = vrot.lane.b32.xlu0 %v415, 120
    %v709 = vpop.permute.xlu0 %708
    %710 = vrot.lane.b32.xlu0 %v420, 120
    %v711 = vpop.permute.xlu0 %710
    %712 = vrot.lane.b32.xlu0 %v425, 120
    %v713 = vpop.permute.xlu0 %712
    %714 = vrot.lane.b32.xlu0 %v410, 88
    %v715 = vpop.permute.xlu0 %714
    %716 = vrot.lane.b32.xlu0 %v415, 88
    %v717 = vpop.permute.xlu0 %716
    %718 = vrot.lane.b32.xlu0 %v420, 88
    %v719 = vpop.permute.xlu0 %718
    %720 = vrot.lane.b32.xlu0 %v425, 88
    %v721 = vpop.permute.xlu0 %720
    %v722 = vsel %vm211, %v707, 0
    %v724 = vsel %vm211, %v709, 0
    %v726 = vsel %vm211, %v711, 0
    %v728 = vsel %vm211, %v713, 0
    %v730 = vsel %vm211, %v715, 0
    %v732 = vsel %vm211, %v717, 0
    %v734 = vsel %vm211, %v719, 0
    %v736 = vsel %vm211, %v721, 0
    %738 = vmatprep.subr.mxu0 0.0
    %739 = vmatpush1.xpose.msra.mxu0 0.0
    %740 = vmatprep.subr.mxu0 0.0
    %741 = vmatpush1.xpose.msra.mxu0 0.0
    %742 = vmatprep.subr.mxu0 0.0
    %743 = vmatpush1.xpose.msra.mxu0 0.0
    %744 = vmatprep.subr.mxu0 0.0
    %745 = vmatpush1.xpose.msra.mxu0 0.0
    %746 = vmatprep.subr.mxu0 0.0
    %747 = vmatpush1.xpose.msra.mxu0 0.0
    %748 = vmatprep.subr.mxu0 0.0
    %749 = vmatpush1.xpose.msra.mxu0 0.0
    %750 = vmatprep.subr.mxu0 0.0
    %751 = vmatpush1.xpose.msra.mxu0 0.0
    %752 = vmatprep.subr.mxu0 0.0
    %753 = vmatpush1.xpose.msra.mxu0 0.0
    %754 = vmatprep.subr.mxu0 0.0
    %755 = vmatpush1.xpose.msra.mxu0 0.0
    %756 = vmatprep.subr.mxu0 0.0
    %757 = vmatpush1.xpose.msra.mxu0 0.0
    %758 = vmatprep.subr.mxu0 0.0
    %759 = vmatpush1.xpose.msra.mxu0 0.0
    %760 = vmatprep.subr.mxu0 0.0
    %761 = vmatpush1.xpose.msra.mxu0 0.0
    %762 = vmatprep.subr.mxu0 0.0
    %763 = vmatpush1.xpose.msra.mxu0 %v736
    %764 = vmatprep.subr.mxu0 0.0
    %765 = vmatpush1.xpose.msra.mxu0 %v734
    %766 = vmatprep.subr.mxu0 0.0
    %767 = vmatpush1.xpose.msra.mxu0 %v732
    %768 = vmatprep.subr.mxu0 0.0
    %769 = vmatpush1.xpose.msra.mxu0 %v730
    %770 = vmatprep.subr.mxu0 0.0
    %771 = vmatpush2.xpose.msra.mxu0 0.0
    %772 = vmatprep.subr.mxu0 0.0
    %773 = vmatpush2.xpose.msra.mxu0 0.0
    %774 = vmatprep.subr.mxu0 0.0
    %775 = vmatpush2.xpose.msra.mxu0 0.0
    %776 = vmatprep.subr.mxu0 0.0
    %777 = vmatpush2.xpose.msra.mxu0 0.0
    %778 = vmatprep.subr.mxu0 0.0
    %779 = vmatpush2.xpose.msra.mxu0 0.0
    %780 = vmatprep.subr.mxu0 0.0
    %781 = vmatpush2.xpose.msra.mxu0 0.0
    %782 = vmatprep.subr.mxu0 0.0
    %783 = vmatpush2.xpose.msra.mxu0 0.0
    %784 = vmatprep.subr.mxu0 0.0
    %785 = vmatpush2.xpose.msra.mxu0 0.0
    %786 = vmatprep.subr.mxu0 0.0
    %787 = vmatpush2.xpose.msra.mxu0 0.0
    %788 = vmatprep.subr.mxu0 0.0
    %789 = vmatpush2.xpose.msra.mxu0 0.0
    %790 = vmatprep.subr.mxu0 0.0
    %791 = vmatpush2.xpose.msra.mxu0 0.0
    %792 = vmatprep.subr.mxu0 0.0
    %793 = vmatpush2.xpose.msra.mxu0 0.0
    %794 = vmatprep.subr.mxu0 0.0
    %795 = vmatpush2.xpose.msra.mxu0 0.0
    %796 = vmatprep.subr.mxu0 0.0
    %797 = vmatpush2.xpose.msra.mxu0 0.0
    %798 = vmatprep.subr.mxu0 0.0
    %799 = vmatpush2.xpose.msra.mxu0 0.0
    %800 = vmatprep.subr.mxu0 0.0
    %801 = vmatpush2.xpose.msra.mxu0 0.0
    %802 = vmatprep.mubr.f32.mxu0 0.0
    %803 = vmatmul.mubr.f32.gmra.mxu0 %v722
    %v804 = vpop.f32.mrf.mxu0
    %v805 = vadd.f32 0.0, %v804
    %v806 = vpop.f32.mrf.mxu0
    %807 = vmatprep.mubr.f32.mxu0 0.0
    %808 = vmatmul.mubr.f32.gmra.mxu0 %v724
    %v809 = vpop.f32.mrf.mxu0
    %v810 = vadd.f32 0.0, %v809
    %v811 = vpop.f32.mrf.mxu0
    %812 = vmatprep.mubr.f32.mxu0 0.0
    %813 = vmatmul.mubr.f32.gmra.mxu0 %v726
    %v814 = vpop.f32.mrf.mxu0
    %v815 = vadd.f32 0.0, %v814
    %v816 = vpop.f32.mrf.mxu0
    %817 = vmatprep.mubr.f32.mxu0 0.0
    %818 = vmatmul.mubr.f32.gmra.mxu0 %v728
    %v819 = vpop.f32.mrf.mxu0
    %v820 = vadd.f32 0.0, %v819
    %v821 = vpop.f32.mrf.mxu0
    %822 = vdwg.mxu0
    %v823 = vmul.f32 %v805, 0.35355338
    %v824 = vmul.f32 %v810, 0.35355338
    %v825 = vmul.f32 %v815, 0.35355338
    %v826 = vmul.f32 %v820, 0.35355338
    %v827 = vadd.f32 %v823, %v35
    %v828 = vadd.f32 %v824, %v36
    %v829 = vadd.f32 %v825, %v37
    %v830 = vadd.f32 %v826, %v38
    %v831 = vsel %vm330, %v827, -inf
    %832 = vmax.xlane.f32.xlu0 %v831
    %v833 = vpop.xlane.xlu0 %832
    %v834 = vsel %vm330, %v828, -inf
    %835 = vmax.xlane.f32.xlu0 %v834
    %v836 = vpop.xlane.xlu0 %835
    %v837 = vsel %vm330, %v829, -inf
    %838 = vmax.xlane.f32.xlu0 %v837
    %v839 = vpop.xlane.xlu0 %838
    %v840 = vsel %vm330, %v830, -inf
    %841 = vmax.xlane.f32.xlu0 %v840
    %v842 = vpop.xlane.xlu0 %841
    %v843 = vsub.f32 %v827, %v833
    %v844 = vsub.f32 %v828, %v836
    %v845 = vsub.f32 %v829, %v839
    %v846 = vsub.f32 %v830, %v842
    %v847 = vmul.f32 %v843, 1.442695
    %v848 = vpow.pop %v847
    %v849 = vmul.f32 %v844, 1.442695
    %v850 = vpow.pop %v849
    %v851 = vmul.f32 %v845, 1.442695
    %v852 = vpow.pop %v851
    %v853 = vmul.f32 %v846, 1.442695
    %v854 = vpow.pop %v853
    %v855 = vsel %vm330, %v848, 0.0
    %856 = vadd.xlane.f32.xlu0 %v855
    %v857 = vpop.xlane.xlu0 %856
    %v858 = vsel %vm330, %v850, 0.0
    %859 = vadd.xlane.f32.xlu0 %v858
    %v860 = vpop.xlane.xlu0 %859
    %v861 = vsel %vm330, %v852, 0.0
    %862 = vadd.xlane.f32.xlu0 %v861
    %v863 = vpop.xlane.xlu0 %862
    %v864 = vsel %vm330, %v854, 0.0
    %865 = vadd.xlane.f32.xlu0 %v864
    %v866 = vpop.xlane.xlu0 %865
    %v867 = vrcp.pop %v857
    %v868 = vrcp.pop %v860
    %v869 = vrcp.pop %v863
    %v870 = vrcp.pop %v866
    %v871 = vmul.f32 %v848, %v867
    %v872 = vmul.f32 %v850, %v868
    %v873 = vmul.f32 %v852, %v869
    %v874 = vmul.f32 %v854, %v870
    %875 = vrot.lane.b32.xlu0 %v410, 56
    %v876 = vpop.permute.xlu0 %875
    %877 = vrot.lane.b32.xlu0 %v415, 56
    %v878 = vpop.permute.xlu0 %877
    %879 = vrot.lane.b32.xlu0 %v420, 56
    %v880 = vpop.permute.xlu0 %879
    %881 = vrot.lane.b32.xlu0 %v425, 56
    %v882 = vpop.permute.xlu0 %881
    %v888 = vsel %vm330, %v871, 0
    %v891 = vsel %vm330, %v872, 0
    %v894 = vsel %vm330, %v873, 0
    %v897 = vsel %vm330, %v874, 0
    %899 = vmatprep.subr.mxu0 0.0
    %900 = vmatpush1.msra.mxu0 0.0
    %901 = vmatprep.subr.mxu0 0.0
    %902 = vmatpush1.msra.mxu0 0.0
    %903 = vmatprep.subr.mxu0 0.0
    %904 = vmatpush1.msra.mxu0 0.0
    %905 = vmatprep.subr.mxu0 0.0
    %906 = vmatpush1.msra.mxu0 0.0
    %907 = vmatprep.subr.mxu0 0.0
    %908 = vmatpush1.msra.mxu0 0.0
    %909 = vmatprep.subr.mxu0 0.0
    %910 = vmatpush1.msra.mxu0 0.0
    %911 = vmatprep.subr.mxu0 0.0
    %912 = vmatpush1.msra.mxu0 0.0
    %913 = vmatprep.subr.mxu0 0.0
    %914 = vmatpush1.msra.mxu0 0.0
    %915 = vmatprep.subr.mxu0 0.0
    %916 = vmatpush1.msra.mxu0 0.0
    %917 = vmatprep.subr.mxu0 0.0
    %918 = vmatpush1.msra.mxu0 0.0
    %919 = vmatprep.subr.mxu0 0.0
    %920 = vmatpush1.msra.mxu0 0.0
    %921 = vmatprep.subr.mxu0 0.0
    %922 = vmatpush1.msra.mxu0 0.0
    %923 = vmatprep.subr.mxu0 0.0
    %924 = vmatpush1.msra.mxu0 %v882
    %925 = vmatprep.subr.mxu0 0.0
    %926 = vmatpush1.msra.mxu0 %v880
    %927 = vmatprep.subr.mxu0 0.0
    %928 = vmatpush1.msra.mxu0 %v878
    %929 = vmatprep.subr.mxu0 0.0
    %930 = vmatpush1.msra.mxu0 %v876
    %931 = vmatprep.subr.mxu0 0.0
    %932 = vmatpush2.msra.mxu0 0.0
    %933 = vmatprep.subr.mxu0 0.0
    %934 = vmatpush2.msra.mxu0 0.0
    %935 = vmatprep.subr.mxu0 0.0
    %936 = vmatpush2.msra.mxu0 0.0
    %937 = vmatprep.subr.mxu0 0.0
    %938 = vmatpush2.msra.mxu0 0.0
    %939 = vmatprep.subr.mxu0 0.0
    %940 = vmatpush2.msra.mxu0 0.0
    %941 = vmatprep.subr.mxu0 0.0
    %942 = vmatpush2.msra.mxu0 0.0
    %943 = vmatprep.subr.mxu0 0.0
    %944 = vmatpush2.msra.mxu0 0.0
    %945 = vmatprep.subr.mxu0 0.0
    %946 = vmatpush2.msra.mxu0 0.0
    %947 = vmatprep.subr.mxu0 0.0
    %948 = vmatpush2.msra.mxu0 0.0
    %949 = vmatprep.subr.mxu0 0.0
    %950 = vmatpush2.msra.mxu0 0.0
    %951 = vmatprep.subr.mxu0 0.0
    %952 = vmatpush2.msra.mxu0 0.0
    %953 = vmatprep.subr.mxu0 0.0
    %954 = vmatpush2.msra.mxu0 0.0
    %955 = vmatprep.subr.mxu0 0.0
    %956 = vmatpush2.msra.mxu0 0.0
    %957 = vmatprep.subr.mxu0 0.0
    %958 = vmatpush2.msra.mxu0 0.0
    %959 = vmatprep.subr.mxu0 0.0
    %960 = vmatpush2.msra.mxu0 0.0
    %961 = vmatprep.subr.mxu0 0.0
    %962 = vmatpush2.msra.mxu0 0.0
    %963 = vmatprep.mubr.f32.mxu0 0.0
    %964 = vmatmul.mubr.f32.gmra.mxu0 %v888
    %v965 = vpop.f32.mrf.mxu0
    %v966 = vadd.f32 0.0, %v965
    %v967 = vpop.f32.mrf.mxu0
    %968 = vmatprep.mubr.f32.mxu0 0.0
    %969 = vmatmul.mubr.f32.gmra.mxu0 %v891
    %v970 = vpop.f32.mrf.mxu0
    %v971 = vadd.f32 0.0, %v970
    %v972 = vpop.f32.mrf.mxu0
    %973 = vmatprep.mubr.f32.mxu0 0.0
    %974 = vmatmul.mubr.f32.gmra.mxu0 %v894
    %v975 = vpop.f32.mrf.mxu0
    %v976 = vadd.f32 0.0, %v975
    %v977 = vpop.f32.mrf.mxu0
    %978 = vmatprep.mubr.f32.mxu0 0.0
    %979 = vmatmul.mubr.f32.gmra.mxu0 %v897
    %v980 = vpop.f32.mrf.mxu0
    %v981 = vadd.f32 0.0, %v980
    %v982 = vpop.f32.mrf.mxu0
    %983 = vdwg.mxu0
    %988 = vrot.lane.b32.xlu0 %v966, 8
    %v989 = vpop.permute.xlu0 %988
    %990 = vrot.lane.b32.xlu0 %v971, 8
    %v991 = vpop.permute.xlu0 %990
    %992 = vrot.lane.b32.xlu0 %v976, 8
    %v993 = vpop.permute.xlu0 %992
    %994 = vrot.lane.b32.xlu0 %v981, 8
    %v995 = vpop.permute.xlu0 %994
    %vm1000 = vcmask 130112
    %1001 = vst.msk [vmem:[#allocation2] sm:$0xff] %vm1000, %v989
    %1002 = vst.msk [vmem:[#allocation2 + $0x8] sm:$0xff] %vm1000, %v991
    %1003 = vst.msk [vmem:[#allocation2 + $0x10] sm:$0xff] %vm1000, %v993
    %1004 = vst.msk [vmem:[#allocation2 + $0x18] sm:$0xff] %vm1000, %v995
    %1005 = vrot.lane.b32.xlu0 %v410, 112
    %v1006 = vpop.permute.xlu0 %1005
    %1007 = vrot.lane.b32.xlu0 %v415, 112
    %v1008 = vpop.permute.xlu0 %1007
    %1009 = vrot.lane.b32.xlu0 %v420, 112
    %v1010 = vpop.permute.xlu0 %1009
    %1011 = vrot.lane.b32.xlu0 %v425, 112
    %v1012 = vpop.permute.xlu0 %1011
    %1013 = vrot.lane.b32.xlu0 %v410, 80
    %v1014 = vpop.permute.xlu0 %1013
    %1015 = vrot.lane.b32.xlu0 %v415, 80
    %v1016 = vpop.permute.xlu0 %1015
    %1017 = vrot.lane.b32.xlu0 %v420, 80
    %v1018 = vpop.permute.xlu0 %1017
    %1019 = vrot.lane.b32.xlu0 %v425, 80
    %v1020 = vpop.permute.xlu0 %1019
    %v1021 = vsel %vm211, %v1006, 0
    %v1023 = vsel %vm211, %v1008, 0
    %v1025 = vsel %vm211, %v1010, 0
    %v1027 = vsel %vm211, %v1012, 0
    %v1029 = vsel %vm211, %v1014, 0
    %v1031 = vsel %vm211, %v1016, 0
    %v1033 = vsel %vm211, %v1018, 0
    %v1035 = vsel %vm211, %v1020, 0
    %1037 = vmatprep.subr.mxu0 0.0
    %1038 = vmatpush1.xpose.msra.mxu0 0.0
    %1039 = vmatprep.subr.mxu0 0.0
    %1040 = vmatpush1.xpose.msra.mxu0 0.0
    %1041 = vmatprep.subr.mxu0 0.0
    %1042 = vmatpush1.xpose.msra.mxu0 0.0
    %1043 = vmatprep.subr.mxu0 0.0
    %1044 = vmatpush1.xpose.msra.mxu0 0.0
    %1045 = vmatprep.subr.mxu0 0.0
    %1046 = vmatpush1.xpose.msra.mxu0 0.0
    %1047 = vmatprep.subr.mxu0 0.0
    %1048 = vmatpush1.xpose.msra.mxu0 0.0
    %1049 = vmatprep.subr.mxu0 0.0
    %1050 = vmatpush1.xpose.msra.mxu0 0.0
    %1051 = vmatprep.subr.mxu0 0.0
    %1052 = vmatpush1.xpose.msra.mxu0 0.0
    %1053 = vmatprep.subr.mxu0 0.0
    %1054 = vmatpush1.xpose.msra.mxu0 0.0
    %1055 = vmatprep.subr.mxu0 0.0
    %1056 = vmatpush1.xpose.msra.mxu0 0.0
    %1057 = vmatprep.subr.mxu0 0.0
    %1058 = vmatpush1.xpose.msra.mxu0 0.0
    %1059 = vmatprep.subr.mxu0 0.0
    %1060 = vmatpush1.xpose.msra.mxu0 0.0
    %1061 = vmatprep.subr.mxu0 0.0
    %1062 = vmatpush1.xpose.msra.mxu0 %v1035
    %1063 = vmatprep.subr.mxu0 0.0
    %1064 = vmatpush1.xpose.msra.mxu0 %v1033
    %1065 = vmatprep.subr.mxu0 0.0
    %1066 = vmatpush1.xpose.msra.mxu0 %v1031
    %1067 = vmatprep.subr.mxu0 0.0
    %1068 = vmatpush1.xpose.msra.mxu0 %v1029
    %1069 = vmatprep.subr.mxu0 0.0
    %1070 = vmatpush2.xpose.msra.mxu0 0.0
    %1071 = vmatprep.subr.mxu0 0.0
    %1072 = vmatpush2.xpose.msra.mxu0 0.0
    %1073 = vmatprep.subr.mxu0 0.0
    %1074 = vmatpush2.xpose.msra.mxu0 0.0
    %1075 = vmatprep.subr.mxu0 0.0
    %1076 = vmatpush2.xpose.msra.mxu0 0.0
    %1077 = vmatprep.subr.mxu0 0.0
    %1078 = vmatpush2.xpose.msra.mxu0 0.0
    %1079 = vmatprep.subr.mxu0 0.0
    %1080 = vmatpush2.xpose.msra.mxu0 0.0
    %1081 = vmatprep.subr.mxu0 0.0
    %1082 = vmatpush2.xpose.msra.mxu0 0.0
    %1083 = vmatprep.subr.mxu0 0.0
    %1084 = vmatpush2.xpose.msra.mxu0 0.0
    %1085 = vmatprep.subr.mxu0 0.0
    %1086 = vmatpush2.xpose.msra.mxu0 0.0
    %1087 = vmatprep.subr.mxu0 0.0
    %1088 = vmatpush2.xpose.msra.mxu0 0.0
    %1089 = vmatprep.subr.mxu0 0.0
    %1090 = vmatpush2.xpose.msra.mxu0 0.0
    %1091 = vmatprep.subr.mxu0 0.0
    %1092 = vmatpush2.xpose.msra.mxu0 0.0
    %1093 = vmatprep.subr.mxu0 0.0
    %1094 = vmatpush2.xpose.msra.mxu0 0.0
    %1095 = vmatprep.subr.mxu0 0.0
    %1096 = vmatpush2.xpose.msra.mxu0 0.0
    %1097 = vmatprep.subr.mxu0 0.0
    %1098 = vmatpush2.xpose.msra.mxu0 0.0
    %1099 = vmatprep.subr.mxu0 0.0
    %1100 = vmatpush2.xpose.msra.mxu0 0.0
    %1101 = vmatprep.mubr.f32.mxu0 0.0
    %1102 = vmatmul.mubr.f32.gmra.mxu0 %v1021
    %v1103 = vpop.f32.mrf.mxu0
    %v1104 = vadd.f32 0.0, %v1103
    %v1105 = vpop.f32.mrf.mxu0
    %1106 = vmatprep.mubr.f32.mxu0 0.0
    %1107 = vmatmul.mubr.f32.gmra.mxu0 %v1023
    %v1108 = vpop.f32.mrf.mxu0
    %v1109 = vadd.f32 0.0, %v1108
    %v1110 = vpop.f32.mrf.mxu0
    %1111 = vmatprep.mubr.f32.mxu0 0.0
    %1112 = vmatmul.mubr.f32.gmra.mxu0 %v1025
    %v1113 = vpop.f32.mrf.mxu0
    %v1114 = vadd.f32 0.0, %v1113
    %v1115 = vpop.f32.mrf.mxu0
    %1116 = vmatprep.mubr.f32.mxu0 0.0
    %1117 = vmatmul.mubr.f32.gmra.mxu0 %v1027
    %v1118 = vpop.f32.mrf.mxu0
    %v1119 = vadd.f32 0.0, %v1118
    %v1120 = vpop.f32.mrf.mxu0
    %1121 = vdwg.mxu0
    %v1122 = vmul.f32 %v1104, 0.35355338
    %v1123 = vmul.f32 %v1109, 0.35355338
    %v1124 = vmul.f32 %v1114, 0.35355338
    %v1125 = vmul.f32 %v1119, 0.35355338
    %v1126 = vadd.f32 %v1122, %v35
    %v1127 = vadd.f32 %v1123, %v36
    %v1128 = vadd.f32 %v1124, %v37
    %v1129 = vadd.f32 %v1125, %v38
    %v1130 = vsel %vm330, %v1126, -inf
    %1131 = vmax.xlane.f32.xlu0 %v1130
    %v1132 = vpop.xlane.xlu0 %1131
    %v1133 = vsel %vm330, %v1127, -inf
    %1134 = vmax.xlane.f32.xlu0 %v1133
    %v1135 = vpop.xlane.xlu0 %1134
    %v1136 = vsel %vm330, %v1128, -inf
    %1137 = vmax.xlane.f32.xlu0 %v1136
    %v1138 = vpop.xlane.xlu0 %1137
    %v1139 = vsel %vm330, %v1129, -inf
    %1140 = vmax.xlane.f32.xlu0 %v1139
    %v1141 = vpop.xlane.xlu0 %1140
    %v1142 = vsub.f32 %v1126, %v1132
    %v1143 = vsub.f32 %v1127, %v1135
    %v1144 = vsub.f32 %v1128, %v1138
    %v1145 = vsub.f32 %v1129, %v1141
    %v1146 = vmul.f32 %v1142, 1.442695
    %v1147 = vpow.pop %v1146
    %v1148 = vmul.f32 %v1143, 1.442695
    %v1149 = vpow.pop %v1148
    %v1150 = vmul.f32 %v1144, 1.442695
    %v1151 = vpow.pop %v1150
    %v1152 = vmul.f32 %v1145, 1.442695
    %v1153 = vpow.pop %v1152
    %v1154 = vsel %vm330, %v1147, 0.0
    %1155 = vadd.xlane.f32.xlu0 %v1154
    %v1156 = vpop.xlane.xlu0 %1155
    %v1157 = vsel %vm330, %v1149, 0.0
    %1158 = vadd.xlane.f32.xlu0 %v1157
    %v1159 = vpop.xlane.xlu0 %1158
    %v1160 = vsel %vm330, %v1151, 0.0
    %1161 = vadd.xlane.f32.xlu0 %v1160
    %v1162 = vpop.xlane.xlu0 %1161
    %v1163 = vsel %vm330, %v1153, 0.0
    %1164 = vadd.xlane.f32.xlu0 %v1163
    %v1165 = vpop.xlane.xlu0 %1164
    %v1166 = vrcp.pop %v1156
    %v1167 = vrcp.pop %v1159
    %v1168 = vrcp.pop %v1162
    %v1169 = vrcp.pop %v1165
    %v1170 = vmul.f32 %v1147, %v1166
    %v1171 = vmul.f32 %v1149, %v1167
    %v1172 = vmul.f32 %v1151, %v1168
    %v1173 = vmul.f32 %v1153, %v1169
    %1174 = vrot.lane.b32.xlu0 %v410, 48
    %v1175 = vpop.permute.xlu0 %1174
    %1176 = vrot.lane.b32.xlu0 %v415, 48
    %v1177 = vpop.permute.xlu0 %1176
    %1178 = vrot.lane.b32.xlu0 %v420, 48
    %v1179 = vpop.permute.xlu0 %1178
    %1180 = vrot.lane.b32.xlu0 %v425, 48
    %v1181 = vpop.permute.xlu0 %1180
    %v1187 = vsel %vm330, %v1170, 0
    %v1190 = vsel %vm330, %v1171, 0
    %v1193 = vsel %vm330, %v1172, 0
    %v1196 = vsel %vm330, %v1173, 0
    %1198 = vmatprep.subr.mxu0 0.0
    %1199 = vmatpush1.msra.mxu0 0.0
    %1200 = vmatprep.subr.mxu0 0.0
    %1201 = vmatpush1.msra.mxu0 0.0
    %1202 = vmatprep.subr.mxu0 0.0
    %1203 = vmatpush1.msra.mxu0 0.0
    %1204 = vmatprep.subr.mxu0 0.0
    %1205 = vmatpush1.msra.mxu0 0.0
    %1206 = vmatprep.subr.mxu0 0.0
    %1207 = vmatpush1.msra.mxu0 0.0
    %1208 = vmatprep.subr.mxu0 0.0
    %1209 = vmatpush1.msra.mxu0 0.0
    %1210 = vmatprep.subr.mxu0 0.0
    %1211 = vmatpush1.msra.mxu0 0.0
    %1212 = vmatprep.subr.mxu0 0.0
    %1213 = vmatpush1.msra.mxu0 0.0
    %1214 = vmatprep.subr.mxu0 0.0
    %1215 = vmatpush1.msra.mxu0 0.0
    %1216 = vmatprep.subr.mxu0 0.0
    %1217 = vmatpush1.msra.mxu0 0.0
    %1218 = vmatprep.subr.mxu0 0.0
    %1219 = vmatpush1.msra.mxu0 0.0
    %1220 = vmatprep.subr.mxu0 0.0
    %1221 = vmatpush1.msra.mxu0 0.0
    %1222 = vmatprep.subr.mxu0 0.0
    %1223 = vmatpush1.msra.mxu0 %v1181
    %1224 = vmatprep.subr.mxu0 0.0
    %1225 = vmatpush1.msra.mxu0 %v1179
    %1226 = vmatprep.subr.mxu0 0.0
    %1227 = vmatpush1.msra.mxu0 %v1177
    %1228 = vmatprep.subr.mxu0 0.0
    %1229 = vmatpush1.msra.mxu0 %v1175
    %1230 = vmatprep.subr.mxu0 0.0
    %1231 = vmatpush2.msra.mxu0 0.0
    %1232 = vmatprep.subr.mxu0 0.0
    %1233 = vmatpush2.msra.mxu0 0.0
    %1234 = vmatprep.subr.mxu0 0.0
    %1235 = vmatpush2.msra.mxu0 0.0
    %1236 = vmatprep.subr.mxu0 0.0
    %1237 = vmatpush2.msra.mxu0 0.0
    %1238 = vmatprep.subr.mxu0 0.0
    %1239 = vmatpush2.msra.mxu0 0.0
    %1240 = vmatprep.subr.mxu0 0.0
    %1241 = vmatpush2.msra.mxu0 0.0
    %1242 = vmatprep.subr.mxu0 0.0
    %1243 = vmatpush2.msra.mxu0 0.0
    %1244 = vmatprep.subr.mxu0 0.0
    %1245 = vmatpush2.msra.mxu0 0.0
    %1246 = vmatprep.subr.mxu0 0.0
    %1247 = vmatpush2.msra.mxu0 0.0
    %1248 = vmatprep.subr.mxu0 0.0
    %1249 = vmatpush2.msra.mxu0 0.0
    %1250 = vmatprep.subr.mxu0 0.0
    %1251 = vmatpush2.msra.mxu0 0.0
    %1252 = vmatprep.subr.mxu0 0.0
    %1253 = vmatpush2.msra.mxu0 0.0
    %1254 = vmatprep.subr.mxu0 0.0
    %1255 = vmatpush2.msra.mxu0 0.0
    %1256 = vmatprep.subr.mxu0 0.0
    %1257 = vmatpush2.msra.mxu0 0.0
    %1258 = vmatprep.subr.mxu0 0.0
    %1259 = vmatpush2.msra.mxu0 0.0
    %1260 = vmatprep.subr.mxu0 0.0
    %1261 = vmatpush2.msra.mxu0 0.0
    %1262 = vmatprep.mubr.f32.mxu0 0.0
    %1263 = vmatmul.mubr.f32.gmra.mxu0 %v1187
    %v1264 = vpop.f32.mrf.mxu0
    %v1265 = vadd.f32 0.0, %v1264
    %v1266 = vpop.f32.mrf.mxu0
    %1267 = vmatprep.mubr.f32.mxu0 0.0
    %1268 = vmatmul.mubr.f32.gmra.mxu0 %v1190
    %v1269 = vpop.f32.mrf.mxu0
    %v1270 = vadd.f32 0.0, %v1269
    %v1271 = vpop.f32.mrf.mxu0
    %1272 = vmatprep.mubr.f32.mxu0 0.0
    %1273 = vmatmul.mubr.f32.gmra.mxu0 %v1193
    %v1274 = vpop.f32.mrf.mxu0
    %v1275 = vadd.f32 0.0, %v1274
    %v1276 = vpop.f32.mrf.mxu0
    %1277 = vmatprep.mubr.f32.mxu0 0.0
    %1278 = vmatmul.mubr.f32.gmra.mxu0 %v1196
    %v1279 = vpop.f32.mrf.mxu0
    %v1280 = vadd.f32 0.0, %v1279
    %v1281 = vpop.f32.mrf.mxu0
    %1282 = vdwg.mxu0
    %1287 = vrot.lane.b32.xlu0 %v1265, 16
    %v1288 = vpop.permute.xlu0 %1287
    %1289 = vrot.lane.b32.xlu0 %v1270, 16
    %v1290 = vpop.permute.xlu0 %1289
    %1291 = vrot.lane.b32.xlu0 %v1275, 16
    %v1292 = vpop.permute.xlu0 %1291
    %1293 = vrot.lane.b32.xlu0 %v1280, 16
    %v1294 = vpop.permute.xlu0 %1293
    %vm1299 = vcmask 195712
    %1300 = vst.msk [vmem:[#allocation2] sm:$0xff] %vm1299, %v1288
    %1301 = vst.msk [vmem:[#allocation2 + $0x8] sm:$0xff] %vm1299, %v1290
    %1302 = vst.msk [vmem:[#allocation2 + $0x10] sm:$0xff] %vm1299, %v1292
    %1303 = vst.msk [vmem:[#allocation2 + $0x18] sm:$0xff] %vm1299, %v1294
    %1304 = vrot.lane.b32.xlu0 %v410, 104
    %v1305 = vpop.permute.xlu0 %1304
    %1306 = vrot.lane.b32.xlu0 %v415, 104
    %v1307 = vpop.permute.xlu0 %1306
    %1308 = vrot.lane.b32.xlu0 %v420, 104
    %v1309 = vpop.permute.xlu0 %1308
    %1310 = vrot.lane.b32.xlu0 %v425, 104
    %v1311 = vpop.permute.xlu0 %1310
    %1312 = vrot.lane.b32.xlu0 %v410, 72
    %v1313 = vpop.permute.xlu0 %1312
    %1314 = vrot.lane.b32.xlu0 %v415, 72
    %v1315 = vpop.permute.xlu0 %1314
    %1316 = vrot.lane.b32.xlu0 %v420, 72
    %v1317 = vpop.permute.xlu0 %1316
    %1318 = vrot.lane.b32.xlu0 %v425, 72
    %v1319 = vpop.permute.xlu0 %1318
    %v1320 = vsel %vm211, %v1305, 0
    %v1322 = vsel %vm211, %v1307, 0
    %v1324 = vsel %vm211, %v1309, 0
    %v1326 = vsel %vm211, %v1311, 0
    %v1328 = vsel %vm211, %v1313, 0
    %v1330 = vsel %vm211, %v1315, 0
    %v1332 = vsel %vm211, %v1317, 0
    %v1334 = vsel %vm211, %v1319, 0
    %1336 = vmatprep.subr.mxu0 0.0
    %1337 = vmatpush1.xpose.msra.mxu0 0.0
    %1338 = vmatprep.subr.mxu0 0.0
    %1339 = vmatpush1.xpose.msra.mxu0 0.0
    %1340 = vmatprep.subr.mxu0 0.0
    %1341 = vmatpush1.xpose.msra.mxu0 0.0
    %1342 = vmatprep.subr.mxu0 0.0
    %1343 = vmatpush1.xpose.msra.mxu0 0.0
    %1344 = vmatprep.subr.mxu0 0.0
    %1345 = vmatpush1.xpose.msra.mxu0 0.0
    %1346 = vmatprep.subr.mxu0 0.0
    %1347 = vmatpush1.xpose.msra.mxu0 0.0
    %1348 = vmatprep.subr.mxu0 0.0
    %1349 = vmatpush1.xpose.msra.mxu0 0.0
    %1350 = vmatprep.subr.mxu0 0.0
    %1351 = vmatpush1.xpose.msra.mxu0 0.0
    %1352 = vmatprep.subr.mxu0 0.0
    %1353 = vmatpush1.xpose.msra.mxu0 0.0
    %1354 = vmatprep.subr.mxu0 0.0
    %1355 = vmatpush1.xpose.msra.mxu0 0.0
    %1356 = vmatprep.subr.mxu0 0.0
    %1357 = vmatpush1.xpose.msra.mxu0 0.0
    %1358 = vmatprep.subr.mxu0 0.0
    %1359 = vmatpush1.xpose.msra.mxu0 0.0
    %1360 = vmatprep.subr.mxu0 0.0
    %1361 = vmatpush1.xpose.msra.mxu0 %v1334
    %1362 = vmatprep.subr.mxu0 0.0
    %1363 = vmatpush1.xpose.msra.mxu0 %v1332
    %1364 = vmatprep.subr.mxu0 0.0
    %1365 = vmatpush1.xpose.msra.mxu0 %v1330
    %1366 = vmatprep.subr.mxu0 0.0
    %1367 = vmatpush1.xpose.msra.mxu0 %v1328
    %1368 = vmatprep.subr.mxu0 0.0
    %1369 = vmatpush2.xpose.msra.mxu0 0.0
    %1370 = vmatprep.subr.mxu0 0.0
    %1371 = vmatpush2.xpose.msra.mxu0 0.0
    %1372 = vmatprep.subr.mxu0 0.0
    %1373 = vmatpush2.xpose.msra.mxu0 0.0
    %1374 = vmatprep.subr.mxu0 0.0
    %1375 = vmatpush2.xpose.msra.mxu0 0.0
    %1376 = vmatprep.subr.mxu0 0.0
    %1377 = vmatpush2.xpose.msra.mxu0 0.0
    %1378 = vmatprep.subr.mxu0 0.0
    %1379 = vmatpush2.xpose.msra.mxu0 0.0
    %1380 = vmatprep.subr.mxu0 0.0
    %1381 = vmatpush2.xpose.msra.mxu0 0.0
    %1382 = vmatprep.subr.mxu0 0.0
    %1383 = vmatpush2.xpose.msra.mxu0 0.0
    %1384 = vmatprep.subr.mxu0 0.0
    %1385 = vmatpush2.xpose.msra.mxu0 0.0
    %1386 = vmatprep.subr.mxu0 0.0
    %1387 = vmatpush2.xpose.msra.mxu0 0.0
    %1388 = vmatprep.subr.mxu0 0.0
    %1389 = vmatpush2.xpose.msra.mxu0 0.0
    %1390 = vmatprep.subr.mxu0 0.0
    %1391 = vmatpush2.xpose.msra.mxu0 0.0
    %1392 = vmatprep.subr.mxu0 0.0
    %1393 = vmatpush2.xpose.msra.mxu0 0.0
    %1394 = vmatprep.subr.mxu0 0.0
    %1395 = vmatpush2.xpose.msra.mxu0 0.0
    %1396 = vmatprep.subr.mxu0 0.0
    %1397 = vmatpush2.xpose.msra.mxu0 0.0
    %1398 = vmatprep.subr.mxu0 0.0
    %1399 = vmatpush2.xpose.msra.mxu0 0.0
    %1400 = vmatprep.mubr.f32.mxu0 0.0
    %1401 = vmatmul.mubr.f32.gmra.mxu0 %v1320
    %v1402 = vpop.f32.mrf.mxu0
    %v1403 = vadd.f32 0.0, %v1402
    %v1404 = vpop.f32.mrf.mxu0
    %1405 = vmatprep.mubr.f32.mxu0 0.0
    %1406 = vmatmul.mubr.f32.gmra.mxu0 %v1322
    %v1407 = vpop.f32.mrf.mxu0
    %v1408 = vadd.f32 0.0, %v1407
    %v1409 = vpop.f32.mrf.mxu0
    %1410 = vmatprep.mubr.f32.mxu0 0.0
    %1411 = vmatmul.mubr.f32.gmra.mxu0 %v1324
    %v1412 = vpop.f32.mrf.mxu0
    %v1413 = vadd.f32 0.0, %v1412
    %v1414 = vpop.f32.mrf.mxu0
    %1415 = vmatprep.mubr.f32.mxu0 0.0
    %1416 = vmatmul.mubr.f32.gmra.mxu0 %v1326
    %v1417 = vpop.f32.mrf.mxu0
    %v1418 = vadd.f32 0.0, %v1417
    %v1419 = vpop.f32.mrf.mxu0
    %1420 = vdwg.mxu0
    %v1421 = vmul.f32 %v1403, 0.35355338
    %v1422 = vmul.f32 %v1408, 0.35355338
    %v1423 = vmul.f32 %v1413, 0.35355338
    %v1424 = vmul.f32 %v1418, 0.35355338
    %v1425 = vadd.f32 %v1421, %v35
    %v1426 = vadd.f32 %v1422, %v36
    %v1427 = vadd.f32 %v1423, %v37
    %v1428 = vadd.f32 %v1424, %v38
    %v1429 = vsel %vm330, %v1425, -inf
    %1430 = vmax.xlane.f32.xlu0 %v1429
    %v1431 = vpop.xlane.xlu0 %1430
    %v1432 = vsel %vm330, %v1426, -inf
    %1433 = vmax.xlane.f32.xlu0 %v1432
    %v1434 = vpop.xlane.xlu0 %1433
    %v1435 = vsel %vm330, %v1427, -inf
    %1436 = vmax.xlane.f32.xlu0 %v1435
    %v1437 = vpop.xlane.xlu0 %1436
    %v1438 = vsel %vm330, %v1428, -inf
    %1439 = vmax.xlane.f32.xlu0 %v1438
    %v1440 = vpop.xlane.xlu0 %1439
    %v1441 = vsub.f32 %v1425, %v1431
    %v1442 = vsub.f32 %v1426, %v1434
    %v1443 = vsub.f32 %v1427, %v1437
    %v1444 = vsub.f32 %v1428, %v1440
    %v1445 = vmul.f32 %v1441, 1.442695
    %v1446 = vpow.pop %v1445
    %v1447 = vmul.f32 %v1442, 1.442695
    %v1448 = vpow.pop %v1447
    %v1449 = vmul.f32 %v1443, 1.442695
    %v1450 = vpow.pop %v1449
    %v1451 = vmul.f32 %v1444, 1.442695
    %v1452 = vpow.pop %v1451
    %v1453 = vsel %vm330, %v1446, 0.0
    %1454 = vadd.xlane.f32.xlu0 %v1453
    %v1455 = vpop.xlane.xlu0 %1454
    %v1456 = vsel %vm330, %v1448, 0.0
    %1457 = vadd.xlane.f32.xlu0 %v1456
    %v1458 = vpop.xlane.xlu0 %1457
    %v1459 = vsel %vm330, %v1450, 0.0
    %1460 = vadd.xlane.f32.xlu0 %v1459
    %v1461 = vpop.xlane.xlu0 %1460
    %v1462 = vsel %vm330, %v1452, 0.0
    %1463 = vadd.xlane.f32.xlu0 %v1462
    %v1464 = vpop.xlane.xlu0 %1463
    %v1465 = vrcp.pop %v1455
    %v1466 = vrcp.pop %v1458
    %v1467 = vrcp.pop %v1461
    %v1468 = vrcp.pop %v1464
    %v1469 = vmul.f32 %v1446, %v1465
    %v1470 = vmul.f32 %v1448, %v1466
    %v1471 = vmul.f32 %v1450, %v1467
    %v1472 = vmul.f32 %v1452, %v1468
    %1473 = vrot.lane.b32.xlu0 %v410, 40
    %v1474 = vpop.permute.xlu0 %1473
    %1475 = vrot.lane.b32.xlu0 %v415, 40
    %v1476 = vpop.permute.xlu0 %1475
    %1477 = vrot.lane.b32.xlu0 %v420, 40
    %v1478 = vpop.permute.xlu0 %1477
    %1479 = vrot.lane.b32.xlu0 %v425, 40
    %v1480 = vpop.permute.xlu0 %1479
    %v1486 = vsel %vm330, %v1469, 0
    %v1489 = vsel %vm330, %v1470, 0
    %v1492 = vsel %vm330, %v1471, 0
    %v1495 = vsel %vm330, %v1472, 0
    %1497 = vmatprep.subr.mxu0 0.0
    %1498 = vmatpush1.msra.mxu0 0.0
    %1499 = vmatprep.subr.mxu0 0.0
    %1500 = vmatpush1.msra.mxu0 0.0
    %1501 = vmatprep.subr.mxu0 0.0
    %1502 = vmatpush1.msra.mxu0 0.0
    %1503 = vmatprep.subr.mxu0 0.0
    %1504 = vmatpush1.msra.mxu0 0.0
    %1505 = vmatprep.subr.mxu0 0.0
    %1506 = vmatpush1.msra.mxu0 0.0
    %1507 = vmatprep.subr.mxu0 0.0
    %1508 = vmatpush1.msra.mxu0 0.0
    %1509 = vmatprep.subr.mxu0 0.0
    %1510 = vmatpush1.msra.mxu0 0.0
    %1511 = vmatprep.subr.mxu0 0.0
    %1512 = vmatpush1.msra.mxu0 0.0
    %1513 = vmatprep.subr.mxu0 0.0
    %1514 = vmatpush1.msra.mxu0 0.0
    %1515 = vmatprep.subr.mxu0 0.0
    %1516 = vmatpush1.msra.mxu0 0.0
    %1517 = vmatprep.subr.mxu0 0.0
    %1518 = vmatpush1.msra.mxu0 0.0
    %1519 = vmatprep.subr.mxu0 0.0
    %1520 = vmatpush1.msra.mxu0 0.0
    %1521 = vmatprep.subr.mxu0 0.0
    %1522 = vmatpush1.msra.mxu0 %v1480
    %1523 = vmatprep.subr.mxu0 0.0
    %1524 = vmatpush1.msra.mxu0 %v1478
    %1525 = vmatprep.subr.mxu0 0.0
    %1526 = vmatpush1.msra.mxu0 %v1476
    %1527 = vmatprep.subr.mxu0 0.0
    %1528 = vmatpush1.msra.mxu0 %v1474
    %1529 = vmatprep.subr.mxu0 0.0
    %1530 = vmatpush2.msra.mxu0 0.0
    %1531 = vmatprep.subr.mxu0 0.0
    %1532 = vmatpush2.msra.mxu0 0.0
    %1533 = vmatprep.subr.mxu0 0.0
    %1534 = vmatpush2.msra.mxu0 0.0
    %1535 = vmatprep.subr.mxu0 0.0
    %1536 = vmatpush2.msra.mxu0 0.0
    %1537 = vmatprep.subr.mxu0 0.0
    %1538 = vmatpush2.msra.mxu0 0.0
    %1539 = vmatprep.subr.mxu0 0.0
    %1540 = vmatpush2.msra.mxu0 0.0
    %1541 = vmatprep.subr.mxu0 0.0
    %1542 = vmatpush2.msra.mxu0 0.0
    %1543 = vmatprep.subr.mxu0 0.0
    %1544 = vmatpush2.msra.mxu0 0.0
    %1545 = vmatprep.subr.mxu0 0.0
    %1546 = vmatpush2.msra.mxu0 0.0
    %1547 = vmatprep.subr.mxu0 0.0
    %1548 = vmatpush2.msra.mxu0 0.0
    %1549 = vmatprep.subr.mxu0 0.0
    %1550 = vmatpush2.msra.mxu0 0.0
    %1551 = vmatprep.subr.mxu0 0.0
    %1552 = vmatpush2.msra.mxu0 0.0
    %1553 = vmatprep.subr.mxu0 0.0
    %1554 = vmatpush2.msra.mxu0 0.0
    %1555 = vmatprep.subr.mxu0 0.0
    %1556 = vmatpush2.msra.mxu0 0.0
    %1557 = vmatprep.subr.mxu0 0.0
    %1558 = vmatpush2.msra.mxu0 0.0
    %1559 = vmatprep.subr.mxu0 0.0
    %1560 = vmatpush2.msra.mxu0 0.0
    %1561 = vmatprep.mubr.f32.mxu0 0.0
    %1562 = vmatmul.mubr.f32.gmra.mxu0 %v1486
    %v1563 = vpop.f32.mrf.mxu0
    %v1564 = vadd.f32 0.0, %v1563
    %v1565 = vpop.f32.mrf.mxu0
    %1566 = vmatprep.mubr.f32.mxu0 0.0
    %1567 = vmatmul.mubr.f32.gmra.mxu0 %v1489
    %v1568 = vpop.f32.mrf.mxu0
    %v1569 = vadd.f32 0.0, %v1568
    %v1570 = vpop.f32.mrf.mxu0
    %1571 = vmatprep.mubr.f32.mxu0 0.0
    %1572 = vmatmul.mubr.f32.gmra.mxu0 %v1492
    %v1573 = vpop.f32.mrf.mxu0
    %v1574 = vadd.f32 0.0, %v1573
    %v1575 = vpop.f32.mrf.mxu0
    %1576 = vmatprep.mubr.f32.mxu0 0.0
    %1577 = vmatmul.mubr.f32.gmra.mxu0 %v1495
    %v1578 = vpop.f32.mrf.mxu0
    %v1579 = vadd.f32 0.0, %v1578
    %v1580 = vpop.f32.mrf.mxu0
    %1581 = vdwg.mxu0
    %1586 = vrot.lane.b32.xlu0 %v1564, 24
    %v1587 = vpop.permute.xlu0 %1586
    %1588 = vrot.lane.b32.xlu0 %v1569, 24
    %v1589 = vpop.permute.xlu0 %1588
    %1590 = vrot.lane.b32.xlu0 %v1574, 24
    %v1591 = vpop.permute.xlu0 %1590
    %1592 = vrot.lane.b32.xlu0 %v1579, 24
    %v1593 = vpop.permute.xlu0 %1592
    %vm1598 = vcmask 261312
    %1599 = vst.msk [vmem:[#allocation2] sm:$0xff] %vm1598, %v1587
    %1600 = vst.msk [vmem:[#allocation2 + $0x8] sm:$0xff] %vm1598, %v1589
    %1601 = vst.msk [vmem:[#allocation2 + $0x10] sm:$0xff] %vm1598, %v1591
    %1602 = vst.msk [vmem:[#allocation2 + $0x18] sm:$0xff] %vm1598, %v1593
    %v1603 = vld [vmem:[#allocation2] sm:$0xff]
    %v1604 = vld [vmem:[#allocation2 + $0x8] sm:$0xff]
    %v1605 = vld [vmem:[#allocation2 + $0x10] sm:$0xff]
    %v1606 = vld [vmem:[#allocation2 + $0x18] sm:$0xff]
    %v1607 = vld [vmem:[#allocation3 + $0x1d0] sm:$0xff]
    %v1608 = vld [vmem:[#allocation3 + $0x1e0] sm:$0xff]
    %v1609 = vld [vmem:[#allocation3 + $0x1f0] sm:$0xff]
    %v1610 = vld [vmem:[#allocation3 + $0x200] sm:$0xff]
    %v1611 = vld [vmem:[#allocation3 + $0x210] ss:$0 sm:$0xff]
    %v1613 = vsel %vm330, %v1603, 0
    %v1616 = vsel %vm330, %v1604, 0
    %v1619 = vsel %vm330, %v1605, 0
    %v1622 = vsel %vm330, %v1606, 0
    %1624 = vmatprep.subr.mxu0 0.0
    %1625 = vmatpush1.msra.mxu0 0.0
    %1626 = vmatprep.subr.mxu0 0.0
    %1627 = vmatpush1.msra.mxu0 0.0
    %1628 = vmatprep.subr.mxu0 0.0
    %1629 = vmatpush1.msra.mxu0 0.0
    %1630 = vmatprep.subr.mxu0 0.0
    %1631 = vmatpush1.msra.mxu0 0.0
    %1632 = vmatprep.subr.mxu0 0.0
    %1633 = vmatpush1.msra.mxu0 0.0
    %1634 = vmatprep.subr.mxu0 0.0
    %1635 = vmatpush1.msra.mxu0 0.0
    %1636 = vmatprep.subr.mxu0 0.0
    %1637 = vmatpush1.msra.mxu0 0.0
    %1638 = vmatprep.subr.mxu0 0.0
    %1639 = vmatpush1.msra.mxu0 0.0
    %1640 = vmatprep.subr.mxu0 0.0
    %1641 = vmatpush1.msra.mxu0 0.0
    %1642 = vmatprep.subr.mxu0 0.0
    %1643 = vmatpush1.msra.mxu0 0.0
    %1644 = vmatprep.subr.mxu0 0.0
    %1645 = vmatpush1.msra.mxu0 0.0
    %1646 = vmatprep.subr.mxu0 0.0
    %1647 = vmatpush1.msra.mxu0 0.0
    %1648 = vmatprep.subr.mxu0 0.0
    %1649 = vmatpush1.msra.mxu0 %v1610
    %1650 = vmatprep.subr.mxu0 0.0
    %1651 = vmatpush1.msra.mxu0 %v1609
    %1652 = vmatprep.subr.mxu0 0.0
    %1653 = vmatpush1.msra.mxu0 %v1608
    %1654 = vmatprep.subr.mxu0 0.0
    %1655 = vmatpush1.msra.mxu0 %v1607
    %1656 = vmatprep.subr.mxu0 0.0
    %1657 = vmatpush2.msra.mxu0 0.0
    %1658 = vmatprep.subr.mxu0 0.0
    %1659 = vmatpush2.msra.mxu0 0.0
    %1660 = vmatprep.subr.mxu0 0.0
    %1661 = vmatpush2.msra.mxu0 0.0
    %1662 = vmatprep.subr.mxu0 0.0
    %1663 = vmatpush2.msra.mxu0 0.0
    %1664 = vmatprep.subr.mxu0 0.0
    %1665 = vmatpush2.msra.mxu0 0.0
    %1666 = vmatprep.subr.mxu0 0.0
    %1667 = vmatpush2.msra.mxu0 0.0
    %1668 = vmatprep.subr.mxu0 0.0
    %1669 = vmatpush2.msra.mxu0 0.0
    %1670 = vmatprep.subr.mxu0 0.0
    %1671 = vmatpush2.msra.mxu0 0.0
    %1672 = vmatprep.subr.mxu0 0.0
    %1673 = vmatpush2.msra.mxu0 0.0
    %1674 = vmatprep.subr.mxu0 0.0
    %1675 = vmatpush2.msra.mxu0 0.0
    %1676 = vmatprep.subr.mxu0 0.0
    %1677 = vmatpush2.msra.mxu0 0.0
    %1678 = vmatprep.subr.mxu0 0.0
    %1679 = vmatpush2.msra.mxu0 0.0
    %1680 = vmatprep.subr.mxu0 0.0
    %1681 = vmatpush2.msra.mxu0 0.0
    %1682 = vmatprep.subr.mxu0 0.0
    %1683 = vmatpush2.msra.mxu0 0.0
    %1684 = vmatprep.subr.mxu0 0.0
    %1685 = vmatpush2.msra.mxu0 0.0
    %1686 = vmatprep.subr.mxu0 0.0
    %1687 = vmatpush2.msra.mxu0 0.0
    %1688 = vmatprep.mubr.f32.mxu0 0.0
    %1689 = vmatmul.mubr.f32.gmra.mxu0 %v1613
    %v1690 = vpop.f32.mrf.mxu0
    %v1691 = vadd.f32 %v1611, %v1690
    %v1692 = vpop.f32.mrf.mxu0
    %1693 = vmatprep.mubr.f32.mxu0 0.0
    %1694 = vmatmul.mubr.f32.gmra.mxu0 %v1616
    %v1695 = vpop.f32.mrf.mxu0
    %v1696 = vadd.f32 %v1611, %v1695
    %v1697 = vpop.f32.mrf.mxu0
    %1698 = vmatprep.mubr.f32.mxu0 0.0
    %1699 = vmatmul.mubr.f32.gmra.mxu0 %v1619
    %v1700 = vpop.f32.mrf.mxu0
    %v1701 = vadd.f32 %v1611, %v1700
    %v1702 = vpop.f32.mrf.mxu0
    %1703 = vmatprep.mubr.f32.mxu0 0.0
    %1704 = vmatmul.mubr.f32.gmra.mxu0 %v1622
    %v1705 = vpop.f32.mrf.mxu0
    %v1706 = vadd.f32 %v1611, %v1705
    %v1707 = vpop.f32.mrf.mxu0
    %1708 = vdwg.mxu0
    %v1709 = vadd.f32 %v307, %v1691
    %v1710 = vadd.f32 %v312, %v1696
    %v1711 = vadd.f32 %v317, %v1701
    %v1712 = vadd.f32 %v322, %v1706
    %v1713 = vsel %vm330, %v1709, 0.0
    %1714 = vadd.xlane.f32.xlu0 %v1713
    %v1715 = vpop.xlane.xlu0 %1714
    %v1716 = vsel %vm330, %v1710, 0.0
    %1717 = vadd.xlane.f32.xlu0 %v1716
    %v1718 = vpop.xlane.xlu0 %1717
    %v1719 = vsel %vm330, %v1711, 0.0
    %1720 = vadd.xlane.f32.xlu0 %v1719
    %v1721 = vpop.xlane.xlu0 %1720
    %v1722 = vsel %vm330, %v1712, 0.0
    %1723 = vadd.xlane.f32.xlu0 %v1722
    %v1724 = vpop.xlane.xlu0 %1723
    %v1725 = vrcp.pop 32.0
    %v1726 = vmul.f32 %v1715, %v1725
    %v1727 = vmul.f32 %v1718, %v1725
    %v1728 = vmul.f32 %v1721, %v1725
    %v1729 = vmul.f32 %v1724, %v1725
    %v1730 = vsub.f32 %v1709, %v1726
    %v1731 = vsub.f32 %v1710, %v1727
    %v1732 = vsub.f32 %v1711, %v1728
    %v1733 = vsub.f32 %v1712, %v1729
    %v1734 = vmul.f32 %v1730, %v1730
    %v1735 = vmul.f32 %v1731, %v1731
    %v1736 = vmul.f32 %v1732, %v1732
    %v1737 = vmul.f32 %v1733, %v1733
    %v1738 = vsel %vm330, %v1734, 0.0
    %1739 = vadd.xlane.f32.xlu0 %v1738
    %v1740 = vpop.xlane.xlu0 %1739
    %v1741 = vsel %vm330, %v1735, 0.0
    %1742 = vadd.xlane.f32.xlu0 %v1741
    %v1743 = vpop.xlane.xlu0 %1742
    %v1744 = vsel %vm330, %v1736, 0.0
    %1745 = vadd.xlane.f32.xlu0 %v1744
    %v1746 = vpop.xlane.xlu0 %1745
    %v1747 = vsel %vm330, %v1737, 0.0
    %1748 = vadd.xlane.f32.xlu0 %v1747
    %v1749 = vpop.xlane.xlu0 %1748
    %v1750 = vmul.f32 %v1740, %v1725
    %v1751 = vmul.f32 %v1743, %v1725
    %v1752 = vmul.f32 %v1746, %v1725
    %v1753 = vmul.f32 %v1749, %v1725
    %v1754 = vadd.f32 %v1750, 1e-05
    %v1755 = vadd.f32 %v1751, 1e-05
    %v1756 = vadd.f32 %v1752, 1e-05
    %v1757 = vadd.f32 %v1753, 1e-05
    %v1758 = vrsqrt.pop %v1754
    %v1759 = vrsqrt.pop %v1755
    %v1760 = vrsqrt.pop %v1756
    %v1761 = vrsqrt.pop %v1757
    %v1762 = vmul.f32 %v1730, %v1758
    %v1763 = vmul.f32 %v1731, %v1759
    %v1764 = vmul.f32 %v1732, %v1760
    %v1765 = vmul.f32 %v1733, %v1761
    %v1766 = vld [vmem:[#allocation3 + $0x300] ss:$0 sm:$0xff]
    %v1767 = vmul.f32 %v1762, %v1766
    %v1768 = vmul.f32 %v1763, %v1766
    %v1769 = vmul.f32 %v1764, %v1766
    %v1770 = vmul.f32 %v1765, %v1766
    %v1771 = vld [vmem:[#allocation3 + $0x310] ss:$0 sm:$0xff]
    %v1772 = vadd.f32 %v1767, %v1771
    %v1773 = vadd.f32 %v1768, %v1771
    %v1774 = vadd.f32 %v1769, %v1771
    %v1775 = vadd.f32 %v1770, %v1771
    %v1776 = vld [vmem:[#allocation3 + $0x220] sm:$0xff]
    %v1777 = vld [vmem:[#allocation3 + $0x230] sm:$0xff]
    %v1778 = vld [vmem:[#allocation3 + $0x240] sm:$0xff]
    %v1779 = vld [vmem:[#allocation3 + $0x250] sm:$0xff]
    %v1780 = vld [vmem:[#allocation3 + $0x260] ss:$0 sm:$0xff]
    %v1782 = vsel %vm330, %v1772, 0
    %v1785 = vsel %vm330, %v1773, 0
    %v1788 = vsel %vm330, %v1774, 0
    %v1791 = vsel %vm330, %v1775, 0
    %1793 = vmatprep.subr.mxu0 0.0
    %1794 = vmatpush1.msra.mxu0 0.0
    %1795 = vmatprep.subr.mxu0 0.0
    %1796 = vmatpush1.msra.mxu0 0.0
    %1797 = vmatprep.subr.mxu0 0.0
    %1798 = vmatpush1.msra.mxu0 0.0
    %1799 = vmatprep.subr.mxu0 0.0
    %1800 = vmatpush1.msra.mxu0 0.0
    %1801 = vmatprep.subr.mxu0 0.0
    %1802 = vmatpush1.msra.mxu0 0.0
    %1803 = vmatprep.subr.mxu0 0.0
    %1804 = vmatpush1.msra.mxu0 0.0
    %1805 = vmatprep.subr.mxu0 0.0
    %1806 = vmatpush1.msra.mxu0 0.0
    %1807 = vmatprep.subr.mxu0 0.0
    %1808 = vmatpush1.msra.mxu0 0.0
    %1809 = vmatprep.subr.mxu0 0.0
    %1810 = vmatpush1.msra.mxu0 0.0
    %1811 = vmatprep.subr.mxu0 0.0
    %1812 = vmatpush1.msra.mxu0 0.0
    %1813 = vmatprep.subr.mxu0 0.0
    %1814 = vmatpush1.msra.mxu0 0.0
    %1815 = vmatprep.subr.mxu0 0.0
    %1816 = vmatpush1.msra.mxu0 0.0
    %1817 = vmatprep.subr.mxu0 0.0
    %1818 = vmatpush1.msra.mxu0 %v1779
    %1819 = vmatprep.subr.mxu0 0.0
    %1820 = vmatpush1.msra.mxu0 %v1778
    %1821 = vmatprep.subr.mxu0 0.0
    %1822 = vmatpush1.msra.mxu0 %v1777
    %1823 = vmatprep.subr.mxu0 0.0
    %1824 = vmatpush1.msra.mxu0 %v1776
    %1825 = vmatprep.subr.mxu0 0.0
    %1826 = vmatpush2.msra.mxu0 0.0
    %1827 = vmatprep.subr.mxu0 0.0
    %1828 = vmatpush2.msra.mxu0 0.0
    %1829 = vmatprep.subr.mxu0 0.0
    %1830 = vmatpush2.msra.mxu0 0.0
    %1831 = vmatprep.subr.mxu0 0.0
    %1832 = vmatpush2.msra.mxu0 0.0
    %1833 = vmatprep.subr.mxu0 0.0
    %1834 = vmatpush2.msra.mxu0 0.0
    %1835 = vmatprep.subr.mxu0 0.0
    %1836 = vmatpush2.msra.mxu0 0.0
    %1837 = vmatprep.subr.mxu0 0.0
    %1838 = vmatpush2.msra.mxu0 0.0
    %1839 = vmatprep.subr.mxu0 0.0
    %1840 = vmatpush2.msra.mxu0 0.0
    %1841 = vmatprep.subr.mxu0 0.0
    %1842 = vmatpush2.msra.mxu0 0.0
    %1843 = vmatprep.subr.mxu0 0.0
    %1844 = vmatpush2.msra.mxu0 0.0
    %1845 = vmatprep.subr.mxu0 0.0
    %1846 = vmatpush2.msra.mxu0 0.0
    %1847 = vmatprep.subr.mxu0 0.0
    %1848 = vmatpush2.msra.mxu0 0.0
    %1849 = vmatprep.subr.mxu0 0.0
    %1850 = vmatpush2.msra.mxu0 0.0
    %1851 = vmatprep.subr.mxu0 0.0
    %1852 = vmatpush2.msra.mxu0 0.0
    %1853 = vmatprep.subr.mxu0 0.0
    %1854 = vmatpush2.msra.mxu0 0.0
    %1855 = vmatprep.subr.mxu0 0.0
    %1856 = vmatpush2.msra.mxu0 0.0
    %1857 = vmatprep.mubr.f32.mxu0 0.0
    %1858 = vmatmul.mubr.f32.gmra.mxu0 %v1782
    %v1859 = vpop.f32.mrf.mxu0
    %v1860 = vadd.f32 %v1780, %v1859
    %v1861 = vpop.f32.mrf.mxu0
    %1862 = vmatprep.mubr.f32.mxu0 0.0
    %1863 = vmatmul.mubr.f32.gmra.mxu0 %v1785
    %v1864 = vpop.f32.mrf.mxu0
    %v1865 = vadd.f32 %v1780, %v1864
    %v1866 = vpop.f32.mrf.mxu0
    %1867 = vmatprep.mubr.f32.mxu0 0.0
    %1868 = vmatmul.mubr.f32.gmra.mxu0 %v1788
    %v1869 = vpop.f32.mrf.mxu0
    %v1870 = vadd.f32 %v1780, %v1869
    %v1871 = vpop.f32.mrf.mxu0
    %1872 = vmatprep.mubr.f32.mxu0 0.0
    %1873 = vmatmul.mubr.f32.gmra.mxu0 %v1791
    %v1874 = vpop.f32.mrf.mxu0
    %v1875 = vadd.f32 %v1780, %v1874
    %v1876 = vpop.f32.mrf.mxu0
    %1877 = vdwg.mxu0
    %v1878 = vmul.f32 %v1860, 0.5
    %v1879 = vmul.f32 %v1865, 0.5
    %v1880 = vmul.f32 %v1870, 0.5
    %v1881 = vmul.f32 %v1875, 0.5
    %v1882 = vmul.f32 %v1860, 0.044715
    %v1883 = vmul.f32 %v1865, 0.044715
    %v1884 = vmul.f32 %v1870, 0.044715
    %v1885 = vmul.f32 %v1875, 0.044715
    %v1886 = vmul.f32 %v1882, %v1860
    %v1887 = vmul.f32 %v1883, %v1865
    %v1888 = vmul.f32 %v1884, %v1870
    %v1889 = vmul.f32 %v1885, %v1875
    %v1890 = vmul.f32 %v1886, %v1860
    %v1891 = vmul.f32 %v1887, %v1865
    %v1892 = vmul.f32 %v1888, %v1870
    %v1893 = vmul.f32 %v1889, %v1875
    %v1894 = vadd.f32 %v1860, %v1890
    %v1895 = vadd.f32 %v1865, %v1891
    %v1896 = vadd.f32 %v1870, %v1892
    %v1897 = vadd.f32 %v1875, %v1893
    %v1898 = vmul.f32 %v1894, 0.7978846
    %v1899 = vmul.f32 %v1895, 0.7978846
    %v1900 = vmul.f32 %v1896, 0.7978846
    %v1901 = vmul.f32 %v1897, 0.7978846
    %v1902 = vtanh.pop %v1898
    %v1903 = vtanh.pop %v1899
    %v1904 = vtanh.pop %v1900
    %v1905 = vtanh.pop %v1901
    %v1906 = vadd.f32 %v1902, 1.0
    %v1907 = vadd.f32 %v1903, 1.0
    %v1908 = vadd.f32 %v1904, 1.0
    %v1909 = vadd.f32 %v1905, 1.0
    %v1910 = vmul.f32 %v1878, %v1906
    %v1911 = vmul.f32 %v1879, %v1907
    %v1912 = vmul.f32 %v1880, %v1908
    %v1913 = vmul.f32 %v1881, %v1909
    %v1914 = vld [vmem:[#allocation3 + $0x270] sm:$0xff]
    %v1915 = vld [vmem:[#allocation3 + $0x280] sm:$0xff]
    %v1916 = vld [vmem:[#allocation3 + $0x290] sm:$0xff]
    %v1917 = vld [vmem:[#allocation3 + $0x2a0] sm:$0xff]
    %v1918 = vld [vmem:[#allocation3 + $0x2b0] sm:$0xff]
    %v1919 = vld [vmem:[#allocation3 + $0x2c0] sm:$0xff]
    %v1920 = vld [vmem:[#allocation3 + $0x2d0] sm:$0xff]
    %v1921 = vld [vmem:[#allocation3 + $0x2e0] sm:$0xff]
    %v1922 = vld [vmem:[#allocation3 + $0x2f0] ss:$0 sm:$0xff]
    %vm1923 = vcmask 523264
    %v1925 = vsel %vm1923, %v1910, 0
    %v1928 = vsel %vm1923, %v1911, 0
    %v1931 = vsel %vm1923, %v1912, 0
    %v1934 = vsel %vm1923, %v1913, 0
    %1936 = vmatprep.subr.mxu0 0.0
    %1937 = vmatpush1.msra.mxu0 0.0
    %1938 = vmatprep.subr.mxu0 0.0
    %1939 = vmatpush1.msra.mxu0 0.0
    %1940 = vmatprep.subr.mxu0 0.0
    %1941 = vmatpush1.msra.mxu0 0.0
    %1942 = vmatprep.subr.mxu0 0.0
    %1943 = vmatpush1.msra.mxu0 0.0
    %1944 = vmatprep.subr.mxu0 0.0
    %1945 = vmatpush1.msra.mxu0 0.0
    %1946 = vmatprep.subr.mxu0 0.0
    %1947 = vmatpush1.msra.mxu0 0.0
    %1948 = vmatprep.subr.mxu0 0.0
    %1949 = vmatpush1.msra.mxu0 0.0
    %1950 = vmatprep.subr.mxu0 0.0
    %1951 = vmatpush1.msra.mxu0 0.0
    %1952 = vmatprep.subr.mxu0 0.0
    %1953 = vmatpush1.msra.mxu0 %v1921
    %1954 = vmatprep.subr.mxu0 0.0
    %1955 = vmatpush1.msra.mxu0 %v1920
    %1956 = vmatprep.subr.mxu0 0.0
    %1957 = vmatpush1.msra.mxu0 %v1919
    %1958 = vmatprep.subr.mxu0 0.0
    %1959 = vmatpush1.msra.mxu0 %v1918
    %1960 = vmatprep.subr.mxu0 0.0
    %1961 = vmatpush1.msra.mxu0 %v1917
    %1962 = vmatprep.subr.mxu0 0.0
    %1963 = vmatpush1.msra.mxu0 %v1916
    %1964 = vmatprep.subr.mxu0 0.0
    %1965 = vmatpush1.msra.mxu0 %v1915
    %1966 = vmatprep.subr.mxu0 0.0
    %1967 = vmatpush1.msra.mxu0 %v1914
    %1968 = vmatprep.subr.mxu0 0.0
    %1969 = vmatpush2.msra.mxu0 0.0
    %1970 = vmatprep.subr.mxu0 0.0
    %1971 = vmatpush2.msra.mxu0 0.0
    %1972 = vmatprep.subr.mxu0 0.0
    %1973 = vmatpush2.msra.mxu0 0.0
    %1974 = vmatprep.subr.mxu0 0.0
    %1975 = vmatpush2.msra.mxu0 0.0
    %1976 = vmatprep.subr.mxu0 0.0
    %1977 = vmatpush2.msra.mxu0 0.0
    %1978 = vmatprep.subr.mxu0 0.0
    %1979 = vmatpush2.msra.mxu0 0.0
    %1980 = vmatprep.subr.mxu0 0.0
    %1981 = vmatpush2.msra.mxu0 0.0
    %1982 = vmatprep.subr.mxu0 0.0
    %1983 = vmatpush2.msra.mxu0 0.0
    %1984 = vmatprep.subr.mxu0 0.0
    %1985 = vmatpush2.msra.mxu0 0.0
    %1986 = vmatprep.subr.mxu0 0.0
    %1987 = vmatpush2.msra.mxu0 0.0
    %1988 = vmatprep.subr.mxu0 0.0
    %1989 = vmatpush2.msra.mxu0 0.0
    %1990 = vmatprep.subr.mxu0 0.0
    %1991 = vmatpush2.msra.mxu0 0.0
    %1992 = vmatprep.subr.mxu0 0.0
    %1993 = vmatpush2.msra.mxu0 0.0
    %1994 = vmatprep.subr.mxu0 0.0
    %1995 = vmatpush2.msra.mxu0 0.0
    %1996 = vmatprep.subr.mxu0 0.0
    %1997 = vmatpush2.msra.mxu0 0.0
    %1998 = vmatprep.subr.mxu0 0.0
    %1999 = vmatpush2.msra.mxu0 0.0
    %2000 = vmatprep.mubr.f32.mxu0 0.0
    %2001 = vmatmul.mubr.f32.gmra.mxu0 %v1925
    %v2002 = vpop.f32.mrf.mxu0
    %v2003 = vadd.f32 %v1922, %v2002
    %v2004 = vpop.f32.mrf.mxu0
    %2005 = vmatprep.mubr.f32.mxu0 0.0
    %2006 = vmatmul.mubr.f32.gmra.mxu0 %v1928
    %v2007 = vpop.f32.mrf.mxu0
    %v2008 = vadd.f32 %v1922, %v2007
    %v2009 = vpop.f32.mrf.mxu0
    %2010 = vmatprep.mubr.f32.mxu0 0.0
    %2011 = vmatmul.mubr.f32.gmra.mxu0 %v1931
    %v2012 = vpop.f32.mrf.mxu0
    %v2013 = vadd.f32 %v1922, %v2012
    %v2014 = vpop.f32.mrf.mxu0
    %2015 = vmatprep.mubr.f32.mxu0 0.0
    %2016 = vmatmul.mubr.f32.gmra.mxu0 %v1934
    %v2017 = vpop.f32.mrf.mxu0
    %v2018 = vadd.f32 %v1922, %v2017
    %v2019 = vpop.f32.mrf.mxu0
    %2020 = vdwg.mxu0
    %v2021 = vadd.f32 %v1772, %v2003
    %v2022 = vadd.f32 %v1773, %v2008
    %v2023 = vadd.f32 %v1774, %v2013
    %v2024 = vadd.f32 %v1775, %v2018
    %v2025 = vsel %vm330, %v2021, 0.0
    %2026 = vadd.xlane.f32.xlu0 %v2025
    %v2027 = vpop.xlane.xlu0 %2026
    %v2028 = vsel %vm330, %v2022, 0.0
    %2029 = vadd.xlane.f32.xlu0 %v2028
    %v2030 = vpop.xlane.xlu0 %2029
    %v2031 = vsel %vm330, %v2023, 0.0
    %2032 = vadd.xlane.f32.xlu0 %v2031
    %v2033 = vpop.xlane.xlu0 %2032
    %v2034 = vsel %vm330, %v2024, 0.0
    %2035 = vadd.xlane.f32.xlu0 %v2034
    %v2036 = vpop.xlane.xlu0 %2035
    %v2037 = vmul.f32 %v2027, %v1725
    %v2038 = vmul.f32 %v2030, %v1725
    %v2039 = vmul.f32 %v2033, %v1725
    %v2040 = vmul.f32 %v2036, %v1725
    %v2041 = vsub.f32 %v2021, %v2037
    %v2042 = vsub.f32 %v2022, %v2038
    %v2043 = vsub.f32 %v2023, %v2039
    %v2044 = vsub.f32 %v2024, %v2040
    %v2045 = vmul.f32 %v2041, %v2041
    %v2046 = vmul.f32 %v2042, %v2042
    %v2047 = vmul.f32 %v2043, %v2043
    %v2048 = vmul.f32 %v2044, %v2044
    %v2049 = vsel %vm330, %v2045, 0.0
    %2050 = vadd.xlane.f32.xlu0 %v2049
    %v2051 = vpop.xlane.xlu0 %2050
    %v2052 = vsel %vm330, %v2046, 0.0
    %2053 = vadd.xlane.f32.xlu0 %v2052
    %v2054 = vpop.xlane.xlu0 %2053
    %v2055 = vsel %vm330, %v2047, 0.0
    %2056 = vadd.xlane.f32.xlu0 %v2055
    %v2057 = vpop.xlane.xlu0 %2056
    %v2058 = vsel %vm330, %v2048, 0.0
    %2059 = vadd.xlane.f32.xlu0 %v2058
    %v2060 = vpop.xlane.xlu0 %2059
    %v2061 = vmul.f32 %v2051, %v1725
    %v2062 = vmul.f32 %v2054, %v1725
    %v2063 = vmul.f32 %v2057, %v1725
    %v2064 = vmul.f32 %v2060, %v1725
    %v2065 = vadd.f32 %v2061, 1e-05
    %v2066 = vadd.f32 %v2062, 1e-05
    %v2067 = vadd.f32 %v2063, 1e-05
    %v2068 = vadd.f32 %v2064, 1e-05
    %v2069 = vrsqrt.pop %v2065
    %v2070 = vrsqrt.pop %v2066
    %v2071 = vrsqrt.pop %v2067
    %v2072 = vrsqrt.pop %v2068
    %v2073 = vmul.f32 %v2041, %v2069
    %v2074 = vmul.f32 %v2042, %v2070
    %v2075 = vmul.f32 %v2043, %v2071
    %v2076 = vmul.f32 %v2044, %v2072
    %v2077 = vld [vmem:[#allocation3 + $0x320] ss:$0 sm:$0xff]
    %v2078 = vmul.f32 %v2073, %v2077
    %v2079 = vmul.f32 %v2074, %v2077
    %v2080 = vmul.f32 %v2075, %v2077
    %v2081 = vmul.f32 %v2076, %v2077
    %v2082 = vld [vmem:[#allocation3 + $0x330] ss:$0 sm:$0xff]
    %v2083 = vadd.f32 %v2078, %v2082
    %v2084 = vadd.f32 %v2079, %v2082
    %v2085 = vadd.f32 %v2080, %v2082
    %v2086 = vadd.f32 %v2081, %v2082
    %v2087 = vld [vmem:[#allocation3 + $0x340] sm:$0xff]
    %v2088 = vld [vmem:[#allocation3 + $0x350] sm:$0xff]
    %v2089 = vld [vmem:[#allocation3 + $0x360] sm:$0xff]
    %v2090 = vld [vmem:[#allocation3 + $0x370] sm:$0xff]
    %v2091 = vld [vmem:[#allocation3 + $0x380] ss:$0 sm:$0xff]
    %v2093 = vsel %vm330, %v2083, 0
    %v2096 = vsel %vm330, %v2084, 0
    %v2099 = vsel %vm330, %v2085, 0
    %v2102 = vsel %vm330, %v2086, 0
    %2104 = vmatprep.subr.mxu0 0.0
    %2105 = vmatpush1.msra.mxu0 0.0
    %2106 = vmatprep.subr.mxu0 0.0
    %2107 = vmatpush1.msra.mxu0 0.0
    %2108 = vmatprep.subr.mxu0 0.0
    %2109 = vmatpush1.msra.mxu0 0.0
    %2110 = vmatprep.subr.mxu0 0.0
    %2111 = vmatpush1.msra.mxu0 0.0
    %2112 = vmatprep.subr.mxu0 0.0
    %2113 = vmatpush1.msra.mxu0 0.0
    %2114 = vmatprep.subr.mxu0 0.0
    %2115 = vmatpush1.msra.mxu0 0.0
    %2116 = vmatprep.subr.mxu0 0.0
    %2117 = vmatpush1.msra.mxu0 0.0
    %2118 = vmatprep.subr.mxu0 0.0
    %2119 = vmatpush1.msra.mxu0 0.0
    %2120 = vmatprep.subr.mxu0 0.0
    %2121 = vmatpush1.msra.mxu0 0.0
    %2122 = vmatprep.subr.mxu0 0.0
    %2123 = vmatpush1.msra.mxu0 0.0
    %2124 = vmatprep.subr.mxu0 0.0
    %2125 = vmatpush1.msra.mxu0 0.0
    %2126 = vmatprep.subr.mxu0 0.0
    %2127 = vmatpush1.msra.mxu0 0.0
    %2128 = vmatprep.subr.mxu0 0.0
    %2129 = vmatpush1.msra.mxu0 %v2090
    %2130 = vmatprep.subr.mxu0 0.0
    %2131 = vmatpush1.msra.mxu0 %v2089
    %2132 = vmatprep.subr.mxu0 0.0
    %2133 = vmatpush1.msra.mxu0 %v2088
    %2134 = vmatprep.subr.mxu0 0.0
    %2135 = vmatpush1.msra.mxu0 %v2087
    %2136 = vmatprep.subr.mxu0 0.0
    %2137 = vmatpush2.msra.mxu0 0.0
    %2138 = vmatprep.subr.mxu0 0.0
    %2139 = vmatpush2.msra.mxu0 0.0
    %2140 = vmatprep.subr.mxu0 0.0
    %2141 = vmatpush2.msra.mxu0 0.0
    %2142 = vmatprep.subr.mxu0 0.0
    %2143 = vmatpush2.msra.mxu0 0.0
    %2144 = vmatprep.subr.mxu0 0.0
    %2145 = vmatpush2.msra.mxu0 0.0
    %2146 = vmatprep.subr.mxu0 0.0
    %2147 = vmatpush2.msra.mxu0 0.0
    %2148 = vmatprep.subr.mxu0 0.0
    %2149 = vmatpush2.msra.mxu0 0.0
    %2150 = vmatprep.subr.mxu0 0.0
    %2151 = vmatpush2.msra.mxu0 0.0
    %2152 = vmatprep.subr.mxu0 0.0
    %2153 = vmatpush2.msra.mxu0 0.0
    %2154 = vmatprep.subr.mxu0 0.0
    %2155 = vmatpush2.msra.mxu0 0.0
    %2156 = vmatprep.subr.mxu0 0.0
    %2157 = vmatpush2.msra.mxu0 0.0
    %2158 = vmatprep.subr.mxu0 0.0
    %2159 = vmatpush2.msra.mxu0 0.0
    %2160 = vmatprep.subr.mxu0 0.0
    %2161 = vmatpush2.msra.mxu0 0.0
    %2162 = vmatprep.subr.mxu0 0.0
    %2163 = vmatpush2.msra.mxu0 0.0
    %2164 = vmatprep.subr.mxu0 0.0
    %2165 = vmatpush2.msra.mxu0 0.0
    %2166 = vmatprep.subr.mxu0 0.0
    %2167 = vmatpush2.msra.mxu0 0.0
    %2168 = vmatprep.mubr.f32.mxu0 0.0
    %2169 = vmatmul.mubr.f32.gmra.mxu0 %v2093
    %v2170 = vpop.f32.mrf.mxu0
    %v2171 = vadd.f32 %v2091, %v2170
    %v2172 = vpop.f32.mrf.mxu0
    %2173 = vmatprep.mubr.f32.mxu0 0.0
    %2174 = vmatmul.mubr.f32.gmra.mxu0 %v2096
    %v2175 = vpop.f32.mrf.mxu0
    %v2176 = vadd.f32 %v2091, %v2175
    %v2177 = vpop.f32.mrf.mxu0
    %2178 = vmatprep.mubr.f32.mxu0 0.0
    %2179 = vmatmul.mubr.f32.gmra.mxu0 %v2099
    %v2180 = vpop.f32.mrf.mxu0
    %v2181 = vadd.f32 %v2091, %v2180
    %v2182 = vpop.f32.mrf.mxu0
    %2183 = vmatprep.mubr.f32.mxu0 0.0
    %2184 = vmatmul.mubr.f32.gmra.mxu0 %v2102
    %v2185 = vpop.f32.mrf.mxu0
    %v2186 = vadd.f32 %v2091, %v2185
    %v2187 = vpop.f32.mrf.mxu0
    %2188 = vdwg.mxu0
    %2193 = vrot.lane.b32.xlu0 %v2171, 96
    %v2194 = vpop.permute.xlu0 %2193
    %2195 = vrot.lane.b32.xlu0 %v2176, 96
    %v2196 = vpop.permute.xlu0 %2195
    %2197 = vrot.lane.b32.xlu0 %v2181, 96
    %v2198 = vpop.permute.xlu0 %2197
    %2199 = vrot.lane.b32.xlu0 %v2186, 96
    %v2200 = vpop.permute.xlu0 %2199
    %v2201 = vsel %vm211, %v2171, 0
    %v2203 = vsel %vm211, %v2176, 0
    %v2205 = vsel %vm211, %v2181, 0
    %v2207 = vsel %vm211, %v2186, 0
    %v2209 = vsel %vm211, %v2194, 0
    %v2211 = vsel %vm211, %v2196, 0
    %v2213 = vsel %vm211, %v2198, 0
    %v2215 = vsel %vm211, %v2200, 0
    %2217 = vmatprep.subr.mxu0 0.0
    %2218 = vmatpush1.xpose.msra.mxu0 0.0
    %2219 = vmatprep.subr.mxu0 0.0
    %2220 = vmatpush1.xpose.msra.mxu0 0.0
    %2221 = vmatprep.subr.mxu0 0.0
    %2222 = vmatpush1.xpose.msra.mxu0 0.0
    %2223 = vmatprep.subr.mxu0 0.0
    %2224 = vmatpush1.xpose.msra.mxu0 0.0
    %2225 = vmatprep.subr.mxu0 0.0
    %2226 = vmatpush1.xpose.msra.mxu0 0.0
    %2227 = vmatprep.subr.mxu0 0.0
    %2228 = vmatpush1.xpose.msra.mxu0 0.0
    %2229 = vmatprep.subr.mxu0 0.0
    %2230 = vmatpush1.xpose.msra.mxu0 0.0
    %2231 = vmatprep.subr.mxu0 0.0
    %2232 = vmatpush1.xpose.msra.mxu0 0.0
    %2233 = vmatprep.subr.mxu0 0.0
    %2234 = vmatpush1.xpose.msra.mxu0 0.0
    %2235 = vmatprep.subr.mxu0 0.0
    %2236 = vmatpush1.xpose.msra.mxu0 0.0
    %2237 = vmatprep.subr.mxu0 0.0
    %2238 = vmatpush1.xpose.msra.mxu0 0.0
    %2239 = vmatprep.subr.mxu0 0.0
    %2240 = vmatpush1.xpose.msra.mxu0 0.0
    %2241 = vmatprep.subr.mxu0 0.0
    %2242 = vmatpush1.xpose.msra.mxu0 %v2215
    %2243 = vmatprep.subr.mxu0 0.0
    %2244 = vmatpush1.xpose.msra.mxu0 %v2213
    %2245 = vmatprep.subr.mxu0 0.0
    %2246 = vmatpush1.xpose.msra.mxu0 %v2211
    %2247 = vmatprep.subr.mxu0 0.0
    %2248 = vmatpush1.xpose.msra.mxu0 %v2209
    %2249 = vmatprep.subr.mxu0 0.0
    %2250 = vmatpush2.xpose.msra.mxu0 0.0
    %2251 = vmatprep.subr.mxu0 0.0
    %2252 = vmatpush2.xpose.msra.mxu0 0.0
    %2253 = vmatprep.subr.mxu0 0.0
    %2254 = vmatpush2.xpose.msra.mxu0 0.0
    %2255 = vmatprep.subr.mxu0 0.0
    %2256 = vmatpush2.xpose.msra.mxu0 0.0
    %2257 = vmatprep.subr.mxu0 0.0
    %2258 = vmatpush2.xpose.msra.mxu0 0.0
    %2259 = vmatprep.subr.mxu0 0.0
    %2260 = vmatpush2.xpose.msra.mxu0 0.0
    %2261 = vmatprep.subr.mxu0 0.0
    %2262 = vmatpush2.xpose.msra.mxu0 0.0
    %2263 = vmatprep.subr.mxu0 0.0
    %2264 = vmatpush2.xpose.msra.mxu0 0.0
    %2265 = vmatprep.subr.mxu0 0.0
    %2266 = vmatpush2.xpose.msra.mxu0 0.0
    %2267 = vmatprep.subr.mxu0 0.0
    %2268 = vmatpush2.xpose.msra.mxu0 0.0
    %2269 = vmatprep.subr.mxu0 0.0
    %2270 = vmatpush2.xpose.msra.mxu0 0.0
    %2271 = vmatprep.subr.mxu0 0.0
    %2272 = vmatpush2.xpose.msra.mxu0 0.0
    %2273 = vmatprep.subr.mxu0 0.0
    %2274 = vmatpush2.xpose.msra.mxu0 0.0
    %2275 = vmatprep.subr.mxu0 0.0
    %2276 = vmatpush2.xpose.msra.mxu0 0.0
    %2277 = vmatprep.subr.mxu0 0.0
    %2278 = vmatpush2.xpose.msra.mxu0 0.0
    %2279 = vmatprep.subr.mxu0 0.0
    %2280 = vmatpush2.xpose.msra.mxu0 0.0
    %2281 = vmatprep.mubr.f32.mxu0 0.0
    %2282 = vmatmul.mubr.f32.gmra.mxu0 %v2201
    %v2283 = vpop.f32.mrf.mxu0
    %v2284 = vadd.f32 0.0, %v2283
    %v2285 = vpop.f32.mrf.mxu0
    %2286 = vmatprep.mubr.f32.mxu0 0.0
    %2287 = vmatmul.mubr.f32.gmra.mxu0 %v2203
    %v2288 = vpop.f32.mrf.mxu0
    %v2289 = vadd.f32 0.0, %v2288
    %v2290 = vpop.f32.mrf.mxu0
    %2291 = vmatprep.mubr.f32.mxu0 0.0
    %2292 = vmatmul.mubr.f32.gmra.mxu0 %v2205
    %v2293 = vpop.f32.mrf.mxu0
    %v2294 = vadd.f32 0.0, %v2293
    %v2295 = vpop.f32.mrf.mxu0
    %2296 = vmatprep.mubr.f32.mxu0 0.0
    %2297 = vmatmul.mubr.f32.gmra.mxu0 %v2207
    %v2298 = vpop.f32.mrf.mxu0
    %v2299 = vadd.f32 0.0, %v2298
    %v2300 = vpop.f32.mrf.mxu0
    %2301 = vdwg.mxu0
    %v2302 = vmul.f32 %v2284, 0.35355338
    %v2303 = vmul.f32 %v2289, 0.35355338
    %v2304 = vmul.f32 %v2294, 0.35355338
    %v2305 = vmul.f32 %v2299, 0.35355338
    %v2306 = vadd.f32 %v2302, %v35
    %v2307 = vadd.f32 %v2303, %v36
    %v2308 = vadd.f32 %v2304, %v37
    %v2309 = vadd.f32 %v2305, %v38
    %v2310 = vsel %vm330, %v2306, -inf
    %2311 = vmax.xlane.f32.xlu0 %v2310
    %v2312 = vpop.xlane.xlu0 %2311
    %v2313 = vsel %vm330, %v2307, -inf
    %2314 = vmax.xlane.f32.xlu0 %v2313
    %v2315 = vpop.xlane.xlu0 %2314
    %v2316 = vsel %vm330, %v2308, -inf
    %2317 = vmax.xlane.f32.xlu0 %v2316
    %v2318 = vpop.xlane.xlu0 %2317
    %v2319 = vsel %vm330, %v2309, -inf
    %2320 = vmax.xlane.f32.xlu0 %v2319
    %v2321 = vpop.xlane.xlu0 %2320
    %v2322 = vsub.f32 %v2306, %v2312
    %v2323 = vsub.f32 %v2307, %v2315
    %v2324 = vsub.f32 %v2308, %v2318
    %v2325 = vsub.f32 %v2309, %v2321
    %v2326 = vmul.f32 %v2322, 1.442695
    %v2327 = vpow.pop %v2326
    %v2328 = vmul.f32 %v2323, 1.442695
    %v2329 = vpow.pop %v2328
    %v2330 = vmul.f32 %v2324, 1.442695
    %v2331 = vpow.pop %v2330
    %v2332 = vmul.f32 %v2325, 1.442695
    %v2333 = vpow.pop %v2332
    %v2334 = vsel %vm330, %v2327, 0.0
    %2335 = vadd.xlane.f32.xlu0 %v2334
    %v2336 = vpop.xlane.xlu0 %2335
    %v2337 = vsel %vm330, %v2329, 0.0
    %2338 = vadd.xlane.f32.xlu0 %v2337
    %v2339 = vpop.xlane.xlu0 %2338
    %v2340 = vsel %vm330, %v2331, 0.0
    %2341 = vadd.xlane.f32.xlu0 %v2340
    %v2342 = vpop.xlane.xlu0 %2341
    %v2343 = vsel %vm330, %v2333, 0.0
    %2344 = vadd.xlane.f32.xlu0 %v2343
    %v2345 = vpop.xlane.xlu0 %2344
    %v2346 = vrcp.pop %v2336
    %v2347 = vrcp.pop %v2339
    %v2348 = vrcp.pop %v2342
    %v2349 = vrcp.pop %v2345
    %v2350 = vmul.f32 %v2327, %v2346
    %v2351 = vmul.f32 %v2329, %v2347
    %v2352 = vmul.f32 %v2331, %v2348
    %v2353 = vmul.f32 %v2333, %v2349
    %2354 = vrot.lane.b32.xlu0 %v2171, 64
    %v2355 = vpop.permute.xlu0 %2354
    %2356 = vrot.lane.b32.xlu0 %v2176, 64
    %v2357 = vpop.permute.xlu0 %2356
    %2358 = vrot.lane.b32.xlu0 %v2181, 64
    %v2359 = vpop.permute.xlu0 %2358
    %2360 = vrot.lane.b32.xlu0 %v2186, 64
    %v2361 = vpop.permute.xlu0 %2360
    %v2367 = vsel %vm330, %v2350, 0
    %v2370 = vsel %vm330, %v2351, 0
    %v2373 = vsel %vm330, %v2352, 0
    %v2376 = vsel %vm330, %v2353, 0
    %2378 = vmatprep.subr.mxu0 0.0
    %2379 = vmatpush1.msra.mxu0 0.0
    %2380 = vmatprep.subr.mxu0 0.0
    %2381 = vmatpush1.msra.mxu0 0.0
    %2382 = vmatprep.subr.mxu0 0.0
    %2383 = vmatpush1.msra.mxu0 0.0
    %2384 = vmatprep.subr.mxu0 0.0
    %2385 = vmatpush1.msra.mxu0 0.0
    %2386 = vmatprep.subr.mxu0 0.0
    %2387 = vmatpush1.msra.mxu0 0.0
    %2388 = vmatprep.subr.mxu0 0.0
    %2389 = vmatpush1.msra.mxu0 0.0
    %2390 = vmatprep.subr.mxu0 0.0
    %2391 = vmatpush1.msra.mxu0 0.0
    %2392 = vmatprep.subr.mxu0 0.0
    %2393 = vmatpush1.msra.mxu0 0.0
    %2394 = vmatprep.subr.mxu0 0.0
    %2395 = vmatpush1.msra.mxu0 0.0
    %2396 = vmatprep.subr.mxu0 0.0
    %2397 = vmatpush1.msra.mxu0 0.0
    %2398 = vmatprep.subr.mxu0 0.0
    %2399 = vmatpush1.msra.mxu0 0.0
    %2400 = vmatprep.subr.mxu0 0.0
    %2401 = vmatpush1.msra.mxu0 0.0
    %2402 = vmatprep.subr.mxu0 0.0
    %2403 = vmatpush1.msra.mxu0 %v2361
    %2404 = vmatprep.subr.mxu0 0.0
    %2405 = vmatpush1.msra.mxu0 %v2359
    %2406 = vmatprep.subr.mxu0 0.0
    %2407 = vmatpush1.msra.mxu0 %v2357
    %2408 = vmatprep.subr.mxu0 0.0
    %2409 = vmatpush1.msra.mxu0 %v2355
    %2410 = vmatprep.subr.mxu0 0.0
    %2411 = vmatpush2.msra.mxu0 0.0
    %2412 = vmatprep.subr.mxu0 0.0
    %2413 = vmatpush2.msra.mxu0 0.0
    %2414 = vmatprep.subr.mxu0 0.0
    %2415 = vmatpush2.msra.mxu0 0.0
    %2416 = vmatprep.subr.mxu0 0.0
    %2417 = vmatpush2.msra.mxu0 0.0
    %2418 = vmatprep.subr.mxu0 0.0
    %2419 = vmatpush2.msra.mxu0 0.0
    %2420 = vmatprep.subr.mxu0 0.0
    %2421 = vmatpush2.msra.mxu0 0.0
    %2422 = vmatprep.subr.mxu0 0.0
    %2423 = vmatpush2.msra.mxu0 0.0
    %2424 = vmatprep.subr.mxu0 0.0
    %2425 = vmatpush2.msra.mxu0 0.0
    %2426 = vmatprep.subr.mxu0 0.0
    %2427 = vmatpush2.msra.mxu0 0.0
    %2428 = vmatprep.subr.mxu0 0.0
    %2429 = vmatpush2.msra.mxu0 0.0
    %2430 = vmatprep.subr.mxu0 0.0
    %2431 = vmatpush2.msra.mxu0 0.0
    %2432 = vmatprep.subr.mxu0 0.0
    %2433 = vmatpush2.msra.mxu0 0.0
    %2434 = vmatprep.subr.mxu0 0.0
    %2435 = vmatpush2.msra.mxu0 0.0
    %2436 = vmatprep.subr.mxu0 0.0
    %2437 = vmatpush2.msra.mxu0 0.0
    %2438 = vmatprep.subr.mxu0 0.0
    %2439 = vmatpush2.msra.mxu0 0.0
    %2440 = vmatprep.subr.mxu0 0.0
    %2441 = vmatpush2.msra.mxu0 0.0
    %2442 = vmatprep.mubr.f32.mxu0 0.0
    %2443 = vmatmul.mubr.f32.gmra.mxu0 %v2367
    %v2444 = vpop.f32.mrf.mxu0
    %v2445 = vadd.f32 0.0, %v2444
    %v2446 = vpop.f32.mrf.mxu0
    %2447 = vmatprep.mubr.f32.mxu0 0.0
    %2448 = vmatmul.mubr.f32.gmra.mxu0 %v2370
    %v2449 = vpop.f32.mrf.mxu0
    %v2450 = vadd.f32 0.0, %v2449
    %v2451 = vpop.f32.mrf.mxu0
    %2452 = vmatprep.mubr.f32.mxu0 0.0
    %2453 = vmatmul.mubr.f32.gmra.mxu0 %v2373
    %v2454 = vpop.f32.mrf.mxu0
    %v2455 = vadd.f32 0.0, %v2454
    %v2456 = vpop.f32.mrf.mxu0
    %2457 = vmatprep.mubr.f32.mxu0 0.0
    %2458 = vmatmul.mubr.f32.gmra.mxu0 %v2376
    %v2459 = vpop.f32.mrf.mxu0
    %v2460 = vadd.f32 0.0, %v2459
    %v2461 = vpop.f32.mrf.mxu0
    %2462 = vdwg.mxu0
    %2463 = vst.msk [vmem:[#allocation2] sm:$0xff] %vm211, %v2445
    %2464 = vst.msk [vmem:[#allocation2 + $0x8] sm:$0xff] %vm211, %v2450
    %2465 = vst.msk [vmem:[#allocation2 + $0x10] sm:$0xff] %vm211, %v2455
    %2466 = vst.msk [vmem:[#allocation2 + $0x18] sm:$0xff] %vm211, %v2460
    %2467 = vrot.lane.b32.xlu0 %v2171, 120
    %v2468 = vpop.permute.xlu0 %2467
    %2469 = vrot.lane.b32.xlu0 %v2176, 120
    %v2470 = vpop.permute.xlu0 %2469
    %2471 = vrot.lane.b32.xlu0 %v2181, 120
    %v2472 = vpop.permute.xlu0 %2471
    %2473 = vrot.lane.b32.xlu0 %v2186, 120
    %v2474 = vpop.permute.xlu0 %2473
    %2475 = vrot.lane.b32.xlu0 %v2171, 88
    %v2476 = vpop.permute.xlu0 %2475
    %2477 = vrot.lane.b32.xlu0 %v2176, 88
    %v2478 = vpop.permute.xlu0 %2477
    %2479 = vrot.lane.b32.xlu0 %v2181, 88
    %v2480 = vpop.permute.xlu0 %2479
    %2481 = vrot.lane.b32.xlu0 %v2186, 88
    %v2482 = vpop.permute.xlu0 %2481
    %v2483 = vsel %vm211, %v2468, 0
    %v2485 = vsel %vm211, %v2470, 0
    %v2487 = vsel %vm211, %v2472, 0
    %v2489 = vsel %vm211, %v2474, 0
    %v2491 = vsel %vm211, %v2476, 0
    %v2493 = vsel %vm211, %v2478, 0
    %v2495 = vsel %vm211, %v2480, 0
    %v2497 = vsel %vm211, %v2482, 0
    %2499 = vmatprep.subr.mxu0 0.0
    %2500 = vmatpush1.xpose.msra.mxu0 0.0
    %2501 = vmatprep.subr.mxu0 0.0
    %2502 = vmatpush1.xpose.msra.mxu0 0.0
    %2503 = vmatprep.subr.mxu0 0.0
    %2504 = vmatpush1.xpose.msra.mxu0 0.0
    %2505 = vmatprep.subr.mxu0 0.0
    %2506 = vmatpush1.xpose.msra.mxu0 0.0
    %2507 = vmatprep.subr.mxu0 0.0
    %2508 = vmatpush1.xpose.msra.mxu0 0.0
    %2509 = vmatprep.subr.mxu0 0.0
    %2510 = vmatpush1.xpose.msra.mxu0 0.0
    %2511 = vmatprep.subr.mxu0 0.0
    %2512 = vmatpush1.xpose.msra.mxu0 0.0
    %2513 = vmatprep.subr.mxu0 0.0
    %2514 = vmatpush1.xpose.msra.mxu0 0.0
    %2515 = vmatprep.subr.mxu0 0.0
    %2516 = vmatpush1.xpose.msra.mxu0 0.0
    %2517 = vmatprep.subr.mxu0 0.0
    %2518 = vmatpush1.xpose.msra.mxu0 0.0
    %2519 = vmatprep.subr.mxu0 0.0
    %2520 = vmatpush1.xpose.msra.mxu0 0.0
    %2521 = vmatprep.subr.mxu0 0.0
    %2522 = vmatpush1.xpose.msra.mxu0 0.0
    %2523 = vmatprep.subr.mxu0 0.0
    %2524 = vmatpush1.xpose.msra.mxu0 %v2497
    %2525 = vmatprep.subr.mxu0 0.0
    %2526 = vmatpush1.xpose.msra.mxu0 %v2495
    %2527 = vmatprep.subr.mxu0 0.0
    %2528 = vmatpush1.xpose.msra.mxu0 %v2493
    %2529 = vmatprep.subr.mxu0 0.0
    %2530 = vmatpush1.xpose.msra.mxu0 %v2491
    %2531 = vmatprep.subr.mxu0 0.0
    %2532 = vmatpush2.xpose.msra.mxu0 0.0
    %2533 = vmatprep.subr.mxu0 0.0
    %2534 = vmatpush2.xpose.msra.mxu0 0.0
    %2535 = vmatprep.subr.mxu0 0.0
    %2536 = vmatpush2.xpose.msra.mxu0 0.0
    %2537 = vmatprep.subr.mxu0 0.0
    %2538 = vmatpush2.xpose.msra.mxu0 0.0
    %2539 = vmatprep.subr.mxu0 0.0
    %2540 = vmatpush2.xpose.msra.mxu0 0.0
    %2541 = vmatprep.subr.mxu0 0.0
    %2542 = vmatpush2.xpose.msra.mxu0 0.0
    %2543 = vmatprep.subr.mxu0 0.0
    %2544 = vmatpush2.xpose.msra.mxu0 0.0
    %2545 = vmatprep.subr.mxu0 0.0
    %2546 = vmatpush2.xpose.msra.mxu0 0.0
    %2547 = vmatprep.subr.mxu0 0.0
    %2548 = vmatpush2.xpose.msra.mxu0 0.0
    %2549 = vmatprep.subr.mxu0 0.0
    %2550 = vmatpush2.xpose.msra.mxu0 0.0
    %2551 = vmatprep.subr.mxu0 0.0
    %2552 = vmatpush2.xpose.msra.mxu0 0.0
    %2553 = vmatprep.subr.mxu0 0.0
    %2554 = vmatpush2.xpose.msra.mxu0 0.0
    %2555 = vmatprep.subr.mxu0 0.0
    %2556 = vmatpush2.xpose.msra.mxu0 0.0
    %2557 = vmatprep.subr.mxu0 0.0
    %2558 = vmatpush2.xpose.msra.mxu0 0.0
    %2559 = vmatprep.subr.mxu0 0.0
    %2560 = vmatpush2.xpose.msra.mxu0 0.0
    %2561 = vmatprep.subr.mxu0 0.0
    %2562 = vmatpush2.xpose.msra.mxu0 0.0
    %2563 = vmatprep.mubr.f32.mxu0 0.0
    %2564 = vmatmul.mubr.f32.gmra.mxu0 %v2483
    %v2565 = vpop.f32.mrf.mxu0
    %v2566 = vadd.f32 0.0, %v2565
    %v2567 = vpop.f32.mrf.mxu0
    %2568 = vmatprep.mubr.f32.mxu0 0.0
    %2569 = vmatmul.mubr.f32.gmra.mxu0 %v2485
    %v2570 = vpop.f32.mrf.mxu0
    %v2571 = vadd.f32 0.0, %v2570
    %v2572 = vpop.f32.mrf.mxu0
    %2573 = vmatprep.mubr.f32.mxu0 0.0
    %2574 = vmatmul.mubr.f32.gmra.mxu0 %v2487
    %v2575 = vpop.f32.mrf.mxu0
    %v2576 = vadd.f32 0.0, %v2575
    %v2577 = vpop.f32.mrf.mxu0
    %2578 = vmatprep.mubr.f32.mxu0 0.0
    %2579 = vmatmul.mubr.f32.gmra.mxu0 %v2489
    %v2580 = vpop.f32.mrf.mxu0
    %v2581 = vadd.f32 0.0, %v2580
    %v2582 = vpop.f32.mrf.mxu0
    %2583 = vdwg.mxu0
    %v2584 = vmul.f32 %v2566, 0.35355338
    %v2585 = vmul.f32 %v2571, 0.35355338
    %v2586 = vmul.f32 %v2576, 0.35355338
    %v2587 = vmul.f32 %v2581, 0.35355338
    %v2588 = vadd.f32 %v2584, %v35
    %v2589 = vadd.f32 %v2585, %v36
    %v2590 = vadd.f32 %v2586, %v37
    %v2591 = vadd.f32 %v2587, %v38
    %v2592 = vsel %vm330, %v2588, -inf
    %2593 = vmax.xlane.f32.xlu0 %v2592
    %v2594 = vpop.xlane.xlu0 %2593
    %v2595 = vsel %vm330, %v2589, -inf
    %2596 = vmax.xlane.f32.xlu0 %v2595
    %v2597 = vpop.xlane.xlu0 %2596
    %v2598 = vsel %vm330, %v2590, -inf
    %2599 = vmax.xlane.f32.xlu0 %v2598
    %v2600 = vpop.xlane.xlu0 %2599
    %v2601 = vsel %vm330, %v2591, -inf
    %2602 = vmax.xlane.f32.xlu0 %v2601
    %v2603 = vpop.xlane.xlu0 %2602
    %v2604 = vsub.f32 %v2588, %v2594
    %v2605 = vsub.f32 %v2589, %v2597
    %v2606 = vsub.f32 %v2590, %v2600
    %v2607 = vsub.f32 %v2591, %v2603
    %v2608 = vmul.f32 %v2604, 1.442695
    %v2609 = vpow.pop %v2608
    %v2610 = vmul.f32 %v2605, 1.442695
    %v2611 = vpow.pop %v2610
    %v2612 = vmul.f32 %v2606, 1.442695
    %v2613 = vpow.pop %v2612
    %v2614 = vmul.f32 %v2607, 1.442695
    %v2615 = vpow.pop %v2614
    %v2616 = vsel %vm330, %v2609, 0.0
    %2617 = vadd.xlane.f32.xlu0 %v2616
    %v2618 = vpop.xlane.xlu0 %2617
    %v2619 = vsel %vm330, %v2611, 0.0
    %2620 = vadd.xlane.f32.xlu0 %v2619
    %v2621 = vpop.xlane.xlu0 %2620
    %v2622 = vsel %vm330, %v2613, 0.0
    %2623 = vadd.xlane.f32.xlu0 %v2622
    %v2624 = vpop.xlane.xlu0 %2623
    %v2625 = vsel %vm330, %v2615, 0.0
    %2626 = vadd.xlane.f32.xlu0 %v2625
    %v2627 = vpop.xlane.xlu0 %2626
    %v2628 = vrcp.pop %v2618
    %v2629 = vrcp.pop %v2621
    %v2630 = vrcp.pop %v2624
    %v2631 = vrcp.pop %v2627
    %v2632 = vmul.f32 %v2609, %v2628
    %v2633 = vmul.f32 %v2611, %v2629
    %v2634 = vmul.f32 %v2613, %v2630
    %v2635 = vmul.f32 %v2615, %v2631
    %2636 = vrot.lane.b32.xlu0 %v2171, 56
    %v2637 = vpop.permute.xlu0 %2636
    %2638 = vrot.lane.b32.xlu0 %v2176, 56
    %v2639 = vpop.permute.xlu0 %2638
    %2640 = vrot.lane.b32.xlu0 %v2181, 56
    %v2641 = vpop.permute.xlu0 %2640
    %2642 = vrot.lane.b32.xlu0 %v2186, 56
    %v2643 = vpop.permute.xlu0 %2642
    %v2649 = vsel %vm330, %v2632, 0
    %v2652 = vsel %vm330, %v2633, 0
    %v2655 = vsel %vm330, %v2634, 0
    %v2658 = vsel %vm330, %v2635, 0
    %2660 = vmatprep.subr.mxu0 0.0
    %2661 = vmatpush1.msra.mxu0 0.0
    %2662 = vmatprep.subr.mxu0 0.0
    %2663 = vmatpush1.msra.mxu0 0.0
    %2664 = vmatprep.subr.mxu0 0.0
    %2665 = vmatpush1.msra.mxu0 0.0
    %2666 = vmatprep.subr.mxu0 0.0
    %2667 = vmatpush1.msra.mxu0 0.0
    %2668 = vmatprep.subr.mxu0 0.0
    %2669 = vmatpush1.msra.mxu0 0.0
    %2670 = vmatprep.subr.mxu0 0.0
    %2671 = vmatpush1.msra.mxu0 0.0
    %2672 = vmatprep.subr.mxu0 0.0
    %2673 = vmatpush1.msra.mxu0 0.0
    %2674 = vmatprep.subr.mxu0 0.0
    %2675 = vmatpush1.msra.mxu0 0.0
    %2676 = vmatprep.subr.mxu0 0.0
    %2677 = vmatpush1.msra.mxu0 0.0
    %2678 = vmatprep.subr.mxu0 0.0
    %2679 = vmatpush1.msra.mxu0 0.0
    %2680 = vmatprep.subr.mxu0 0.0
    %2681 = vmatpush1.msra.mxu0 0.0
    %2682 = vmatprep.subr.mxu0 0.0
    %2683 = vmatpush1.msra.mxu0 0.0
    %2684 = vmatprep.subr.mxu0 0.0
    %2685 = vmatpush1.msra.mxu0 %v2643
    %2686 = vmatprep.subr.mxu0 0.0
    %2687 = vmatpush1.msra.mxu0 %v2641
    %2688 = vmatprep.subr.mxu0 0.0
    %2689 = vmatpush1.msra.mxu0 %v2639
    %2690 = vmatprep.subr.mxu0 0.0
    %2691 = vmatpush1.msra.mxu0 %v2637
    %2692 = vmatprep.subr.mxu0 0.0
    %2693 = vmatpush2.msra.mxu0 0.0
    %2694 = vmatprep.subr.mxu0 0.0
    %2695 = vmatpush2.msra.mxu0 0.0
    %2696 = vmatprep.subr.mxu0 0.0
    %2697 = vmatpush2.msra.mxu0 0.0
    %2698 = vmatprep.subr.mxu0 0.0
    %2699 = vmatpush2.msra.mxu0 0.0
    %2700 = vmatprep.subr.mxu0 0.0
    %2701 = vmatpush2.msra.mxu0 0.0
    %2702 = vmatprep.subr.mxu0 0.0
    %2703 = vmatpush2.msra.mxu0 0.0
    %2704 = vmatprep.subr.mxu0 0.0
    %2705 = vmatpush2.msra.mxu0 0.0
    %2706 = vmatprep.subr.mxu0 0.0
    %2707 = vmatpush2.msra.mxu0 0.0
    %2708 = vmatprep.subr.mxu0 0.0
    %2709 = vmatpush2.msra.mxu0 0.0
    %2710 = vmatprep.subr.mxu0 0.0
    %2711 = vmatpush2.msra.mxu0 0.0
    %2712 = vmatprep.subr.mxu0 0.0
    %2713 = vmatpush2.msra.mxu0 0.0
    %2714 = vmatprep.subr.mxu0 0.0
    %2715 = vmatpush2.msra.mxu0 0.0
    %2716 = vmatprep.subr.mxu0 0.0
    %2717 = vmatpush2.msra.mxu0 0.0
    %2718 = vmatprep.subr.mxu0 0.0
    %2719 = vmatpush2.msra.mxu0 0.0
    %2720 = vmatprep.subr.mxu0 0.0
    %2721 = vmatpush2.msra.mxu0 0.0
    %2722 = vmatprep.subr.mxu0 0.0
    %2723 = vmatpush2.msra.mxu0 0.0
    %2724 = vmatprep.mubr.f32.mxu0 0.0
    %2725 = vmatmul.mubr.f32.gmra.mxu0 %v2649
    %v2726 = vpop.f32.mrf.mxu0
    %v2727 = vadd.f32 0.0, %v2726
    %v2728 = vpop.f32.mrf.mxu0
    %2729 = vmatprep.mubr.f32.mxu0 0.0
    %2730 = vmatmul.mubr.f32.gmra.mxu0 %v2652
    %v2731 = vpop.f32.mrf.mxu0
    %v2732 = vadd.f32 0.0, %v2731
    %v2733 = vpop.f32.mrf.mxu0
    %2734 = vmatprep.mubr.f32.mxu0 0.0
    %2735 = vmatmul.mubr.f32.gmra.mxu0 %v2655
    %v2736 = vpop.f32.mrf.mxu0
    %v2737 = vadd.f32 0.0, %v2736
    %v2738 = vpop.f32.mrf.mxu0
    %2739 = vmatprep.mubr.f32.mxu0 0.0
    %2740 = vmatmul.mubr.f32.gmra.mxu0 %v2658
    %v2741 = vpop.f32.mrf.mxu0
    %v2742 = vadd.f32 0.0, %v2741
    %v2743 = vpop.f32.mrf.mxu0
    %2744 = vdwg.mxu0
    %2749 = vrot.lane.b32.xlu0 %v2727, 8
    %v2750 = vpop.permute.xlu0 %2749
    %2751 = vrot.lane.b32.xlu0 %v2732, 8
    %v2752 = vpop.permute.xlu0 %2751
    %2753 = vrot.lane.b32.xlu0 %v2737, 8
    %v2754 = vpop.permute.xlu0 %2753
    %2755 = vrot.lane.b32.xlu0 %v2742, 8
    %v2756 = vpop.permute.xlu0 %2755
    %2761 = vst.msk [vmem:[#allocation2] sm:$0xff] %vm1000, %v2750
    %2762 = vst.msk [vmem:[#allocation2 + $0x8] sm:$0xff] %vm1000, %v2752
    %2763 = vst.msk [vmem:[#allocation2 + $0x10] sm:$0xff] %vm1000, %v2754
    %2764 = vst.msk [vmem:[#allocation2 + $0x18] sm:$0xff] %vm1000, %v2756
    %2765 = vrot.lane.b32.xlu0 %v2171, 112
    %v2766 = vpop.permute.xlu0 %2765
    %2767 = vrot.lane.b32.xlu0 %v2176, 112
    %v2768 = vpop.permute.xlu0 %2767
    %2769 = vrot.lane.b32.xlu0 %v2181, 112
    %v2770 = vpop.permute.xlu0 %2769
    %2771 = vrot.lane.b32.xlu0 %v2186, 112
    %v2772 = vpop.permute.xlu0 %2771
    %2773 = vrot.lane.b32.xlu0 %v2171, 80
    %v2774 = vpop.permute.xlu0 %2773
    %2775 = vrot.lane.b32.xlu0 %v2176, 80
    %v2776 = vpop.permute.xlu0 %2775
    %2777 = vrot.lane.b32.xlu0 %v2181, 80
    %v2778 = vpop.permute.xlu0 %2777
    %2779 = vrot.lane.b32.xlu0 %v2186, 80
    %v2780 = vpop.permute.xlu0 %2779
    %v2781 = vsel %vm211, %v2766, 0
    %v2783 = vsel %vm211, %v2768, 0
    %v2785 = vsel %vm211, %v2770, 0
    %v2787 = vsel %vm211, %v2772, 0
    %v2789 = vsel %vm211, %v2774, 0
    %v2791 = vsel %vm211, %v2776, 0
    %v2793 = vsel %vm211, %v2778, 0
    %v2795 = vsel %vm211, %v2780, 0
    %2797 = vmatprep.subr.mxu0 0.0
    %2798 = vmatpush1.xpose.msra.mxu0 0.0
    %2799 = vmatprep.subr.mxu0 0.0
    %2800 = vmatpush1.xpose.msra.mxu0 0.0
    %2801 = vmatprep.subr.mxu0 0.0
    %2802 = vmatpush1.xpose.msra.mxu0 0.0
    %2803 = vmatprep.subr.mxu0 0.0
    %2804 = vmatpush1.xpose.msra.mxu0 0.0
    %2805 = vmatprep.subr.mxu0 0.0
    %2806 = vmatpush1.xpose.msra.mxu0 0.0
    %2807 = vmatprep.subr.mxu0 0.0
    %2808 = vmatpush1.xpose.msra.mxu0 0.0
    %2809 = vmatprep.subr.mxu0 0.0
    %2810 = vmatpush1.xpose.msra.mxu0 0.0
    %2811 = vmatprep.subr.mxu0 0.0
    %2812 = vmatpush1.xpose.msra.mxu0 0.0
    %2813 = vmatprep.subr.mxu0 0.0
    %2814 = vmatpush1.xpose.msra.mxu0 0.0
    %2815 = vmatprep.subr.mxu0 0.0
    %2816 = vmatpush1.xpose.msra.mxu0 0.0
    %2817 = vmatprep.subr.mxu0 0.0
    %2818 = vmatpush1.xpose.msra.mxu0 0.0
    %2819 = vmatprep.subr.mxu0 0.0
    %2820 = vmatpush1.xpose.msra.mxu0 0.0
    %2821 = vmatprep.subr.mxu0 0.0
    %2822 = vmatpush1.xpose.msra.mxu0 %v2795
    %2823 = vmatprep.subr.mxu0 0.0
    %2824 = vmatpush1.xpose.msra.mxu0 %v2793
    %2825 = vmatprep.subr.mxu0 0.0
    %2826 = vmatpush1.xpose.msra.mxu0 %v2791
    %2827 = vmatprep.subr.mxu0 0.0
    %2828 = vmatpush1.xpose.msra.mxu0 %v2789
    %2829 = vmatprep.subr.mxu0 0.0
    %2830 = vmatpush2.xpose.msra.mxu0 0.0
    %2831 = vmatprep.subr.mxu0 0.0
    %2832 = vmatpush2.xpose.msra.mxu0 0.0
    %2833 = vmatprep.subr.mxu0 0.0
    %2834 = vmatpush2.xpose.msra.mxu0 0.0
    %2835 = vmatprep.subr.mxu0 0.0
    %2836 = vmatpush2.xpose.msra.mxu0 0.0
    %2837 = vmatprep.subr.mxu0 0.0
    %2838 = vmatpush2.xpose.msra.mxu0 0.0
    %2839 = vmatprep.subr.mxu0 0.0
    %2840 = vmatpush2.xpose.msra.mxu0 0.0
    %2841 = vmatprep.subr.mxu0 0.0
    %2842 = vmatpush2.xpose.msra.mxu0 0.0
    %2843 = vmatprep.subr.mxu0 0.0
    %2844 = vmatpush2.xpose.msra.mxu0 0.0
    %2845 = vmatprep.subr.mxu0 0.0
    %2846 = vmatpush2.xpose.msra.mxu0 0.0
    %2847 = vmatprep.subr.mxu0 0.0
    %2848 = vmatpush2.xpose.msra.mxu0 0.0
    %2849 = vmatprep.subr.mxu0 0.0
    %2850 = vmatpush2.xpose.msra.mxu0 0.0
    %2851 = vmatprep.subr.mxu0 0.0
    %2852 = vmatpush2.xpose.msra.mxu0 0.0
    %2853 = vmatprep.subr.mxu0 0.0
    %2854 = vmatpush2.xpose.msra.mxu0 0.0
    %2855 = vmatprep.subr.mxu0 0.0
    %2856 = vmatpush2.xpose.msra.mxu0 0.0
    %2857 = vmatprep.subr.mxu0 0.0
    %2858 = vmatpush2.xpose.msra.mxu0 0.0
    %2859 = vmatprep.subr.mxu0 0.0
    %2860 = vmatpush2.xpose.msra.mxu0 0.0
    %2861 = vmatprep.mubr.f32.mxu0 0.0
    %2862 = vmatmul.mubr.f32.gmra.mxu0 %v2781
    %v2863 = vpop.f32.mrf.mxu0
    %v2864 = vadd.f32 0.0, %v2863
    %v2865 = vpop.f32.mrf.mxu0
    %2866 = vmatprep.mubr.f32.mxu0 0.0
    %2867 = vmatmul.mubr.f32.gmra.mxu0 %v2783
    %v2868 = vpop.f32.mrf.mxu0
    %v2869 = vadd.f32 0.0, %v2868
    %v2870 = vpop.f32.mrf.mxu0
    %2871 = vmatprep.mubr.f32.mxu0 0.0
    %2872 = vmatmul.mubr.f32.gmra.mxu0 %v2785
    %v2873 = vpop.f32.mrf.mxu0
    %v2874 = vadd.f32 0.0, %v2873
    %v2875 = vpop.f32.mrf.mxu0
    %2876 = vmatprep.mubr.f32.mxu0 0.0
    %2877 = vmatmul.mubr.f32.gmra.mxu0 %v2787
    %v2878 = vpop.f32.mrf.mxu0
    %v2879 = vadd.f32 0.0, %v2878
    %v2880 = vpop.f32.mrf.mxu0
    %2881 = vdwg.mxu0
    %v2882 = vmul.f32 %v2864, 0.35355338
    %v2883 = vmul.f32 %v2869, 0.35355338
    %v2884 = vmul.f32 %v2874, 0.35355338
    %v2885 = vmul.f32 %v2879, 0.35355338
    %v2886 = vadd.f32 %v2882, %v35
    %v2887 = vadd.f32 %v2883, %v36
    %v2888 = vadd.f32 %v2884, %v37
    %v2889 = vadd.f32 %v2885, %v38
    %v2890 = vsel %vm330, %v2886, -inf
    %2891 = vmax.xlane.f32.xlu0 %v2890
    %v2892 = vpop.xlane.xlu0 %2891
    %v2893 = vsel %vm330, %v2887, -inf
    %2894 = vmax.xlane.f32.xlu0 %v2893
    %v2895 = vpop.xlane.xlu0 %2894
    %v2896 = vsel %vm330, %v2888, -inf
    %2897 = vmax.xlane.f32.xlu0 %v2896
    %v2898 = vpop.xlane.xlu0 %2897
    %v2899 = vsel %vm330, %v2889, -inf
    %2900 = vmax.xlane.f32.xlu0 %v2899
    %v2901 = vpop.xlane.xlu0 %2900
    %v2902 = vsub.f32 %v2886, %v2892
    %v2903 = vsub.f32 %v2887, %v2895
    %v2904 = vsub.f32 %v2888, %v2898
    %v2905 = vsub.f32 %v2889, %v2901
    %v2906 = vmul.f32 %v2902, 1.442695
    %v2907 = vpow.pop %v2906
    %v2908 = vmul.f32 %v2903, 1.442695
    %v2909 = vpow.pop %v2908
    %v2910 = vmul.f32 %v2904, 1.442695
    %v2911 = vpow.pop %v2910
    %v2912 = vmul.f32 %v2905, 1.442695
    %v2913 = vpow.pop %v2912
    %v2914 = vsel %vm330, %v2907, 0.0
    %2915 = vadd.xlane.f32.xlu0 %v2914
    %v2916 = vpop.xlane.xlu0 %2915
    %v2917 = vsel %vm330, %v2909, 0.0
    %2918 = vadd.xlane.f32.xlu0 %v2917
    %v2919 = vpop.xlane.xlu0 %2918
    %v2920 = vsel %vm330, %v2911, 0.0
    %2921 = vadd.xlane.f32.xlu0 %v2920
    %v2922 = vpop.xlane.xlu0 %2921
    %v2923 = vsel %vm330, %v2913, 0.0
    %2924 = vadd.xlane.f32.xlu0 %v2923
    %v2925 = vpop.xlane.xlu0 %2924
    %v2926 = vrcp.pop %v2916
    %v2927 = vrcp.pop %v2919
    %v2928 = vrcp.pop %v2922
    %v2929 = vrcp.pop %v2925
    %v2930 = vmul.f32 %v2907, %v2926
    %v2931 = vmul.f32 %v2909, %v2927
    %v2932 = vmul.f32 %v2911, %v2928
    %v2933 = vmul.f32 %v2913, %v2929
    %2934 = vrot.lane.b32.xlu0 %v2171, 48
    %v2935 = vpop.permute.xlu0 %2934
    %2936 = vrot.lane.b32.xlu0 %v2176, 48
    %v2937 = vpop.permute.xlu0 %2936
    %2938 = vrot.lane.b32.xlu0 %v2181, 48
    %v2939 = vpop.permute.xlu0 %2938
    %2940 = vrot.lane.b32.xlu0 %v2186, 48
    %v2941 = vpop.permute.xlu0 %2940
    %v2947 = vsel %vm330, %v2930, 0
    %v2950 = vsel %vm330, %v2931, 0
    %v2953 = vsel %vm330, %v2932, 0
    %v2956 = vsel %vm330, %v2933, 0
    %2958 = vmatprep.subr.mxu0 0.0
    %2959 = vmatpush1.msra.mxu0 0.0
    %2960 = vmatprep.subr.mxu0 0.0
    %2961 = vmatpush1.msra.mxu0 0.0
    %2962 = vmatprep.subr.mxu0 0.0
    %2963 = vmatpush1.msra.mxu0 0.0
    %2964 = vmatprep.subr.mxu0 0.0
    %2965 = vmatpush1.msra.mxu0 0.0
    %2966 = vmatprep.subr.mxu0 0.0
    %2967 = vmatpush1.msra.mxu0 0.0
    %2968 = vmatprep.subr.mxu0 0.0
    %2969 = vmatpush1.msra.mxu0 0.0
    %2970 = vmatprep.subr.mxu0 0.0
    %2971 = vmatpush1.msra.mxu0 0.0
    %2972 = vmatprep.subr.mxu0 0.0
    %2973 = vmatpush1.msra.mxu0 0.0
    %2974 = vmatprep.subr.mxu0 0.0
    %2975 = vmatpush1.msra.mxu0 0.0
    %2976 = vmatprep.subr.mxu0 0.0
    %2977 = vmatpush1.msra.mxu0 0.0
    %2978 = vmatprep.subr.mxu0 0.0
    %2979 = vmatpush1.msra.mxu0 0.0
    %2980 = vmatprep.subr.mxu0 0.0
    %2981 = vmatpush1.msra.mxu0 0.0
    %2982 = vmatprep.subr.mxu0 0.0
    %2983 = vmatpush1.msra.mxu0 %v2941
    %2984 = vmatprep.subr.mxu0 0.0
    %2985 = vmatpush1.msra.mxu0 %v2939
    %2986 = vmatprep.subr.mxu0 0.0
    %2987 = vmatpush1.msra.mxu0 %v2937
    %2988 = vmatprep.subr.mxu0 0.0
    %2989 = vmatpush1.msra.mxu0 %v2935
    %2990 = vmatprep.subr.mxu0 0.0
    %2991 = vmatpush2.msra.mxu0 0.0
    %2992 = vmatprep.subr.mxu0 0.0
    %2993 = vmatpush2.msra.mxu0 0.0
    %2994 = vmatprep.subr.mxu0 0.0
    %2995 = vmatpush2.msra.mxu0 0.0
    %2996 = vmatprep.subr.mxu0 0.0
    %2997 = vmatpush2.msra.mxu0 0.0
    %2998 = vmatprep.subr.mxu0 0.0
    %2999 = vmatpush2.msra.mxu0 0.0
    %3000 = vmatprep.subr.mxu0 0.0
    %3001 = vmatpush2.msra.mxu0 0.0
    %3002 = vmatprep.subr.mxu0 0.0
    %3003 = vmatpush2.msra.mxu0 0.0
    %3004 = vmatprep.subr.mxu0 0.0
    %3005 = vmatpush2.msra.mxu0 0.0
    %3006 = vmatprep.subr.mxu0 0.0
    %3007 = vmatpush2.msra.mxu0 0.0
    %3008 = vmatprep.subr.mxu0 0.0
    %3009 = vmatpush2.msra.mxu0 0.0
    %3010 = vmatprep.subr.mxu0 0.0
    %3011 = vmatpush2.msra.mxu0 0.0
    %3012 = vmatprep.subr.mxu0 0.0
    %3013 = vmatpush2.msra.mxu0 0.0
    %3014 = vmatprep.subr.mxu0 0.0
    %3015 = vmatpush2.msra.mxu0 0.0
    %3016 = vmatprep.subr.mxu0 0.0
    %3017 = vmatpush2.msra.mxu0 0.0
    %3018 = vmatprep.subr.mxu0 0.0
    %3019 = vmatpush2.msra.mxu0 0.0
    %3020 = vmatprep.subr.mxu0 0.0
    %3021 = vmatpush2.msra.mxu0 0.0
    %3022 = vmatprep.mubr.f32.mxu0 0.0
    %3023 = vmatmul.mubr.f32.gmra.mxu0 %v2947
    %v3024 = vpop.f32.mrf.mxu0
    %v3025 = vadd.f32 0.0, %v3024
    %v3026 = vpop.f32.mrf.mxu0
    %3027 = vmatprep.mubr.f32.mxu0 0.0
    %3028 = vmatmul.mubr.f32.gmra.mxu0 %v2950
    %v3029 = vpop.f32.mrf.mxu0
    %v3030 = vadd.f32 0.0, %v3029
    %v3031 = vpop.f32.mrf.mxu0
    %3032 = vmatprep.mubr.f32.mxu0 0.0
    %3033 = vmatmul.mubr.f32.gmra.mxu0 %v2953
    %v3034 = vpop.f32.mrf.mxu0
    %v3035 = vadd.f32 0.0, %v3034
    %v3036 = vpop.f32.mrf.mxu0
    %3037 = vmatprep.mubr.f32.mxu0 0.0
    %3038 = vmatmul.mubr.f32.gmra.mxu0 %v2956
    %v3039 = vpop.f32.mrf.mxu0
    %v3040 = vadd.f32 0.0, %v3039
    %v3041 = vpop.f32.mrf.mxu0
    %3042 = vdwg.mxu0
    %3047 = vrot.lane.b32.xlu0 %v3025, 16
    %v3048 = vpop.permute.xlu0 %3047
    %3049 = vrot.lane.b32.xlu0 %v3030, 16
    %v3050 = vpop.permute.xlu0 %3049
    %3051 = vrot.lane.b32.xlu0 %v3035, 16
    %v3052 = vpop.permute.xlu0 %3051
    %3053 = vrot.lane.b32.xlu0 %v3040, 16
    %v3054 = vpop.permute.xlu0 %3053
    %3059 = vst.msk [vmem:[#allocation2] sm:$0xff] %vm1299, %v3048
    %3060 = vst.msk [vmem:[#allocation2 + $0x8] sm:$0xff] %vm1299, %v3050
    %3061 = vst.msk [vmem:[#allocation2 + $0x10] sm:$0xff] %vm1299, %v3052
    %3062 = vst.msk [vmem:[#allocation2 + $0x18] sm:$0xff] %vm1299, %v3054
    %3063 = vrot.lane.b32.xlu0 %v2171, 104
    %v3064 = vpop.permute.xlu0 %3063
    %3065 = vrot.lane.b32.xlu0 %v2176, 104
    %v3066 = vpop.permute.xlu0 %3065
    %3067 = vrot.lane.b32.xlu0 %v2181, 104
    %v3068 = vpop.permute.xlu0 %3067
    %3069 = vrot.lane.b32.xlu0 %v2186, 104
    %v3070 = vpop.permute.xlu0 %3069
    %3071 = vrot.lane.b32.xlu0 %v2171, 72
    %v3072 = vpop.permute.xlu0 %3071
    %3073 = vrot.lane.b32.xlu0 %v2176, 72
    %v3074 = vpop.permute.xlu0 %3073
    %3075 = vrot.lane.b32.xlu0 %v2181, 72
    %v3076 = vpop.permute.xlu0 %3075
    %3077 = vrot.lane.b32.xlu0 %v2186, 72
    %v3078 = vpop.permute.xlu0 %3077
    %v3079 = vsel %vm211, %v3064, 0
    %v3081 = vsel %vm211, %v3066, 0
    %v3083 = vsel %vm211, %v3068, 0
    %v3085 = vsel %vm211, %v3070, 0
    %v3087 = vsel %vm211, %v3072, 0
    %v3089 = vsel %vm211, %v3074, 0
    %v3091 = vsel %vm211, %v3076, 0
    %v3093 = vsel %vm211, %v3078, 0
    %3095 = vmatprep.subr.mxu0 0.0
    %3096 = vmatpush1.xpose.msra.mxu0 0.0
    %3097 = vmatprep.subr.mxu0 0.0
    %3098 = vmatpush1.xpose.msra.mxu0 0.0
    %3099 = vmatprep.subr.mxu0 0.0
    %3100 = vmatpush1.xpose.msra.mxu0 0.0
    %3101 = vmatprep.subr.mxu0 0.0
    %3102 = vmatpush1.xpose.msra.mxu0 0.0
    %3103 = vmatprep.subr.mxu0 0.0
    %3104 = vmatpush1.xpose.msra.mxu0 0.0
    %3105 = vmatprep.subr.mxu0 0.0
    %3106 = vmatpush1.xpose.msra.mxu0 0.0
    %3107 = vmatprep.subr.mxu0 0.0
    %3108 = vmatpush1.xpose.msra.mxu0 0.0
    %3109 = vmatprep.subr.mxu0 0.0
    %3110 = vmatpush1.xpose.msra.mxu0 0.0
    %3111 = vmatprep.subr.mxu0 0.0
    %3112 = vmatpush1.xpose.msra.mxu0 0.0
    %3113 = vmatprep.subr.mxu0 0.0
    %3114 = vmatpush1.xpose.msra.mxu0 0.0
    %3115 = vmatprep.subr.mxu0 0.0
    %3116 = vmatpush1.xpose.msra.mxu0 0.0
    %3117 = vmatprep.subr.mxu0 0.0
    %3118 = vmatpush1.xpose.msra.mxu0 0.0
    %3119 = vmatprep.subr.mxu0 0.0
    %3120 = vmatpush1.xpose.msra.mxu0 %v3093
    %3121 = vmatprep.subr.mxu0 0.0
    %3122 = vmatpush1.xpose.msra.mxu0 %v3091
    %3123 = vmatprep.subr.mxu0 0.0
    %3124 = vmatpush1.xpose.msra.mxu0 %v3089
    %3125 = vmatprep.subr.mxu0 0.0
    %3126 = vmatpush1.xpose.msra.mxu0 %v3087
    %3127 = vmatprep.subr.mxu0 0.0
    %3128 = vmatpush2.xpose.msra.mxu0 0.0
    %3129 = vmatprep.subr.mxu0 0.0
    %3130 = vmatpush2.xpose.msra.mxu0 0.0
    %3131 = vmatprep.subr.mxu0 0.0
    %3132 = vmatpush2.xpose.msra.mxu0 0.0
    %3133 = vmatprep.subr.mxu0 0.0
    %3134 = vmatpush2.xpose.msra.mxu0 0.0
    %3135 = vmatprep.subr.mxu0 0.0
    %3136 = vmatpush2.xpose.msra.mxu0 0.0
    %3137 = vmatprep.subr.mxu0 0.0
    %3138 = vmatpush2.xpose.msra.mxu0 0.0
    %3139 = vmatprep.subr.mxu0 0.0
    %3140 = vmatpush2.xpose.msra.mxu0 0.0
    %3141 = vmatprep.subr.mxu0 0.0
    %3142 = vmatpush2.xpose.msra.mxu0 0.0
    %3143 = vmatprep.subr.mxu0 0.0
    %3144 = vmatpush2.xpose.msra.mxu0 0.0
    %3145 = vmatprep.subr.mxu0 0.0
    %3146 = vmatpush2.xpose.msra.mxu0 0.0
    %3147 = vmatprep.subr.mxu0 0.0
    %3148 = vmatpush2.xpose.msra.mxu0 0.0
    %3149 = vmatprep.subr.mxu0 0.0
    %3150 = vmatpush2.xpose.msra.mxu0 0.0
    %3151 = vmatprep.subr.mxu0 0.0
    %3152 = vmatpush2.xpose.msra.mxu0 0.0
    %3153 = vmatprep.subr.mxu0 0.0
    %3154 = vmatpush2.xpose.msra.mxu0 0.0
    %3155 = vmatprep.subr.mxu0 0.0
    %3156 = vmatpush2.xpose.msra.mxu0 0.0
    %3157 = vmatprep.subr.mxu0 0.0
    %3158 = vmatpush2.xpose.msra.mxu0 0.0
    %3159 = vmatprep.mubr.f32.mxu0 0.0
    %3160 = vmatmul.mubr.f32.gmra.mxu0 %v3079
    %v3161 = vpop.f32.mrf.mxu0
    %v3162 = vadd.f32 0.0, %v3161
    %v3163 = vpop.f32.mrf.mxu0
    %3164 = vmatprep.mubr.f32.mxu0 0.0
    %3165 = vmatmul.mubr.f32.gmra.mxu0 %v3081
    %v3166 = vpop.f32.mrf.mxu0
    %v3167 = vadd.f32 0.0, %v3166
    %v3168 = vpop.f32.mrf.mxu0
    %3169 = vmatprep.mubr.f32.mxu0 0.0
    %3170 = vmatmul.mubr.f32.gmra.mxu0 %v3083
    %v3171 = vpop.f32.mrf.mxu0
    %v3172 = vadd.f32 0.0, %v3171
    %v3173 = vpop.f32.mrf.mxu0
    %3174 = vmatprep.mubr.f32.mxu0 0.0
    %3175 = vmatmul.mubr.f32.gmra.mxu0 %v3085
    %v3176 = vpop.f32.mrf.mxu0
    %v3177 = vadd.f32 0.0, %v3176
    %v3178 = vpop.f32.mrf.mxu0
    %3179 = vdwg.mxu0
    %v3180 = vmul.f32 %v3162, 0.35355338
    %v3181 = vmul.f32 %v3167, 0.35355338
    %v3182 = vmul.f32 %v3172, 0.35355338
    %v3183 = vmul.f32 %v3177, 0.35355338
    %v3184 = vadd.f32 %v3180, %v35
    %v3185 = vadd.f32 %v3181, %v36
    %v3186 = vadd.f32 %v3182, %v37
    %v3187 = vadd.f32 %v3183, %v38
    %v3188 = vsel %vm330, %v3184, -inf
    %3189 = vmax.xlane.f32.xlu0 %v3188
    %v3190 = vpop.xlane.xlu0 %3189
    %v3191 = vsel %vm330, %v3185, -inf
    %3192 = vmax.xlane.f32.xlu0 %v3191
    %v3193 = vpop.xlane.xlu0 %3192
    %v3194 = vsel %vm330, %v3186, -inf
    %3195 = vmax.xlane.f32.xlu0 %v3194
    %v3196 = vpop.xlane.xlu0 %3195
    %v3197 = vsel %vm330, %v3187, -inf
    %3198 = vmax.xlane.f32.xlu0 %v3197
    %v3199 = vpop.xlane.xlu0 %3198
    %v3200 = vsub.f32 %v3184, %v3190
    %v3201 = vsub.f32 %v3185, %v3193
    %v3202 = vsub.f32 %v3186, %v3196
    %v3203 = vsub.f32 %v3187, %v3199
    %v3204 = vmul.f32 %v3200, 1.442695
    %v3205 = vpow.pop %v3204
    %v3206 = vmul.f32 %v3201, 1.442695
    %v3207 = vpow.pop %v3206
    %v3208 = vmul.f32 %v3202, 1.442695
    %v3209 = vpow.pop %v3208
    %v3210 = vmul.f32 %v3203, 1.442695
    %v3211 = vpow.pop %v3210
    %v3212 = vsel %vm330, %v3205, 0.0
    %3213 = vadd.xlane.f32.xlu0 %v3212
    %v3214 = vpop.xlane.xlu0 %3213
    %v3215 = vsel %vm330, %v3207, 0.0
    %3216 = vadd.xlane.f32.xlu0 %v3215
    %v3217 = vpop.xlane.xlu0 %3216
    %v3218 = vsel %vm330, %v3209, 0.0
    %3219 = vadd.xlane.f32.xlu0 %v3218
    %v3220 = vpop.xlane.xlu0 %3219
    %v3221 = vsel %vm330, %v3211, 0.0
    %3222 = vadd.xlane.f32.xlu0 %v3221
    %v3223 = vpop.xlane.xlu0 %3222
    %v3224 = vrcp.pop %v3214
    %v3225 = vrcp.pop %v3217
    %v3226 = vrcp.pop %v3220
    %v3227 = vrcp.pop %v3223
    %v3228 = vmul.f32 %v3205, %v3224
    %v3229 = vmul.f32 %v3207, %v3225
    %v3230 = vmul.f32 %v3209, %v3226
    %v3231 = vmul.f32 %v3211, %v3227
    %3232 = vrot.lane.b32.xlu0 %v2171, 40
    %v3233 = vpop.permute.xlu0 %3232
    %3234 = vrot.lane.b32.xlu0 %v2176, 40
    %v3235 = vpop.permute.xlu0 %3234
    %3236 = vrot.lane.b32.xlu0 %v2181, 40
    %v3237 = vpop.permute.xlu0 %3236
    %3238 = vrot.lane.b32.xlu0 %v2186, 40
    %v3239 = vpop.permute.xlu0 %3238
    %v3245 = vsel %vm330, %v3228, 0
    %v3248 = vsel %vm330, %v3229, 0
    %v3251 = vsel %vm330, %v3230, 0
    %v3254 = vsel %vm330, %v3231, 0
    %3256 = vmatprep.subr.mxu0 0.0
    %3257 = vmatpush1.msra.mxu0 0.0
    %3258 = vmatprep.subr.mxu0 0.0
    %3259 = vmatpush1.msra.mxu0 0.0
    %3260 = vmatprep.subr.mxu0 0.0
    %3261 = vmatpush1.msra.mxu0 0.0
    %3262 = vmatprep.subr.mxu0 0.0
    %3263 = vmatpush1.msra.mxu0 0.0
    %3264 = vmatprep.subr.mxu0 0.0
    %3265 = vmatpush1.msra.mxu0 0.0
    %3266 = vmatprep.subr.mxu0 0.0
    %3267 = vmatpush1.msra.mxu0 0.0
    %3268 = vmatprep.subr.mxu0 0.0
    %3269 = vmatpush1.msra.mxu0 0.0
    %3270 = vmatprep.subr.mxu0 0.0
    %3271 = vmatpush1.msra.mxu0 0.0
    %3272 = vmatprep.subr.mxu0 0.0
    %3273 = vmatpush1.msra.mxu0 0.0
    %3274 = vmatprep.subr.mxu0 0.0
    %3275 = vmatpush1.msra.mxu0 0.0
    %3276 = vmatprep.subr.mxu0 0.0
    %3277 = vmatpush1.msra.mxu0 0.0
    %3278 = vmatprep.subr.mxu0 0.0
    %3279 = vmatpush1.msra.mxu0 0.0
    %3280 = vmatprep.subr.mxu0 0.0
    %3281 = vmatpush1.msra.mxu0 %v3239
    %3282 = vmatprep.subr.mxu0 0.0
    %3283 = vmatpush1.msra.mxu0 %v3237
    %3284 = vmatprep.subr.mxu0 0.0
    %3285 = vmatpush1.msra.mxu0 %v3235
    %3286 = vmatprep.subr.mxu0 0.0
    %3287 = vmatpush1.msra.mxu0 %v3233
    %3288 = vmatprep.subr.mxu0 0.0
    %3289 = vmatpush2.msra.mxu0 0.0
    %3290 = vmatprep.subr.mxu0 0.0
    %3291 = vmatpush2.msra.mxu0 0.0
    %3292 = vmatprep.subr.mxu0 0.0
    %3293 = vmatpush2.msra.mxu0 0.0
    %3294 = vmatprep.subr.mxu0 0.0
    %3295 = vmatpush2.msra.mxu0 0.0
    %3296 = vmatprep.subr.mxu0 0.0
    %3297 = vmatpush2.msra.mxu0 0.0
    %3298 = vmatprep.subr.mxu0 0.0
    %3299 = vmatpush2.msra.mxu0 0.0
    %3300 = vmatprep.subr.mxu0 0.0
    %3301 = vmatpush2.msra.mxu0 0.0
    %3302 = vmatprep.subr.mxu0 0.0
    %3303 = vmatpush2.msra.mxu0 0.0
    %3304 = vmatprep.subr.mxu0 0.0
    %3305 = vmatpush2.msra.mxu0 0.0
    %3306 = vmatprep.subr.mxu0 0.0
    %3307 = vmatpush2.msra.mxu0 0.0
    %3308 = vmatprep.subr.mxu0 0.0
    %3309 = vmatpush2.msra.mxu0 0.0
    %3310 = vmatprep.subr.mxu0 0.0
    %3311 = vmatpush2.msra.mxu0 0.0
    %3312 = vmatprep.subr.mxu0 0.0
    %3313 = vmatpush2.msra.mxu0 0.0
    %3314 = vmatprep.subr.mxu0 0.0
    %3315 = vmatpush2.msra.mxu0 0.0
    %3316 = vmatprep.subr.mxu0 0.0
    %3317 = vmatpush2.msra.mxu0 0.0
    %3318 = vmatprep.subr.mxu0 0.0
    %3319 = vmatpush2.msra.mxu0 0.0
    %3320 = vmatprep.mubr.f32.mxu0 0.0
    %3321 = vmatmul.mubr.f32.gmra.mxu0 %v3245
    %v3322 = vpop.f32.mrf.mxu0
    %v3323 = vadd.f32 0.0, %v3322
    %v3324 = vpop.f32.mrf.mxu0
    %3325 = vmatprep.mubr.f32.mxu0 0.0
    %3326 = vmatmul.mubr.f32.gmra.mxu0 %v3248
    %v3327 = vpop.f32.mrf.mxu0
    %v3328 = vadd.f32 0.0, %v3327
    %v3329 = vpop.f32.mrf.mxu0
    %3330 = vmatprep.mubr.f32.mxu0 0.0
    %3331 = vmatmul.mubr.f32.gmra.mxu0 %v3251
    %v3332 = vpop.f32.mrf.mxu0
    %v3333 = vadd.f32 0.0, %v3332
    %v3334 = vpop.f32.mrf.mxu0
    %3335 = vmatprep.mubr.f32.mxu0 0.0
    %3336 = vmatmul.mubr.f32.gmra.mxu0 %v3254
    %v3337 = vpop.f32.mrf.mxu0
    %v3338 = vadd.f32 0.0, %v3337
    %v3339 = vpop.f32.mrf.mxu0
    %3340 = vdwg.mxu0
    %3345 = vrot.lane.b32.xlu0 %v3323, 24
    %v3346 = vpop.permute.xlu0 %3345
    %3347 = vrot.lane.b32.xlu0 %v3328, 24
    %v3348 = vpop.permute.xlu0 %3347
    %3349 = vrot.lane.b32.xlu0 %v3333, 24
    %v3350 = vpop.permute.xlu0 %3349
    %3351 = vrot.lane.b32.xlu0 %v3338, 24
    %v3352 = vpop.permute.xlu0 %3351
    %3357 = vst.msk [vmem:[#allocation2] sm:$0xff] %vm1598, %v3346
    %3358 = vst.msk [vmem:[#allocation2 + $0x8] sm:$0xff] %vm1598, %v3348
    %3359 = vst.msk [vmem:[#allocation2 + $0x10] sm:$0xff] %vm1598, %v3350
    %3360 = vst.msk [vmem:[#allocation2 + $0x18] sm:$0xff] %vm1598, %v3352
    %v3361 = vld [vmem:[#allocation2] sm:$0xff]
    %v3362 = vld [vmem:[#allocation2 + $0x8] sm:$0xff]
    %v3363 = vld [vmem:[#allocation2 + $0x10] sm:$0xff]
    %v3364 = vld [vmem:[#allocation2 + $0x18] sm:$0xff]
    %v3365 = vld [vmem:[#allocation3 + $0x390] sm:$0xff]
    %v3366 = vld [vmem:[#allocation3 + $0x3a0] sm:$0xff]
    %v3367 = vld [vmem:[#allocation3 + $0x3b0] sm:$0xff]
    %v3368 = vld [vmem:[#allocation3 + $0x3c0] sm:$0xff]
    %v3369 = vld [vmem:[#allocation3 + $0x3d0] ss:$0 sm:$0xff]
    %v3371 = vsel %vm330, %v3361, 0
    %v3374 = vsel %vm330, %v3362, 0
    %v3377 = vsel %vm330, %v3363, 0
    %v3380 = vsel %vm330, %v3364, 0
    %3382 = vmatprep.subr.mxu0 0.0
    %3383 = vmatpush1.msra.mxu0 0.0
    %3384 = vmatprep.subr.mxu0 0.0
    %3385 = vmatpush1.msra.mxu0 0.0
    %3386 = vmatprep.subr.mxu0 0.0
    %3387 = vmatpush1.msra.mxu0 0.0
    %3388 = vmatprep.subr.mxu0 0.0
    %3389 = vmatpush1.msra.mxu0 0.0
    %3390 = vmatprep.subr.mxu0 0.0
    %3391 = vmatpush1.msra.mxu0 0.0
    %3392 = vmatprep.subr.mxu0 0.0
    %3393 = vmatpush1.msra.mxu0 0.0
    %3394 = vmatprep.subr.mxu0 0.0
    %3395 = vmatpush1.msra.mxu0 0.0
    %3396 = vmatprep.subr.mxu0 0.0
    %3397 = vmatpush1.msra.mxu0 0.0
    %3398 = vmatprep.subr.mxu0 0.0
    %3399 = vmatpush1.msra.mxu0 0.0
    %3400 = vmatprep.subr.mxu0 0.0
    %3401 = vmatpush1.msra.mxu0 0.0
    %3402 = vmatprep.subr.mxu0 0.0
    %3403 = vmatpush1.msra.mxu0 0.0
    %3404 = vmatprep.subr.mxu0 0.0
    %3405 = vmatpush1.msra.mxu0 0.0
    %3406 = vmatprep.subr.mxu0 0.0
    %3407 = vmatpush1.msra.mxu0 %v3368
    %3408 = vmatprep.subr.mxu0 0.0
    %3409 = vmatpush1.msra.mxu0 %v3367
    %3410 = vmatprep.subr.mxu0 0.0
    %3411 = vmatpush1.msra.mxu0 %v3366
    %3412 = vmatprep.subr.mxu0 0.0
    %3413 = vmatpush1.msra.mxu0 %v3365
    %3414 = vmatprep.subr.mxu0 0.0
    %3415 = vmatpush2.msra.mxu0 0.0
    %3416 = vmatprep.subr.mxu0 0.0
    %3417 = vmatpush2.msra.mxu0 0.0
    %3418 = vmatprep.subr.mxu0 0.0
    %3419 = vmatpush2.msra.mxu0 0.0
    %3420 = vmatprep.subr.mxu0 0.0
    %3421 = vmatpush2.msra.mxu0 0.0
    %3422 = vmatprep.subr.mxu0 0.0
    %3423 = vmatpush2.msra.mxu0 0.0
    %3424 = vmatprep.subr.mxu0 0.0
    %3425 = vmatpush2.msra.mxu0 0.0
    %3426 = vmatprep.subr.mxu0 0.0
    %3427 = vmatpush2.msra.mxu0 0.0
    %3428 = vmatprep.subr.mxu0 0.0
    %3429 = vmatpush2.msra.mxu0 0.0
    %3430 = vmatprep.subr.mxu0 0.0
    %3431 = vmatpush2.msra.mxu0 0.0
    %3432 = vmatprep.subr.mxu0 0.0
    %3433 = vmatpush2.msra.mxu0 0.0
    %3434 = vmatprep.subr.mxu0 0.0
    %3435 = vmatpush2.msra.mxu0 0.0
    %3436 = vmatprep.subr.mxu0 0.0
    %3437 = vmatpush2.msra.mxu0 0.0
    %3438 = vmatprep.subr.mxu0 0.0
    %3439 = vmatpush2.msra.mxu0 0.0
    %3440 = vmatprep.subr.mxu0 0.0
    %3441 = vmatpush2.msra.mxu0 0.0
    %3442 = vmatprep.subr.mxu0 0.0
    %3443 = vmatpush2.msra.mxu0 0.0
    %3444 = vmatprep.subr.mxu0 0.0
    %3445 = vmatpush2.msra.mxu0 0.0
    %3446 = vmatprep.mubr.f32.mxu0 0.0
    %3447 = vmatmul.mubr.f32.gmra.mxu0 %v3371
    %v3448 = vpop.f32.mrf.mxu0
    %v3449 = vadd.f32 %v3369, %v3448
    %v3450 = vpop.f32.mrf.mxu0
    %3451 = vmatprep.mubr.f32.mxu0 0.0
    %3452 = vmatmul.mubr.f32.gmra.mxu0 %v3374
    %v3453 = vpop.f32.mrf.mxu0
    %v3454 = vadd.f32 %v3369, %v3453
    %v3455 = vpop.f32.mrf.mxu0
    %3456 = vmatprep.mubr.f32.mxu0 0.0
    %3457 = vmatmul.mubr.f32.gmra.mxu0 %v3377
    %v3458 = vpop.f32.mrf.mxu0
    %v3459 = vadd.f32 %v3369, %v3458
    %v3460 = vpop.f32.mrf.mxu0
    %3461 = vmatprep.mubr.f32.mxu0 0.0
    %3462 = vmatmul.mubr.f32.gmra.mxu0 %v3380
    %v3463 = vpop.f32.mrf.mxu0
    %v3464 = vadd.f32 %v3369, %v3463
    %v3465 = vpop.f32.mrf.mxu0
    %3466 = vdwg.mxu0
    %v3467 = vadd.f32 %v2083, %v3449
    %v3468 = vadd.f32 %v2084, %v3454
    %v3469 = vadd.f32 %v2085, %v3459
    %v3470 = vadd.f32 %v2086, %v3464
    %v3471 = vsel %vm330, %v3467, 0.0
    %3472 = vadd.xlane.f32.xlu0 %v3471
    %v3473 = vpop.xlane.xlu0 %3472
    %v3474 = vsel %vm330, %v3468, 0.0
    %3475 = vadd.xlane.f32.xlu0 %v3474
    %v3476 = vpop.xlane.xlu0 %3475
    %v3477 = vsel %vm330, %v3469, 0.0
    %3478 = vadd.xlane.f32.xlu0 %v3477
    %v3479 = vpop.xlane.xlu0 %3478
    %v3480 = vsel %vm330, %v3470, 0.0
    %3481 = vadd.xlane.f32.xlu0 %v3480
    %v3482 = vpop.xlane.xlu0 %3481
    %v3483 = vmul.f32 %v3473, %v1725
    %v3484 = vmul.f32 %v3476, %v1725
    %v3485 = vmul.f32 %v3479, %v1725
    %v3486 = vmul.f32 %v3482, %v1725
    %v3487 = vsub.f32 %v3467, %v3483
    %v3488 = vsub.f32 %v3468, %v3484
    %v3489 = vsub.f32 %v3469, %v3485
    %v3490 = vsub.f32 %v3470, %v3486
    %v3491 = vmul.f32 %v3487, %v3487
    %v3492 = vmul.f32 %v3488, %v3488
    %v3493 = vmul.f32 %v3489, %v3489
    %v3494 = vmul.f32 %v3490, %v3490
    %v3495 = vsel %vm330, %v3491, 0.0
    %3496 = vadd.xlane.f32.xlu0 %v3495
    %v3497 = vpop.xlane.xlu0 %3496
    %v3498 = vsel %vm330, %v3492, 0.0
    %3499 = vadd.xlane.f32.xlu0 %v3498
    %v3500 = vpop.xlane.xlu0 %3499
    %v3501 = vsel %vm330, %v3493, 0.0
    %3502 = vadd.xlane.f32.xlu0 %v3501
    %v3503 = vpop.xlane.xlu0 %3502
    %v3504 = vsel %vm330, %v3494, 0.0
    %3505 = vadd.xlane.f32.xlu0 %v3504
    %v3506 = vpop.xlane.xlu0 %3505
    %v3507 = vmul.f32 %v3497, %v1725
    %v3508 = vmul.f32 %v3500, %v1725
    %v3509 = vmul.f32 %v3503, %v1725
    %v3510 = vmul.f32 %v3506, %v1725
    %v3511 = vadd.f32 %v3507, 1e-05
    %v3512 = vadd.f32 %v3508, 1e-05
    %v3513 = vadd.f32 %v3509, 1e-05
    %v3514 = vadd.f32 %v3510, 1e-05
    %v3515 = vrsqrt.pop %v3511
    %v3516 = vrsqrt.pop %v3512
    %v3517 = vrsqrt.pop %v3513
    %v3518 = vrsqrt.pop %v3514
    %v3519 = vmul.f32 %v3487, %v3515
    %v3520 = vmul.f32 %v3488, %v3516
    %v3521 = vmul.f32 %v3489, %v3517
    %v3522 = vmul.f32 %v3490, %v3518
    %v3523 = vld [vmem:[#allocation3 + $0x4c0] ss:$0 sm:$0xff]
    %v3524 = vmul.f32 %v3519, %v3523
    %v3525 = vmul.f32 %v3520, %v3523
    %v3526 = vmul.f32 %v3521, %v3523
    %v3527 = vmul.f32 %v3522, %v3523
    %v3528 = vld [vmem:[#allocation3 + $0x4d0] ss:$0 sm:$0xff]
    %v3529 = vadd.f32 %v3524, %v3528
    %v3530 = vadd.f32 %v3525, %v3528
    %v3531 = vadd.f32 %v3526, %v3528
    %v3532 = vadd.f32 %v3527, %v3528
    %v3533 = vld [vmem:[#allocation3 + $0x3e0] sm:$0xff]
    %v3534 = vld [vmem:[#allocation3 + $0x3f0] sm:$0xff]
    %v3535 = vld [vmem:[#allocation3 + $0x400] sm:$0xff]
    %v3536 = vld [vmem:[#allocation3 + $0x410] sm:$0xff]
    %v3537 = vld [vmem:[#allocation3 + $0x420] ss:$0 sm:$0xff]
    %v3539 = vsel %vm330, %v3529, 0
    %v3542 = vsel %vm330, %v3530, 0
    %v3545 = vsel %vm330, %v3531, 0
    %v3548 = vsel %vm330, %v3532, 0
    %3550 = vmatprep.subr.mxu0 0.0
    %3551 = vmatpush1.msra.mxu0 0.0
    %3552 = vmatprep.subr.mxu0 0.0
    %3553 = vmatpush1.msra.mxu0 0.0
    %3554 = vmatprep.subr.mxu0 0.0
    %3555 = vmatpush1.msra.mxu0 0.0
    %3556 = vmatprep.subr.mxu0 0.0
    %3557 = vmatpush1.msra.mxu0 0.0
    %3558 = vmatprep.subr.mxu0 0.0
    %3559 = vmatpush1.msra.mxu0 0.0
    %3560 = vmatprep.subr.mxu0 0.0
    %3561 = vmatpush1.msra.mxu0 0.0
    %3562 = vmatprep.subr.mxu0 0.0
    %3563 = vmatpush1.msra.mxu0 0.0
    %3564 = vmatprep.subr.mxu0 0.0
    %3565 = vmatpush1.msra.mxu0 0.0
    %3566 = vmatprep.subr.mxu0 0.0
    %3567 = vmatpush1.msra.mxu0 0.0
    %3568 = vmatprep.subr.mxu0 0.0
    %3569 = vmatpush1.msra.mxu0 0.0
    %3570 = vmatprep.subr.mxu0 0.0
    %3571 = vmatpush1.msra.mxu0 0.0
    %3572 = vmatprep.subr.mxu0 0.0
    %3573 = vmatpush1.msra.mxu0 0.0
    %3574 = vmatprep.subr.mxu0 0.0
    %3575 = vmatpush1.msra.mxu0 %v3536
    %3576 = vmatprep.subr.mxu0 0.0
    %3577 = vmatpush1.msra.mxu0 %v3535
    %3578 = vmatprep.subr.mxu0 0.0
    %3579 = vmatpush1.msra.mxu0 %v3534
    %3580 = vmatprep.subr.mxu0 0.0
    %3581 = vmatpush1.msra.mxu0 %v3533
    %3582 = vmatprep.subr.mxu0 0.0
    %3583 = vmatpush2.msra.mxu0 0.0
    %3584 = vmatprep.subr.mxu0 0.0
    %3585 = vmatpush2.msra.mxu0 0.0
    %3586 = vmatprep.subr.mxu0 0.0
    %3587 = vmatpush2.msra.mxu0 0.0
    %3588 = vmatprep.subr.mxu0 0.0
    %3589 = vmatpush2.msra.mxu0 0.0
    %3590 = vmatprep.subr.mxu0 0.0
    %3591 = vmatpush2.msra.mxu0 0.0
    %3592 = vmatprep.subr.mxu0 0.0
    %3593 = vmatpush2.msra.mxu0 0.0
    %3594 = vmatprep.subr.mxu0 0.0
    %3595 = vmatpush2.msra.mxu0 0.0
    %3596 = vmatprep.subr.mxu0 0.0
    %3597 = vmatpush2.msra.mxu0 0.0
    %3598 = vmatprep.subr.mxu0 0.0
    %3599 = vmatpush2.msra.mxu0 0.0
    %3600 = vmatprep.subr.mxu0 0.0
    %3601 = vmatpush2.msra.mxu0 0.0
    %3602 = vmatprep.subr.mxu0 0.0
    %3603 = vmatpush2.msra.mxu0 0.0
    %3604 = vmatprep.subr.mxu0 0.0
    %3605 = vmatpush2.msra.mxu0 0.0
    %3606 = vmatprep.subr.mxu0 0.0
    %3607 = vmatpush2.msra.mxu0 0.0
    %3608 = vmatprep.subr.mxu0 0.0
    %3609 = vmatpush2.msra.mxu0 0.0
    %3610 = vmatprep.subr.mxu0 0.0
    %3611 = vmatpush2.msra.mxu0 0.0
    %3612 = vmatprep.subr.mxu0 0.0
    %3613 = vmatpush2.msra.mxu0 0.0
    %3614 = vmatprep.mubr.f32.mxu0 0.0
    %3615 = vmatmul.mubr.f32.gmra.mxu0 %v3539
    %v3616 = vpop.f32.mrf.mxu0
    %v3617 = vadd.f32 %v3537, %v3616
    %v3618 = vpop.f32.mrf.mxu0
    %3619 = vmatprep.mubr.f32.mxu0 0.0
    %3620 = vmatmul.mubr.f32.gmra.mxu0 %v3542
    %v3621 = vpop.f32.mrf.mxu0
    %v3622 = vadd.f32 %v3537, %v3621
    %v3623 = vpop.f32.mrf.mxu0
    %3624 = vmatprep.mubr.f32.mxu0 0.0
    %3625 = vmatmul.mubr.f32.gmra.mxu0 %v3545
    %v3626 = vpop.f32.mrf.mxu0
    %v3627 = vadd.f32 %v3537, %v3626
    %v3628 = vpop.f32.mrf.mxu0
    %3629 = vmatprep.mubr.f32.mxu0 0.0
    %3630 = vmatmul.mubr.f32.gmra.mxu0 %v3548
    %v3631 = vpop.f32.mrf.mxu0
    %v3632 = vadd.f32 %v3537, %v3631
    %v3633 = vpop.f32.mrf.mxu0
    %3634 = vdwg.mxu0
    %v3635 = vmul.f32 %v3617, 0.5
    %v3636 = vmul.f32 %v3622, 0.5
    %v3637 = vmul.f32 %v3627, 0.5
    %v3638 = vmul.f32 %v3632, 0.5
    %v3639 = vmul.f32 %v3617, 0.044715
    %v3640 = vmul.f32 %v3622, 0.044715
    %v3641 = vmul.f32 %v3627, 0.044715
    %v3642 = vmul.f32 %v3632, 0.044715
    %v3643 = vmul.f32 %v3639, %v3617
    %v3644 = vmul.f32 %v3640, %v3622
    %v3645 = vmul.f32 %v3641, %v3627
    %v3646 = vmul.f32 %v3642, %v3632
    %v3647 = vmul.f32 %v3643, %v3617
    %v3648 = vmul.f32 %v3644, %v3622
    %v3649 = vmul.f32 %v3645, %v3627
    %v3650 = vmul.f32 %v3646, %v3632
    %v3651 = vadd.f32 %v3617, %v3647
    %v3652 = vadd.f32 %v3622, %v3648
    %v3653 = vadd.f32 %v3627, %v3649
    %v3654 = vadd.f32 %v3632, %v3650
    %v3655 = vmul.f32 %v3651, 0.7978846
    %v3656 = vmul.f32 %v3652, 0.7978846
    %v3657 = vmul.f32 %v3653, 0.7978846
    %v3658 = vmul.f32 %v3654, 0.7978846
    %v3659 = vtanh.pop %v3655
    %v3660 = vtanh.pop %v3656
    %v3661 = vtanh.pop %v3657
    %v3662 = vtanh.pop %v3658
    %v3663 = vadd.f32 %v3659, 1.0
    %v3664 = vadd.f32 %v3660, 1.0
    %v3665 = vadd.f32 %v3661, 1.0
    %v3666 = vadd.f32 %v3662, 1.0
    %v3667 = vmul.f32 %v3635, %v3663
    %v3668 = vmul.f32 %v3636, %v3664
    %v3669 = vmul.f32 %v3637, %v3665
    %v3670 = vmul.f32 %v3638, %v3666
    %v3671 = vld [vmem:[#allocation3 + $0x430] sm:$0xff]
    %v3672 = vld [vmem:[#allocation3 + $0x440] sm:$0xff]
    %v3673 = vld [vmem:[#allocation3 + $0x450] sm:$0xff]
    %v3674 = vld [vmem:[#allocation3 + $0x460] sm:$0xff]
    %v3675 = vld [vmem:[#allocation3 + $0x470] sm:$0xff]
    %v3676 = vld [vmem:[#allocation3 + $0x480] sm:$0xff]
    %v3677 = vld [vmem:[#allocation3 + $0x490] sm:$0xff]
    %v3678 = vld [vmem:[#allocation3 + $0x4a0] sm:$0xff]
    %v3679 = vld [vmem:[#allocation3 + $0x4b0] ss:$0 sm:$0xff]
    %v3681 = vsel %vm1923, %v3667, 0
    %v3684 = vsel %vm1923, %v3668, 0
    %v3687 = vsel %vm1923, %v3669, 0
    %v3690 = vsel %vm1923, %v3670, 0
    %3692 = vmatprep.subr.mxu0 0.0
    %3693 = vmatpush1.msra.mxu0 0.0
    %3694 = vmatprep.subr.mxu0 0.0
    %3695 = vmatpush1.msra.mxu0 0.0
    %3696 = vmatprep.subr.mxu0 0.0
    %3697 = vmatpush1.msra.mxu0 0.0
    %3698 = vmatprep.subr.mxu0 0.0
    %3699 = vmatpush1.msra.mxu0 0.0
    %3700 = vmatprep.subr.mxu0 0.0
    %3701 = vmatpush1.msra.mxu0 0.0
    %3702 = vmatprep.subr.mxu0 0.0
    %3703 = vmatpush1.msra.mxu0 0.0
    %3704 = vmatprep.subr.mxu0 0.0
    %3705 = vmatpush1.msra.mxu0 0.0
    %3706 = vmatprep.subr.mxu0 0.0
    %3707 = vmatpush1.msra.mxu0 0.0
    %3708 = vmatprep.subr.mxu0 0.0
    %3709 = vmatpush1.msra.mxu0 %v3678
    %3710 = vmatprep.subr.mxu0 0.0
    %3711 = vmatpush1.msra.mxu0 %v3677
    %3712 = vmatprep.subr.mxu0 0.0
    %3713 = vmatpush1.msra.mxu0 %v3676
    %3714 = vmatprep.subr.mxu0 0.0
    %3715 = vmatpush1.msra.mxu0 %v3675
    %3716 = vmatprep.subr.mxu0 0.0
    %3717 = vmatpush1.msra.mxu0 %v3674
    %3718 = vmatprep.subr.mxu0 0.0
    %3719 = vmatpush1.msra.mxu0 %v3673
    %3720 = vmatprep.subr.mxu0 0.0
    %3721 = vmatpush1.msra.mxu0 %v3672
    %3722 = vmatprep.subr.mxu0 0.0
    %3723 = vmatpush1.msra.mxu0 %v3671
    %3724 = vmatprep.subr.mxu0 0.0
    %3725 = vmatpush2.msra.mxu0 0.0
    %3726 = vmatprep.subr.mxu0 0.0
    %3727 = vmatpush2.msra.mxu0 0.0
    %3728 = vmatprep.subr.mxu0 0.0
    %3729 = vmatpush2.msra.mxu0 0.0
    %3730 = vmatprep.subr.mxu0 0.0
    %3731 = vmatpush2.msra.mxu0 0.0
    %3732 = vmatprep.subr.mxu0 0.0
    %3733 = vmatpush2.msra.mxu0 0.0
    %3734 = vmatprep.subr.mxu0 0.0
    %3735 = vmatpush2.msra.mxu0 0.0
    %3736 = vmatprep.subr.mxu0 0.0
    %3737 = vmatpush2.msra.mxu0 0.0
    %3738 = vmatprep.subr.mxu0 0.0
    %3739 = vmatpush2.msra.mxu0 0.0
    %3740 = vmatprep.subr.mxu0 0.0
    %3741 = vmatpush2.msra.mxu0 0.0
    %3742 = vmatprep.subr.mxu0 0.0
    %3743 = vmatpush2.msra.mxu0 0.0
    %3744 = vmatprep.subr.mxu0 0.0
    %3745 = vmatpush2.msra.mxu0 0.0
    %3746 = vmatprep.subr.mxu0 0.0
    %3747 = vmatpush2.msra.mxu0 0.0
    %3748 = vmatprep.subr.mxu0 0.0
    %3749 = vmatpush2.msra.mxu0 0.0
    %3750 = vmatprep.subr.mxu0 0.0
    %3751 = vmatpush2.msra.mxu0 0.0
    %3752 = vmatprep.subr.mxu0 0.0
    %3753 = vmatpush2.msra.mxu0 0.0
    %3754 = vmatprep.subr.mxu0 0.0
    %3755 = vmatpush2.msra.mxu0 0.0
    %3756 = vmatprep.mubr.f32.mxu0 0.0
    %3757 = vmatmul.mubr.f32.gmra.mxu0 %v3681
    %v3758 = vpop.f32.mrf.mxu0
    %v3759 = vadd.f32 %v3679, %v3758
    %v3760 = vpop.f32.mrf.mxu0
    %3761 = vmatprep.mubr.f32.mxu0 0.0
    %3762 = vmatmul.mubr.f32.gmra.mxu0 %v3684
    %v3763 = vpop.f32.mrf.mxu0
    %v3764 = vadd.f32 %v3679, %v3763
    %v3765 = vpop.f32.mrf.mxu0
    %3766 = vmatprep.mubr.f32.mxu0 0.0
    %3767 = vmatmul.mubr.f32.gmra.mxu0 %v3687
    %v3768 = vpop.f32.mrf.mxu0
    %v3769 = vadd.f32 %v3679, %v3768
    %v3770 = vpop.f32.mrf.mxu0
    %3771 = vmatprep.mubr.f32.mxu0 0.0
    %3772 = vmatmul.mubr.f32.gmra.mxu0 %v3690
    %v3773 = vpop.f32.mrf.mxu0
    %v3774 = vadd.f32 %v3679, %v3773
    %v3775 = vpop.f32.mrf.mxu0
    %3776 = vdwg.mxu0
    %v3777 = vadd.f32 %v3529, %v3759
    %v3778 = vadd.f32 %v3530, %v3764
    %v3779 = vadd.f32 %v3531, %v3769
    %v3780 = vadd.f32 %v3532, %v3774
    %v3781 = vsel %vm330, %v3777, 0.0
    %3782 = vadd.xlane.f32.xlu0 %v3781
    %v3783 = vpop.xlane.xlu0 %3782
    %v3784 = vsel %vm330, %v3778, 0.0
    %3785 = vadd.xlane.f32.xlu0 %v3784
    %v3786 = vpop.xlane.xlu0 %3785
    %v3787 = vsel %vm330, %v3779, 0.0
    %3788 = vadd.xlane.f32.xlu0 %v3787
    %v3789 = vpop.xlane.xlu0 %3788
    %v3790 = vsel %vm330, %v3780, 0.0
    %3791 = vadd.xlane.f32.xlu0 %v3790
    %v3792 = vpop.xlane.xlu0 %3791
    %v3793 = vmul.f32 %v3783, %v1725
    %v3794 = vmul.f32 %v3786, %v1725
    %v3795 = vmul.f32 %v3789, %v1725
    %v3796 = vmul.f32 %v3792, %v1725
    %v3797 = vsub.f32 %v3777, %v3793
    %v3798 = vsub.f32 %v3778, %v3794
    %v3799 = vsub.f32 %v3779, %v3795
    %v3800 = vsub.f32 %v3780, %v3796
    %v3801 = vmul.f32 %v3797, %v3797
    %v3802 = vmul.f32 %v3798, %v3798
    %v3803 = vmul.f32 %v3799, %v3799
    %v3804 = vmul.f32 %v3800, %v3800
    %v3805 = vsel %vm330, %v3801, 0.0
    %3806 = vadd.xlane.f32.xlu0 %v3805
    %v3807 = vpop.xlane.xlu0 %3806
    %v3808 = vsel %vm330, %v3802, 0.0
    %3809 = vadd.xlane.f32.xlu0 %v3808
    %v3810 = vpop.xlane.xlu0 %3809
    %v3811 = vsel %vm330, %v3803, 0.0
    %3812 = vadd.xlane.f32.xlu0 %v3811
    %v3813 = vpop.xlane.xlu0 %3812
    %v3814 = vsel %vm330, %v3804, 0.0
    %3815 = vadd.xlane.f32.xlu0 %v3814
    %v3816 = vpop.xlane.xlu0 %3815
    %v3817 = vmul.f32 %v3807, %v1725
    %v3818 = vmul.f32 %v3810, %v1725
    %v3819 = vmul.f32 %v3813, %v1725
    %v3820 = vmul.f32 %v3816, %v1725
    %v3821 = vadd.f32 %v3817, 1e-05
    %v3822 = vadd.f32 %v3818, 1e-05
    %v3823 = vadd.f32 %v3819, 1e-05
    %v3824 = vadd.f32 %v3820, 1e-05
    %v3825 = vrsqrt.pop %v3821
    %v3826 = vrsqrt.pop %v3822
    %v3827 = vrsqrt.pop %v3823
    %v3828 = vrsqrt.pop %v3824
    %v3829 = vmul.f32 %v3797, %v3825
    %v3830 = vmul.f32 %v3798, %v3826
    %v3831 = vmul.f32 %v3799, %v3827
    %v3832 = vmul.f32 %v3800, %v3828
    %v3833 = vld [vmem:[#allocation3 + $0x4e0] ss:$0 sm:$0xff]
    %v3834 = vmul.f32 %v3829, %v3833
    %v3835 = vmul.f32 %v3830, %v3833
    %v3836 = vmul.f32 %v3831, %v3833
    %v3837 = vmul.f32 %v3832, %v3833
    %v3838 = vld [vmem:[#allocation3 + $0x4f0] ss:$0 sm:$0xff]
    %v3839 = vadd.f32 %v3834, %v3838
    %v3840 = vadd.f32 %v3835, %v3838
    %v3841 = vadd.f32 %v3836, %v3838
    %v3842 = vadd.f32 %v3837, %v3838
    %v3843 = vsel %vm330, %v3839, 0.0
    %3844 = vadd.xlane.f32.xlu0 %v3843
    %v3845 = vpop.xlane.xlu0 %3844
    %v3846 = vsel %vm330, %v3840, 0.0
    %3847 = vadd.xlane.f32.xlu0 %v3846
    %v3848 = vpop.xlane.xlu0 %3847
    %v3849 = vsel %vm330, %v3841, 0.0
    %3850 = vadd.xlane.f32.xlu0 %v3849
    %v3851 = vpop.xlane.xlu0 %3850
    %v3852 = vsel %vm330, %v3842, 0.0
    %3853 = vadd.xlane.f32.xlu0 %v3852
    %v3854 = vpop.xlane.xlu0 %3853
    %v3855 = vmul.f32 %v3845, %v1725
    %v3856 = vmul.f32 %v3848, %v1725
    %v3857 = vmul.f32 %v3851, %v1725
    %v3858 = vmul.f32 %v3854, %v1725
    %v3859 = vsub.f32 %v3839, %v3855
    %v3860 = vsub.f32 %v3840, %v3856
    %v3861 = vsub.f32 %v3841, %v3857
    %v3862 = vsub.f32 %v3842, %v3858
    %v3863 = vmul.f32 %v3859, %v3859
    %v3864 = vmul.f32 %v3860, %v3860
    %v3865 = vmul.f32 %v3861, %v3861
    %v3866 = vmul.f32 %v3862, %v3862
    %v3867 = vsel %vm330, %v3863, 0.0
    %3868 = vadd.xlane.f32.xlu0 %v3867
    %v3869 = vpop.xlane.xlu0 %3868
    %v3870 = vsel %vm330, %v3864, 0.0
    %3871 = vadd.xlane.f32.xlu0 %v3870
    %v3872 = vpop.xlane.xlu0 %3871
    %v3873 = vsel %vm330, %v3865, 0.0
    %3874 = vadd.xlane.f32.xlu0 %v3873
    %v3875 = vpop.xlane.xlu0 %3874
    %v3876 = vsel %vm330, %v3866, 0.0
    %3877 = vadd.xlane.f32.xlu0 %v3876
    %v3878 = vpop.xlane.xlu0 %3877
    %v3879 = vmul.f32 %v3869, %v1725
    %v3880 = vmul.f32 %v3872, %v1725
    %v3881 = vmul.f32 %v3875, %v1725
    %v3882 = vmul.f32 %v3878, %v1725
    %v3883 = vadd.f32 %v3879, 1e-05
    %v3884 = vadd.f32 %v3880, 1e-05
    %v3885 = vadd.f32 %v3881, 1e-05
    %v3886 = vadd.f32 %v3882, 1e-05
    %v3887 = vrsqrt.pop %v3883
    %v3888 = vrsqrt.pop %v3884
    %v3889 = vrsqrt.pop %v3885
    %v3890 = vrsqrt.pop %v3886
    %v3891 = vmul.f32 %v3859, %v3887
    %v3892 = vmul.f32 %v3860, %v3888
    %v3893 = vmul.f32 %v3861, %v3889
    %v3894 = vmul.f32 %v3862, %v3890
    %v3895 = vld [vmem:[#allocation3 + $0x500] ss:$0 sm:$0xff]
    %v3896 = vmul.f32 %v3891, %v3895
    %v3897 = vmul.f32 %v3892, %v3895
    %v3898 = vmul.f32 %v3893, %v3895
    %v3899 = vmul.f32 %v3894, %v3895
    %v3900 = vld [vmem:[#allocation3 + $0x510] ss:$0 sm:$0xff]
    %v3901 = vadd.f32 %v3896, %v3900
    %v3902 = vadd.f32 %v3897, %v3900
    %v3903 = vadd.f32 %v3898, %v3900
    %v3904 = vadd.f32 %v3899, %v3900
    %v3905 = vld [vmem:[%s2] sm:$0xff]
    %v3906 = vld [vmem:[%s2 + $0x8] sm:$0xff]
    %v3907 = vld [vmem:[%s2 + $0x10] sm:$0xff]
    %v3908 = vld [vmem:[%s2 + $0x18] sm:$0xff]
    %v3909 = vld [vmem:[%s3] sm:$0xff]
    %v3910 = vld [vmem:[%s3 + $0x8] sm:$0xff]
    %v3911 = vld [vmem:[%s3 + $0x10] sm:$0xff]
    %v3912 = vld [vmem:[%s3 + $0x18] sm:$0xff]
    %v3913 = vrot.slane %v3905, 7
    %v3914 = vrot.slane %v3906, 7
    %v3915 = vrot.slane %v3907, 7
    %v3916 = vrot.slane %v3908, 7
    %v3917 = vsel %vm61, %v3915, %v3916
    %v3918 = vsel %vm61, %v3914, %v3915
    %v3919 = vsel %vm61, %v3913, %v3914
    %v3920 = vsel %vm61, %v3916, %v3913
    %v3921 = vrot.slane %v3905, 1
    %v3922 = vrot.slane %v3906, 1
    %v3923 = vrot.slane %v3907, 1
    %v3924 = vrot.slane %v3908, 1
    %v3925 = vsel %vm70, %v3923, %v3924
    %v3926 = vsel %vm70, %v3922, %v3923
    %v3927 = vsel %vm70, %v3921, %v3922
    %v3928 = vsel %vm70, %v3924, %v3921
    %v3929 = vsel %vm134, %v3918, %v3920
    %v3930 = vsel %vm135, %v3917, %v3919
    %v3931 = vsel %vm136, %v3920, %v3918
    %v3932 = vsel %vm137, %v3919, %v3917
    %v3933 = vsel %vm150, %v3925, %v3927
    %v3934 = vsel %vm151, %v3928, %v3926
    %v3935 = vsel %vm152, %v3927, %v3925
    %v3936 = vsel %vm153, %v3926, %v3928
    %3941 = vrot.lane.b32.xlu0 %v3905, 4
    %v3942 = vpop.permute.xlu0 %3941
    %3943 = vrot.lane.b32.xlu0 %v3906, 4
    %v3944 = vpop.permute.xlu0 %3943
    %3945 = vrot.lane.b32.xlu0 %v3907, 4
    %v3946 = vpop.permute.xlu0 %3945
    %3947 = vrot.lane.b32.xlu0 %v3908, 4
    %v3948 = vpop.permute.xlu0 %3947
    %3957 = vrot.lane.b32.xlu0 %v3933, 8
    %v3958 = vpop.permute.xlu0 %3957
    %3959 = vrot.lane.b32.xlu0 %v3934, 8
    %v3960 = vpop.permute.xlu0 %3959
    %3961 = vrot.lane.b32.xlu0 %v3935, 8
    %v3962 = vpop.permute.xlu0 %3961
    %3963 = vrot.lane.b32.xlu0 %v3936, 8
    %v3964 = vpop.permute.xlu0 %3963
    %3973 = vrot.lane.b32.xlu0 %v3909, 12
    %v3974 = vpop.permute.xlu0 %3973
    %3975 = vrot.lane.b32.xlu0 %v3910, 12
    %v3976 = vpop.permute.xlu0 %3975
    %3977 = vrot.lane.b32.xlu0 %v3911, 12
    %v3978 = vpop.permute.xlu0 %3977
    %3979 = vrot.lane.b32.xlu0 %v3912, 12
    %v3980 = vpop.permute.xlu0 %3979
    %v3985 = vsel %vm206, %v3929, %v3942
    %v3986 = vsel %vm206, %v3930, %v3944
    %v3987 = vsel %vm206, %v3931, %v3946
    %v3988 = vsel %vm206, %v3932, %v3948
    %v3989 = vsel %vm211, %v3985, %v3958
    %v3990 = vsel %vm211, %v3986, %v3960
    %v3991 = vsel %vm211, %v3987, %v3962
    %v3992 = vsel %vm211, %v3988, %v3964
    %v3993 = vsel %vm216, %v3989, %v3974
    %v3994 = vsel %vm216, %v3990, %v3976
    %v3995 = vsel %vm216, %v3991, %v3978
    %v3996 = vsel %vm216, %v3992, %v3980
    %v3997 = vld [vmem:[#allocation3 + $0x20] sm:$0xff]
    %v3998 = vld [vmem:[#allocation3 + $0x30] sm:$0xff]
    %v3999 = vld [vmem:[#allocation3 + $0x80] sm:$0xff]
    %v4000 = vld [vmem:[#allocation3 + $0x90] sm:$0xff]
    %v4001 = vld [vmem:[#allocation3 + $0xa0] sm:$0xff]
    %v4002 = vld [vmem:[#allocation3 + $0xb0] sm:$0xff]
    %v4004 = vsel %vm227, %v3993, 0
    %v4007 = vsel %vm227, %v3994, 0
    %v4010 = vsel %vm227, %v3995, 0
    %v4013 = vsel %vm227, %v3996, 0
    %4015 = vmatprep.subr.mxu0 0.0
    %4016 = vmatpush1.msra.mxu0 0.0
    %4017 = vmatprep.subr.mxu0 0.0
    %4018 = vmatpush1.msra.mxu0 0.0
    %4019 = vmatprep.subr.mxu0 0.0
    %4020 = vmatpush1.msra.mxu0 0.0
    %4021 = vmatprep.subr.mxu0 0.0
    %4022 = vmatpush1.msra.mxu0 0.0
    %4023 = vmatprep.subr.mxu0 0.0
    %4024 = vmatpush1.msra.mxu0 0.0
    %4025 = vmatprep.subr.mxu0 0.0
    %4026 = vmatpush1.msra.mxu0 0.0
    %4027 = vmatprep.subr.mxu0 0.0
    %4028 = vmatpush1.msra.mxu0 0.0
    %4029 = vmatprep.subr.mxu0 0.0
    %4030 = vmatpush1.msra.mxu0 0.0
    %4031 = vmatprep.subr.mxu0 0.0
    %4032 = vmatpush1.msra.mxu0 0.0
    %4033 = vmatprep.subr.mxu0 0.0
    %4034 = vmatpush1.msra.mxu0 0.0
    %4035 = vmatprep.subr.mxu0 0.0
    %4036 = vmatpush1.msra.mxu0 0.0
    %4037 = vmatprep.subr.mxu0 0.0
    %4038 = vmatpush1.msra.mxu0 0.0
    %4039 = vmatprep.subr.mxu0 0.0
    %4040 = vmatpush1.msra.mxu0 0.0
    %4041 = vmatprep.subr.mxu0 0.0
    %4042 = vmatpush1.msra.mxu0 0.0
    %4043 = vmatprep.subr.mxu0 0.0
    %4044 = vmatpush1.msra.mxu0 %v3998
    %4045 = vmatprep.subr.mxu0 0.0
    %4046 = vmatpush1.msra.mxu0 %v3997
    %4047 = vmatprep.subr.mxu0 0.0
    %4048 = vmatpush2.msra.mxu0 0.0
    %4049 = vmatprep.subr.mxu0 0.0
    %4050 = vmatpush2.msra.mxu0 0.0
    %4051 = vmatprep.subr.mxu0 0.0
    %4052 = vmatpush2.msra.mxu0 0.0
    %4053 = vmatprep.subr.mxu0 0.0
    %4054 = vmatpush2.msra.mxu0 0.0
    %4055 = vmatprep.subr.mxu0 0.0
    %4056 = vmatpush2.msra.mxu0 0.0
    %4057 = vmatprep.subr.mxu0 0.0
    %4058 = vmatpush2.msra.mxu0 0.0
    %4059 = vmatprep.subr.mxu0 0.0
    %4060 = vmatpush2.msra.mxu0 0.0
    %4061 = vmatprep.subr.mxu0 0.0
    %4062 = vmatpush2.msra.mxu0 0.0
    %4063 = vmatprep.subr.mxu0 0.0
    %4064 = vmatpush2.msra.mxu0 0.0
    %4065 = vmatprep.subr.mxu0 0.0
    %4066 = vmatpush2.msra.mxu0 0.0
    %4067 = vmatprep.subr.mxu0 0.0
    %4068 = vmatpush2.msra.mxu0 0.0
    %4069 = vmatprep.subr.mxu0 0.0
    %4070 = vmatpush2.msra.mxu0 0.0
    %4071 = vmatprep.subr.mxu0 0.0
    %4072 = vmatpush2.msra.mxu0 0.0
    %4073 = vmatprep.subr.mxu0 0.0
    %4074 = vmatpush2.msra.mxu0 0.0
    %4075 = vmatprep.subr.mxu0 0.0
    %4076 = vmatpush2.msra.mxu0 0.0
    %4077 = vmatprep.subr.mxu0 0.0
    %4078 = vmatpush2.msra.mxu0 0.0
    %4079 = vmatprep.mubr.f32.mxu0 0.0
    %4080 = vmatmul.mubr.f32.gmra.mxu0 %v4004
    %v4081 = vpop.f32.mrf.mxu0
    %v4082 = vadd.f32 %v3999, %v4081
    %v4083 = vpop.f32.mrf.mxu0
    %4084 = vmatprep.mubr.f32.mxu0 0.0
    %4085 = vmatmul.mubr.f32.gmra.mxu0 %v4007
    %v4086 = vpop.f32.mrf.mxu0
    %v4087 = vadd.f32 %v4000, %v4086
    %v4088 = vpop.f32.mrf.mxu0
    %4089 = vmatprep.mubr.f32.mxu0 0.0
    %4090 = vmatmul.mubr.f32.gmra.mxu0 %v4010
    %v4091 = vpop.f32.mrf.mxu0
    %v4092 = vadd.f32 %v4001, %v4091
    %v4093 = vpop.f32.mrf.mxu0
    %4094 = vmatprep.mubr.f32.mxu0 0.0
    %4095 = vmatmul.mubr.f32.gmra.mxu0 %v4013
    %v4096 = vpop.f32.mrf.mxu0
    %v4097 = vadd.f32 %v4002, %v4096
    %v4098 = vpop.f32.mrf.mxu0
    %4099 = vdwg.mxu0
    %v4100 = vld [vmem:[#allocation3 + $0x520] sm:$0xff]
    %v4101 = vld [vmem:[#allocation3 + $0x530] sm:$0xff]
    %v4102 = vld [vmem:[#allocation3 + $0x540] sm:$0xff]
    %v4103 = vld [vmem:[#allocation3 + $0x550] sm:$0xff]
    %v4104 = vld [vmem:[#allocation3 + $0x560] ss:$0 sm:$0xff]
    %v4106 = vsel %vm330, %v4082, 0
    %v4109 = vsel %vm330, %v4087, 0
    %v4112 = vsel %vm330, %v4092, 0
    %v4115 = vsel %vm330, %v4097, 0
    %4117 = vmatprep.subr.mxu0 0.0
    %4118 = vmatpush1.msra.mxu0 0.0
    %4119 = vmatprep.subr.mxu0 0.0
    %4120 = vmatpush1.msra.mxu0 0.0
    %4121 = vmatprep.subr.mxu0 0.0
    %4122 = vmatpush1.msra.mxu0 0.0
    %4123 = vmatprep.subr.mxu0 0.0
    %4124 = vmatpush1.msra.mxu0 0.0
    %4125 = vmatprep.subr.mxu0 0.0
    %4126 = vmatpush1.msra.mxu0 0.0
    %4127 = vmatprep.subr.mxu0 0.0
    %4128 = vmatpush1.msra.mxu0 0.0
    %4129 = vmatprep.subr.mxu0 0.0
    %4130 = vmatpush1.msra.mxu0 0.0
    %4131 = vmatprep.subr.mxu0 0.0
    %4132 = vmatpush1.msra.mxu0 0.0
    %4133 = vmatprep.subr.mxu0 0.0
    %4134 = vmatpush1.msra.mxu0 0.0
    %4135 = vmatprep.subr.mxu0 0.0
    %4136 = vmatpush1.msra.mxu0 0.0
    %4137 = vmatprep.subr.mxu0 0.0
    %4138 = vmatpush1.msra.mxu0 0.0
    %4139 = vmatprep.subr.mxu0 0.0
    %4140 = vmatpush1.msra.mxu0 0.0
    %4141 = vmatprep.subr.mxu0 0.0
    %4142 = vmatpush1.msra.mxu0 %v4103
    %4143 = vmatprep.subr.mxu0 0.0
    %4144 = vmatpush1.msra.mxu0 %v4102
    %4145 = vmatprep.subr.mxu0 0.0
    %4146 = vmatpush1.msra.mxu0 %v4101
    %4147 = vmatprep.subr.mxu0 0.0
    %4148 = vmatpush1.msra.mxu0 %v4100
    %4149 = vmatprep.subr.mxu0 0.0
    %4150 = vmatpush2.msra.mxu0 0.0
    %4151 = vmatprep.subr.mxu0 0.0
    %4152 = vmatpush2.msra.mxu0 0.0
    %4153 = vmatprep.subr.mxu0 0.0
    %4154 = vmatpush2.msra.mxu0 0.0
    %4155 = vmatprep.subr.mxu0 0.0
    %4156 = vmatpush2.msra.mxu0 0.0
    %4157 = vmatprep.subr.mxu0 0.0
    %4158 = vmatpush2.msra.mxu0 0.0
    %4159 = vmatprep.subr.mxu0 0.0
    %4160 = vmatpush2.msra.mxu0 0.0
    %4161 = vmatprep.subr.mxu0 0.0
    %4162 = vmatpush2.msra.mxu0 0.0
    %4163 = vmatprep.subr.mxu0 0.0
    %4164 = vmatpush2.msra.mxu0 0.0
    %4165 = vmatprep.subr.mxu0 0.0
    %4166 = vmatpush2.msra.mxu0 0.0
    %4167 = vmatprep.subr.mxu0 0.0
    %4168 = vmatpush2.msra.mxu0 0.0
    %4169 = vmatprep.subr.mxu0 0.0
    %4170 = vmatpush2.msra.mxu0 0.0
    %4171 = vmatprep.subr.mxu0 0.0
    %4172 = vmatpush2.msra.mxu0 0.0
    %4173 = vmatprep.subr.mxu0 0.0
    %4174 = vmatpush2.msra.mxu0 0.0
    %4175 = vmatprep.subr.mxu0 0.0
    %4176 = vmatpush2.msra.mxu0 0.0
    %4177 = vmatprep.subr.mxu0 0.0
    %4178 = vmatpush2.msra.mxu0 0.0
    %4179 = vmatprep.subr.mxu0 0.0
    %4180 = vmatpush2.msra.mxu0 0.0
    %4181 = vmatprep.mubr.f32.mxu0 0.0
    %4182 = vmatmul.mubr.f32.gmra.mxu0 %v4106
    %v4183 = vpop.f32.mrf.mxu0
    %v4184 = vadd.f32 %v4104, %v4183
    %v4185 = vpop.f32.mrf.mxu0
    %4186 = vmatprep.mubr.f32.mxu0 0.0
    %4187 = vmatmul.mubr.f32.gmra.mxu0 %v4109
    %v4188 = vpop.f32.mrf.mxu0
    %v4189 = vadd.f32 %v4104, %v4188
    %v4190 = vpop.f32.mrf.mxu0
    %4191 = vmatprep.mubr.f32.mxu0 0.0
    %4192 = vmatmul.mubr.f32.gmra.mxu0 %v4112
    %v4193 = vpop.f32.mrf.mxu0
    %v4194 = vadd.f32 %v4104, %v4193
    %v4195 = vpop.f32.mrf.mxu0
    %4196 = vmatprep.mubr.f32.mxu0 0.0
    %4197 = vmatmul.mubr.f32.gmra.mxu0 %v4115
    %v4198 = vpop.f32.mrf.mxu0
    %v4199 = vadd.f32 %v4104, %v4198
    %v4200 = vpop.f32.mrf.mxu0
    %4201 = vdwg.mxu0
    %4206 = vrot.lane.b32.xlu0 %v4184, 96
    %v4207 = vpop.permute.xlu0 %4206
    %4208 = vrot.lane.b32.xlu0 %v4189, 96
    %v4209 = vpop.permute.xlu0 %4208
    %4210 = vrot.lane.b32.xlu0 %v4194, 96
    %v4211 = vpop.permute.xlu0 %4210
    %4212 = vrot.lane.b32.xlu0 %v4199, 96
    %v4213 = vpop.permute.xlu0 %4212
    %v4214 = vsel %vm211, %v4184, 0
    %v4216 = vsel %vm211, %v4189, 0
    %v4218 = vsel %vm211, %v4194, 0
    %v4220 = vsel %vm211, %v4199, 0
    %v4222 = vsel %vm211, %v4207, 0
    %v4224 = vsel %vm211, %v4209, 0
    %v4226 = vsel %vm211, %v4211, 0
    %v4228 = vsel %vm211, %v4213, 0
    %4230 = vmatprep.subr.mxu0 0.0
    %4231 = vmatpush1.xpose.msra.mxu0 0.0
    %4232 = vmatprep.subr.mxu0 0.0
    %4233 = vmatpush1.xpose.msra.mxu0 0.0
    %4234 = vmatprep.subr.mxu0 0.0
    %4235 = vmatpush1.xpose.msra.mxu0 0.0
    %4236 = vmatprep.subr.mxu0 0.0
    %4237 = vmatpush1.xpose.msra.mxu0 0.0
    %4238 = vmatprep.subr.mxu0 0.0
    %4239 = vmatpush1.xpose.msra.mxu0 0.0
    %4240 = vmatprep.subr.mxu0 0.0
    %4241 = vmatpush1.xpose.msra.mxu0 0.0
    %4242 = vmatprep.subr.mxu0 0.0
    %4243 = vmatpush1.xpose.msra.mxu0 0.0
    %4244 = vmatprep.subr.mxu0 0.0
    %4245 = vmatpush1.xpose.msra.mxu0 0.0
    %4246 = vmatprep.subr.mxu0 0.0
    %4247 = vmatpush1.xpose.msra.mxu0 0.0
    %4248 = vmatprep.subr.mxu0 0.0
    %4249 = vmatpush1.xpose.msra.mxu0 0.0
    %4250 = vmatprep.subr.mxu0 0.0
    %4251 = vmatpush1.xpose.msra.mxu0 0.0
    %4252 = vmatprep.subr.mxu0 0.0
    %4253 = vmatpush1.xpose.msra.mxu0 0.0
    %4254 = vmatprep.subr.mxu0 0.0
    %4255 = vmatpush1.xpose.msra.mxu0 %v4228
    %4256 = vmatprep.subr.mxu0 0.0
    %4257 = vmatpush1.xpose.msra.mxu0 %v4226
    %4258 = vmatprep.subr.mxu0 0.0
    %4259 = vmatpush1.xpose.msra.mxu0 %v4224
    %4260 = vmatprep.subr.mxu0 0.0
    %4261 = vmatpush1.xpose.msra.mxu0 %v4222
    %4262 = vmatprep.subr.mxu0 0.0
    %4263 = vmatpush2.xpose.msra.mxu0 0.0
    %4264 = vmatprep.subr.mxu0 0.0
    %4265 = vmatpush2.xpose.msra.mxu0 0.0
    %4266 = vmatprep.subr.mxu0 0.0
    %4267 = vmatpush2.xpose.msra.mxu0 0.0
    %4268 = vmatprep.subr.mxu0 0.0
    %4269 = vmatpush2.xpose.msra.mxu0 0.0
    %4270 = vmatprep.subr.mxu0 0.0
    %4271 = vmatpush2.xpose.msra.mxu0 0.0
    %4272 = vmatprep.subr.mxu0 0.0
    %4273 = vmatpush2.xpose.msra.mxu0 0.0
    %4274 = vmatprep.subr.mxu0 0.0
    %4275 = vmatpush2.xpose.msra.mxu0 0.0
    %4276 = vmatprep.subr.mxu0 0.0
    %4277 = vmatpush2.xpose.msra.mxu0 0.0
    %4278 = vmatprep.subr.mxu0 0.0
    %4279 = vmatpush2.xpose.msra.mxu0 0.0
    %4280 = vmatprep.subr.mxu0 0.0
    %4281 = vmatpush2.xpose.msra.mxu0 0.0
    %4282 = vmatprep.subr.mxu0 0.0
    %4283 = vmatpush2.xpose.msra.mxu0 0.0
    %4284 = vmatprep.subr.mxu0 0.0
    %4285 = vmatpush2.xpose.msra.mxu0 0.0
    %4286 = vmatprep.subr.mxu0 0.0
    %4287 = vmatpush2.xpose.msra.mxu0 0.0
    %4288 = vmatprep.subr.mxu0 0.0
    %4289 = vmatpush2.xpose.msra.mxu0 0.0
    %4290 = vmatprep.subr.mxu0 0.0
    %4291 = vmatpush2.xpose.msra.mxu0 0.0
    %4292 = vmatprep.subr.mxu0 0.0
    %4293 = vmatpush2.xpose.msra.mxu0 0.0
    %4294 = vmatprep.mubr.f32.mxu0 0.0
    %4295 = vmatmul.mubr.f32.gmra.mxu0 %v4214
    %v4296 = vpop.f32.mrf.mxu0
    %v4297 = vadd.f32 0.0, %v4296
    %v4298 = vpop.f32.mrf.mxu0
    %4299 = vmatprep.mubr.f32.mxu0 0.0
    %4300 = vmatmul.mubr.f32.gmra.mxu0 %v4216
    %v4301 = vpop.f32.mrf.mxu0
    %v4302 = vadd.f32 0.0, %v4301
    %v4303 = vpop.f32.mrf.mxu0
    %4304 = vmatprep.mubr.f32.mxu0 0.0
    %4305 = vmatmul.mubr.f32.gmra.mxu0 %v4218
    %v4306 = vpop.f32.mrf.mxu0
    %v4307 = vadd.f32 0.0, %v4306
    %v4308 = vpop.f32.mrf.mxu0
    %4309 = vmatprep.mubr.f32.mxu0 0.0
    %4310 = vmatmul.mubr.f32.gmra.mxu0 %v4220
    %v4311 = vpop.f32.mrf.mxu0
    %v4312 = vadd.f32 0.0, %v4311
    %v4313 = vpop.f32.mrf.mxu0
    %4314 = vdwg.mxu0
    %v4315 = vmul.f32 %v4297, 0.35355338
    %v4316 = vmul.f32 %v4302, 0.35355338
    %v4317 = vmul.f32 %v4307, 0.35355338
    %v4318 = vmul.f32 %v4312, 0.35355338
    %v4319 = vadd.f32 %v4315, %v39
    %v4320 = vadd.f32 %v4316, %v40
    %v4321 = vadd.f32 %v4317, %v41
    %v4322 = vadd.f32 %v4318, %v42
    %v4323 = vsel %vm330, %v4319, -inf
    %4324 = vmax.xlane.f32.xlu0 %v4323
    %v4325 = vpop.xlane.xlu0 %4324
    %v4326 = vsel %vm330, %v4320, -inf
    %4327 = vmax.xlane.f32.xlu0 %v4326
    %v4328 = vpop.xlane.xlu0 %4327
    %v4329 = vsel %vm330, %v4321, -inf
    %4330 = vmax.xlane.f32.xlu0 %v4329
    %v4331 = vpop.xlane.xlu0 %4330
    %v4332 = vsel %vm330, %v4322, -inf
    %4333 = vmax.xlane.f32.xlu0 %v4332
    %v4334 = vpop.xlane.xlu0 %4333
    %v4335 = vsub.f32 %v4319, %v4325
    %v4336 = vsub.f32 %v4320, %v4328
    %v4337 = vsub.f32 %v4321, %v4331
    %v4338 = vsub.f32 %v4322, %v4334
    %v4339 = vmul.f32 %v4335, 1.442695
    %v4340 = vpow.pop %v4339
    %v4341 = vmul.f32 %v4336, 1.442695
    %v4342 = vpow.pop %v4341
    %v4343 = vmul.f32 %v4337, 1.442695
    %v4344 = vpow.pop %v4343
    %v4345 = vmul.f32 %v4338, 1.442695
    %v4346 = vpow.pop %v4345
    %v4347 = vsel %vm330, %v4340, 0.0
    %4348 = vadd.xlane.f32.xlu0 %v4347
    %v4349 = vpop.xlane.xlu0 %4348
    %v4350 = vsel %vm330, %v4342, 0.0
    %4351 = vadd.xlane.f32.xlu0 %v4350
    %v4352 = vpop.xlane.xlu0 %4351
    %v4353 = vsel %vm330, %v4344, 0.0
    %4354 = vadd.xlane.f32.xlu0 %v4353
    %v4355 = vpop.xlane.xlu0 %4354
    %v4356 = vsel %vm330, %v4346, 0.0
    %4357 = vadd.xlane.f32.xlu0 %v4356
    %v4358 = vpop.xlane.xlu0 %4357
    %v4359 = vrcp.pop %v4349
    %v4360 = vrcp.pop %v4352
    %v4361 = vrcp.pop %v4355
    %v4362 = vrcp.pop %v4358
    %v4363 = vmul.f32 %v4340, %v4359
    %v4364 = vmul.f32 %v4342, %v4360
    %v4365 = vmul.f32 %v4344, %v4361
    %v4366 = vmul.f32 %v4346, %v4362
    %4367 = vrot.lane.b32.xlu0 %v4184, 64
    %v4368 = vpop.permute.xlu0 %4367
    %4369 = vrot.lane.b32.xlu0 %v4189, 64
    %v4370 = vpop.permute.xlu0 %4369
    %4371 = vrot.lane.b32.xlu0 %v4194, 64
    %v4372 = vpop.permute.xlu0 %4371
    %4373 = vrot.lane.b32.xlu0 %v4199, 64
    %v4374 = vpop.permute.xlu0 %4373
    %v4380 = vsel %vm330, %v4363, 0
    %v4383 = vsel %vm330, %v4364, 0
    %v4386 = vsel %vm330, %v4365, 0
    %v4389 = vsel %vm330, %v4366, 0
    %4391 = vmatprep.subr.mxu0 0.0
    %4392 = vmatpush1.msra.mxu0 0.0
    %4393 = vmatprep.subr.mxu0 0.0
    %4394 = vmatpush1.msra.mxu0 0.0
    %4395 = vmatprep.subr.mxu0 0.0
    %4396 = vmatpush1.msra.mxu0 0.0
    %4397 = vmatprep.subr.mxu0 0.0
    %4398 = vmatpush1.msra.mxu0 0.0
    %4399 = vmatprep.subr.mxu0 0.0
    %4400 = vmatpush1.msra.mxu0 0.0
    %4401 = vmatprep.subr.mxu0 0.0
    %4402 = vmatpush1.msra.mxu0 0.0
    %4403 = vmatprep.subr.mxu0 0.0
    %4404 = vmatpush1.msra.mxu0 0.0
    %4405 = vmatprep.subr.mxu0 0.0
    %4406 = vmatpush1.msra.mxu0 0.0
    %4407 = vmatprep.subr.mxu0 0.0
    %4408 = vmatpush1.msra.mxu0 0.0
    %4409 = vmatprep.subr.mxu0 0.0
    %4410 = vmatpush1.msra.mxu0 0.0
    %4411 = vmatprep.subr.mxu0 0.0
    %4412 = vmatpush1.msra.mxu0 0.0
    %4413 = vmatprep.subr.mxu0 0.0
    %4414 = vmatpush1.msra.mxu0 0.0
    %4415 = vmatprep.subr.mxu0 0.0
    %4416 = vmatpush1.msra.mxu0 %v4374
    %4417 = vmatprep.subr.mxu0 0.0
    %4418 = vmatpush1.msra.mxu0 %v4372
    %4419 = vmatprep.subr.mxu0 0.0
    %4420 = vmatpush1.msra.mxu0 %v4370
    %4421 = vmatprep.subr.mxu0 0.0
    %4422 = vmatpush1.msra.mxu0 %v4368
    %4423 = vmatprep.subr.mxu0 0.0
    %4424 = vmatpush2.msra.mxu0 0.0
    %4425 = vmatprep.subr.mxu0 0.0
    %4426 = vmatpush2.msra.mxu0 0.0
    %4427 = vmatprep.subr.mxu0 0.0
    %4428 = vmatpush2.msra.mxu0 0.0
    %4429 = vmatprep.subr.mxu0 0.0
    %4430 = vmatpush2.msra.mxu0 0.0
    %4431 = vmatprep.subr.mxu0 0.0
    %4432 = vmatpush2.msra.mxu0 0.0
    %4433 = vmatprep.subr.mxu0 0.0
    %4434 = vmatpush2.msra.mxu0 0.0
    %4435 = vmatprep.subr.mxu0 0.0
    %4436 = vmatpush2.msra.mxu0 0.0
    %4437 = vmatprep.subr.mxu0 0.0
    %4438 = vmatpush2.msra.mxu0 0.0
    %4439 = vmatprep.subr.mxu0 0.0
    %4440 = vmatpush2.msra.mxu0 0.0
    %4441 = vmatprep.subr.mxu0 0.0
    %4442 = vmatpush2.msra.mxu0 0.0
    %4443 = vmatprep.subr.mxu0 0.0
    %4444 = vmatpush2.msra.mxu0 0.0
    %4445 = vmatprep.subr.mxu0 0.0
    %4446 = vmatpush2.msra.mxu0 0.0
    %4447 = vmatprep.subr.mxu0 0.0
    %4448 = vmatpush2.msra.mxu0 0.0
    %4449 = vmatprep.subr.mxu0 0.0
    %4450 = vmatpush2.msra.mxu0 0.0
    %4451 = vmatprep.subr.mxu0 0.0
    %4452 = vmatpush2.msra.mxu0 0.0
    %4453 = vmatprep.subr.mxu0 0.0
    %4454 = vmatpush2.msra.mxu0 0.0
    %4455 = vmatprep.mubr.f32.mxu0 0.0
    %4456 = vmatmul.mubr.f32.gmra.mxu0 %v4380
    %v4457 = vpop.f32.mrf.mxu0
    %v4458 = vadd.f32 0.0, %v4457
    %v4459 = vpop.f32.mrf.mxu0
    %4460 = vmatprep.mubr.f32.mxu0 0.0
    %4461 = vmatmul.mubr.f32.gmra.mxu0 %v4383
    %v4462 = vpop.f32.mrf.mxu0
    %v4463 = vadd.f32 0.0, %v4462
    %v4464 = vpop.f32.mrf.mxu0
    %4465 = vmatprep.mubr.f32.mxu0 0.0
    %4466 = vmatmul.mubr.f32.gmra.mxu0 %v4386
    %v4467 = vpop.f32.mrf.mxu0
    %v4468 = vadd.f32 0.0, %v4467
    %v4469 = vpop.f32.mrf.mxu0
    %4470 = vmatprep.mubr.f32.mxu0 0.0
    %4471 = vmatmul.mubr.f32.gmra.mxu0 %v4389
    %v4472 = vpop.f32.mrf.mxu0
    %v4473 = vadd.f32 0.0, %v4472
    %v4474 = vpop.f32.mrf.mxu0
    %4475 = vdwg.mxu0
    %4476 = vst.msk [vmem:[#allocation2] sm:$0xff] %vm211, %v4458
    %4477 = vst.msk [vmem:[#allocation2 + $0x8] sm:$0xff] %vm211, %v4463
    %4478 = vst.msk [vmem:[#allocation2 + $0x10] sm:$0xff] %vm211, %v4468
    %4479 = vst.msk [vmem:[#allocation2 + $0x18] sm:$0xff] %vm211, %v4473
    %4480 = vrot.lane.b32.xlu0 %v4184, 120
    %v4481 = vpop.permute.xlu0 %4480
    %4482 = vrot.lane.b32.xlu0 %v4189, 120
    %v4483 = vpop.permute.xlu0 %4482
    %4484 = vrot.lane.b32.xlu0 %v4194, 120
    %v4485 = vpop.permute.xlu0 %4484
    %4486 = vrot.lane.b32.xlu0 %v4199, 120
    %v4487 = vpop.permute.xlu0 %4486
    %4488 = vrot.lane.b32.xlu0 %v4184, 88
    %v4489 = vpop.permute.xlu0 %4488
    %4490 = vrot.lane.b32.xlu0 %v4189, 88
    %v4491 = vpop.permute.xlu0 %4490
    %4492 = vrot.lane.b32.xlu0 %v4194, 88
    %v4493 = vpop.permute.xlu0 %4492
    %4494 = vrot.lane.b32.xlu0 %v4199, 88
    %v4495 = vpop.permute.xlu0 %4494
    %v4496 = vsel %vm211, %v4481, 0
    %v4498 = vsel %vm211, %v4483, 0
    %v4500 = vsel %vm211, %v4485, 0
    %v4502 = vsel %vm211, %v4487, 0
    %v4504 = vsel %vm211, %v4489, 0
    %v4506 = vsel %vm211, %v4491, 0
    %v4508 = vsel %vm211, %v4493, 0
    %v4510 = vsel %vm211, %v4495, 0
    %4512 = vmatprep.subr.mxu0 0.0
    %4513 = vmatpush1.xpose.msra.mxu0 0.0
    %4514 = vmatprep.subr.mxu0 0.0
    %4515 = vmatpush1.xpose.msra.mxu0 0.0
    %4516 = vmatprep.subr.mxu0 0.0
    %4517 = vmatpush1.xpose.msra.mxu0 0.0
    %4518 = vmatprep.subr.mxu0 0.0
    %4519 = vmatpush1.xpose.msra.mxu0 0.0
    %4520 = vmatprep.subr.mxu0 0.0
    %4521 = vmatpush1.xpose.msra.mxu0 0.0
    %4522 = vmatprep.subr.mxu0 0.0
    %4523 = vmatpush1.xpose.msra.mxu0 0.0
    %4524 = vmatprep.subr.mxu0 0.0
    %4525 = vmatpush1.xpose.msra.mxu0 0.0
    %4526 = vmatprep.subr.mxu0 0.0
    %4527 = vmatpush1.xpose.msra.mxu0 0.0
    %4528 = vmatprep.subr.mxu0 0.0
    %4529 = vmatpush1.xpose.msra.mxu0 0.0
    %4530 = vmatprep.subr.mxu0 0.0
    %4531 = vmatpush1.xpose.msra.mxu0 0.0
    %4532 = vmatprep.subr.mxu0 0.0
    %4533 = vmatpush1.xpose.msra.mxu0 0.0
    %4534 = vmatprep.subr.mxu0 0.0
    %4535 = vmatpush1.xpose.msra.mxu0 0.0
    %4536 = vmatprep.subr.mxu0 0.0
    %4537 = vmatpush1.xpose.msra.mxu0 %v4510
    %4538 = vmatprep.subr.mxu0 0.0
    %4539 = vmatpush1.xpose.msra.mxu0 %v4508
    %4540 = vmatprep.subr.mxu0 0.0
    %4541 = vmatpush1.xpose.msra.mxu0 %v4506
    %4542 = vmatprep.subr.mxu0 0.0
    %4543 = vmatpush1.xpose.msra.mxu0 %v4504
    %4544 = vmatprep.subr.mxu0 0.0
    %4545 = vmatpush2.xpose.msra.mxu0 0.0
    %4546 = vmatprep.subr.mxu0 0.0
    %4547 = vmatpush2.xpose.msra.mxu0 0.0
    %4548 = vmatprep.subr.mxu0 0.0
    %4549 = vmatpush2.xpose.msra.mxu0 0.0
    %4550 = vmatprep.subr.mxu0 0.0
    %4551 = vmatpush2.xpose.msra.mxu0 0.0
    %4552 = vmatprep.subr.mxu0 0.0
    %4553 = vmatpush2.xpose.msra.mxu0 0.0
    %4554 = vmatprep.subr.mxu0 0.0
    %4555 = vmatpush2.xpose.msra.mxu0 0.0
    %4556 = vmatprep.subr.mxu0 0.0
    %4557 = vmatpush2.xpose.msra.mxu0 0.0
    %4558 = vmatprep.subr.mxu0 0.0
    %4559 = vmatpush2.xpose.msra.mxu0 0.0
    %4560 = vmatprep.subr.mxu0 0.0
    %4561 = vmatpush2.xpose.msra.mxu0 0.0
    %4562 = vmatprep.subr.mxu0 0.0
    %4563 = vmatpush2.xpose.msra.mxu0 0.0
    %4564 = vmatprep.subr.mxu0 0.0
    %4565 = vmatpush2.xpose.msra.mxu0 0.0
    %4566 = vmatprep.subr.mxu0 0.0
    %4567 = vmatpush2.xpose.msra.mxu0 0.0
    %4568 = vmatprep.subr.mxu0 0.0
    %4569 = vmatpush2.xpose.msra.mxu0 0.0
    %4570 = vmatprep.subr.mxu0 0.0
    %4571 = vmatpush2.xpose.msra.mxu0 0.0
    %4572 = vmatprep.subr.mxu0 0.0
    %4573 = vmatpush2.xpose.msra.mxu0 0.0
    %4574 = vmatprep.subr.mxu0 0.0
    %4575 = vmatpush2.xpose.msra.mxu0 0.0
    %4576 = vmatprep.mubr.f32.mxu0 0.0
    %4577 = vmatmul.mubr.f32.gmra.mxu0 %v4496
    %v4578 = vpop.f32.mrf.mxu0
    %v4579 = vadd.f32 0.0, %v4578
    %v4580 = vpop.f32.mrf.mxu0
    %4581 = vmatprep.mubr.f32.mxu0 0.0
    %4582 = vmatmul.mubr.f32.gmra.mxu0 %v4498
    %v4583 = vpop.f32.mrf.mxu0
    %v4584 = vadd.f32 0.0, %v4583
    %v4585 = vpop.f32.mrf.mxu0
    %4586 = vmatprep.mubr.f32.mxu0 0.0
    %4587 = vmatmul.mubr.f32.gmra.mxu0 %v4500
    %v4588 = vpop.f32.mrf.mxu0
    %v4589 = vadd.f32 0.0, %v4588
    %v4590 = vpop.f32.mrf.mxu0
    %4591 = vmatprep.mubr.f32.mxu0 0.0
    %4592 = vmatmul.mubr.f32.gmra.mxu0 %v4502
    %v4593 = vpop.f32.mrf.mxu0
    %v4594 = vadd.f32 0.0, %v4593
    %v4595 = vpop.f32.mrf.mxu0
    %4596 = vdwg.mxu0
    %v4597 = vmul.f32 %v4579, 0.35355338
    %v4598 = vmul.f32 %v4584, 0.35355338
    %v4599 = vmul.f32 %v4589, 0.35355338
    %v4600 = vmul.f32 %v4594, 0.35355338
    %v4601 = vadd.f32 %v4597, %v39
    %v4602 = vadd.f32 %v4598, %v40
    %v4603 = vadd.f32 %v4599, %v41
    %v4604 = vadd.f32 %v4600, %v42
    %v4605 = vsel %vm330, %v4601, -inf
    %4606 = vmax.xlane.f32.xlu0 %v4605
    %v4607 = vpop.xlane.xlu0 %4606
    %v4608 = vsel %vm330, %v4602, -inf
    %4609 = vmax.xlane.f32.xlu0 %v4608
    %v4610 = vpop.xlane.xlu0 %4609
    %v4611 = vsel %vm330, %v4603, -inf
    %4612 = vmax.xlane.f32.xlu0 %v4611
    %v4613 = vpop.xlane.xlu0 %4612
    %v4614 = vsel %vm330, %v4604, -inf
    %4615 = vmax.xlane.f32.xlu0 %v4614
    %v4616 = vpop.xlane.xlu0 %4615
    %v4617 = vsub.f32 %v4601, %v4607
    %v4618 = vsub.f32 %v4602, %v4610
    %v4619 = vsub.f32 %v4603, %v4613
    %v4620 = vsub.f32 %v4604, %v4616
    %v4621 = vmul.f32 %v4617, 1.442695
    %v4622 = vpow.pop %v4621
    %v4623 = vmul.f32 %v4618, 1.442695
    %v4624 = vpow.pop %v4623
    %v4625 = vmul.f32 %v4619, 1.442695
    %v4626 = vpow.pop %v4625
    %v4627 = vmul.f32 %v4620, 1.442695
    %v4628 = vpow.pop %v4627
    %v4629 = vsel %vm330, %v4622, 0.0
    %4630 = vadd.xlane.f32.xlu0 %v4629
    %v4631 = vpop.xlane.xlu0 %4630
    %v4632 = vsel %vm330, %v4624, 0.0
    %4633 = vadd.xlane.f32.xlu0 %v4632
    %v4634 = vpop.xlane.xlu0 %4633
    %v4635 = vsel %vm330, %v4626, 0.0
    %4636 = vadd.xlane.f32.xlu0 %v4635
    %v4637 = vpop.xlane.xlu0 %4636
    %v4638 = vsel %vm330, %v4628, 0.0
    %4639 = vadd.xlane.f32.xlu0 %v4638
    %v4640 = vpop.xlane.xlu0 %4639
    %v4641 = vrcp.pop %v4631
    %v4642 = vrcp.pop %v4634
    %v4643 = vrcp.pop %v4637
    %v4644 = vrcp.pop %v4640
    %v4645 = vmul.f32 %v4622, %v4641
    %v4646 = vmul.f32 %v4624, %v4642
    %v4647 = vmul.f32 %v4626, %v4643
    %v4648 = vmul.f32 %v4628, %v4644
    %4649 = vrot.lane.b32.xlu0 %v4184, 56
    %v4650 = vpop.permute.xlu0 %4649
    %4651 = vrot.lane.b32.xlu0 %v4189, 56
    %v4652 = vpop.permute.xlu0 %4651
    %4653 = vrot.lane.b32.xlu0 %v4194, 56
    %v4654 = vpop.permute.xlu0 %4653
    %4655 = vrot.lane.b32.xlu0 %v4199, 56
    %v4656 = vpop.permute.xlu0 %4655
    %v4662 = vsel %vm330, %v4645, 0
    %v4665 = vsel %vm330, %v4646, 0
    %v4668 = vsel %vm330, %v4647, 0
    %v4671 = vsel %vm330, %v4648, 0
    %4673 = vmatprep.subr.mxu0 0.0
    %4674 = vmatpush1.msra.mxu0 0.0
    %4675 = vmatprep.subr.mxu0 0.0
    %4676 = vmatpush1.msra.mxu0 0.0
    %4677 = vmatprep.subr.mxu0 0.0
    %4678 = vmatpush1.msra.mxu0 0.0
    %4679 = vmatprep.subr.mxu0 0.0
    %4680 = vmatpush1.msra.mxu0 0.0
    %4681 = vmatprep.subr.mxu0 0.0
    %4682 = vmatpush1.msra.mxu0 0.0
    %4683 = vmatprep.subr.mxu0 0.0
    %4684 = vmatpush1.msra.mxu0 0.0
    %4685 = vmatprep.subr.mxu0 0.0
    %4686 = vmatpush1.msra.mxu0 0.0
    %4687 = vmatprep.subr.mxu0 0.0
    %4688 = vmatpush1.msra.mxu0 0.0
    %4689 = vmatprep.subr.mxu0 0.0
    %4690 = vmatpush1.msra.mxu0 0.0
    %4691 = vmatprep.subr.mxu0 0.0
    %4692 = vmatpush1.msra.mxu0 0.0
    %4693 = vmatprep.subr.mxu0 0.0
    %4694 = vmatpush1.msra.mxu0 0.0
    %4695 = vmatprep.subr.mxu0 0.0
    %4696 = vmatpush1.msra.mxu0 0.0
    %4697 = vmatprep.subr.mxu0 0.0
    %4698 = vmatpush1.msra.mxu0 %v4656
    %4699 = vmatprep.subr.mxu0 0.0
    %4700 = vmatpush1.msra.mxu0 %v4654
    %4701 = vmatprep.subr.mxu0 0.0
    %4702 = vmatpush1.msra.mxu0 %v4652
    %4703 = vmatprep.subr.mxu0 0.0
    %4704 = vmatpush1.msra.mxu0 %v4650
    %4705 = vmatprep.subr.mxu0 0.0
    %4706 = vmatpush2.msra.mxu0 0.0
    %4707 = vmatprep.subr.mxu0 0.0
    %4708 = vmatpush2.msra.mxu0 0.0
    %4709 = vmatprep.subr.mxu0 0.0
    %4710 = vmatpush2.msra.mxu0 0.0
    %4711 = vmatprep.subr.mxu0 0.0
    %4712 = vmatpush2.msra.mxu0 0.0
    %4713 = vmatprep.subr.mxu0 0.0
    %4714 = vmatpush2.msra.mxu0 0.0
    %4715 = vmatprep.subr.mxu0 0.0
    %4716 = vmatpush2.msra.mxu0 0.0
    %4717 = vmatprep.subr.mxu0 0.0
    %4718 = vmatpush2.msra.mxu0 0.0
    %4719 = vmatprep.subr.mxu0 0.0
    %4720 = vmatpush2.msra.mxu0 0.0
    %4721 = vmatprep.subr.mxu0 0.0
    %4722 = vmatpush2.msra.mxu0 0.0
    %4723 = vmatprep.subr.mxu0 0.0
    %4724 = vmatpush2.msra.mxu0 0.0
    %4725 = vmatprep.subr.mxu0 0.0
    %4726 = vmatpush2.msra.mxu0 0.0
    %4727 = vmatprep.subr.mxu0 0.0
    %4728 = vmatpush2.msra.mxu0 0.0
    %4729 = vmatprep.subr.mxu0 0.0
    %4730 = vmatpush2.msra.mxu0 0.0
    %4731 = vmatprep.subr.mxu0 0.0
    %4732 = vmatpush2.msra.mxu0 0.0
    %4733 = vmatprep.subr.mxu0 0.0
    %4734 = vmatpush2.msra.mxu0 0.0
    %4735 = vmatprep.subr.mxu0 0.0
    %4736 = vmatpush2.msra.mxu0 0.0
    %4737 = vmatprep.mubr.f32.mxu0 0.0
    %4738 = vmatmul.mubr.f32.gmra.mxu0 %v4662
    %v4739 = vpop.f32.mrf.mxu0
    %v4740 = vadd.f32 0.0, %v4739
    %v4741 = vpop.f32.mrf.mxu0
    %4742 = vmatprep.mubr.f32.mxu0 0.0
    %4743 = vmatmul.mubr.f32.gmra.mxu0 %v4665
    %v4744 = vpop.f32.mrf.mxu0
    %v4745 = vadd.f32 0.0, %v4744
    %v4746 = vpop.f32.mrf.mxu0
    %4747 = vmatprep.mubr.f32.mxu0 0.0
    %4748 = vmatmul.mubr.f32.gmra.mxu0 %v4668
    %v4749 = vpop.f32.mrf.mxu0
    %v4750 = vadd.f32 0.0, %v4749
    %v4751 = vpop.f32.mrf.mxu0
    %4752 = vmatprep.mubr.f32.mxu0 0.0
    %4753 = vmatmul.mubr.f32.gmra.mxu0 %v4671
    %v4754 = vpop.f32.mrf.mxu0
    %v4755 = vadd.f32 0.0, %v4754
    %v4756 = vpop.f32.mrf.mxu0
    %4757 = vdwg.mxu0
    %4762 = vrot.lane.b32.xlu0 %v4740, 8
    %v4763 = vpop.permute.xlu0 %4762
    %4764 = vrot.lane.b32.xlu0 %v4745, 8
    %v4765 = vpop.permute.xlu0 %4764
    %4766 = vrot.lane.b32.xlu0 %v4750, 8
    %v4767 = vpop.permute.xlu0 %4766
    %4768 = vrot.lane.b32.xlu0 %v4755, 8
    %v4769 = vpop.permute.xlu0 %4768
    %4774 = vst.msk [vmem:[#allocation2] sm:$0xff] %vm1000, %v4763
    %4775 = vst.msk [vmem:[#allocation2 + $0x8] sm:$0xff] %vm1000, %v4765
    %4776 = vst.msk [vmem:[#allocation2 + $0x10] sm:$0xff] %vm1000, %v4767
    %4777 = vst.msk [vmem:[#allocation2 + $0x18] sm:$0xff] %vm1000, %v4769
    %4778 = vrot.lane.b32.xlu0 %v4184, 112
    %v4779 = vpop.permute.xlu0 %4778
    %4780 = vrot.lane.b32.xlu0 %v4189, 112
    %v4781 = vpop.permute.xlu0 %4780
    %4782 = vrot.lane.b32.xlu0 %v4194, 112
    %v4783 = vpop.permute.xlu0 %4782
    %4784 = vrot.lane.b32.xlu0 %v4199, 112
    %v4785 = vpop.permute.xlu0 %4784
    %4786 = vrot.lane.b32.xlu0 %v4184, 80
    %v4787 = vpop.permute.xlu0 %4786
    %4788 = vrot.lane.b32.xlu0 %v4189, 80
    %v4789 = vpop.permute.xlu0 %4788
    %4790 = vrot.lane.b32.xlu0 %v4194, 80
    %v4791 = vpop.permute.xlu0 %4790
    %4792 = vrot.lane.b32.xlu0 %v4199, 80
    %v4793 = vpop.permute.xlu0 %4792
    %v4794 = vsel %vm211, %v4779, 0
    %v4796 = vsel %vm211, %v4781, 0
    %v4798 = vsel %vm211, %v4783, 0
    %v4800 = vsel %vm211, %v4785, 0
    %v4802 = vsel %vm211, %v4787, 0
    %v4804 = vsel %vm211, %v4789, 0
    %v4806 = vsel %vm211, %v4791, 0
    %v4808 = vsel %vm211, %v4793, 0
    %4810 = vmatprep.subr.mxu0 0.0
    %4811 = vmatpush1.xpose.msra.mxu0 0.0
    %4812 = vmatprep.subr.mxu0 0.0
    %4813 = vmatpush1.xpose.msra.mxu0 0.0
    %4814 = vmatprep.subr.mxu0 0.0
    %4815 = vmatpush1.xpose.msra.mxu0 0.0
    %4816 = vmatprep.subr.mxu0 0.0
    %4817 = vmatpush1.xpose.msra.mxu0 0.0
    %4818 = vmatprep.subr.mxu0 0.0
    %4819 = vmatpush1.xpose.msra.mxu0 0.0
    %4820 = vmatprep.subr.mxu0 0.0
    %4821 = vmatpush1.xpose.msra.mxu0 0.0
    %4822 = vmatprep.subr.mxu0 0.0
    %4823 = vmatpush1.xpose.msra.mxu0 0.0
    %4824 = vmatprep.subr.mxu0 0.0
    %4825 = vmatpush1.xpose.msra.mxu0 0.0
    %4826 = vmatprep.subr.mxu0 0.0
    %4827 = vmatpush1.xpose.msra.mxu0 0.0
    %4828 = vmatprep.subr.mxu0 0.0
    %4829 = vmatpush1.xpose.msra.mxu0 0.0
    %4830 = vmatprep.subr.mxu0 0.0
    %4831 = vmatpush1.xpose.msra.mxu0 0.0
    %4832 = vmatprep.subr.mxu0 0.0
    %4833 = vmatpush1.xpose.msra.mxu0 0.0
    %4834 = vmatprep.subr.mxu0 0.0
    %4835 = vmatpush1.xpose.msra.mxu0 %v4808
    %4836 = vmatprep.subr.mxu0 0.0
    %4837 = vmatpush1.xpose.msra.mxu0 %v4806
    %4838 = vmatprep.subr.mxu0 0.0
    %4839 = vmatpush1.xpose.msra.mxu0 %v4804
    %4840 = vmatprep.subr.mxu0 0.0
    %4841 = vmatpush1.xpose.msra.mxu0 %v4802
    %4842 = vmatprep.subr.mxu0 0.0
    %4843 = vmatpush2.xpose.msra.mxu0 0.0
    %4844 = vmatprep.subr.mxu0 0.0
    %4845 = vmatpush2.xpose.msra.mxu0 0.0
    %4846 = vmatprep.subr.mxu0 0.0
    %4847 = vmatpush2.xpose.msra.mxu0 0.0
    %4848 = vmatprep.subr.mxu0 0.0
    %4849 = vmatpush2.xpose.msra.mxu0 0.0
    %4850 = vmatprep.subr.mxu0 0.0
    %4851 = vmatpush2.xpose.msra.mxu0 0.0
    %4852 = vmatprep.subr.mxu0 0.0
    %4853 = vmatpush2.xpose.msra.mxu0 0.0
    %4854 = vmatprep.subr.mxu0 0.0
    %4855 = vmatpush2.xpose.msra.mxu0 0.0
    %4856 = vmatprep.subr.mxu0 0.0
    %4857 = vmatpush2.xpose.msra.mxu0 0.0
    %4858 = vmatprep.subr.mxu0 0.0
    %4859 = vmatpush2.xpose.msra.mxu0 0.0
    %4860 = vmatprep.subr.mxu0 0.0
    %4861 = vmatpush2.xpose.msra.mxu0 0.0
    %4862 = vmatprep.subr.mxu0 0.0
    %4863 = vmatpush2.xpose.msra.mxu0 0.0
    %4864 = vmatprep.subr.mxu0 0.0
    %4865 = vmatpush2.xpose.msra.mxu0 0.0
    %4866 = vmatprep.subr.mxu0 0.0
    %4867 = vmatpush2.xpose.msra.mxu0 0.0
    %4868 = vmatprep.subr.mxu0 0.0
    %4869 = vmatpush2.xpose.msra.mxu0 0.0
    %4870 = vmatprep.subr.mxu0 0.0
    %4871 = vmatpush2.xpose.msra.mxu0 0.0
    %4872 = vmatprep.subr.mxu0 0.0
    %4873 = vmatpush2.xpose.msra.mxu0 0.0
    %4874 = vmatprep.mubr.f32.mxu0 0.0
    %4875 = vmatmul.mubr.f32.gmra.mxu0 %v4794
    %v4876 = vpop.f32.mrf.mxu0
    %v4877 = vadd.f32 0.0, %v4876
    %v4878 = vpop.f32.mrf.mxu0
    %4879 = vmatprep.mubr.f32.mxu0 0.0
    %4880 = vmatmul.mubr.f32.gmra.mxu0 %v4796
    %v4881 = vpop.f32.mrf.mxu0
    %v4882 = vadd.f32 0.0, %v4881
    %v4883 = vpop.f32.mrf.mxu0
    %4884 = vmatprep.mubr.f32.mxu0 0.0
    %4885 = vmatmul.mubr.f32.gmra.mxu0 %v4798
    %v4886 = vpop.f32.mrf.mxu0
    %v4887 = vadd.f32 0.0, %v4886
    %v4888 = vpop.f32.mrf.mxu0
    %4889 = vmatprep.mubr.f32.mxu0 0.0
    %4890 = vmatmul.mubr.f32.gmra.mxu0 %v4800
    %v4891 = vpop.f32.mrf.mxu0
    %v4892 = vadd.f32 0.0, %v4891
    %v4893 = vpop.f32.mrf.mxu0
    %4894 = vdwg.mxu0
    %v4895 = vmul.f32 %v4877, 0.35355338
    %v4896 = vmul.f32 %v4882, 0.35355338
    %v4897 = vmul.f32 %v4887, 0.35355338
    %v4898 = vmul.f32 %v4892, 0.35355338
    %v4899 = vadd.f32 %v4895, %v39
    %v4900 = vadd.f32 %v4896, %v40
    %v4901 = vadd.f32 %v4897, %v41
    %v4902 = vadd.f32 %v4898, %v42
    %v4903 = vsel %vm330, %v4899, -inf
    %4904 = vmax.xlane.f32.xlu0 %v4903
    %v4905 = vpop.xlane.xlu0 %4904
    %v4906 = vsel %vm330, %v4900, -inf
    %4907 = vmax.xlane.f32.xlu0 %v4906
    %v4908 = vpop.xlane.xlu0 %4907
    %v4909 = vsel %vm330, %v4901, -inf
    %4910 = vmax.xlane.f32.xlu0 %v4909
    %v4911 = vpop.xlane.xlu0 %4910
    %v4912 = vsel %vm330, %v4902, -inf
    %4913 = vmax.xlane.f32.xlu0 %v4912
    %v4914 = vpop.xlane.xlu0 %4913
    %v4915 = vsub.f32 %v4899, %v4905
    %v4916 = vsub.f32 %v4900, %v4908
    %v4917 = vsub.f32 %v4901, %v4911
    %v4918 = vsub.f32 %v4902, %v4914
    %v4919 = vmul.f32 %v4915, 1.442695
    %v4920 = vpow.pop %v4919
    %v4921 = vmul.f32 %v4916, 1.442695
    %v4922 = vpow.pop %v4921
    %v4923 = vmul.f32 %v4917, 1.442695
    %v4924 = vpow.pop %v4923
    %v4925 = vmul.f32 %v4918, 1.442695
    %v4926 = vpow.pop %v4925
    %v4927 = vsel %vm330, %v4920, 0.0
    %4928 = vadd.xlane.f32.xlu0 %v4927
    %v4929 = vpop.xlane.xlu0 %4928
    %v4930 = vsel %vm330, %v4922, 0.0
    %4931 = vadd.xlane.f32.xlu0 %v4930
    %v4932 = vpop.xlane.xlu0 %4931
    %v4933 = vsel %vm330, %v4924, 0.0
    %4934 = vadd.xlane.f32.xlu0 %v4933
    %v4935 = vpop.xlane.xlu0 %4934
    %v4936 = vsel %vm330, %v4926, 0.0
    %4937 = vadd.xlane.f32.xlu0 %v4936
    %v4938 = vpop.xlane.xlu0 %4937
    %v4939 = vrcp.pop %v4929
    %v4940 = vrcp.pop %v4932
    %v4941 = vrcp.pop %v4935
    %v4942 = vrcp.pop %v4938
    %v4943 = vmul.f32 %v4920, %v4939
    %v4944 = vmul.f32 %v4922, %v4940
    %v4945 = vmul.f32 %v4924, %v4941
    %v4946 = vmul.f32 %v4926, %v4942
    %4947 = vrot.lane.b32.xlu0 %v4184, 48
    %v4948 = vpop.permute.xlu0 %4947
    %4949 = vrot.lane.b32.xlu0 %v4189, 48
    %v4950 = vpop.permute.xlu0 %4949
    %4951 = vrot.lane.b32.xlu0 %v4194, 48
    %v4952 = vpop.permute.xlu0 %4951
    %4953 = vrot.lane.b32.xlu0 %v4199, 48
    %v4954 = vpop.permute.xlu0 %4953
    %v4960 = vsel %vm330, %v4943, 0
    %v4963 = vsel %vm330, %v4944, 0
    %v4966 = vsel %vm330, %v4945, 0
    %v4969 = vsel %vm330, %v4946, 0
    %4971 = vmatprep.subr.mxu0 0.0
    %4972 = vmatpush1.msra.mxu0 0.0
    %4973 = vmatprep.subr.mxu0 0.0
    %4974 = vmatpush1.msra.mxu0 0.0
    %4975 = vmatprep.subr.mxu0 0.0
    %4976 = vmatpush1.msra.mxu0 0.0
    %4977 = vmatprep.subr.mxu0 0.0
    %4978 = vmatpush1.msra.mxu0 0.0
    %4979 = vmatprep.subr.mxu0 0.0
    %4980 = vmatpush1.msra.mxu0 0.0
    %4981 = vmatprep.subr.mxu0 0.0
    %4982 = vmatpush1.msra.mxu0 0.0
    %4983 = vmatprep.subr.mxu0 0.0
    %4984 = vmatpush1.msra.mxu0 0.0
    %4985 = vmatprep.subr.mxu0 0.0
    %4986 = vmatpush1.msra.mxu0 0.0
    %4987 = vmatprep.subr.mxu0 0.0
    %4988 = vmatpush1.msra.mxu0 0.0
    %4989 = vmatprep.subr.mxu0 0.0
    %4990 = vmatpush1.msra.mxu0 0.0
    %4991 = vmatprep.subr.mxu0 0.0
    %4992 = vmatpush1.msra.mxu0 0.0
    %4993 = vmatprep.subr.mxu0 0.0
    %4994 = vmatpush1.msra.mxu0 0.0
    %4995 = vmatprep.subr.mxu0 0.0
    %4996 = vmatpush1.msra.mxu0 %v4954
    %4997 = vmatprep.subr.mxu0 0.0
    %4998 = vmatpush1.msra.mxu0 %v4952
    %4999 = vmatprep.subr.mxu0 0.0
    %5000 = vmatpush1.msra.mxu0 %v4950
    %5001 = vmatprep.subr.mxu0 0.0
    %5002 = vmatpush1.msra.mxu0 %v4948
    %5003 = vmatprep.subr.mxu0 0.0
    %5004 = vmatpush2.msra.mxu0 0.0
    %5005 = vmatprep.subr.mxu0 0.0
    %5006 = vmatpush2.msra.mxu0 0.0
    %5007 = vmatprep.subr.mxu0 0.0
    %5008 = vmatpush2.msra.mxu0 0.0
    %5009 = vmatprep.subr.mxu0 0.0
    %5010 = vmatpush2.msra.mxu0 0.0
    %5011 = vmatprep.subr.mxu0 0.0
    %5012 = vmatpush2.msra.mxu0 0.0
    %5013 = vmatprep.subr.mxu0 0.0
    %5014 = vmatpush2.msra.mxu0 0.0
    %5015 = vmatprep.subr.mxu0 0.0
    %5016 = vmatpush2.msra.mxu0 0.0
    %5017 = vmatprep.subr.mxu0 0.0
    %5018 = vmatpush2.msra.mxu0 0.0
    %5019 = vmatprep.subr.mxu0 0.0
    %5020 = vmatpush2.msra.mxu0 0.0
    %5021 = vmatprep.subr.mxu0 0.0
    %5022 = vmatpush2.msra.mxu0 0.0
    %5023 = vmatprep.subr.mxu0 0.0
    %5024 = vmatpush2.msra.mxu0 0.0
    %5025 = vmatprep.subr.mxu0 0.0
    %5026 = vmatpush2.msra.mxu0 0.0
    %5027 = vmatprep.subr.mxu0 0.0
    %5028 = vmatpush2.msra.mxu0 0.0
    %5029 = vmatprep.subr.mxu0 0.0
    %5030 = vmatpush2.msra.mxu0 0.0
    %5031 = vmatprep.subr.mxu0 0.0
    %5032 = vmatpush2.msra.mxu0 0.0
    %5033 = vmatprep.subr.mxu0 0.0
    %5034 = vmatpush2.msra.mxu0 0.0
    %5035 = vmatprep.mubr.f32.mxu0 0.0
    %5036 = vmatmul.mubr.f32.gmra.mxu0 %v4960
    %v5037 = vpop.f32.mrf.mxu0
    %v5038 = vadd.f32 0.0, %v5037
    %v5039 = vpop.f32.mrf.mxu0
    %5040 = vmatprep.mubr.f32.mxu0 0.0
    %5041 = vmatmul.mubr.f32.gmra.mxu0 %v4963
    %v5042 = vpop.f32.mrf.mxu0
    %v5043 = vadd.f32 0.0, %v5042
    %v5044 = vpop.f32.mrf.mxu0
    %5045 = vmatprep.mubr.f32.mxu0 0.0
    %5046 = vmatmul.mubr.f32.gmra.mxu0 %v4966
    %v5047 = vpop.f32.mrf.mxu0
    %v5048 = vadd.f32 0.0, %v5047
    %v5049 = vpop.f32.mrf.mxu0
    %5050 = vmatprep.mubr.f32.mxu0 0.0
    %5051 = vmatmul.mubr.f32.gmra.mxu0 %v4969
    %v5052 = vpop.f32.mrf.mxu0
    %v5053 = vadd.f32 0.0, %v5052
    %v5054 = vpop.f32.mrf.mxu0
    %5055 = vdwg.mxu0
    %5060 = vrot.lane.b32.xlu0 %v5038, 16
    %v5061 = vpop.permute.xlu0 %5060
    %5062 = vrot.lane.b32.xlu0 %v5043, 16
    %v5063 = vpop.permute.xlu0 %5062
    %5064 = vrot.lane.b32.xlu0 %v5048, 16
    %v5065 = vpop.permute.xlu0 %5064
    %5066 = vrot.lane.b32.xlu0 %v5053, 16
    %v5067 = vpop.permute.xlu0 %5066
    %5072 = vst.msk [vmem:[#allocation2] sm:$0xff] %vm1299, %v5061
    %5073 = vst.msk [vmem:[#allocation2 + $0x8] sm:$0xff] %vm1299, %v5063
    %5074 = vst.msk [vmem:[#allocation2 + $0x10] sm:$0xff] %vm1299, %v5065
    %5075 = vst.msk [vmem:[#allocation2 + $0x18] sm:$0xff] %vm1299, %v5067
    %5076 = vrot.lane.b32.xlu0 %v4184, 104
    %v5077 = vpop.permute.xlu0 %5076
    %5078 = vrot.lane.b32.xlu0 %v4189, 104
    %v5079 = vpop.permute.xlu0 %5078
    %5080 = vrot.lane.b32.xlu0 %v4194, 104
    %v5081 = vpop.permute.xlu0 %5080
    %5082 = vrot.lane.b32.xlu0 %v4199, 104
    %v5083 = vpop.permute.xlu0 %5082
    %5084 = vrot.lane.b32.xlu0 %v4184, 72
    %v5085 = vpop.permute.xlu0 %5084
    %5086 = vrot.lane.b32.xlu0 %v4189, 72
    %v5087 = vpop.permute.xlu0 %5086
    %5088 = vrot.lane.b32.xlu0 %v4194, 72
    %v5089 = vpop.permute.xlu0 %5088
    %5090 = vrot.lane.b32.xlu0 %v4199, 72
    %v5091 = vpop.permute.xlu0 %5090
    %v5092 = vsel %vm211, %v5077, 0
    %v5094 = vsel %vm211, %v5079, 0
    %v5096 = vsel %vm211, %v5081, 0
    %v5098 = vsel %vm211, %v5083, 0
    %v5100 = vsel %vm211, %v5085, 0
    %v5102 = vsel %vm211, %v5087, 0
    %v5104 = vsel %vm211, %v5089, 0
    %v5106 = vsel %vm211, %v5091, 0
    %5108 = vmatprep.subr.mxu0 0.0
    %5109 = vmatpush1.xpose.msra.mxu0 0.0
    %5110 = vmatprep.subr.mxu0 0.0
    %5111 = vmatpush1.xpose.msra.mxu0 0.0
    %5112 = vmatprep.subr.mxu0 0.0
    %5113 = vmatpush1.xpose.msra.mxu0 0.0
    %5114 = vmatprep.subr.mxu0 0.0
    %5115 = vmatpush1.xpose.msra.mxu0 0.0
    %5116 = vmatprep.subr.mxu0 0.0
    %5117 = vmatpush1.xpose.msra.mxu0 0.0
    %5118 = vmatprep.subr.mxu0 0.0
    %5119 = vmatpush1.xpose.msra.mxu0 0.0
    %5120 = vmatprep.subr.mxu0 0.0
    %5121 = vmatpush1.xpose.msra.mxu0 0.0
    %5122 = vmatprep.subr.mxu0 0.0
    %5123 = vmatpush1.xpose.msra.mxu0 0.0
    %5124 = vmatprep.subr.mxu0 0.0
    %5125 = vmatpush1.xpose.msra.mxu0 0.0
    %5126 = vmatprep.subr.mxu0 0.0
    %5127 = vmatpush1.xpose.msra.mxu0 0.0
    %5128 = vmatprep.subr.mxu0 0.0
    %5129 = vmatpush1.xpose.msra.mxu0 0.0
    %5130 = vmatprep.subr.mxu0 0.0
    %5131 = vmatpush1.xpose.msra.mxu0 0.0
    %5132 = vmatprep.subr.mxu0 0.0
    %5133 = vmatpush1.xpose.msra.mxu0 %v5106
    %5134 = vmatprep.subr.mxu0 0.0
    %5135 = vmatpush1.xpose.msra.mxu0 %v5104
    %5136 = vmatprep.subr.mxu0 0.0
    %5137 = vmatpush1.xpose.msra.mxu0 %v5102
    %5138 = vmatprep.subr.mxu0 0.0
    %5139 = vmatpush1.xpose.msra.mxu0 %v5100
    %5140 = vmatprep.subr.mxu0 0.0
    %5141 = vmatpush2.xpose.msra.mxu0 0.0
    %5142 = vmatprep.subr.mxu0 0.0
    %5143 = vmatpush2.xpose.msra.mxu0 0.0
    %5144 = vmatprep.subr.mxu0 0.0
    %5145 = vmatpush2.xpose.msra.mxu0 0.0
    %5146 = vmatprep.subr.mxu0 0.0
    %5147 = vmatpush2.xpose.msra.mxu0 0.0
    %5148 = vmatprep.subr.mxu0 0.0
    %5149 = vmatpush2.xpose.msra.mxu0 0.0
    %5150 = vmatprep.subr.mxu0 0.0
    %5151 = vmatpush2.xpose.msra.mxu0 0.0
    %5152 = vmatprep.subr.mxu0 0.0
    %5153 = vmatpush2.xpose.msra.mxu0 0.0
    %5154 = vmatprep.subr.mxu0 0.0
    %5155 = vmatpush2.xpose.msra.mxu0 0.0
    %5156 = vmatprep.subr.mxu0 0.0
    %5157 = vmatpush2.xpose.msra.mxu0 0.0
    %5158 = vmatprep.subr.mxu0 0.0
    %5159 = vmatpush2.xpose.msra.mxu0 0.0
    %5160 = vmatprep.subr.mxu0 0.0
    %5161 = vmatpush2.xpose.msra.mxu0 0.0
    %5162 = vmatprep.subr.mxu0 0.0
    %5163 = vmatpush2.xpose.msra.mxu0 0.0
    %5164 = vmatprep.subr.mxu0 0.0
    %5165 = vmatpush2.xpose.msra.mxu0 0.0
    %5166 = vmatprep.subr.mxu0 0.0
    %5167 = vmatpush2.xpose.msra.mxu0 0.0
    %5168 = vmatprep.subr.mxu0 0.0
    %5169 = vmatpush2.xpose.msra.mxu0 0.0
    %5170 = vmatprep.subr.mxu0 0.0
    %5171 = vmatpush2.xpose.msra.mxu0 0.0
    %5172 = vmatprep.mubr.f32.mxu0 0.0
    %5173 = vmatmul.mubr.f32.gmra.mxu0 %v5092
    %v5174 = vpop.f32.mrf.mxu0
    %v5175 = vadd.f32 0.0, %v5174
    %v5176 = vpop.f32.mrf.mxu0
    %5177 = vmatprep.mubr.f32.mxu0 0.0
    %5178 = vmatmul.mubr.f32.gmra.mxu0 %v5094
    %v5179 = vpop.f32.mrf.mxu0
    %v5180 = vadd.f32 0.0, %v5179
    %v5181 = vpop.f32.mrf.mxu0
    %5182 = vmatprep.mubr.f32.mxu0 0.0
    %5183 = vmatmul.mubr.f32.gmra.mxu0 %v5096
    %v5184 = vpop.f32.mrf.mxu0
    %v5185 = vadd.f32 0.0, %v5184
    %v5186 = vpop.f32.mrf.mxu0
    %5187 = vmatprep.mubr.f32.mxu0 0.0
    %5188 = vmatmul.mubr.f32.gmra.mxu0 %v5098
    %v5189 = vpop.f32.mrf.mxu0
    %v5190 = vadd.f32 0.0, %v5189
    %v5191 = vpop.f32.mrf.mxu0
    %5192 = vdwg.mxu0
    %v5193 = vmul.f32 %v5175, 0.35355338
    %v5194 = vmul.f32 %v5180, 0.35355338
    %v5195 = vmul.f32 %v5185, 0.35355338
    %v5196 = vmul.f32 %v5190, 0.35355338
    %v5197 = vadd.f32 %v5193, %v39
    %v5198 = vadd.f32 %v5194, %v40
    %v5199 = vadd.f32 %v5195, %v41
    %v5200 = vadd.f32 %v5196, %v42
    %v5201 = vsel %vm330, %v5197, -inf
    %5202 = vmax.xlane.f32.xlu0 %v5201
    %v5203 = vpop.xlane.xlu0 %5202
    %v5204 = vsel %vm330, %v5198, -inf
    %5205 = vmax.xlane.f32.xlu0 %v5204
    %v5206 = vpop.xlane.xlu0 %5205
    %v5207 = vsel %vm330, %v5199, -inf
    %5208 = vmax.xlane.f32.xlu0 %v5207
    %v5209 = vpop.xlane.xlu0 %5208
    %v5210 = vsel %vm330, %v5200, -inf
    %5211 = vmax.xlane.f32.xlu0 %v5210
    %v5212 = vpop.xlane.xlu0 %5211
    %v5213 = vsub.f32 %v5197, %v5203
    %v5214 = vsub.f32 %v5198, %v5206
    %v5215 = vsub.f32 %v5199, %v5209
    %v5216 = vsub.f32 %v5200, %v5212
    %v5217 = vmul.f32 %v5213, 1.442695
    %v5218 = vpow.pop %v5217
    %v5219 = vmul.f32 %v5214, 1.442695
    %v5220 = vpow.pop %v5219
    %v5221 = vmul.f32 %v5215, 1.442695
    %v5222 = vpow.pop %v5221
    %v5223 = vmul.f32 %v5216, 1.442695
    %v5224 = vpow.pop %v5223
    %v5225 = vsel %vm330, %v5218, 0.0
    %5226 = vadd.xlane.f32.xlu0 %v5225
    %v5227 = vpop.xlane.xlu0 %5226
    %v5228 = vsel %vm330, %v5220, 0.0
    %5229 = vadd.xlane.f32.xlu0 %v5228
    %v5230 = vpop.xlane.xlu0 %5229
    %v5231 = vsel %vm330, %v5222, 0.0
    %5232 = vadd.xlane.f32.xlu0 %v5231
    %v5233 = vpop.xlane.xlu0 %5232
    %v5234 = vsel %vm330, %v5224, 0.0
    %5235 = vadd.xlane.f32.xlu0 %v5234
    %v5236 = vpop.xlane.xlu0 %5235
    %v5237 = vrcp.pop %v5227
    %v5238 = vrcp.pop %v5230
    %v5239 = vrcp.pop %v5233
    %v5240 = vrcp.pop %v5236
    %v5241 = vmul.f32 %v5218, %v5237
    %v5242 = vmul.f32 %v5220, %v5238
    %v5243 = vmul.f32 %v5222, %v5239
    %v5244 = vmul.f32 %v5224, %v5240
    %5245 = vrot.lane.b32.xlu0 %v4184, 40
    %v5246 = vpop.permute.xlu0 %5245
    %5247 = vrot.lane.b32.xlu0 %v4189, 40
    %v5248 = vpop.permute.xlu0 %5247
    %5249 = vrot.lane.b32.xlu0 %v4194, 40
    %v5250 = vpop.permute.xlu0 %5249
    %5251 = vrot.lane.b32.xlu0 %v4199, 40
    %v5252 = vpop.permute.xlu0 %5251
    %v5258 = vsel %vm330, %v5241, 0
    %v5261 = vsel %vm330, %v5242, 0
    %v5264 = vsel %vm330, %v5243, 0
    %v5267 = vsel %vm330, %v5244, 0
    %5269 = vmatprep.subr.mxu0 0.0
    %5270 = vmatpush1.msra.mxu0 0.0
    %5271 = vmatprep.subr.mxu0 0.0
    %5272 = vmatpush1.msra.mxu0 0.0
    %5273 = vmatprep.subr.mxu0 0.0
    %5274 = vmatpush1.msra.mxu0 0.0
    %5275 = vmatprep.subr.mxu0 0.0
    %5276 = vmatpush1.msra.mxu0 0.0
    %5277 = vmatprep.subr.mxu0 0.0
    %5278 = vmatpush1.msra.mxu0 0.0
    %5279 = vmatprep.subr.mxu0 0.0
    %5280 = vmatpush1.msra.mxu0 0.0
    %5281 = vmatprep.subr.mxu0 0.0
    %5282 = vmatpush1.msra.mxu0 0.0
    %5283 = vmatprep.subr.mxu0 0.0
    %5284 = vmatpush1.msra.mxu0 0.0
    %5285 = vmatprep.subr.mxu0 0.0
    %5286 = vmatpush1.msra.mxu0 0.0
    %5287 = vmatprep.subr.mxu0 0.0
    %5288 = vmatpush1.msra.mxu0 0.0
    %5289 = vmatprep.subr.mxu0 0.0
    %5290 = vmatpush1.msra.mxu0 0.0
    %5291 = vmatprep.subr.mxu0 0.0
    %5292 = vmatpush1.msra.mxu0 0.0
    %5293 = vmatprep.subr.mxu0 0.0
    %5294 = vmatpush1.msra.mxu0 %v5252
    %5295 = vmatprep.subr.mxu0 0.0
    %5296 = vmatpush1.msra.mxu0 %v5250
    %5297 = vmatprep.subr.mxu0 0.0
    %5298 = vmatpush1.msra.mxu0 %v5248
    %5299 = vmatprep.subr.mxu0 0.0
    %5300 = vmatpush1.msra.mxu0 %v5246
    %5301 = vmatprep.subr.mxu0 0.0
    %5302 = vmatpush2.msra.mxu0 0.0
    %5303 = vmatprep.subr.mxu0 0.0
    %5304 = vmatpush2.msra.mxu0 0.0
    %5305 = vmatprep.subr.mxu0 0.0
    %5306 = vmatpush2.msra.mxu0 0.0
    %5307 = vmatprep.subr.mxu0 0.0
    %5308 = vmatpush2.msra.mxu0 0.0
    %5309 = vmatprep.subr.mxu0 0.0
    %5310 = vmatpush2.msra.mxu0 0.0
    %5311 = vmatprep.subr.mxu0 0.0
    %5312 = vmatpush2.msra.mxu0 0.0
    %5313 = vmatprep.subr.mxu0 0.0
    %5314 = vmatpush2.msra.mxu0 0.0
    %5315 = vmatprep.subr.mxu0 0.0
    %5316 = vmatpush2.msra.mxu0 0.0
    %5317 = vmatprep.subr.mxu0 0.0
    %5318 = vmatpush2.msra.mxu0 0.0
    %5319 = vmatprep.subr.mxu0 0.0
    %5320 = vmatpush2.msra.mxu0 0.0
    %5321 = vmatprep.subr.mxu0 0.0
    %5322 = vmatpush2.msra.mxu0 0.0
    %5323 = vmatprep.subr.mxu0 0.0
    %5324 = vmatpush2.msra.mxu0 0.0
    %5325 = vmatprep.subr.mxu0 0.0
    %5326 = vmatpush2.msra.mxu0 0.0
    %5327 = vmatprep.subr.mxu0 0.0
    %5328 = vmatpush2.msra.mxu0 0.0
    %5329 = vmatprep.subr.mxu0 0.0
    %5330 = vmatpush2.msra.mxu0 0.0
    %5331 = vmatprep.subr.mxu0 0.0
    %5332 = vmatpush2.msra.mxu0 0.0
    %5333 = vmatprep.mubr.f32.mxu0 0.0
    %5334 = vmatmul.mubr.f32.gmra.mxu0 %v5258
    %v5335 = vpop.f32.mrf.mxu0
    %v5336 = vadd.f32 0.0, %v5335
    %v5337 = vpop.f32.mrf.mxu0
    %5338 = vmatprep.mubr.f32.mxu0 0.0
    %5339 = vmatmul.mubr.f32.gmra.mxu0 %v5261
    %v5340 = vpop.f32.mrf.mxu0
    %v5341 = vadd.f32 0.0, %v5340
    %v5342 = vpop.f32.mrf.mxu0
    %5343 = vmatprep.mubr.f32.mxu0 0.0
    %5344 = vmatmul.mubr.f32.gmra.mxu0 %v5264
    %v5345 = vpop.f32.mrf.mxu0
    %v5346 = vadd.f32 0.0, %v5345
    %v5347 = vpop.f32.mrf.mxu0
    %5348 = vmatprep.mubr.f32.mxu0 0.0
    %5349 = vmatmul.mubr.f32.gmra.mxu0 %v5267
    %v5350 = vpop.f32.mrf.mxu0
    %v5351 = vadd.f32 0.0, %v5350
    %v5352 = vpop.f32.mrf.mxu0
    %5353 = vdwg.mxu0
    %5358 = vrot.lane.b32.xlu0 %v5336, 24
    %v5359 = vpop.permute.xlu0 %5358
    %5360 = vrot.lane.b32.xlu0 %v5341, 24
    %v5361 = vpop.permute.xlu0 %5360
    %5362 = vrot.lane.b32.xlu0 %v5346, 24
    %v5363 = vpop.permute.xlu0 %5362
    %5364 = vrot.lane.b32.xlu0 %v5351, 24
    %v5365 = vpop.permute.xlu0 %5364
    %5370 = vst.msk [vmem:[#allocation2] sm:$0xff] %vm1598, %v5359
    %5371 = vst.msk [vmem:[#allocation2 + $0x8] sm:$0xff] %vm1598, %v5361
    %5372 = vst.msk [vmem:[#allocation2 + $0x10] sm:$0xff] %vm1598, %v5363
    %5373 = vst.msk [vmem:[#allocation2 + $0x18] sm:$0xff] %vm1598, %v5365
    %v5374 = vld [vmem:[#allocation2] sm:$0xff]
    %v5375 = vld [vmem:[#allocation2 + $0x8] sm:$0xff]
    %v5376 = vld [vmem:[#allocation2 + $0x10] sm:$0xff]
    %v5377 = vld [vmem:[#allocation2 + $0x18] sm:$0xff]
    %v5378 = vld [vmem:[#allocation3 + $0x570] sm:$0xff]
    %v5379 = vld [vmem:[#allocation3 + $0x580] sm:$0xff]
    %v5380 = vld [vmem:[#allocation3 + $0x590] sm:$0xff]
    %v5381 = vld [vmem:[#allocation3 + $0x5a0] sm:$0xff]
    %v5382 = vld [vmem:[#allocation3 + $0x5b0] ss:$0 sm:$0xff]
    %v5384 = vsel %vm330, %v5374, 0
    %v5387 = vsel %vm330, %v5375, 0
    %v5390 = vsel %vm330, %v5376, 0
    %v5393 = vsel %vm330, %v5377, 0
    %5395 = vmatprep.subr.mxu0 0.0
    %5396 = vmatpush1.msra.mxu0 0.0
    %5397 = vmatprep.subr.mxu0 0.0
    %5398 = vmatpush1.msra.mxu0 0.0
    %5399 = vmatprep.subr.mxu0 0.0
    %5400 = vmatpush1.msra.mxu0 0.0
    %5401 = vmatprep.subr.mxu0 0.0
    %5402 = vmatpush1.msra.mxu0 0.0
    %5403 = vmatprep.subr.mxu0 0.0
    %5404 = vmatpush1.msra.mxu0 0.0
    %5405 = vmatprep.subr.mxu0 0.0
    %5406 = vmatpush1.msra.mxu0 0.0
    %5407 = vmatprep.subr.mxu0 0.0
    %5408 = vmatpush1.msra.mxu0 0.0
    %5409 = vmatprep.subr.mxu0 0.0
    %5410 = vmatpush1.msra.mxu0 0.0
    %5411 = vmatprep.subr.mxu0 0.0
    %5412 = vmatpush1.msra.mxu0 0.0
    %5413 = vmatprep.subr.mxu0 0.0
    %5414 = vmatpush1.msra.mxu0 0.0
    %5415 = vmatprep.subr.mxu0 0.0
    %5416 = vmatpush1.msra.mxu0 0.0
    %5417 = vmatprep.subr.mxu0 0.0
    %5418 = vmatpush1.msra.mxu0 0.0
    %5419 = vmatprep.subr.mxu0 0.0
    %5420 = vmatpush1.msra.mxu0 %v5381
    %5421 = vmatprep.subr.mxu0 0.0
    %5422 = vmatpush1.msra.mxu0 %v5380
    %5423 = vmatprep.subr.mxu0 0.0
    %5424 = vmatpush1.msra.mxu0 %v5379
    %5425 = vmatprep.subr.mxu0 0.0
    %5426 = vmatpush1.msra.mxu0 %v5378
    %5427 = vmatprep.subr.mxu0 0.0
    %5428 = vmatpush2.msra.mxu0 0.0
    %5429 = vmatprep.subr.mxu0 0.0
    %5430 = vmatpush2.msra.mxu0 0.0
    %5431 = vmatprep.subr.mxu0 0.0
    %5432 = vmatpush2.msra.mxu0 0.0
    %5433 = vmatprep.subr.mxu0 0.0
    %5434 = vmatpush2.msra.mxu0 0.0
    %5435 = vmatprep.subr.mxu0 0.0
    %5436 = vmatpush2.msra.mxu0 0.0
    %5437 = vmatprep.subr.mxu0 0.0
    %5438 = vmatpush2.msra.mxu0 0.0
    %5439 = vmatprep.subr.mxu0 0.0
    %5440 = vmatpush2.msra.mxu0 0.0
    %5441 = vmatprep.subr.mxu0 0.0
    %5442 = vmatpush2.msra.mxu0 0.0
    %5443 = vmatprep.subr.mxu0 0.0
    %5444 = vmatpush2.msra.mxu0 0.0
    %5445 = vmatprep.subr.mxu0 0.0
    %5446 = vmatpush2.msra.mxu0 0.0
    %5447 = vmatprep.subr.mxu0 0.0
    %5448 = vmatpush2.msra.mxu0 0.0
    %5449 = vmatprep.subr.mxu0 0.0
    %5450 = vmatpush2.msra.mxu0 0.0
    %5451 = vmatprep.subr.mxu0 0.0
    %5452 = vmatpush2.msra.mxu0 0.0
    %5453 = vmatprep.subr.mxu0 0.0
    %5454 = vmatpush2.msra.mxu0 0.0
    %5455 = vmatprep.subr.mxu0 0.0
    %5456 = vmatpush2.msra.mxu0 0.0
    %5457 = vmatprep.subr.mxu0 0.0
    %5458 = vmatpush2.msra.mxu0 0.0
    %5459 = vmatprep.mubr.f32.mxu0 0.0
    %5460 = vmatmul.mubr.f32.gmra.mxu0 %v5384
    %v5461 = vpop.f32.mrf.mxu0
    %v5462 = vadd.f32 %v5382, %v5461
    %v5463 = vpop.f32.mrf.mxu0
    %5464 = vmatprep.mubr.f32.mxu0 0.0
    %5465 = vmatmul.mubr.f32.gmra.mxu0 %v5387
    %v5466 = vpop.f32.mrf.mxu0
    %v5467 = vadd.f32 %v5382, %v5466
    %v5468 = vpop.f32.mrf.mxu0
    %5469 = vmatprep.mubr.f32.mxu0 0.0
    %5470 = vmatmul.mubr.f32.gmra.mxu0 %v5390
    %v5471 = vpop.f32.mrf.mxu0
    %v5472 = vadd.f32 %v5382, %v5471
    %v5473 = vpop.f32.mrf.mxu0
    %5474 = vmatprep.mubr.f32.mxu0 0.0
    %5475 = vmatmul.mubr.f32.gmra.mxu0 %v5393
    %v5476 = vpop.f32.mrf.mxu0
    %v5477 = vadd.f32 %v5382, %v5476
    %v5478 = vpop.f32.mrf.mxu0
    %5479 = vdwg.mxu0
    %v5480 = vadd.f32 %v4082, %v5462
    %v5481 = vadd.f32 %v4087, %v5467
    %v5482 = vadd.f32 %v4092, %v5472
    %v5483 = vadd.f32 %v4097, %v5477
    %v5484 = vsel %vm330, %v5480, 0.0
    %5485 = vadd.xlane.f32.xlu0 %v5484
    %v5486 = vpop.xlane.xlu0 %5485
    %v5487 = vsel %vm330, %v5481, 0.0
    %5488 = vadd.xlane.f32.xlu0 %v5487
    %v5489 = vpop.xlane.xlu0 %5488
    %v5490 = vsel %vm330, %v5482, 0.0
    %5491 = vadd.xlane.f32.xlu0 %v5490
    %v5492 = vpop.xlane.xlu0 %5491
    %v5493 = vsel %vm330, %v5483, 0.0
    %5494 = vadd.xlane.f32.xlu0 %v5493
    %v5495 = vpop.xlane.xlu0 %5494
    %v5496 = vmul.f32 %v5486, %v1725
    %v5497 = vmul.f32 %v5489, %v1725
    %v5498 = vmul.f32 %v5492, %v1725
    %v5499 = vmul.f32 %v5495, %v1725
    %v5500 = vsub.f32 %v5480, %v5496
    %v5501 = vsub.f32 %v5481, %v5497
    %v5502 = vsub.f32 %v5482, %v5498
    %v5503 = vsub.f32 %v5483, %v5499
    %v5504 = vmul.f32 %v5500, %v5500
    %v5505 = vmul.f32 %v5501, %v5501
    %v5506 = vmul.f32 %v5502, %v5502
    %v5507 = vmul.f32 %v5503, %v5503
    %v5508 = vsel %vm330, %v5504, 0.0
    %5509 = vadd.xlane.f32.xlu0 %v5508
    %v5510 = vpop.xlane.xlu0 %5509
    %v5511 = vsel %vm330, %v5505, 0.0
    %5512 = vadd.xlane.f32.xlu0 %v5511
    %v5513 = vpop.xlane.xlu0 %5512
    %v5514 = vsel %vm330, %v5506, 0.0
    %5515 = vadd.xlane.f32.xlu0 %v5514
    %v5516 = vpop.xlane.xlu0 %5515
    %v5517 = vsel %vm330, %v5507, 0.0
    %5518 = vadd.xlane.f32.xlu0 %v5517
    %v5519 = vpop.xlane.xlu0 %5518
    %v5520 = vmul.f32 %v5510, %v1725
    %v5521 = vmul.f32 %v5513, %v1725
    %v5522 = vmul.f32 %v5516, %v1725
    %v5523 = vmul.f32 %v5519, %v1725
    %v5524 = vadd.f32 %v5520, 1e-05
    %v5525 = vadd.f32 %v5521, 1e-05
    %v5526 = vadd.f32 %v5522, 1e-05
    %v5527 = vadd.f32 %v5523, 1e-05
    %v5528 = vrsqrt.pop %v5524
    %v5529 = vrsqrt.pop %v5525
    %v5530 = vrsqrt.pop %v5526
    %v5531 = vrsqrt.pop %v5527
    %v5532 = vmul.f32 %v5500, %v5528
    %v5533 = vmul.f32 %v5501, %v5529
    %v5534 = vmul.f32 %v5502, %v5530
    %v5535 = vmul.f32 %v5503, %v5531
    %v5536 = vld [vmem:[#allocation3 + $0x740] ss:$0 sm:$0xff]
    %v5537 = vmul.f32 %v5532, %v5536
    %v5538 = vmul.f32 %v5533, %v5536
    %v5539 = vmul.f32 %v5534, %v5536
    %v5540 = vmul.f32 %v5535, %v5536
    %v5541 = vld [vmem:[#allocation3 + $0x750] ss:$0 sm:$0xff]
    %v5542 = vadd.f32 %v5537, %v5541
    %v5543 = vadd.f32 %v5538, %v5541
    %v5544 = vadd.f32 %v5539, %v5541
    %v5545 = vadd.f32 %v5540, %v5541
    %v5546 = vld [vmem:[#allocation3 + $0x5c0] sm:$0xff]
    %v5547 = vld [vmem:[#allocation3 + $0x5d0] sm:$0xff]
    %v5548 = vld [vmem:[#allocation3 + $0x5e0] sm:$0xff]
    %v5549 = vld [vmem:[#allocation3 + $0x5f0] sm:$0xff]
    %v5550 = vld [vmem:[#allocation3 + $0x600] ss:$0 sm:$0xff]
    %v5552 = vsel %vm330, %v5542, 0
    %v5555 = vsel %vm330, %v5543, 0
    %v5558 = vsel %vm330, %v5544, 0
    %v5561 = vsel %vm330, %v5545, 0
    %v5564 = vsel %vm330, %v3901, 0
    %v5567 = vsel %vm330, %v3902, 0
    %v5570 = vsel %vm330, %v3903, 0
    %v5573 = vsel %vm330, %v3904, 0
    %5575 = vmatprep.subr.mxu0 0.0
    %5576 = vmatpush1.msra.mxu0 0.0
    %5577 = vmatprep.subr.mxu0 0.0
    %5578 = vmatpush1.msra.mxu0 0.0
    %5579 = vmatprep.subr.mxu0 0.0
    %5580 = vmatpush1.msra.mxu0 0.0
    %5581 = vmatprep.subr.mxu0 0.0
    %5582 = vmatpush1.msra.mxu0 0.0
    %5583 = vmatprep.subr.mxu0 0.0
    %5584 = vmatpush1.msra.mxu0 0.0
    %5585 = vmatprep.subr.mxu0 0.0
    %5586 = vmatpush1.msra.mxu0 0.0
    %5587 = vmatprep.subr.mxu0 0.0
    %5588 = vmatpush1.msra.mxu0 0.0
    %5589 = vmatprep.subr.mxu0 0.0
    %5590 = vmatpush1.msra.mxu0 0.0
    %5591 = vmatprep.subr.mxu0 0.0
    %5592 = vmatpush1.msra.mxu0 0.0
    %5593 = vmatprep.subr.mxu0 0.0
    %5594 = vmatpush1.msra.mxu0 0.0
    %5595 = vmatprep.subr.mxu0 0.0
    %5596 = vmatpush1.msra.mxu0 0.0
    %5597 = vmatprep.subr.mxu0 0.0
    %5598 = vmatpush1.msra.mxu0 0.0
    %5599 = vmatprep.subr.mxu0 0.0
    %5600 = vmatpush1.msra.mxu0 %v5549
    %5601 = vmatprep.subr.mxu0 0.0
    %5602 = vmatpush1.msra.mxu0 %v5548
    %5603 = vmatprep.subr.mxu0 0.0
    %5604 = vmatpush1.msra.mxu0 %v5547
    %5605 = vmatprep.subr.mxu0 0.0
    %5606 = vmatpush1.msra.mxu0 %v5546
    %5607 = vmatprep.subr.mxu0 0.0
    %5608 = vmatpush2.msra.mxu0 0.0
    %5609 = vmatprep.subr.mxu0 0.0
    %5610 = vmatpush2.msra.mxu0 0.0
    %5611 = vmatprep.subr.mxu0 0.0
    %5612 = vmatpush2.msra.mxu0 0.0
    %5613 = vmatprep.subr.mxu0 0.0
    %5614 = vmatpush2.msra.mxu0 0.0
    %5615 = vmatprep.subr.mxu0 0.0
    %5616 = vmatpush2.msra.mxu0 0.0
    %5617 = vmatprep.subr.mxu0 0.0
    %5618 = vmatpush2.msra.mxu0 0.0
    %5619 = vmatprep.subr.mxu0 0.0
    %5620 = vmatpush2.msra.mxu0 0.0
    %5621 = vmatprep.subr.mxu0 0.0
    %5622 = vmatpush2.msra.mxu0 0.0
    %5623 = vmatprep.subr.mxu0 0.0
    %5624 = vmatpush2.msra.mxu0 0.0
    %5625 = vmatprep.subr.mxu0 0.0
    %5626 = vmatpush2.msra.mxu0 0.0
    %5627 = vmatprep.subr.mxu0 0.0
    %5628 = vmatpush2.msra.mxu0 0.0
    %5629 = vmatprep.subr.mxu0 0.0
    %5630 = vmatpush2.msra.mxu0 0.0
    %5631 = vmatprep.subr.mxu0 0.0
    %5632 = vmatpush2.msra.mxu0 0.0
    %5633 = vmatprep.subr.mxu0 0.0
    %5634 = vmatpush2.msra.mxu0 0.0
    %5635 = vmatprep.subr.mxu0 0.0
    %5636 = vmatpush2.msra.mxu0 0.0
    %5637 = vmatprep.subr.mxu0 0.0
    %5638 = vmatpush2.msra.mxu0 0.0
    %5639 = vmatprep.mubr.f32.mxu0 0.0
    %5640 = vmatmul.mubr.f32.gmra.mxu0 %v5552
    %v5641 = vpop.f32.mrf.mxu0
    %v5642 = vadd.f32 %v5550, %v5641
    %v5643 = vpop.f32.mrf.mxu0
    %5644 = vmatprep.mubr.f32.mxu0 0.0
    %5645 = vmatmul.mubr.f32.gmra.mxu0 %v5555
    %v5646 = vpop.f32.mrf.mxu0
    %v5647 = vadd.f32 %v5550, %v5646
    %v5648 = vpop.f32.mrf.mxu0
    %5649 = vmatprep.mubr.f32.mxu0 0.0
    %5650 = vmatmul.mubr.f32.gmra.mxu0 %v5558
    %v5651 = vpop.f32.mrf.mxu0
    %v5652 = vadd.f32 %v5550, %v5651
    %v5653 = vpop.f32.mrf.mxu0
    %5654 = vmatprep.mubr.f32.mxu0 0.0
    %5655 = vmatmul.mubr.f32.gmra.mxu0 %v5561
    %v5656 = vpop.f32.mrf.mxu0
    %v5657 = vadd.f32 %v5550, %v5656
    %v5658 = vpop.f32.mrf.mxu0
    %5659 = vmatprep.mubr.f32.mxu0 0.0
    %5660 = vmatmul.mubr.f32.gmra.mxu0 %v5564
    %v5661 = vpop.f32.mrf.mxu0
    %v5662 = vadd.f32 %v5550, %v5661
    %v5663 = vpop.f32.mrf.mxu0
    %5664 = vmatprep.mubr.f32.mxu0 0.0
    %5665 = vmatmul.mubr.f32.gmra.mxu0 %v5567
    %v5666 = vpop.f32.mrf.mxu0
    %v5667 = vadd.f32 %v5550, %v5666
    %v5668 = vpop.f32.mrf.mxu0
    %5669 = vmatprep.mubr.f32.mxu0 0.0
    %5670 = vmatmul.mubr.f32.gmra.mxu0 %v5570
    %v5671 = vpop.f32.mrf.mxu0
    %v5672 = vadd.f32 %v5550, %v5671
    %v5673 = vpop.f32.mrf.mxu0
    %5674 = vmatprep.mubr.f32.mxu0 0.0
    %5675 = vmatmul.mubr.f32.gmra.mxu0 %v5573
    %v5676 = vpop.f32.mrf.mxu0
    %v5677 = vadd.f32 %v5550, %v5676
    %v5678 = vpop.f32.mrf.mxu0
    %5679 = vdwg.mxu0
    %5684 = vrot.lane.b32.xlu0 %v5662, 96
    %v5685 = vpop.permute.xlu0 %5684
    %5686 = vrot.lane.b32.xlu0 %v5667, 96
    %v5687 = vpop.permute.xlu0 %5686
    %5688 = vrot.lane.b32.xlu0 %v5672, 96
    %v5689 = vpop.permute.xlu0 %5688
    %5690 = vrot.lane.b32.xlu0 %v5677, 96
    %v5691 = vpop.permute.xlu0 %5690
    %v5693 = vsel %vm211, %v5642, 0
    %v5696 = vsel %vm211, %v5647, 0
    %v5699 = vsel %vm211, %v5652, 0
    %v5702 = vsel %vm211, %v5657, 0
    %v5704 = vsel %vm211, %v5685, 0
    %v5706 = vsel %vm211, %v5687, 0
    %v5708 = vsel %vm211, %v5689, 0
    %v5710 = vsel %vm211, %v5691, 0
    %5712 = vmatprep.subr.mxu0 0.0
    %5713 = vmatpush1.xpose.msra.mxu0 0.0
    %5714 = vmatprep.subr.mxu0 0.0
    %5715 = vmatpush1.xpose.msra.mxu0 0.0
    %5716 = vmatprep.subr.mxu0 0.0
    %5717 = vmatpush1.xpose.msra.mxu0 0.0
    %5718 = vmatprep.subr.mxu0 0.0
    %5719 = vmatpush1.xpose.msra.mxu0 0.0
    %5720 = vmatprep.subr.mxu0 0.0
    %5721 = vmatpush1.xpose.msra.mxu0 0.0
    %5722 = vmatprep.subr.mxu0 0.0
    %5723 = vmatpush1.xpose.msra.mxu0 0.0
    %5724 = vmatprep.subr.mxu0 0.0
    %5725 = vmatpush1.xpose.msra.mxu0 0.0
    %5726 = vmatprep.subr.mxu0 0.0
    %5727 = vmatpush1.xpose.msra.mxu0 0.0
    %5728 = vmatprep.subr.mxu0 0.0
    %5729 = vmatpush1.xpose.msra.mxu0 0.0
    %5730 = vmatprep.subr.mxu0 0.0
    %5731 = vmatpush1.xpose.msra.mxu0 0.0
    %5732 = vmatprep.subr.mxu0 0.0
    %5733 = vmatpush1.xpose.msra.mxu0 0.0
    %5734 = vmatprep.subr.mxu0 0.0
    %5735 = vmatpush1.xpose.msra.mxu0 0.0
    %5736 = vmatprep.subr.mxu0 0.0
    %5737 = vmatpush1.xpose.msra.mxu0 %v5710
    %5738 = vmatprep.subr.mxu0 0.0
    %5739 = vmatpush1.xpose.msra.mxu0 %v5708
    %5740 = vmatprep.subr.mxu0 0.0
    %5741 = vmatpush1.xpose.msra.mxu0 %v5706
    %5742 = vmatprep.subr.mxu0 0.0
    %5743 = vmatpush1.xpose.msra.mxu0 %v5704
    %5744 = vmatprep.subr.mxu0 0.0
    %5745 = vmatpush2.xpose.msra.mxu0 0.0
    %5746 = vmatprep.subr.mxu0 0.0
    %5747 = vmatpush2.xpose.msra.mxu0 0.0
    %5748 = vmatprep.subr.mxu0 0.0
    %5749 = vmatpush2.xpose.msra.mxu0 0.0
    %5750 = vmatprep.subr.mxu0 0.0
    %5751 = vmatpush2.xpose.msra.mxu0 0.0
    %5752 = vmatprep.subr.mxu0 0.0
    %5753 = vmatpush2.xpose.msra.mxu0 0.0
    %5754 = vmatprep.subr.mxu0 0.0
    %5755 = vmatpush2.xpose.msra.mxu0 0.0
    %5756 = vmatprep.subr.mxu0 0.0
    %5757 = vmatpush2.xpose.msra.mxu0 0.0
    %5758 = vmatprep.subr.mxu0 0.0
    %5759 = vmatpush2.xpose.msra.mxu0 0.0
    %5760 = vmatprep.subr.mxu0 0.0
    %5761 = vmatpush2.xpose.msra.mxu0 0.0
    %5762 = vmatprep.subr.mxu0 0.0
    %5763 = vmatpush2.xpose.msra.mxu0 0.0
    %5764 = vmatprep.subr.mxu0 0.0
    %5765 = vmatpush2.xpose.msra.mxu0 0.0
    %5766 = vmatprep.subr.mxu0 0.0
    %5767 = vmatpush2.xpose.msra.mxu0 0.0
    %5768 = vmatprep.subr.mxu0 0.0
    %5769 = vmatpush2.xpose.msra.mxu0 0.0
    %5770 = vmatprep.subr.mxu0 0.0
    %5771 = vmatpush2.xpose.msra.mxu0 0.0
    %5772 = vmatprep.subr.mxu0 0.0
    %5773 = vmatpush2.xpose.msra.mxu0 0.0
    %5774 = vmatprep.subr.mxu0 0.0
    %5775 = vmatpush2.xpose.msra.mxu0 0.0
    %5776 = vmatprep.mubr.f32.mxu0 0.0
    %5777 = vmatmul.mubr.f32.gmra.mxu0 %v5693
    %v5778 = vpop.f32.mrf.mxu0
    %v5779 = vadd.f32 0.0, %v5778
    %v5780 = vpop.f32.mrf.mxu0
    %5781 = vmatprep.mubr.f32.mxu0 0.0
    %5782 = vmatmul.mubr.f32.gmra.mxu0 %v5696
    %v5783 = vpop.f32.mrf.mxu0
    %v5784 = vadd.f32 0.0, %v5783
    %v5785 = vpop.f32.mrf.mxu0
    %5786 = vmatprep.mubr.f32.mxu0 0.0
    %5787 = vmatmul.mubr.f32.gmra.mxu0 %v5699
    %v5788 = vpop.f32.mrf.mxu0
    %v5789 = vadd.f32 0.0, %v5788
    %v5790 = vpop.f32.mrf.mxu0
    %5791 = vmatprep.mubr.f32.mxu0 0.0
    %5792 = vmatmul.mubr.f32.gmra.mxu0 %v5702
    %v5793 = vpop.f32.mrf.mxu0
    %v5794 = vadd.f32 0.0, %v5793
    %v5795 = vpop.f32.mrf.mxu0
    %5796 = vdwg.mxu0
    %v5797 = vmul.f32 %v5779, 0.35355338
    %v5798 = vmul.f32 %v5784, 0.35355338
    %v5799 = vmul.f32 %v5789, 0.35355338
    %v5800 = vmul.f32 %v5794, 0.35355338
    %v5801 = vadd.f32 %v5797, %v43
    %v5802 = vadd.f32 %v5798, %v44
    %v5803 = vadd.f32 %v5799, %v45
    %v5804 = vadd.f32 %v5800, %v46
    %v5805 = vsel %vm330, %v5801, -inf
    %5806 = vmax.xlane.f32.xlu0 %v5805
    %v5807 = vpop.xlane.xlu0 %5806
    %v5808 = vsel %vm330, %v5802, -inf
    %5809 = vmax.xlane.f32.xlu0 %v5808
    %v5810 = vpop.xlane.xlu0 %5809
    %v5811 = vsel %vm330, %v5803, -inf
    %5812 = vmax.xlane.f32.xlu0 %v5811
    %v5813 = vpop.xlane.xlu0 %5812
    %v5814 = vsel %vm330, %v5804, -inf
    %5815 = vmax.xlane.f32.xlu0 %v5814
    %v5816 = vpop.xlane.xlu0 %5815
    %v5817 = vsub.f32 %v5801, %v5807
    %v5818 = vsub.f32 %v5802, %v5810
    %v5819 = vsub.f32 %v5803, %v5813
    %v5820 = vsub.f32 %v5804, %v5816
    %v5821 = vmul.f32 %v5817, 1.442695
    %v5822 = vpow.pop %v5821
    %v5823 = vmul.f32 %v5818, 1.442695
    %v5824 = vpow.pop %v5823
    %v5825 = vmul.f32 %v5819, 1.442695
    %v5826 = vpow.pop %v5825
    %v5827 = vmul.f32 %v5820, 1.442695
    %v5828 = vpow.pop %v5827
    %v5829 = vsel %vm330, %v5822, 0.0
    %5830 = vadd.xlane.f32.xlu0 %v5829
    %v5831 = vpop.xlane.xlu0 %5830
    %v5832 = vsel %vm330, %v5824, 0.0
    %5833 = vadd.xlane.f32.xlu0 %v5832
    %v5834 = vpop.xlane.xlu0 %5833
    %v5835 = vsel %vm330, %v5826, 0.0
    %5836 = vadd.xlane.f32.xlu0 %v5835
    %v5837 = vpop.xlane.xlu0 %5836
    %v5838 = vsel %vm330, %v5828, 0.0
    %5839 = vadd.xlane.f32.xlu0 %v5838
    %v5840 = vpop.xlane.xlu0 %5839
    %v5841 = vrcp.pop %v5831
    %v5842 = vrcp.pop %v5834
    %v5843 = vrcp.pop %v5837
    %v5844 = vrcp.pop %v5840
    %v5845 = vmul.f32 %v5822, %v5841
    %v5846 = vmul.f32 %v5824, %v5842
    %v5847 = vmul.f32 %v5826, %v5843
    %v5848 = vmul.f32 %v5828, %v5844
    %5849 = vrot.lane.b32.xlu0 %v5662, 64
    %v5850 = vpop.permute.xlu0 %5849
    %5851 = vrot.lane.b32.xlu0 %v5667, 64
    %v5852 = vpop.permute.xlu0 %5851
    %5853 = vrot.lane.b32.xlu0 %v5672, 64
    %v5854 = vpop.permute.xlu0 %5853
    %5855 = vrot.lane.b32.xlu0 %v5677, 64
    %v5856 = vpop.permute.xlu0 %5855
    %v5862 = vsel %vm330, %v5845, 0
    %v5865 = vsel %vm330, %v5846, 0
    %v5868 = vsel %vm330, %v5847, 0
    %v5871 = vsel %vm330, %v5848, 0
    %5873 = vmatprep.subr.mxu0 0.0
    %5874 = vmatpush1.msra.mxu0 0.0
    %5875 = vmatprep.subr.mxu0 0.0
    %5876 = vmatpush1.msra.mxu0 0.0
    %5877 = vmatprep.subr.mxu0 0.0
    %5878 = vmatpush1.msra.mxu0 0.0
    %5879 = vmatprep.subr.mxu0 0.0
    %5880 = vmatpush1.msra.mxu0 0.0
    %5881 = vmatprep.subr.mxu0 0.0
    %5882 = vmatpush1.msra.mxu0 0.0
    %5883 = vmatprep.subr.mxu0 0.0
    %5884 = vmatpush1.msra.mxu0 0.0
    %5885 = vmatprep.subr.mxu0 0.0
    %5886 = vmatpush1.msra.mxu0 0.0
    %5887 = vmatprep.subr.mxu0 0.0
    %5888 = vmatpush1.msra.mxu0 0.0
    %5889 = vmatprep.subr.mxu0 0.0
    %5890 = vmatpush1.msra.mxu0 0.0
    %5891 = vmatprep.subr.mxu0 0.0
    %5892 = vmatpush1.msra.mxu0 0.0
    %5893 = vmatprep.subr.mxu0 0.0
    %5894 = vmatpush1.msra.mxu0 0.0
    %5895 = vmatprep.subr.mxu0 0.0
    %5896 = vmatpush1.msra.mxu0 0.0
    %5897 = vmatprep.subr.mxu0 0.0
    %5898 = vmatpush1.msra.mxu0 %v5856
    %5899 = vmatprep.subr.mxu0 0.0
    %5900 = vmatpush1.msra.mxu0 %v5854
    %5901 = vmatprep.subr.mxu0 0.0
    %5902 = vmatpush1.msra.mxu0 %v5852
    %5903 = vmatprep.subr.mxu0 0.0
    %5904 = vmatpush1.msra.mxu0 %v5850
    %5905 = vmatprep.subr.mxu0 0.0
    %5906 = vmatpush2.msra.mxu0 0.0
    %5907 = vmatprep.subr.mxu0 0.0
    %5908 = vmatpush2.msra.mxu0 0.0
    %5909 = vmatprep.subr.mxu0 0.0
    %5910 = vmatpush2.msra.mxu0 0.0
    %5911 = vmatprep.subr.mxu0 0.0
    %5912 = vmatpush2.msra.mxu0 0.0
    %5913 = vmatprep.subr.mxu0 0.0
    %5914 = vmatpush2.msra.mxu0 0.0
    %5915 = vmatprep.subr.mxu0 0.0
    %5916 = vmatpush2.msra.mxu0 0.0
    %5917 = vmatprep.subr.mxu0 0.0
    %5918 = vmatpush2.msra.mxu0 0.0
    %5919 = vmatprep.subr.mxu0 0.0
    %5920 = vmatpush2.msra.mxu0 0.0
    %5921 = vmatprep.subr.mxu0 0.0
    %5922 = vmatpush2.msra.mxu0 0.0
    %5923 = vmatprep.subr.mxu0 0.0
    %5924 = vmatpush2.msra.mxu0 0.0
    %5925 = vmatprep.subr.mxu0 0.0
    %5926 = vmatpush2.msra.mxu0 0.0
    %5927 = vmatprep.subr.mxu0 0.0
    %5928 = vmatpush2.msra.mxu0 0.0
    %5929 = vmatprep.subr.mxu0 0.0
    %5930 = vmatpush2.msra.mxu0 0.0
    %5931 = vmatprep.subr.mxu0 0.0
    %5932 = vmatpush2.msra.mxu0 0.0
    %5933 = vmatprep.subr.mxu0 0.0
    %5934 = vmatpush2.msra.mxu0 0.0
    %5935 = vmatprep.subr.mxu0 0.0
    %5936 = vmatpush2.msra.mxu0 0.0
    %5937 = vmatprep.mubr.f32.mxu0 0.0
    %5938 = vmatmul.mubr.f32.gmra.mxu0 %v5862
    %v5939 = vpop.f32.mrf.mxu0
    %v5940 = vadd.f32 0.0, %v5939
    %v5941 = vpop.f32.mrf.mxu0
    %5942 = vmatprep.mubr.f32.mxu0 0.0
    %5943 = vmatmul.mubr.f32.gmra.mxu0 %v5865
    %v5944 = vpop.f32.mrf.mxu0
    %v5945 = vadd.f32 0.0, %v5944
    %v5946 = vpop.f32.mrf.mxu0
    %5947 = vmatprep.mubr.f32.mxu0 0.0
    %5948 = vmatmul.mubr.f32.gmra.mxu0 %v5868
    %v5949 = vpop.f32.mrf.mxu0
    %v5950 = vadd.f32 0.0, %v5949
    %v5951 = vpop.f32.mrf.mxu0
    %5952 = vmatprep.mubr.f32.mxu0 0.0
    %5953 = vmatmul.mubr.f32.gmra.mxu0 %v5871
    %v5954 = vpop.f32.mrf.mxu0
    %v5955 = vadd.f32 0.0, %v5954
    %v5956 = vpop.f32.mrf.mxu0
    %5957 = vdwg.mxu0
    %5958 = vst.msk [vmem:[#allocation2] sm:$0xff] %vm211, %v5940
    %5959 = vst.msk [vmem:[#allocation2 + $0x8] sm:$0xff] %vm211, %v5945
    %5960 = vst.msk [vmem:[#allocation2 + $0x10] sm:$0xff] %vm211, %v5950
    %5961 = vst.msk [vmem:[#allocation2 + $0x18] sm:$0xff] %vm211, %v5955
    %5962 = vrot.lane.b32.xlu0 %v5642, 120
    %v5963 = vpop.permute.xlu0 %5962
    %5964 = vrot.lane.b32.xlu0 %v5647, 120
    %v5965 = vpop.permute.xlu0 %5964
    %5966 = vrot.lane.b32.xlu0 %v5652, 120
    %v5967 = vpop.permute.xlu0 %5966
    %5968 = vrot.lane.b32.xlu0 %v5657, 120
    %v5969 = vpop.permute.xlu0 %5968
    %5970 = vrot.lane.b32.xlu0 %v5662, 88
    %v5971 = vpop.permute.xlu0 %5970
    %5972 = vrot.lane.b32.xlu0 %v5667, 88
    %v5973 = vpop.permute.xlu0 %5972
    %5974 = vrot.lane.b32.xlu0 %v5672, 88
    %v5975 = vpop.permute.xlu0 %5974
    %5976 = vrot.lane.b32.xlu0 %v5677, 88
    %v5977 = vpop.permute.xlu0 %5976
    %v5978 = vsel %vm211, %v5963, 0
    %v5980 = vsel %vm211, %v5965, 0
    %v5982 = vsel %vm211, %v5967, 0
    %v5984 = vsel %vm211, %v5969, 0
    %v5986 = vsel %vm211, %v5971, 0
    %v5988 = vsel %vm211, %v5973, 0
    %v5990 = vsel %vm211, %v5975, 0
    %v5992 = vsel %vm211, %v5977, 0
    %5994 = vmatprep.subr.mxu0 0.0
    %5995 = vmatpush1.xpose.msra.mxu0 0.0
    %5996 = vmatprep.subr.mxu0 0.0
    %5997 = vmatpush1.xpose.msra.mxu0 0.0
    %5998 = vmatprep.subr.mxu0 0.0
    %5999 = vmatpush1.xpose.msra.mxu0 0.0
    %6000 = vmatprep.subr.mxu0 0.0
    %6001 = vmatpush1.xpose.msra.mxu0 0.0
    %6002 = vmatprep.subr.mxu0 0.0
    %6003 = vmatpush1.xpose.msra.mxu0 0.0
    %6004 = vmatprep.subr.mxu0 0.0
    %6005 = vmatpush1.xpose.msra.mxu0 0.0
    %6006 = vmatprep.subr.mxu0 0.0
    %6007 = vmatpush1.xpose.msra.mxu0 0.0
    %6008 = vmatprep.subr.mxu0 0.0
    %6009 = vmatpush1.xpose.msra.mxu0 0.0
    %6010 = vmatprep.subr.mxu0 0.0
    %6011 = vmatpush1.xpose.msra.mxu0 0.0
    %6012 = vmatprep.subr.mxu0 0.0
    %6013 = vmatpush1.xpose.msra.mxu0 0.0
    %6014 = vmatprep.subr.mxu0 0.0
    %6015 = vmatpush1.xpose.msra.mxu0 0.0
    %6016 = vmatprep.subr.mxu0 0.0
    %6017 = vmatpush1.xpose.msra.mxu0 0.0
    %6018 = vmatprep.subr.mxu0 0.0
    %6019 = vmatpush1.xpose.msra.mxu0 %v5992
    %6020 = vmatprep.subr.mxu0 0.0
    %6021 = vmatpush1.xpose.msra.mxu0 %v5990
    %6022 = vmatprep.subr.mxu0 0.0
    %6023 = vmatpush1.xpose.msra.mxu0 %v5988
    %6024 = vmatprep.subr.mxu0 0.0
    %6025 = vmatpush1.xpose.msra.mxu0 %v5986
    %6026 = vmatprep.subr.mxu0 0.0
    %6027 = vmatpush2.xpose.msra.mxu0 0.0
    %6028 = vmatprep.subr.mxu0 0.0
    %6029 = vmatpush2.xpose.msra.mxu0 0.0
    %6030 = vmatprep.subr.mxu0 0.0
    %6031 = vmatpush2.xpose.msra.mxu0 0.0
    %6032 = vmatprep.subr.mxu0 0.0
    %6033 = vmatpush2.xpose.msra.mxu0 0.0
    %6034 = vmatprep.subr.mxu0 0.0
    %6035 = vmatpush2.xpose.msra.mxu0 0.0
    %6036 = vmatprep.subr.mxu0 0.0
    %6037 = vmatpush2.xpose.msra.mxu0 0.0
    %6038 = vmatprep.subr.mxu0 0.0
    %6039 = vmatpush2.xpose.msra.mxu0 0.0
    %6040 = vmatprep.subr.mxu0 0.0
    %6041 = vmatpush2.xpose.msra.mxu0 0.0
    %6042 = vmatprep.subr.mxu0 0.0
    %6043 = vmatpush2.xpose.msra.mxu0 0.0
    %6044 = vmatprep.subr.mxu0 0.0
    %6045 = vmatpush2.xpose.msra.mxu0 0.0
    %6046 = vmatprep.subr.mxu0 0.0
    %6047 = vmatpush2.xpose.msra.mxu0 0.0
    %6048 = vmatprep.subr.mxu0 0.0
    %6049 = vmatpush2.xpose.msra.mxu0 0.0
    %6050 = vmatprep.subr.mxu0 0.0
    %6051 = vmatpush2.xpose.msra.mxu0 0.0
    %6052 = vmatprep.subr.mxu0 0.0
    %6053 = vmatpush2.xpose.msra.mxu0 0.0
    %6054 = vmatprep.subr.mxu0 0.0
    %6055 = vmatpush2.xpose.msra.mxu0 0.0
    %6056 = vmatprep.subr.mxu0 0.0
    %6057 = vmatpush2.xpose.msra.mxu0 0.0
    %6058 = vmatprep.mubr.f32.mxu0 0.0
    %6059 = vmatmul.mubr.f32.gmra.mxu0 %v5978
    %v6060 = vpop.f32.mrf.mxu0
    %v6061 = vadd.f32 0.0, %v6060
    %v6062 = vpop.f32.mrf.mxu0
    %6063 = vmatprep.mubr.f32.mxu0 0.0
    %6064 = vmatmul.mubr.f32.gmra.mxu0 %v5980
    %v6065 = vpop.f32.mrf.mxu0
    %v6066 = vadd.f32 0.0, %v6065
    %v6067 = vpop.f32.mrf.mxu0
    %6068 = vmatprep.mubr.f32.mxu0 0.0
    %6069 = vmatmul.mubr.f32.gmra.mxu0 %v5982
    %v6070 = vpop.f32.mrf.mxu0
    %v6071 = vadd.f32 0.0, %v6070
    %v6072 = vpop.f32.mrf.mxu0
    %6073 = vmatprep.mubr.f32.mxu0 0.0
    %6074 = vmatmul.mubr.f32.gmra.mxu0 %v5984
    %v6075 = vpop.f32.mrf.mxu0
    %v6076 = vadd.f32 0.0, %v6075
    %v6077 = vpop.f32.mrf.mxu0
    %6078 = vdwg.mxu0
    %v6079 = vmul.f32 %v6061, 0.35355338
    %v6080 = vmul.f32 %v6066, 0.35355338
    %v6081 = vmul.f32 %v6071, 0.35355338
    %v6082 = vmul.f32 %v6076, 0.35355338
    %v6083 = vadd.f32 %v6079, %v43
    %v6084 = vadd.f32 %v6080, %v44
    %v6085 = vadd.f32 %v6081, %v45
    %v6086 = vadd.f32 %v6082, %v46
    %v6087 = vsel %vm330, %v6083, -inf
    %6088 = vmax.xlane.f32.xlu0 %v6087
    %v6089 = vpop.xlane.xlu0 %6088
    %v6090 = vsel %vm330, %v6084, -inf
    %6091 = vmax.xlane.f32.xlu0 %v6090
    %v6092 = vpop.xlane.xlu0 %6091
    %v6093 = vsel %vm330, %v6085, -inf
    %6094 = vmax.xlane.f32.xlu0 %v6093
    %v6095 = vpop.xlane.xlu0 %6094
    %v6096 = vsel %vm330, %v6086, -inf
    %6097 = vmax.xlane.f32.xlu0 %v6096
    %v6098 = vpop.xlane.xlu0 %6097
    %v6099 = vsub.f32 %v6083, %v6089
    %v6100 = vsub.f32 %v6084, %v6092
    %v6101 = vsub.f32 %v6085, %v6095
    %v6102 = vsub.f32 %v6086, %v6098
    %v6103 = vmul.f32 %v6099, 1.442695
    %v6104 = vpow.pop %v6103
    %v6105 = vmul.f32 %v6100, 1.442695
    %v6106 = vpow.pop %v6105
    %v6107 = vmul.f32 %v6101, 1.442695
    %v6108 = vpow.pop %v6107
    %v6109 = vmul.f32 %v6102, 1.442695
    %v6110 = vpow.pop %v6109
    %v6111 = vsel %vm330, %v6104, 0.0
    %6112 = vadd.xlane.f32.xlu0 %v6111
    %v6113 = vpop.xlane.xlu0 %6112
    %v6114 = vsel %vm330, %v6106, 0.0
    %6115 = vadd.xlane.f32.xlu0 %v6114
    %v6116 = vpop.xlane.xlu0 %6115
    %v6117 = vsel %vm330, %v6108, 0.0
    %6118 = vadd.xlane.f32.xlu0 %v6117
    %v6119 = vpop.xlane.xlu0 %6118
    %v6120 = vsel %vm330, %v6110, 0.0
    %6121 = vadd.xlane.f32.xlu0 %v6120
    %v6122 = vpop.xlane.xlu0 %6121
    %v6123 = vrcp.pop %v6113
    %v6124 = vrcp.pop %v6116
    %v6125 = vrcp.pop %v6119
    %v6126 = vrcp.pop %v6122
    %v6127 = vmul.f32 %v6104, %v6123
    %v6128 = vmul.f32 %v6106, %v6124
    %v6129 = vmul.f32 %v6108, %v6125
    %v6130 = vmul.f32 %v6110, %v6126
    %6131 = vrot.lane.b32.xlu0 %v5662, 56
    %v6132 = vpop.permute.xlu0 %6131
    %6133 = vrot.lane.b32.xlu0 %v5667, 56
    %v6134 = vpop.permute.xlu0 %6133
    %6135 = vrot.lane.b32.xlu0 %v5672, 56
    %v6136 = vpop.permute.xlu0 %6135
    %6137 = vrot.lane.b32.xlu0 %v5677, 56
    %v6138 = vpop.permute.xlu0 %6137
    %v6144 = vsel %vm330, %v6127, 0
    %v6147 = vsel %vm330, %v6128, 0
    %v6150 = vsel %vm330, %v6129, 0
    %v6153 = vsel %vm330, %v6130, 0
    %6155 = vmatprep.subr.mxu0 0.0
    %6156 = vmatpush1.msra.mxu0 0.0
    %6157 = vmatprep.subr.mxu0 0.0
    %6158 = vmatpush1.msra.mxu0 0.0
    %6159 = vmatprep.subr.mxu0 0.0
    %6160 = vmatpush1.msra.mxu0 0.0
    %6161 = vmatprep.subr.mxu0 0.0
    %6162 = vmatpush1.msra.mxu0 0.0
    %6163 = vmatprep.subr.mxu0 0.0
    %6164 = vmatpush1.msra.mxu0 0.0
    %6165 = vmatprep.subr.mxu0 0.0
    %6166 = vmatpush1.msra.mxu0 0.0
    %6167 = vmatprep.subr.mxu0 0.0
    %6168 = vmatpush1.msra.mxu0 0.0
    %6169 = vmatprep.subr.mxu0 0.0
    %6170 = vmatpush1.msra.mxu0 0.0
    %6171 = vmatprep.subr.mxu0 0.0
    %6172 = vmatpush1.msra.mxu0 0.0
    %6173 = vmatprep.subr.mxu0 0.0
    %6174 = vmatpush1.msra.mxu0 0.0
    %6175 = vmatprep.subr.mxu0 0.0
    %6176 = vmatpush1.msra.mxu0 0.0
    %6177 = vmatprep.subr.mxu0 0.0
    %6178 = vmatpush1.msra.mxu0 0.0
    %6179 = vmatprep.subr.mxu0 0.0
    %6180 = vmatpush1.msra.mxu0 %v6138
    %6181 = vmatprep.subr.mxu0 0.0
    %6182 = vmatpush1.msra.mxu0 %v6136
    %6183 = vmatprep.subr.mxu0 0.0
    %6184 = vmatpush1.msra.mxu0 %v6134
    %6185 = vmatprep.subr.mxu0 0.0
    %6186 = vmatpush1.msra.mxu0 %v6132
    %6187 = vmatprep.subr.mxu0 0.0
    %6188 = vmatpush2.msra.mxu0 0.0
    %6189 = vmatprep.subr.mxu0 0.0
    %6190 = vmatpush2.msra.mxu0 0.0
    %6191 = vmatprep.subr.mxu0 0.0
    %6192 = vmatpush2.msra.mxu0 0.0
    %6193 = vmatprep.subr.mxu0 0.0
    %6194 = vmatpush2.msra.mxu0 0.0
    %6195 = vmatprep.subr.mxu0 0.0
    %6196 = vmatpush2.msra.mxu0 0.0
    %6197 = vmatprep.subr.mxu0 0.0
    %6198 = vmatpush2.msra.mxu0 0.0
    %6199 = vmatprep.subr.mxu0 0.0
    %6200 = vmatpush2.msra.mxu0 0.0
    %6201 = vmatprep.subr.mxu0 0.0
    %6202 = vmatpush2.msra.mxu0 0.0
    %6203 = vmatprep.subr.mxu0 0.0
    %6204 = vmatpush2.msra.mxu0 0.0
    %6205 = vmatprep.subr.mxu0 0.0
    %6206 = vmatpush2.msra.mxu0 0.0
    %6207 = vmatprep.subr.mxu0 0.0
    %6208 = vmatpush2.msra.mxu0 0.0
    %6209 = vmatprep.subr.mxu0 0.0
    %6210 = vmatpush2.msra.mxu0 0.0
    %6211 = vmatprep.subr.mxu0 0.0
    %6212 = vmatpush2.msra.mxu0 0.0
    %6213 = vmatprep.subr.mxu0 0.0
    %6214 = vmatpush2.msra.mxu0 0.0
    %6215 = vmatprep.subr.mxu0 0.0
    %6216 = vmatpush2.msra.mxu0 0.0
    %6217 = vmatprep.subr.mxu0 0.0
    %6218 = vmatpush2.msra.mxu0 0.0
    %6219 = vmatprep.mubr.f32.mxu0 0.0
    %6220 = vmatmul.mubr.f32.gmra.mxu0 %v6144
    %v6221 = vpop.f32.mrf.mxu0
    %v6222 = vadd.f32 0.0, %v6221
    %v6223 = vpop.f32.mrf.mxu0
    %6224 = vmatprep.mubr.f32.mxu0 0.0
    %6225 = vmatmul.mubr.f32.gmra.mxu0 %v6147
    %v6226 = vpop.f32.mrf.mxu0
    %v6227 = vadd.f32 0.0, %v6226
    %v6228 = vpop.f32.mrf.mxu0
    %6229 = vmatprep.mubr.f32.mxu0 0.0
    %6230 = vmatmul.mubr.f32.gmra.mxu0 %v6150
    %v6231 = vpop.f32.mrf.mxu0
    %v6232 = vadd.f32 0.0, %v6231
    %v6233 = vpop.f32.mrf.mxu0
    %6234 = vmatprep.mubr.f32.mxu0 0.0
    %6235 = vmatmul.mubr.f32.gmra.mxu0 %v6153
    %v6236 = vpop.f32.mrf.mxu0
    %v6237 = vadd.f32 0.0, %v6236
    %v6238 = vpop.f32.mrf.mxu0
    %6239 = vdwg.mxu0
    %6244 = vrot.lane.b32.xlu0 %v6222, 8
    %v6245 = vpop.permute.xlu0 %6244
    %6246 = vrot.lane.b32.xlu0 %v6227, 8
    %v6247 = vpop.permute.xlu0 %6246
    %6248 = vrot.lane.b32.xlu0 %v6232, 8
    %v6249 = vpop.permute.xlu0 %6248
    %6250 = vrot.lane.b32.xlu0 %v6237, 8
    %v6251 = vpop.permute.xlu0 %6250
    %6256 = vst.msk [vmem:[#allocation2] sm:$0xff] %vm1000, %v6245
    %6257 = vst.msk [vmem:[#allocation2 + $0x8] sm:$0xff] %vm1000, %v6247
    %6258 = vst.msk [vmem:[#allocation2 + $0x10] sm:$0xff] %vm1000, %v6249
    %6259 = vst.msk [vmem:[#allocation2 + $0x18] sm:$0xff] %vm1000, %v6251
    %6260 = vrot.lane.b32.xlu0 %v5642, 112
    %v6261 = vpop.permute.xlu0 %6260
    %6262 = vrot.lane.b32.xlu0 %v5647, 112
    %v6263 = vpop.permute.xlu0 %6262
    %6264 = vrot.lane.b32.xlu0 %v5652, 112
    %v6265 = vpop.permute.xlu0 %6264
    %6266 = vrot.lane.b32.xlu0 %v5657, 112
    %v6267 = vpop.permute.xlu0 %6266
    %6268 = vrot.lane.b32.xlu0 %v5662, 80
    %v6269 = vpop.permute.xlu0 %6268
    %6270 = vrot.lane.b32.xlu0 %v5667, 80
    %v6271 = vpop.permute.xlu0 %6270
    %6272 = vrot.lane.b32.xlu0 %v5672, 80
    %v6273 = vpop.permute.xlu0 %6272
    %6274 = vrot.lane.b32.xlu0 %v5677, 80
    %v6275 = vpop.permute.xlu0 %6274
    %v6276 = vsel %vm211, %v6261, 0
    %v6278 = vsel %vm211, %v6263, 0
    %v6280 = vsel %vm211, %v6265, 0
    %v6282 = vsel %vm211, %v6267, 0
    %v6284 = vsel %vm211, %v6269, 0
    %v6286 = vsel %vm211, %v6271, 0
    %v6288 = vsel %vm211, %v6273, 0
    %v6290 = vsel %vm211, %v6275, 0
    %6292 = vmatprep.subr.mxu0 0.0
    %6293 = vmatpush1.xpose.msra.mxu0 0.0
    %6294 = vmatprep.subr.mxu0 0.0
    %6295 = vmatpush1.xpose.msra.mxu0 0.0
    %6296 = vmatprep.subr.mxu0 0.0
    %6297 = vmatpush1.xpose.msra.mxu0 0.0
    %6298 = vmatprep.subr.mxu0 0.0
    %6299 = vmatpush1.xpose.msra.mxu0 0.0
    %6300 = vmatprep.subr.mxu0 0.0
    %6301 = vmatpush1.xpose.msra.mxu0 0.0
    %6302 = vmatprep.subr.mxu0 0.0
    %6303 = vmatpush1.xpose.msra.mxu0 0.0
    %6304 = vmatprep.subr.mxu0 0.0
    %6305 = vmatpush1.xpose.msra.mxu0 0.0
    %6306 = vmatprep.subr.mxu0 0.0
    %6307 = vmatpush1.xpose.msra.mxu0 0.0
    %6308 = vmatprep.subr.mxu0 0.0
    %6309 = vmatpush1.xpose.msra.mxu0 0.0
    %6310 = vmatprep.subr.mxu0 0.0
    %6311 = vmatpush1.xpose.msra.mxu0 0.0
    %6312 = vmatprep.subr.mxu0 0.0
    %6313 = vmatpush1.xpose.msra.mxu0 0.0
    %6314 = vmatprep.subr.mxu0 0.0
    %6315 = vmatpush1.xpose.msra.mxu0 0.0
    %6316 = vmatprep.subr.mxu0 0.0
    %6317 = vmatpush1.xpose.msra.mxu0 %v6290
    %6318 = vmatprep.subr.mxu0 0.0
    %6319 = vmatpush1.xpose.msra.mxu0 %v6288
    %6320 = vmatprep.subr.mxu0 0.0
    %6321 = vmatpush1.xpose.msra.mxu0 %v6286
    %6322 = vmatprep.subr.mxu0 0.0
    %6323 = vmatpush1.xpose.msra.mxu0 %v6284
    %6324 = vmatprep.subr.mxu0 0.0
    %6325 = vmatpush2.xpose.msra.mxu0 0.0
    %6326 = vmatprep.subr.mxu0 0.0
    %6327 = vmatpush2.xpose.msra.mxu0 0.0
    %6328 = vmatprep.subr.mxu0 0.0
    %6329 = vmatpush2.xpose.msra.mxu0 0.0
    %6330 = vmatprep.subr.mxu0 0.0
    %6331 = vmatpush2.xpose.msra.mxu0 0.0
    %6332 = vmatprep.subr.mxu0 0.0
    %6333 = vmatpush2.xpose.msra.mxu0 0.0
    %6334 = vmatprep.subr.mxu0 0.0
    %6335 = vmatpush2.xpose.msra.mxu0 0.0
    %6336 = vmatprep.subr.mxu0 0.0
    %6337 = vmatpush2.xpose.msra.mxu0 0.0
    %6338 = vmatprep.subr.mxu0 0.0
    %6339 = vmatpush2.xpose.msra.mxu0 0.0
    %6340 = vmatprep.subr.mxu0 0.0
    %6341 = vmatpush2.xpose.msra.mxu0 0.0
    %6342 = vmatprep.subr.mxu0 0.0
    %6343 = vmatpush2.xpose.msra.mxu0 0.0
    %6344 = vmatprep.subr.mxu0 0.0
    %6345 = vmatpush2.xpose.msra.mxu0 0.0
    %6346 = vmatprep.subr.mxu0 0.0
    %6347 = vmatpush2.xpose.msra.mxu0 0.0
    %6348 = vmatprep.subr.mxu0 0.0
    %6349 = vmatpush2.xpose.msra.mxu0 0.0
    %6350 = vmatprep.subr.mxu0 0.0
    %6351 = vmatpush2.xpose.msra.mxu0 0.0
    %6352 = vmatprep.subr.mxu0 0.0
    %6353 = vmatpush2.xpose.msra.mxu0 0.0
    %6354 = vmatprep.subr.mxu0 0.0
    %6355 = vmatpush2.xpose.msra.mxu0 0.0
    %6356 = vmatprep.mubr.f32.mxu0 0.0
    %6357 = vmatmul.mubr.f32.gmra.mxu0 %v6276
    %v6358 = vpop.f32.mrf.mxu0
    %v6359 = vadd.f32 0.0, %v6358
    %v6360 = vpop.f32.mrf.mxu0
    %6361 = vmatprep.mubr.f32.mxu0 0.0
    %6362 = vmatmul.mubr.f32.gmra.mxu0 %v6278
    %v6363 = vpop.f32.mrf.mxu0
    %v6364 = vadd.f32 0.0, %v6363
    %v6365 = vpop.f32.mrf.mxu0
    %6366 = vmatprep.mubr.f32.mxu0 0.0
    %6367 = vmatmul.mubr.f32.gmra.mxu0 %v6280
    %v6368 = vpop.f32.mrf.mxu0
    %v6369 = vadd.f32 0.0, %v6368
    %v6370 = vpop.f32.mrf.mxu0
    %6371 = vmatprep.mubr.f32.mxu0 0.0
    %6372 = vmatmul.mubr.f32.gmra.mxu0 %v6282
    %v6373 = vpop.f32.mrf.mxu0
    %v6374 = vadd.f32 0.0, %v6373
    %v6375 = vpop.f32.mrf.mxu0
    %6376 = vdwg.mxu0
    %v6377 = vmul.f32 %v6359, 0.35355338
    %v6378 = vmul.f32 %v6364, 0.35355338
    %v6379 = vmul.f32 %v6369, 0.35355338
    %v6380 = vmul.f32 %v6374, 0.35355338
    %v6381 = vadd.f32 %v6377, %v43
    %v6382 = vadd.f32 %v6378, %v44
    %v6383 = vadd.f32 %v6379, %v45
    %v6384 = vadd.f32 %v6380, %v46
    %v6385 = vsel %vm330, %v6381, -inf
    %6386 = vmax.xlane.f32.xlu0 %v6385
    %v6387 = vpop.xlane.xlu0 %6386
    %v6388 = vsel %vm330, %v6382, -inf
    %6389 = vmax.xlane.f32.xlu0 %v6388
    %v6390 = vpop.xlane.xlu0 %6389
    %v6391 = vsel %vm330, %v6383, -inf
    %6392 = vmax.xlane.f32.xlu0 %v6391
    %v6393 = vpop.xlane.xlu0 %6392
    %v6394 = vsel %vm330, %v6384, -inf
    %6395 = vmax.xlane.f32.xlu0 %v6394
    %v6396 = vpop.xlane.xlu0 %6395
    %v6397 = vsub.f32 %v6381, %v6387
    %v6398 = vsub.f32 %v6382, %v6390
    %v6399 = vsub.f32 %v6383, %v6393
    %v6400 = vsub.f32 %v6384, %v6396
    %v6401 = vmul.f32 %v6397, 1.442695
    %v6402 = vpow.pop %v6401
    %v6403 = vmul.f32 %v6398, 1.442695
    %v6404 = vpow.pop %v6403
    %v6405 = vmul.f32 %v6399, 1.442695
    %v6406 = vpow.pop %v6405
    %v6407 = vmul.f32 %v6400, 1.442695
    %v6408 = vpow.pop %v6407
    %v6409 = vsel %vm330, %v6402, 0.0
    %6410 = vadd.xlane.f32.xlu0 %v6409
    %v6411 = vpop.xlane.xlu0 %6410
    %v6412 = vsel %vm330, %v6404, 0.0
    %6413 = vadd.xlane.f32.xlu0 %v6412
    %v6414 = vpop.xlane.xlu0 %6413
    %v6415 = vsel %vm330, %v6406, 0.0
    %6416 = vadd.xlane.f32.xlu0 %v6415
    %v6417 = vpop.xlane.xlu0 %6416
    %v6418 = vsel %vm330, %v6408, 0.0
    %6419 = vadd.xlane.f32.xlu0 %v6418
    %v6420 = vpop.xlane.xlu0 %6419
    %v6421 = vrcp.pop %v6411
    %v6422 = vrcp.pop %v6414
    %v6423 = vrcp.pop %v6417
    %v6424 = vrcp.pop %v6420
    %v6425 = vmul.f32 %v6402, %v6421
    %v6426 = vmul.f32 %v6404, %v6422
    %v6427 = vmul.f32 %v6406, %v6423
    %v6428 = vmul.f32 %v6408, %v6424
    %6429 = vrot.lane.b32.xlu0 %v5662, 48
    %v6430 = vpop.permute.xlu0 %6429
    %6431 = vrot.lane.b32.xlu0 %v5667, 48
    %v6432 = vpop.permute.xlu0 %6431
    %6433 = vrot.lane.b32.xlu0 %v5672, 48
    %v6434 = vpop.permute.xlu0 %6433
    %6435 = vrot.lane.b32.xlu0 %v5677, 48
    %v6436 = vpop.permute.xlu0 %6435
    %v6442 = vsel %vm330, %v6425, 0
    %v6445 = vsel %vm330, %v6426, 0
    %v6448 = vsel %vm330, %v6427, 0
    %v6451 = vsel %vm330, %v6428, 0
    %6453 = vmatprep.subr.mxu0 0.0
    %6454 = vmatpush1.msra.mxu0 0.0
    %6455 = vmatprep.subr.mxu0 0.0
    %6456 = vmatpush1.msra.mxu0 0.0
    %6457 = vmatprep.subr.mxu0 0.0
    %6458 = vmatpush1.msra.mxu0 0.0
    %6459 = vmatprep.subr.mxu0 0.0
    %6460 = vmatpush1.msra.mxu0 0.0
    %6461 = vmatprep.subr.mxu0 0.0
    %6462 = vmatpush1.msra.mxu0 0.0
    %6463 = vmatprep.subr.mxu0 0.0
    %6464 = vmatpush1.msra.mxu0 0.0
    %6465 = vmatprep.subr.mxu0 0.0
    %6466 = vmatpush1.msra.mxu0 0.0
    %6467 = vmatprep.subr.mxu0 0.0
    %6468 = vmatpush1.msra.mxu0 0.0
    %6469 = vmatprep.subr.mxu0 0.0
    %6470 = vmatpush1.msra.mxu0 0.0
    %6471 = vmatprep.subr.mxu0 0.0
    %6472 = vmatpush1.msra.mxu0 0.0
    %6473 = vmatprep.subr.mxu0 0.0
    %6474 = vmatpush1.msra.mxu0 0.0
    %6475 = vmatprep.subr.mxu0 0.0
    %6476 = vmatpush1.msra.mxu0 0.0
    %6477 = vmatprep.subr.mxu0 0.0
    %6478 = vmatpush1.msra.mxu0 %v6436
    %6479 = vmatprep.subr.mxu0 0.0
    %6480 = vmatpush1.msra.mxu0 %v6434
    %6481 = vmatprep.subr.mxu0 0.0
    %6482 = vmatpush1.msra.mxu0 %v6432
    %6483 = vmatprep.subr.mxu0 0.0
    %6484 = vmatpush1.msra.mxu0 %v6430
    %6485 = vmatprep.subr.mxu0 0.0
    %6486 = vmatpush2.msra.mxu0 0.0
    %6487 = vmatprep.subr.mxu0 0.0
    %6488 = vmatpush2.msra.mxu0 0.0
    %6489 = vmatprep.subr.mxu0 0.0
    %6490 = vmatpush2.msra.mxu0 0.0
    %6491 = vmatprep.subr.mxu0 0.0
    %6492 = vmatpush2.msra.mxu0 0.0
    %6493 = vmatprep.subr.mxu0 0.0
    %6494 = vmatpush2.msra.mxu0 0.0
    %6495 = vmatprep.subr.mxu0 0.0
    %6496 = vmatpush2.msra.mxu0 0.0
    %6497 = vmatprep.subr.mxu0 0.0
    %6498 = vmatpush2.msra.mxu0 0.0
    %6499 = vmatprep.subr.mxu0 0.0
    %6500 = vmatpush2.msra.mxu0 0.0
    %6501 = vmatprep.subr.mxu0 0.0
    %6502 = vmatpush2.msra.mxu0 0.0
    %6503 = vmatprep.subr.mxu0 0.0
    %6504 = vmatpush2.msra.mxu0 0.0
    %6505 = vmatprep.subr.mxu0 0.0
    %6506 = vmatpush2.msra.mxu0 0.0
    %6507 = vmatprep.subr.mxu0 0.0
    %6508 = vmatpush2.msra.mxu0 0.0
    %6509 = vmatprep.subr.mxu0 0.0
    %6510 = vmatpush2.msra.mxu0 0.0
    %6511 = vmatprep.subr.mxu0 0.0
    %6512 = vmatpush2.msra.mxu0 0.0
    %6513 = vmatprep.subr.mxu0 0.0
    %6514 = vmatpush2.msra.mxu0 0.0
    %6515 = vmatprep.subr.mxu0 0.0
    %6516 = vmatpush2.msra.mxu0 0.0
    %6517 = vmatprep.mubr.f32.mxu0 0.0
    %6518 = vmatmul.mubr.f32.gmra.mxu0 %v6442
    %v6519 = vpop.f32.mrf.mxu0
    %v6520 = vadd.f32 0.0, %v6519
    %v6521 = vpop.f32.mrf.mxu0
    %6522 = vmatprep.mubr.f32.mxu0 0.0
    %6523 = vmatmul.mubr.f32.gmra.mxu0 %v6445
    %v6524 = vpop.f32.mrf.mxu0
    %v6525 = vadd.f32 0.0, %v6524
    %v6526 = vpop.f32.mrf.mxu0
    %6527 = vmatprep.mubr.f32.mxu0 0.0
    %6528 = vmatmul.mubr.f32.gmra.mxu0 %v6448
    %v6529 = vpop.f32.mrf.mxu0
    %v6530 = vadd.f32 0.0, %v6529
    %v6531 = vpop.f32.mrf.mxu0
    %6532 = vmatprep.mubr.f32.mxu0 0.0
    %6533 = vmatmul.mubr.f32.gmra.mxu0 %v6451
    %v6534 = vpop.f32.mrf.mxu0
    %v6535 = vadd.f32 0.0, %v6534
    %v6536 = vpop.f32.mrf.mxu0
    %6537 = vdwg.mxu0
    %6542 = vrot.lane.b32.xlu0 %v6520, 16
    %v6543 = vpop.permute.xlu0 %6542
    %6544 = vrot.lane.b32.xlu0 %v6525, 16
    %v6545 = vpop.permute.xlu0 %6544
    %6546 = vrot.lane.b32.xlu0 %v6530, 16
    %v6547 = vpop.permute.xlu0 %6546
    %6548 = vrot.lane.b32.xlu0 %v6535, 16
    %v6549 = vpop.permute.xlu0 %6548
    %6554 = vst.msk [vmem:[#allocation2] sm:$0xff] %vm1299, %v6543
    %6555 = vst.msk [vmem:[#allocation2 + $0x8] sm:$0xff] %vm1299, %v6545
    %6556 = vst.msk [vmem:[#allocation2 + $0x10] sm:$0xff] %vm1299, %v6547
    %6557 = vst.msk [vmem:[#allocation2 + $0x18] sm:$0xff] %vm1299, %v6549
    %6558 = vrot.lane.b32.xlu0 %v5642, 104
    %v6559 = vpop.permute.xlu0 %6558
    %6560 = vrot.lane.b32.xlu0 %v5647, 104
    %v6561 = vpop.permute.xlu0 %6560
    %6562 = vrot.lane.b32.xlu0 %v5652, 104
    %v6563 = vpop.permute.xlu0 %6562
    %6564 = vrot.lane.b32.xlu0 %v5657, 104
    %v6565 = vpop.permute.xlu0 %6564
    %6566 = vrot.lane.b32.xlu0 %v5662, 72
    %v6567 = vpop.permute.xlu0 %6566
    %6568 = vrot.lane.b32.xlu0 %v5667, 72
    %v6569 = vpop.permute.xlu0 %6568
    %6570 = vrot.lane.b32.xlu0 %v5672, 72
    %v6571 = vpop.permute.xlu0 %6570
    %6572 = vrot.lane.b32.xlu0 %v5677, 72
    %v6573 = vpop.permute.xlu0 %6572
    %v6574 = vsel %vm211, %v6559, 0
    %v6576 = vsel %vm211, %v6561, 0
    %v6578 = vsel %vm211, %v6563, 0
    %v6580 = vsel %vm211, %v6565, 0
    %v6582 = vsel %vm211, %v6567, 0
    %v6584 = vsel %vm211, %v6569, 0
    %v6586 = vsel %vm211, %v6571, 0
    %v6588 = vsel %vm211, %v6573, 0
    %6590 = vmatprep.subr.mxu0 0.0
    %6591 = vmatpush1.xpose.msra.mxu0 0.0
    %6592 = vmatprep.subr.mxu0 0.0
    %6593 = vmatpush1.xpose.msra.mxu0 0.0
    %6594 = vmatprep.subr.mxu0 0.0
    %6595 = vmatpush1.xpose.msra.mxu0 0.0
    %6596 = vmatprep.subr.mxu0 0.0
    %6597 = vmatpush1.xpose.msra.mxu0 0.0
    %6598 = vmatprep.subr.mxu0 0.0
    %6599 = vmatpush1.xpose.msra.mxu0 0.0
    %6600 = vmatprep.subr.mxu0 0.0
    %6601 = vmatpush1.xpose.msra.mxu0 0.0
    %6602 = vmatprep.subr.mxu0 0.0
    %6603 = vmatpush1.xpose.msra.mxu0 0.0
    %6604 = vmatprep.subr.mxu0 0.0
    %6605 = vmatpush1.xpose.msra.mxu0 0.0
    %6606 = vmatprep.subr.mxu0 0.0
    %6607 = vmatpush1.xpose.msra.mxu0 0.0
    %6608 = vmatprep.subr.mxu0 0.0
    %6609 = vmatpush1.xpose.msra.mxu0 0.0
    %6610 = vmatprep.subr.mxu0 0.0
    %6611 = vmatpush1.xpose.msra.mxu0 0.0
    %6612 = vmatprep.subr.mxu0 0.0
    %6613 = vmatpush1.xpose.msra.mxu0 0.0
    %6614 = vmatprep.subr.mxu0 0.0
    %6615 = vmatpush1.xpose.msra.mxu0 %v6588
    %6616 = vmatprep.subr.mxu0 0.0
    %6617 = vmatpush1.xpose.msra.mxu0 %v6586
    %6618 = vmatprep.subr.mxu0 0.0
    %6619 = vmatpush1.xpose.msra.mxu0 %v6584
    %6620 = vmatprep.subr.mxu0 0.0
    %6621 = vmatpush1.xpose.msra.mxu0 %v6582
    %6622 = vmatprep.subr.mxu0 0.0
    %6623 = vmatpush2.xpose.msra.mxu0 0.0
    %6624 = vmatprep.subr.mxu0 0.0
    %6625 = vmatpush2.xpose.msra.mxu0 0.0
    %6626 = vmatprep.subr.mxu0 0.0
    %6627 = vmatpush2.xpose.msra.mxu0 0.0
    %6628 = vmatprep.subr.mxu0 0.0
    %6629 = vmatpush2.xpose.msra.mxu0 0.0
    %6630 = vmatprep.subr.mxu0 0.0
    %6631 = vmatpush2.xpose.msra.mxu0 0.0
    %6632 = vmatprep.subr.mxu0 0.0
    %6633 = vmatpush2.xpose.msra.mxu0 0.0
    %6634 = vmatprep.subr.mxu0 0.0
    %6635 = vmatpush2.xpose.msra.mxu0 0.0
    %6636 = vmatprep.subr.mxu0 0.0
    %6637 = vmatpush2.xpose.msra.mxu0 0.0
    %6638 = vmatprep.subr.mxu0 0.0
    %6639 = vmatpush2.xpose.msra.mxu0 0.0
    %6640 = vmatprep.subr.mxu0 0.0
    %6641 = vmatpush2.xpose.msra.mxu0 0.0
    %6642 = vmatprep.subr.mxu0 0.0
    %6643 = vmatpush2.xpose.msra.mxu0 0.0
    %6644 = vmatprep.subr.mxu0 0.0
    %6645 = vmatpush2.xpose.msra.mxu0 0.0
    %6646 = vmatprep.subr.mxu0 0.0
    %6647 = vmatpush2.xpose.msra.mxu0 0.0
    %6648 = vmatprep.subr.mxu0 0.0
    %6649 = vmatpush2.xpose.msra.mxu0 0.0
    %6650 = vmatprep.subr.mxu0 0.0
    %6651 = vmatpush2.xpose.msra.mxu0 0.0
    %6652 = vmatprep.subr.mxu0 0.0
    %6653 = vmatpush2.xpose.msra.mxu0 0.0
    %6654 = vmatprep.mubr.f32.mxu0 0.0
    %6655 = vmatmul.mubr.f32.gmra.mxu0 %v6574
    %v6656 = vpop.f32.mrf.mxu0
    %v6657 = vadd.f32 0.0, %v6656
    %v6658 = vpop.f32.mrf.mxu0
    %6659 = vmatprep.mubr.f32.mxu0 0.0
    %6660 = vmatmul.mubr.f32.gmra.mxu0 %v6576
    %v6661 = vpop.f32.mrf.mxu0
    %v6662 = vadd.f32 0.0, %v6661
    %v6663 = vpop.f32.mrf.mxu0
    %6664 = vmatprep.mubr.f32.mxu0 0.0
    %6665 = vmatmul.mubr.f32.gmra.mxu0 %v6578
    %v6666 = vpop.f32.mrf.mxu0
    %v6667 = vadd.f32 0.0, %v6666
    %v6668 = vpop.f32.mrf.mxu0
    %6669 = vmatprep.mubr.f32.mxu0 0.0
    %6670 = vmatmul.mubr.f32.gmra.mxu0 %v6580
    %v6671 = vpop.f32.mrf.mxu0
    %v6672 = vadd.f32 0.0, %v6671
    %v6673 = vpop.f32.mrf.mxu0
    %6674 = vdwg.mxu0
    %v6675 = vmul.f32 %v6657, 0.35355338
    %v6676 = vmul.f32 %v6662, 0.35355338
    %v6677 = vmul.f32 %v6667, 0.35355338
    %v6678 = vmul.f32 %v6672, 0.35355338
    %v6679 = vadd.f32 %v6675, %v43
    %v6680 = vadd.f32 %v6676, %v44
    %v6681 = vadd.f32 %v6677, %v45
    %v6682 = vadd.f32 %v6678, %v46
    %v6683 = vsel %vm330, %v6679, -inf
    %6684 = vmax.xlane.f32.xlu0 %v6683
    %v6685 = vpop.xlane.xlu0 %6684
    %v6686 = vsel %vm330, %v6680, -inf
    %6687 = vmax.xlane.f32.xlu0 %v6686
    %v6688 = vpop.xlane.xlu0 %6687
    %v6689 = vsel %vm330, %v6681, -inf
    %6690 = vmax.xlane.f32.xlu0 %v6689
    %v6691 = vpop.xlane.xlu0 %6690
    %v6692 = vsel %vm330, %v6682, -inf
    %6693 = vmax.xlane.f32.xlu0 %v6692
    %v6694 = vpop.xlane.xlu0 %6693
    %v6695 = vsub.f32 %v6679, %v6685
    %v6696 = vsub.f32 %v6680, %v6688
    %v6697 = vsub.f32 %v6681, %v6691
    %v6698 = vsub.f32 %v6682, %v6694
    %v6699 = vmul.f32 %v6695, 1.442695
    %v6700 = vpow.pop %v6699
    %v6701 = vmul.f32 %v6696, 1.442695
    %v6702 = vpow.pop %v6701
    %v6703 = vmul.f32 %v6697, 1.442695
    %v6704 = vpow.pop %v6703
    %v6705 = vmul.f32 %v6698, 1.442695
    %v6706 = vpow.pop %v6705
    %v6707 = vsel %vm330, %v6700, 0.0
    %6708 = vadd.xlane.f32.xlu0 %v6707
    %v6709 = vpop.xlane.xlu0 %6708
    %v6710 = vsel %vm330, %v6702, 0.0
    %6711 = vadd.xlane.f32.xlu0 %v6710
    %v6712 = vpop.xlane.xlu0 %6711
    %v6713 = vsel %vm330, %v6704, 0.0
    %6714 = vadd.xlane.f32.xlu0 %v6713
    %v6715 = vpop.xlane.xlu0 %6714
    %v6716 = vsel %vm330, %v6706, 0.0
    %6717 = vadd.xlane.f32.xlu0 %v6716
    %v6718 = vpop.xlane.xlu0 %6717
    %v6719 = vrcp.pop %v6709
    %v6720 = vrcp.pop %v6712
    %v6721 = vrcp.pop %v6715
    %v6722 = vrcp.pop %v6718
    %v6723 = vmul.f32 %v6700, %v6719
    %v6724 = vmul.f32 %v6702, %v6720
    %v6725 = vmul.f32 %v6704, %v6721
    %v6726 = vmul.f32 %v6706, %v6722
    %6727 = vrot.lane.b32.xlu0 %v5662, 40
    %v6728 = vpop.permute.xlu0 %6727
    %6729 = vrot.lane.b32.xlu0 %v5667, 40
    %v6730 = vpop.permute.xlu0 %6729
    %6731 = vrot.lane.b32.xlu0 %v5672, 40
    %v6732 = vpop.permute.xlu0 %6731
    %6733 = vrot.lane.b32.xlu0 %v5677, 40
    %v6734 = vpop.permute.xlu0 %6733
    %v6740 = vsel %vm330, %v6723, 0
    %v6743 = vsel %vm330, %v6724, 0
    %v6746 = vsel %vm330, %v6725, 0
    %v6749 = vsel %vm330, %v6726, 0
    %6751 = vmatprep.subr.mxu0 0.0
    %6752 = vmatpush1.msra.mxu0 0.0
    %6753 = vmatprep.subr.mxu0 0.0
    %6754 = vmatpush1.msra.mxu0 0.0
    %6755 = vmatprep.subr.mxu0 0.0
    %6756 = vmatpush1.msra.mxu0 0.0
    %6757 = vmatprep.subr.mxu0 0.0
    %6758 = vmatpush1.msra.mxu0 0.0
    %6759 = vmatprep.subr.mxu0 0.0
    %6760 = vmatpush1.msra.mxu0 0.0
    %6761 = vmatprep.subr.mxu0 0.0
    %6762 = vmatpush1.msra.mxu0 0.0
    %6763 = vmatprep.subr.mxu0 0.0
    %6764 = vmatpush1.msra.mxu0 0.0
    %6765 = vmatprep.subr.mxu0 0.0
    %6766 = vmatpush1.msra.mxu0 0.0
    %6767 = vmatprep.subr.mxu0 0.0
    %6768 = vmatpush1.msra.mxu0 0.0
    %6769 = vmatprep.subr.mxu0 0.0
    %6770 = vmatpush1.msra.mxu0 0.0
    %6771 = vmatprep.subr.mxu0 0.0
    %6772 = vmatpush1.msra.mxu0 0.0
    %6773 = vmatprep.subr.mxu0 0.0
    %6774 = vmatpush1.msra.mxu0 0.0
    %6775 = vmatprep.subr.mxu0 0.0
    %6776 = vmatpush1.msra.mxu0 %v6734
    %6777 = vmatprep.subr.mxu0 0.0
    %6778 = vmatpush1.msra.mxu0 %v6732
    %6779 = vmatprep.subr.mxu0 0.0
    %6780 = vmatpush1.msra.mxu0 %v6730
    %6781 = vmatprep.subr.mxu0 0.0
    %6782 = vmatpush1.msra.mxu0 %v6728
    %6783 = vmatprep.subr.mxu0 0.0
    %6784 = vmatpush2.msra.mxu0 0.0
    %6785 = vmatprep.subr.mxu0 0.0
    %6786 = vmatpush2.msra.mxu0 0.0
    %6787 = vmatprep.subr.mxu0 0.0
    %6788 = vmatpush2.msra.mxu0 0.0
    %6789 = vmatprep.subr.mxu0 0.0
    %6790 = vmatpush2.msra.mxu0 0.0
    %6791 = vmatprep.subr.mxu0 0.0
    %6792 = vmatpush2.msra.mxu0 0.0
    %6793 = vmatprep.subr.mxu0 0.0
    %6794 = vmatpush2.msra.mxu0 0.0
    %6795 = vmatprep.subr.mxu0 0.0
    %6796 = vmatpush2.msra.mxu0 0.0
    %6797 = vmatprep.subr.mxu0 0.0
    %6798 = vmatpush2.msra.mxu0 0.0
    %6799 = vmatprep.subr.mxu0 0.0
    %6800 = vmatpush2.msra.mxu0 0.0
    %6801 = vmatprep.subr.mxu0 0.0
    %6802 = vmatpush2.msra.mxu0 0.0
    %6803 = vmatprep.subr.mxu0 0.0
    %6804 = vmatpush2.msra.mxu0 0.0
    %6805 = vmatprep.subr.mxu0 0.0
    %6806 = vmatpush2.msra.mxu0 0.0
    %6807 = vmatprep.subr.mxu0 0.0
    %6808 = vmatpush2.msra.mxu0 0.0
    %6809 = vmatprep.subr.mxu0 0.0
    %6810 = vmatpush2.msra.mxu0 0.0
    %6811 = vmatprep.subr.mxu0 0.0
    %6812 = vmatpush2.msra.mxu0 0.0
    %6813 = vmatprep.subr.mxu0 0.0
    %6814 = vmatpush2.msra.mxu0 0.0
    %6815 = vmatprep.mubr.f32.mxu0 0.0
    %6816 = vmatmul.mubr.f32.gmra.mxu0 %v6740
    %v6817 = vpop.f32.mrf.mxu0
    %v6818 = vadd.f32 0.0, %v6817
    %v6819 = vpop.f32.mrf.mxu0
    %6820 = vmatprep.mubr.f32.mxu0 0.0
    %6821 = vmatmul.mubr.f32.gmra.mxu0 %v6743
    %v6822 = vpop.f32.mrf.mxu0
    %v6823 = vadd.f32 0.0, %v6822
    %v6824 = vpop.f32.mrf.mxu0
    %6825 = vmatprep.mubr.f32.mxu0 0.0
    %6826 = vmatmul.mubr.f32.gmra.mxu0 %v6746
    %v6827 = vpop.f32.mrf.mxu0
    %v6828 = vadd.f32 0.0, %v6827
    %v6829 = vpop.f32.mrf.mxu0
    %6830 = vmatprep.mubr.f32.mxu0 0.0
    %6831 = vmatmul.mubr.f32.gmra.mxu0 %v6749
    %v6832 = vpop.f32.mrf.mxu0
    %v6833 = vadd.f32 0.0, %v6832
    %v6834 = vpop.f32.mrf.mxu0
    %6835 = vdwg.mxu0
    %6840 = vrot.lane.b32.xlu0 %v6818, 24
    %v6841 = vpop.permute.xlu0 %6840
    %6842 = vrot.lane.b32.xlu0 %v6823, 24
    %v6843 = vpop.permute.xlu0 %6842
    %6844 = vrot.lane.b32.xlu0 %v6828, 24
    %v6845 = vpop.permute.xlu0 %6844
    %6846 = vrot.lane.b32.xlu0 %v6833, 24
    %v6847 = vpop.permute.xlu0 %6846
    %6852 = vst.msk [vmem:[#allocation2] sm:$0xff] %vm1598, %v6841
    %6853 = vst.msk [vmem:[#allocation2 + $0x8] sm:$0xff] %vm1598, %v6843
    %6854 = vst.msk [vmem:[#allocation2 + $0x10] sm:$0xff] %vm1598, %v6845
    %6855 = vst.msk [vmem:[#allocation2 + $0x18] sm:$0xff] %vm1598, %v6847
    %v6856 = vld [vmem:[#allocation2] sm:$0xff]
    %v6857 = vld [vmem:[#allocation2 + $0x8] sm:$0xff]
    %v6858 = vld [vmem:[#allocation2 + $0x10] sm:$0xff]
    %v6859 = vld [vmem:[#allocation2 + $0x18] sm:$0xff]
    %v6860 = vld [vmem:[#allocation3 + $0x610] sm:$0xff]
    %v6861 = vld [vmem:[#allocation3 + $0x620] sm:$0xff]
    %v6862 = vld [vmem:[#allocation3 + $0x630] sm:$0xff]
    %v6863 = vld [vmem:[#allocation3 + $0x640] sm:$0xff]
    %v6864 = vld [vmem:[#allocation3 + $0x650] ss:$0 sm:$0xff]
    %v6866 = vsel %vm330, %v6856, 0
    %v6869 = vsel %vm330, %v6857, 0
    %v6872 = vsel %vm330, %v6858, 0
    %v6875 = vsel %vm330, %v6859, 0
    %6877 = vmatprep.subr.mxu0 0.0
    %6878 = vmatpush1.msra.mxu0 0.0
    %6879 = vmatprep.subr.mxu0 0.0
    %6880 = vmatpush1.msra.mxu0 0.0
    %6881 = vmatprep.subr.mxu0 0.0
    %6882 = vmatpush1.msra.mxu0 0.0
    %6883 = vmatprep.subr.mxu0 0.0
    %6884 = vmatpush1.msra.mxu0 0.0
    %6885 = vmatprep.subr.mxu0 0.0
    %6886 = vmatpush1.msra.mxu0 0.0
    %6887 = vmatprep.subr.mxu0 0.0
    %6888 = vmatpush1.msra.mxu0 0.0
    %6889 = vmatprep.subr.mxu0 0.0
    %6890 = vmatpush1.msra.mxu0 0.0
    %6891 = vmatprep.subr.mxu0 0.0
    %6892 = vmatpush1.msra.mxu0 0.0
    %6893 = vmatprep.subr.mxu0 0.0
    %6894 = vmatpush1.msra.mxu0 0.0
    %6895 = vmatprep.subr.mxu0 0.0
    %6896 = vmatpush1.msra.mxu0 0.0
    %6897 = vmatprep.subr.mxu0 0.0
    %6898 = vmatpush1.msra.mxu0 0.0
    %6899 = vmatprep.subr.mxu0 0.0
    %6900 = vmatpush1.msra.mxu0 0.0
    %6901 = vmatprep.subr.mxu0 0.0
    %6902 = vmatpush1.msra.mxu0 %v6863
    %6903 = vmatprep.subr.mxu0 0.0
    %6904 = vmatpush1.msra.mxu0 %v6862
    %6905 = vmatprep.subr.mxu0 0.0
    %6906 = vmatpush1.msra.mxu0 %v6861
    %6907 = vmatprep.subr.mxu0 0.0
    %6908 = vmatpush1.msra.mxu0 %v6860
    %6909 = vmatprep.subr.mxu0 0.0
    %6910 = vmatpush2.msra.mxu0 0.0
    %6911 = vmatprep.subr.mxu0 0.0
    %6912 = vmatpush2.msra.mxu0 0.0
    %6913 = vmatprep.subr.mxu0 0.0
    %6914 = vmatpush2.msra.mxu0 0.0
    %6915 = vmatprep.subr.mxu0 0.0
    %6916 = vmatpush2.msra.mxu0 0.0
    %6917 = vmatprep.subr.mxu0 0.0
    %6918 = vmatpush2.msra.mxu0 0.0
    %6919 = vmatprep.subr.mxu0 0.0
    %6920 = vmatpush2.msra.mxu0 0.0
    %6921 = vmatprep.subr.mxu0 0.0
    %6922 = vmatpush2.msra.mxu0 0.0
    %6923 = vmatprep.subr.mxu0 0.0
    %6924 = vmatpush2.msra.mxu0 0.0
    %6925 = vmatprep.subr.mxu0 0.0
    %6926 = vmatpush2.msra.mxu0 0.0
    %6927 = vmatprep.subr.mxu0 0.0
    %6928 = vmatpush2.msra.mxu0 0.0
    %6929 = vmatprep.subr.mxu0 0.0
    %6930 = vmatpush2.msra.mxu0 0.0
    %6931 = vmatprep.subr.mxu0 0.0
    %6932 = vmatpush2.msra.mxu0 0.0
    %6933 = vmatprep.subr.mxu0 0.0
    %6934 = vmatpush2.msra.mxu0 0.0
    %6935 = vmatprep.subr.mxu0 0.0
    %6936 = vmatpush2.msra.mxu0 0.0
    %6937 = vmatprep.subr.mxu0 0.0
    %6938 = vmatpush2.msra.mxu0 0.0
    %6939 = vmatprep.subr.mxu0 0.0
    %6940 = vmatpush2.msra.mxu0 0.0
    %6941 = vmatprep.mubr.f32.mxu0 0.0
    %6942 = vmatmul.mubr.f32.gmra.mxu0 %v6866
    %v6943 = vpop.f32.mrf.mxu0
    %v6944 = vadd.f32 %v6864, %v6943
    %v6945 = vpop.f32.mrf.mxu0
    %6946 = vmatprep.mubr.f32.mxu0 0.0
    %6947 = vmatmul.mubr.f32.gmra.mxu0 %v6869
    %v6948 = vpop.f32.mrf.mxu0
    %v6949 = vadd.f32 %v6864, %v6948
    %v6950 = vpop.f32.mrf.mxu0
    %6951 = vmatprep.mubr.f32.mxu0 0.0
    %6952 = vmatmul.mubr.f32.gmra.mxu0 %v6872
    %v6953 = vpop.f32.mrf.mxu0
    %v6954 = vadd.f32 %v6864, %v6953
    %v6955 = vpop.f32.mrf.mxu0
    %6956 = vmatprep.mubr.f32.mxu0 0.0
    %6957 = vmatmul.mubr.f32.gmra.mxu0 %v6875
    %v6958 = vpop.f32.mrf.mxu0
    %v6959 = vadd.f32 %v6864, %v6958
    %v6960 = vpop.f32.mrf.mxu0
    %6961 = vdwg.mxu0
    %v6962 = vadd.f32 %v5542, %v6944
    %v6963 = vadd.f32 %v5543, %v6949
    %v6964 = vadd.f32 %v5544, %v6954
    %v6965 = vadd.f32 %v5545, %v6959
    %v6966 = vsel %vm330, %v6962, 0.0
    %6967 = vadd.xlane.f32.xlu0 %v6966
    %v6968 = vpop.xlane.xlu0 %6967
    %v6969 = vsel %vm330, %v6963, 0.0
    %6970 = vadd.xlane.f32.xlu0 %v6969
    %v6971 = vpop.xlane.xlu0 %6970
    %v6972 = vsel %vm330, %v6964, 0.0
    %6973 = vadd.xlane.f32.xlu0 %v6972
    %v6974 = vpop.xlane.xlu0 %6973
    %v6975 = vsel %vm330, %v6965, 0.0
    %6976 = vadd.xlane.f32.xlu0 %v6975
    %v6977 = vpop.xlane.xlu0 %6976
    %v6978 = vmul.f32 %v6968, %v1725
    %v6979 = vmul.f32 %v6971, %v1725
    %v6980 = vmul.f32 %v6974, %v1725
    %v6981 = vmul.f32 %v6977, %v1725
    %v6982 = vsub.f32 %v6962, %v6978
    %v6983 = vsub.f32 %v6963, %v6979
    %v6984 = vsub.f32 %v6964, %v6980
    %v6985 = vsub.f32 %v6965, %v6981
    %v6986 = vmul.f32 %v6982, %v6982
    %v6987 = vmul.f32 %v6983, %v6983
    %v6988 = vmul.f32 %v6984, %v6984
    %v6989 = vmul.f32 %v6985, %v6985
    %v6990 = vsel %vm330, %v6986, 0.0
    %6991 = vadd.xlane.f32.xlu0 %v6990
    %v6992 = vpop.xlane.xlu0 %6991
    %v6993 = vsel %vm330, %v6987, 0.0
    %6994 = vadd.xlane.f32.xlu0 %v6993
    %v6995 = vpop.xlane.xlu0 %6994
    %v6996 = vsel %vm330, %v6988, 0.0
    %6997 = vadd.xlane.f32.xlu0 %v6996
    %v6998 = vpop.xlane.xlu0 %6997
    %v6999 = vsel %vm330, %v6989, 0.0
    %7000 = vadd.xlane.f32.xlu0 %v6999
    %v7001 = vpop.xlane.xlu0 %7000
    %v7002 = vmul.f32 %v6992, %v1725
    %v7003 = vmul.f32 %v6995, %v1725
    %v7004 = vmul.f32 %v6998, %v1725
    %v7005 = vmul.f32 %v7001, %v1725
    %v7006 = vadd.f32 %v7002, 1e-05
    %v7007 = vadd.f32 %v7003, 1e-05
    %v7008 = vadd.f32 %v7004, 1e-05
    %v7009 = vadd.f32 %v7005, 1e-05
    %v7010 = vrsqrt.pop %v7006
    %v7011 = vrsqrt.pop %v7007
    %v7012 = vrsqrt.pop %v7008
    %v7013 = vrsqrt.pop %v7009
    %v7014 = vmul.f32 %v6982, %v7010
    %v7015 = vmul.f32 %v6983, %v7011
    %v7016 = vmul.f32 %v6984, %v7012
    %v7017 = vmul.f32 %v6985, %v7013
    %v7018 = vld [vmem:[#allocation3 + $0x760] ss:$0 sm:$0xff]
    %v7019 = vmul.f32 %v7014, %v7018
    %v7020 = vmul.f32 %v7015, %v7018
    %v7021 = vmul.f32 %v7016, %v7018
    %v7022 = vmul.f32 %v7017, %v7018
    %v7023 = vld [vmem:[#allocation3 + $0x770] ss:$0 sm:$0xff]
    %v7024 = vadd.f32 %v7019, %v7023
    %v7025 = vadd.f32 %v7020, %v7023
    %v7026 = vadd.f32 %v7021, %v7023
    %v7027 = vadd.f32 %v7022, %v7023
    %v7028 = vld [vmem:[#allocation3 + $0x660] sm:$0xff]
    %v7029 = vld [vmem:[#allocation3 + $0x670] sm:$0xff]
    %v7030 = vld [vmem:[#allocation3 + $0x680] sm:$0xff]
    %v7031 = vld [vmem:[#allocation3 + $0x690] sm:$0xff]
    %v7032 = vld [vmem:[#allocation3 + $0x6a0] ss:$0 sm:$0xff]
    %v7034 = vsel %vm330, %v7024, 0
    %v7037 = vsel %vm330, %v7025, 0
    %v7040 = vsel %vm330, %v7026, 0
    %v7043 = vsel %vm330, %v7027, 0
    %7045 = vmatprep.subr.mxu0 0.0
    %7046 = vmatpush1.msra.mxu0 0.0
    %7047 = vmatprep.subr.mxu0 0.0
    %7048 = vmatpush1.msra.mxu0 0.0
    %7049 = vmatprep.subr.mxu0 0.0
    %7050 = vmatpush1.msra.mxu0 0.0
    %7051 = vmatprep.subr.mxu0 0.0
    %7052 = vmatpush1.msra.mxu0 0.0
    %7053 = vmatprep.subr.mxu0 0.0
    %7054 = vmatpush1.msra.mxu0 0.0
    %7055 = vmatprep.subr.mxu0 0.0
    %7056 = vmatpush1.msra.mxu0 0.0
    %7057 = vmatprep.subr.mxu0 0.0
    %7058 = vmatpush1.msra.mxu0 0.0
    %7059 = vmatprep.subr.mxu0 0.0
    %7060 = vmatpush1.msra.mxu0 0.0
    %7061 = vmatprep.subr.mxu0 0.0
    %7062 = vmatpush1.msra.mxu0 0.0
    %7063 = vmatprep.subr.mxu0 0.0
    %7064 = vmatpush1.msra.mxu0 0.0
    %7065 = vmatprep.subr.mxu0 0.0
    %7066 = vmatpush1.msra.mxu0 0.0
    %7067 = vmatprep.subr.mxu0 0.0
    %7068 = vmatpush1.msra.mxu0 0.0
    %7069 = vmatprep.subr.mxu0 0.0
    %7070 = vmatpush1.msra.mxu0 %v7031
    %7071 = vmatprep.subr.mxu0 0.0
    %7072 = vmatpush1.msra.mxu0 %v7030
    %7073 = vmatprep.subr.mxu0 0.0
    %7074 = vmatpush1.msra.mxu0 %v7029
    %7075 = vmatprep.subr.mxu0 0.0
    %7076 = vmatpush1.msra.mxu0 %v7028
    %7077 = vmatprep.subr.mxu0 0.0
    %7078 = vmatpush2.msra.mxu0 0.0
    %7079 = vmatprep.subr.mxu0 0.0
    %7080 = vmatpush2.msra.mxu0 0.0
    %7081 = vmatprep.subr.mxu0 0.0
    %7082 = vmatpush2.msra.mxu0 0.0
    %7083 = vmatprep.subr.mxu0 0.0
    %7084 = vmatpush2.msra.mxu0 0.0
    %7085 = vmatprep.subr.mxu0 0.0
    %7086 = vmatpush2.msra.mxu0 0.0
    %7087 = vmatprep.subr.mxu0 0.0
    %7088 = vmatpush2.msra.mxu0 0.0
    %7089 = vmatprep.subr.mxu0 0.0
    %7090 = vmatpush2.msra.mxu0 0.0
    %7091 = vmatprep.subr.mxu0 0.0
    %7092 = vmatpush2.msra.mxu0 0.0
    %7093 = vmatprep.subr.mxu0 0.0
    %7094 = vmatpush2.msra.mxu0 0.0
    %7095 = vmatprep.subr.mxu0 0.0
    %7096 = vmatpush2.msra.mxu0 0.0
    %7097 = vmatprep.subr.mxu0 0.0
    %7098 = vmatpush2.msra.mxu0 0.0
    %7099 = vmatprep.subr.mxu0 0.0
    %7100 = vmatpush2.msra.mxu0 0.0
    %7101 = vmatprep.subr.mxu0 0.0
    %7102 = vmatpush2.msra.mxu0 0.0
    %7103 = vmatprep.subr.mxu0 0.0
    %7104 = vmatpush2.msra.mxu0 0.0
    %7105 = vmatprep.subr.mxu0 0.0
    %7106 = vmatpush2.msra.mxu0 0.0
    %7107 = vmatprep.subr.mxu0 0.0
    %7108 = vmatpush2.msra.mxu0 0.0
    %7109 = vmatprep.mubr.f32.mxu0 0.0
    %7110 = vmatmul.mubr.f32.gmra.mxu0 %v7034
    %v7111 = vpop.f32.mrf.mxu0
    %v7112 = vadd.f32 %v7032, %v7111
    %v7113 = vpop.f32.mrf.mxu0
    %7114 = vmatprep.mubr.f32.mxu0 0.0
    %7115 = vmatmul.mubr.f32.gmra.mxu0 %v7037
    %v7116 = vpop.f32.mrf.mxu0
    %v7117 = vadd.f32 %v7032, %v7116
    %v7118 = vpop.f32.mrf.mxu0
    %7119 = vmatprep.mubr.f32.mxu0 0.0
    %7120 = vmatmul.mubr.f32.gmra.mxu0 %v7040
    %v7121 = vpop.f32.mrf.mxu0
    %v7122 = vadd.f32 %v7032, %v7121
    %v7123 = vpop.f32.mrf.mxu0
    %7124 = vmatprep.mubr.f32.mxu0 0.0
    %7125 = vmatmul.mubr.f32.gmra.mxu0 %v7043
    %v7126 = vpop.f32.mrf.mxu0
    %v7127 = vadd.f32 %v7032, %v7126
    %v7128 = vpop.f32.mrf.mxu0
    %7129 = vdwg.mxu0
    %v7130 = vmul.f32 %v7112, 0.5
    %v7131 = vmul.f32 %v7117, 0.5
    %v7132 = vmul.f32 %v7122, 0.5
    %v7133 = vmul.f32 %v7127, 0.5
    %v7134 = vmul.f32 %v7112, 0.044715
    %v7135 = vmul.f32 %v7117, 0.044715
    %v7136 = vmul.f32 %v7122, 0.044715
    %v7137 = vmul.f32 %v7127, 0.044715
    %v7138 = vmul.f32 %v7134, %v7112
    %v7139 = vmul.f32 %v7135, %v7117
    %v7140 = vmul.f32 %v7136, %v7122
    %v7141 = vmul.f32 %v7137, %v7127
    %v7142 = vmul.f32 %v7138, %v7112
    %v7143 = vmul.f32 %v7139, %v7117
    %v7144 = vmul.f32 %v7140, %v7122
    %v7145 = vmul.f32 %v7141, %v7127
    %v7146 = vadd.f32 %v7112, %v7142
    %v7147 = vadd.f32 %v7117, %v7143
    %v7148 = vadd.f32 %v7122, %v7144
    %v7149 = vadd.f32 %v7127, %v7145
    %v7150 = vmul.f32 %v7146, 0.7978846
    %v7151 = vmul.f32 %v7147, 0.7978846
    %v7152 = vmul.f32 %v7148, 0.7978846
    %v7153 = vmul.f32 %v7149, 0.7978846
    %v7154 = vtanh.pop %v7150
    %v7155 = vtanh.pop %v7151
    %v7156 = vtanh.pop %v7152
    %v7157 = vtanh.pop %v7153
    %v7158 = vadd.f32 %v7154, 1.0
    %v7159 = vadd.f32 %v7155, 1.0
    %v7160 = vadd.f32 %v7156, 1.0
    %v7161 = vadd.f32 %v7157, 1.0
    %v7162 = vmul.f32 %v7130, %v7158
    %v7163 = vmul.f32 %v7131, %v7159
    %v7164 = vmul.f32 %v7132, %v7160
    %v7165 = vmul.f32 %v7133, %v7161
    %v7166 = vld [vmem:[#allocation3 + $0x6b0] sm:$0xff]
    %v7167 = vld [vmem:[#allocation3 + $0x6c0] sm:$0xff]
    %v7168 = vld [vmem:[#allocation3 + $0x6d0] sm:$0xff]
    %v7169 = vld [vmem:[#allocation3 + $0x6e0] sm:$0xff]
    %v7170 = vld [vmem:[#allocation3 + $0x6f0] sm:$0xff]
    %v7171 = vld [vmem:[#allocation3 + $0x700] sm:$0xff]
    %v7172 = vld [vmem:[#allocation3 + $0x710] sm:$0xff]
    %v7173 = vld [vmem:[#allocation3 + $0x720] sm:$0xff]
    %v7174 = vld [vmem:[#allocation3 + $0x730] ss:$0 sm:$0xff]
    %v7176 = vsel %vm1923, %v7162, 0
    %v7179 = vsel %vm1923, %v7163, 0
    %v7182 = vsel %vm1923, %v7164, 0
    %v7185 = vsel %vm1923, %v7165, 0
    %7187 = vmatprep.subr.mxu0 0.0
    %7188 = vmatpush1.msra.mxu0 0.0
    %7189 = vmatprep.subr.mxu0 0.0
    %7190 = vmatpush1.msra.mxu0 0.0
    %7191 = vmatprep.subr.mxu0 0.0
    %7192 = vmatpush1.msra.mxu0 0.0
    %7193 = vmatprep.subr.mxu0 0.0
    %7194 = vmatpush1.msra.mxu0 0.0
    %7195 = vmatprep.subr.mxu0 0.0
    %7196 = vmatpush1.msra.mxu0 0.0
    %7197 = vmatprep.subr.mxu0 0.0
    %7198 = vmatpush1.msra.mxu0 0.0
    %7199 = vmatprep.subr.mxu0 0.0
    %7200 = vmatpush1.msra.mxu0 0.0
    %7201 = vmatprep.subr.mxu0 0.0
    %7202 = vmatpush1.msra.mxu0 0.0
    %7203 = vmatprep.subr.mxu0 0.0
    %7204 = vmatpush1.msra.mxu0 %v7173
    %7205 = vmatprep.subr.mxu0 0.0
    %7206 = vmatpush1.msra.mxu0 %v7172
    %7207 = vmatprep.subr.mxu0 0.0
    %7208 = vmatpush1.msra.mxu0 %v7171
    %7209 = vmatprep.subr.mxu0 0.0
    %7210 = vmatpush1.msra.mxu0 %v7170
    %7211 = vmatprep.subr.mxu0 0.0
    %7212 = vmatpush1.msra.mxu0 %v7169
    %7213 = vmatprep.subr.mxu0 0.0
    %7214 = vmatpush1.msra.mxu0 %v7168
    %7215 = vmatprep.subr.mxu0 0.0
    %7216 = vmatpush1.msra.mxu0 %v7167
    %7217 = vmatprep.subr.mxu0 0.0
    %7218 = vmatpush1.msra.mxu0 %v7166
    %7219 = vmatprep.subr.mxu0 0.0
    %7220 = vmatpush2.msra.mxu0 0.0
    %7221 = vmatprep.subr.mxu0 0.0
    %7222 = vmatpush2.msra.mxu0 0.0
    %7223 = vmatprep.subr.mxu0 0.0
    %7224 = vmatpush2.msra.mxu0 0.0
    %7225 = vmatprep.subr.mxu0 0.0
    %7226 = vmatpush2.msra.mxu0 0.0
    %7227 = vmatprep.subr.mxu0 0.0
    %7228 = vmatpush2.msra.mxu0 0.0
    %7229 = vmatprep.subr.mxu0 0.0
    %7230 = vmatpush2.msra.mxu0 0.0
    %7231 = vmatprep.subr.mxu0 0.0
    %7232 = vmatpush2.msra.mxu0 0.0
    %7233 = vmatprep.subr.mxu0 0.0
    %7234 = vmatpush2.msra.mxu0 0.0
    %7235 = vmatprep.subr.mxu0 0.0
    %7236 = vmatpush2.msra.mxu0 0.0
    %7237 = vmatprep.subr.mxu0 0.0
    %7238 = vmatpush2.msra.mxu0 0.0
    %7239 = vmatprep.subr.mxu0 0.0
    %7240 = vmatpush2.msra.mxu0 0.0
    %7241 = vmatprep.subr.mxu0 0.0
    %7242 = vmatpush2.msra.mxu0 0.0
    %7243 = vmatprep.subr.mxu0 0.0
    %7244 = vmatpush2.msra.mxu0 0.0
    %7245 = vmatprep.subr.mxu0 0.0
    %7246 = vmatpush2.msra.mxu0 0.0
    %7247 = vmatprep.subr.mxu0 0.0
    %7248 = vmatpush2.msra.mxu0 0.0
    %7249 = vmatprep.subr.mxu0 0.0
    %7250 = vmatpush2.msra.mxu0 0.0
    %7251 = vmatprep.mubr.f32.mxu0 0.0
    %7252 = vmatmul.mubr.f32.gmra.mxu0 %v7176
    %v7253 = vpop.f32.mrf.mxu0
    %v7254 = vpop.f32.mrf.mxu0
    %7255 = vmatprep.mubr.f32.mxu0 0.0
    %7256 = vmatmul.mubr.f32.gmra.mxu0 %v7179
    %v7257 = vpop.f32.mrf.mxu0
    %v7258 = vadd.f32 %v7174, %v7257
    %v7259 = vpop.f32.mrf.mxu0
    %7260 = vmatprep.mubr.f32.mxu0 0.0
    %7261 = vmatmul.mubr.f32.gmra.mxu0 %v7182
    %v7262 = vpop.f32.mrf.mxu0
    %v7263 = vpop.f32.mrf.mxu0
    %7264 = vmatprep.mubr.f32.mxu0 0.0
    %7265 = vmatmul.mubr.f32.gmra.mxu0 %v7185
    %v7266 = vpop.f32.mrf.mxu0
    %v7267 = vadd.f32 %v7174, %v7266
    %v7268 = vpop.f32.mrf.mxu0
    %7269 = vdwg.mxu0
    %v7270 = vadd.f32 %v7025, %v7258
    %v7271 = vadd.f32 %v7027, %v7267
    %v7272 = vsel %vm330, %v7270, 0.0
    %7273 = vadd.xlane.f32.xlu0 %v7272
    %v7274 = vpop.xlane.xlu0 %7273
    %v7275 = vsel %vm330, %v7271, 0.0
    %7276 = vadd.xlane.f32.xlu0 %v7275
    %v7277 = vpop.xlane.xlu0 %7276
    %v7278 = vmul.f32 %v7274, %v1725
    %v7279 = vmul.f32 %v7277, %v1725
    %v7280 = vsub.f32 %v7270, %v7278
    %v7281 = vsub.f32 %v7271, %v7279
    %v7282 = vmul.f32 %v7280, %v7280
    %v7283 = vmul.f32 %v7281, %v7281
    %v7284 = vsel %vm330, %v7282, 0.0
    %7285 = vadd.xlane.f32.xlu0 %v7284
    %v7286 = vpop.xlane.xlu0 %7285
    %v7287 = vsel %vm330, %v7283, 0.0
    %7288 = vadd.xlane.f32.xlu0 %v7287
    %v7289 = vpop.xlane.xlu0 %7288
    %v7290 = vmul.f32 %v7286, %v1725
    %v7291 = vmul.f32 %v7289, %v1725
    %v7292 = vadd.f32 %v7290, 1e-05
    %v7293 = vadd.f32 %v7291, 1e-05
    %v7294 = vrsqrt.pop %v7292
    %v7295 = vrsqrt.pop %v7293
    %v7296 = vmul.f32 %v7280, %v7294
    %v7297 = vmul.f32 %v7281, %v7295
    %v7298 = vld [vmem:[#allocation3 + $0x780] ss:$0 sm:$0xff]
    %v7299 = vmul.f32 %v7296, %v7298
    %v7300 = vmul.f32 %v7297, %v7298
    %v7301 = vld [vmem:[#allocation3 + $0x790] ss:$0 sm:$0xff]
    %v7302 = vadd.f32 %v7299, %v7301
    %v7303 = vadd.f32 %v7300, %v7301
    %v7304 = vsel %vm330, %v7302, 0.0
    %7305 = vadd.xlane.f32.xlu0 %v7304
    %v7306 = vpop.xlane.xlu0 %7305
    %v7307 = vsel %vm330, %v7303, 0.0
    %7308 = vadd.xlane.f32.xlu0 %v7307
    %v7309 = vpop.xlane.xlu0 %7308
    %v7310 = vmul.f32 %v7306, %v1725
    %v7311 = vmul.f32 %v7309, %v1725
    %v7312 = vsub.f32 %v7302, %v7310
    %v7313 = vsub.f32 %v7303, %v7311
    %v7314 = vmul.f32 %v7312, %v7312
    %v7315 = vmul.f32 %v7313, %v7313
    %v7316 = vsel %vm330, %v7314, 0.0
    %7317 = vadd.xlane.f32.xlu0 %v7316
    %v7318 = vpop.xlane.xlu0 %7317
    %v7319 = vsel %vm330, %v7315, 0.0
    %7320 = vadd.xlane.f32.xlu0 %v7319
    %v7321 = vpop.xlane.xlu0 %7320
    %v7322 = vmul.f32 %v7318, %v1725
    %v7323 = vmul.f32 %v7321, %v1725
    %v7324 = vadd.f32 %v7322, 1e-05
    %v7325 = vadd.f32 %v7323, 1e-05
    %v7326 = vrsqrt.pop %v7324
    %v7327 = vrsqrt.pop %v7325
    %v7328 = vmul.f32 %v7312, %v7326
    %v7329 = vmul.f32 %v7313, %v7327
    %v7330 = vld [vmem:[#allocation3 + $0x7a0] ss:$0 sm:$0xff]
    %v7331 = vmul.f32 %v7328, %v7330
    %v7332 = vmul.f32 %v7329, %v7330
    %v7333 = vld [vmem:[#allocation3 + $0x7b0] ss:$0 sm:$0xff]
    %v7334 = vadd.f32 %v7331, %v7333
    %v7335 = vadd.f32 %v7332, %v7333
    %v7336 = vld [vmem:[#allocation3 + $0x7c0] sm:$0xff]
    %v7337 = vld [vmem:[#allocation3 + $0x7c8] sm:$0xff]
    %v7338 = vld [vmem:[#allocation3 + $0x7d0] sm:$0xff]
    %v7339 = vld [vmem:[#allocation3 + $0x7d8] sm:$0xff]
    %v7340 = vld [vmem:[#allocation3 + $0x7e0] sm:$0xff]
    %v7341 = vld [vmem:[#allocation3 + $0x7e8] sm:$0xff]
    %v7342 = vld [vmem:[#allocation3 + $0x7f0] sm:$0xff]
    %v7343 = vld [vmem:[#allocation3 + $0x7f8] sm:$0xff]
    %s7344 = scalar_lea.vmem [#allocation3], 2048
    %v7345 = vld [vmem:[%s7344] ss:$8 sm:$0x3]
    %v7347 = vlaneseq
    %v7348 = vshrl.u32 %v7347, 7
    %v7349 = vsub.s32 0, %v7348
    %v7350 = vrot.slane %v7345, %v7349
    %v7351 = vlaneseq
    %v7352 = vshrl.u32 %v7351, 7
    %v7353 = vsub.s32 1, %v7352
    %v7354 = vrot.slane %v7345, %v7353
    %v7358 = vsel %vm330, %v7334, 0
    %v7361 = vsel %vm330, %v7335, 0
    %7363 = vmatprep.subr.mxu0 0.0
    %7364 = vmatpush1.msra.mxu0 0.0
    %7365 = vmatprep.subr.mxu0 0.0
    %7366 = vmatpush1.msra.mxu0 0.0
    %7367 = vmatprep.subr.mxu0 0.0
    %7368 = vmatpush1.msra.mxu0 0.0
    %7369 = vmatprep.subr.mxu0 0.0
    %7370 = vmatpush1.msra.mxu0 0.0
    %7371 = vmatprep.subr.mxu0 0.0
    %7372 = vmatpush1.msra.mxu0 0.0
    %7373 = vmatprep.subr.mxu0 0.0
    %7374 = vmatpush1.msra.mxu0 0.0
    %7375 = vmatprep.subr.mxu0 0.0
    %7376 = vmatpush1.msra.mxu0 0.0
    %7377 = vmatprep.subr.mxu0 0.0
    %7378 = vmatpush1.msra.mxu0 0.0
    %7379 = vmatprep.subr.mxu0 0.0
    %7380 = vmatpush1.msra.mxu0 0.0
    %7381 = vmatprep.subr.mxu0 0.0
    %7382 = vmatpush1.msra.mxu0 0.0
    %7383 = vmatprep.subr.mxu0 0.0
    %7384 = vmatpush1.msra.mxu0 0.0
    %7385 = vmatprep.subr.mxu0 0.0
    %7386 = vmatpush1.msra.mxu0 0.0
    %7387 = vmatprep.subr.mxu0 %v7343
    %7388 = vmatpush1.msra.mxu0 %v7342
    %7389 = vmatprep.subr.mxu0 %v7341
    %7390 = vmatpush1.msra.mxu0 %v7340
    %7391 = vmatprep.subr.mxu0 %v7339
    %7392 = vmatpush1.msra.mxu0 %v7338
    %7393 = vmatprep.subr.mxu0 %v7337
    %7394 = vmatpush1.msra.mxu0 %v7336
    %7395 = vmatprep.subr.mxu0 0.0
    %7396 = vmatpush2.msra.mxu0 0.0
    %7397 = vmatprep.subr.mxu0 0.0
    %7398 = vmatpush2.msra.mxu0 0.0
    %7399 = vmatprep.subr.mxu0 0.0
    %7400 = vmatpush2.msra.mxu0 0.0
    %7401 = vmatprep.subr.mxu0 0.0
    %7402 = vmatpush2.msra.mxu0 0.0
    %7403 = vmatprep.subr.mxu0 0.0
    %7404 = vmatpush2.msra.mxu0 0.0
    %7405 = vmatprep.subr.mxu0 0.0
    %7406 = vmatpush2.msra.mxu0 0.0
    %7407 = vmatprep.subr.mxu0 0.0
    %7408 = vmatpush2.msra.mxu0 0.0
    %7409 = vmatprep.subr.mxu0 0.0
    %7410 = vmatpush2.msra.mxu0 0.0
    %7411 = vmatprep.subr.mxu0 0.0
    %7412 = vmatpush2.msra.mxu0 0.0
    %7413 = vmatprep.subr.mxu0 0.0
    %7414 = vmatpush2.msra.mxu0 0.0
    %7415 = vmatprep.subr.mxu0 0.0
    %7416 = vmatpush2.msra.mxu0 0.0
    %7417 = vmatprep.subr.mxu0 0.0
    %7418 = vmatpush2.msra.mxu0 0.0
    %7419 = vmatprep.subr.mxu0 0.0
    %7420 = vmatpush2.msra.mxu0 0.0
    %7421 = vmatprep.subr.mxu0 0.0
    %7422 = vmatpush2.msra.mxu0 0.0
    %7423 = vmatprep.subr.mxu0 0.0
    %7424 = vmatpush2.msra.mxu0 0.0
    %7425 = vmatprep.subr.mxu0 0.0
    %7426 = vmatpush2.msra.mxu0 0.0
    %7427 = vmatprep.mubr.f32.mxu0 0.0
    %7428 = vmatmul.mubr.f32.gmra.mxu0 %v7358
    %v7429 = vpop.f32.mrf.mxu0
    %v7430 = vadd.f32 %v7350, %v7429
    %v7431 = vpop.f32.mrf.mxu0
    %v7432 = vadd.f32 %v7354, %v7431
    %7433 = vmatprep.mubr.f32.mxu0 0.0
    %7434 = vmatmul.mubr.f32.gmra.mxu0 %v7361
    %v7435 = vpop.f32.mrf.mxu0
    %v7436 = vadd.f32 %v7350, %v7435
    %v7437 = vpop.f32.mrf.mxu0
    %v7438 = vadd.f32 %v7354, %v7437
    %7439 = vdwg.mxu0
    %7440 = vst [vmem:[#allocation6] sm:$0xff] %v7430
    %7441 = vst [vmem:[#allocation6 + $0x8] sm:$0xff] %v7432
    %7442 = vst [vmem:[#allocation6 + $0x10] sm:$0xff] %v7436
    %7443 = vst [vmem:[#allocation6 + $0x18] sm:$0xff] %v7438
    // Predicated region
    $region26: #{forward.1} parent=1 // pred_check
      _
    $region27: #{forward.1} parent=1 // pred_check_branch
      %7445 = sbr.rel (0) target = $region29
    $region28: #{forward.1} parent=1 // pred_region
      %s7447 = ssub.s32 512, 512
      %7448 = vsyncadd [#allocation5], %s7447
      %s7449 = sshll.u32 [#allocation6], 4
      %s7450 = int_to_ptr.vmem [resolvable:$true] %s7449
      %7455 = dma.vmem_to_hbm [thread:$0]  %s7450, 512, %s5, [#allocation5], 256, 256, 16
    $region29: #{forward.1} parent=1 // pred_fallthru
      _
    // Predicated region
    $region30: #{forward.1} parent=1 // pred_check
      _
    $region31: #{forward.1} parent=1 // pred_check_branch
      %7457 = sbr.rel (0) target = $region33
    $region32: #{forward.1} parent=1 // pred_region
      %7458 = dma.done [#allocation5], 512
    $region33: #{forward.1} parent=1 // pred_fallthru
      _
    %7459 = vsyncpa [#allocation4], 1
    %7460 = vsyncpa [#allocation5], 1

</llo_original>
